<compile_context>
chip_gen: v7x
topology: tpu7x:2x2x1
jax: 0.10.0
libtpu: 0.0.40
codegen_flags: <defaults>
</compile_context>

<pallas_src>
import functools

import jax
import jax.numpy as jnp
from jax.experimental import pallas as pl
from jax.experimental.pallas import tpu as pltpu


_CPAD = 8       # input / output channels padded to 8 (real channel is 0)
_ROW0 = 1       # first interior row inside the halo scratch (dim0 = pages)
_COL0 = 8       # first interior column (sublane-aligned -> aligned stores)


# ---------------------------------------------------------------------------
# Fused Pallas kernel: all 20 conv layers + ReLUs + residual add.
# ---------------------------------------------------------------------------
def _vdsr_kernel(x_ref, w0_ref, b0_ref, wmid_ref, bmid_ref, wl_ref, bl_ref,
                 o_ref, xpad_ref, act_a_ref, act_b_ref, *, H, W, C, n_mid):
    HW = H * W

    def conv_acc(src_ref, w_ref, w_base, cin, cout):
        """3x3 'same' conv on a zero-haloed scratch.

        src_ref : (H+2, W+2*_COL0, cin), interior at [_ROW0:, _COL0:], zero halo
        w_ref   : (n*3, 3*cin, cout); row (w_base + dy) = kernel row dy,
                  reshaped over (dx, cin) -> 3*cin.
        returns : (H*W, cout) f32 accumulator (no bias / activation).
        """
        acc = jnp.zeros((HW, cout), dtype=jnp.float32)
        for dy in range(3):                      # static unroll over kernel rows
            parts = [
                src_ref[dy:dy + H, _COL0 - 1 + dx:_COL0 - 1 + dx + W, :]
                .reshape(HW, cin)
                for dx in range(3)
            ]
            patch = jnp.concatenate(parts, axis=-1)          # (HW, 3*cin)
            acc = acc + jnp.dot(patch, w_ref[w_base + dy],
                                preferred_element_type=jnp.float32)
        return acc

    # ---- zero the halo scratch (borders must read as 0 for 'same' padding) ----
    xpad_ref[...] = jnp.zeros_like(xpad_ref)
    act_a_ref[...] = jnp.zeros_like(act_a_ref)
    act_b_ref[...] = jnp.zeros_like(act_b_ref)

    # ---- layer 0: _CPAD -> C, ReLU ----
    xpad_ref[_ROW0:_ROW0 + H, _COL0:_COL0 + W, :] = x_ref[0]
    y = conv_acc(xpad_ref, w0_ref, 0, _CPAD, C) + b0_ref[...]
    y = jnp.maximum(y, 0.0)
    act_a_ref[_ROW0:_ROW0 + H, _COL0:_COL0 + W, :] = y.reshape(H, W, C)

    # ---- interior layers: two per iteration (A -> B -> A), all VMEM-resident ----
    def pair(i, carry):
        ya = conv_acc(act_a_ref, wmid_ref, 6 * i, C, C) + bmid_ref[2 * i]
        ya = jnp.maximum(ya, 0.0)
        act_b_ref[_ROW0:_ROW0 + H, _COL0:_COL0 + W, :] = ya.reshape(H, W, C)

        yb = conv_acc(act_b_ref, wmid_ref, 6 * i + 3, C, C) + bmid_ref[2 * i + 1]
        yb = jnp.maximum(yb, 0.0)
        act_a_ref[_ROW0:_ROW0 + H, _COL0:_COL0 + W, :] = yb.reshape(H, W, C)
        return carry

    jax.lax.fori_loop(0, n_mid // 2, pair, 0)

    # ---- last layer: C -> _CPAD (channel 0 real), no ReLU, fused residual ----
    yl = conv_acc(act_a_ref, wl_ref, 0, C, _CPAD) + bl_ref[...]
    out = yl + x_ref[0].reshape(HW, _CPAD)       # residual on the padded input
    o_ref[0] = out.reshape(H, W, _CPAD).astype(o_ref.dtype)


# ---------------------------------------------------------------------------
# Wrapper: one pallas_call for the whole network, grid over batch.
# ---------------------------------------------------------------------------
def vdsr_pallas(x_nchw, weights, biases):
    """weights[i]: (3, 3, Cin, Cout) HWIO;  biases[i]: (Cout,)."""
    B, in_nc, H, W = x_nchw.shape
    C = weights[0].shape[-1]
    out_nc = weights[-1].shape[-1]
    n_mid = len(weights) - 2
    assert n_mid % 2 == 0, "ping-pong scheme expects an even interior layer count"

    x_nhwc = jnp.transpose(x_nchw, (0, 2, 3, 1)).astype(jnp.float32)
    x_p = jnp.pad(x_nhwc, ((0, 0), (0, 0), (0, 0), (0, _CPAD - in_nc)))

    # layer 0: pad Cin to _CPAD, regroup (dy, dx, cin, C) -> (3, 3*_CPAD, C)
    w0 = jnp.pad(weights[0], ((0, 0), (0, 0), (0, _CPAD - in_nc), (0, 0)))
    w0 = w0.reshape(3, 3 * _CPAD, C)
    b0 = biases[0].reshape(1, C)

    # interior layers stacked: (n_mid, 3, 3, C, C) -> (n_mid*3, 3*C, C)
    wmid = jnp.stack(weights[1:-1], axis=0).reshape(n_mid * 3, 3 * C, C)
    bmid = jnp.stack(biases[1:-1], axis=0).reshape(n_mid, 1, C)

    # last layer: pad Cout to _CPAD, regroup -> (3, 3*C, _CPAD)
    wl = jnp.pad(weights[-1], ((0, 0), (0, 0), (0, 0), (0, _CPAD - out_nc)))
    wl = wl.reshape(3, 3 * C, _CPAD)
    bl = jnp.pad(biases[-1], ((0, _CPAD - out_nc),)).reshape(1, _CPAD)

    kernel = functools.partial(_vdsr_kernel, H=H, W=W, C=C, n_mid=n_mid)
    wbuf = W + 2 * _COL0     # haloed scratch width (interior at [_COL0:_COL0+W])

    out = pl.pallas_call(
        kernel,
        out_shape=jax.ShapeDtypeStruct((B, H, W, _CPAD), jnp.float32),
        grid=(B,),
        in_specs=[
            pl.BlockSpec((1, H, W, _CPAD), lambda i: (i, 0, 0, 0)),   # x (padded)
            pl.BlockSpec((3, 3 * _CPAD, C), lambda i: (0, 0, 0)),     # w0
            pl.BlockSpec((1, C), lambda i: (0, 0)),                   # b0
            pl.BlockSpec((n_mid * 3, 3 * C, C), lambda i: (0, 0, 0)), # wmid
            pl.BlockSpec((n_mid, 1, C), lambda i: (0, 0, 0)),         # bmid
            pl.BlockSpec((3, 3 * C, _CPAD), lambda i: (0, 0, 0)),     # w_last
            pl.BlockSpec((1, _CPAD), lambda i: (0, 0)),               # b_last
        ],
        out_specs=pl.BlockSpec((1, H, W, _CPAD), lambda i: (i, 0, 0, 0)),
        scratch_shapes=[
            pltpu.VMEM((H + 2, wbuf, _CPAD), jnp.float32),   # padded input image
            pltpu.VMEM((H + 2, wbuf, C), jnp.float32),       # activation ping
            pltpu.VMEM((H + 2, wbuf, C), jnp.float32),       # activation pong
        ],
        compiler_params=pltpu.CompilerParams(
            dimension_semantics=("parallel",),                # 1 image / core on v7x
            vmem_limit_bytes=32 * 1024 * 1024),
    )(x_p, w0, b0, wmid, bmid, wl, bl)

    return jnp.transpose(out[..., :out_nc], (0, 3, 1, 2))    # back to NCHW


# ---------------------------------------------------------------------------
# Pure-JAX reference
# ---------------------------------------------------------------------------
def vdsr_ref(x_nchw, weights, biases):
    x_nhwc = jnp.transpose(x_nchw, (0, 2, 3, 1)).astype(jnp.float32)
    y = x_nhwc
    for i, (w, b) in enumerate(zip(weights, biases)):
        y = jax.lax.conv_general_dilated(
            y, w, window_strides=(1, 1), padding="SAME",
            dimension_numbers=("NHWC", "HWIO", "NHWC"),
            precision=jax.lax.Precision.HIGHEST) + b
        if i < len(weights) - 1:
            y = jnp.maximum(y, 0.0)
    out = x_nhwc + y
    return jnp.transpose(out, (0, 3, 1, 2))


# ---------------------------------------------------------------------------
# Main
# ---------------------------------------------------------------------------
if __name__ == "__main__":
    in_nc, nc, out_nc, nlayers = 1, 64, 1, 20
    B, H, W = 2, 16, 16

    key = jax.random.PRNGKey(0)
    layer_io = [(in_nc, nc)] + [(nc, nc)] * (nlayers - 2) + [(nc, out_nc)]

    weights, biases = [], []
    for (ci, co) in layer_io:
        key, kw, kb = jax.random.split(key, 3)
        fan_in = 9 * ci
        w = jax.random.normal(kw, (3, 3, ci, co), jnp.float32) * jnp.sqrt(2.0 / fan_in)
        b = jax.random.normal(kb, (co,), jnp.float32) * 0.01
        weights.append(w)
        biases.append(b)

    key, kx = jax.random.split(key)
    x = jax.random.normal(kx, (B, in_nc, H, W), jnp.float32)   # NCHW, like PyTorch

    out = jax.block_until_ready(vdsr_pallas(x, weights, biases))
    ref = jax.block_until_ready(vdsr_ref(x, weights, biases))

    assert out.shape == (B, in_nc, H, W), out.shape
    if not jnp.allclose(out, ref, rtol=1e-2, atol=1e-2):
        raise AssertionError(
            f"mismatch vs reference, max abs diff = {float(jnp.max(jnp.abs(out - ref)))}")

    print("KERNEL_OK")
</pallas_src>

<mosaic_0001>
module attributes {stable_mosaic.version = 11 : i64} {
  func.func @_vdsr_kernel(%arg0: i32, %arg1: memref<1x16x16x8xf32, #tpu.memory_space<vmem>>, %arg2: memref<3x24x64xf32, #tpu.memory_space<vmem>>, %arg3: memref<1x64xf32, #tpu.memory_space<vmem>>, %arg4: memref<54x192x64xf32, #tpu.memory_space<vmem>>, %arg5: memref<18x1x64xf32, #tpu.memory_space<vmem>>, %arg6: memref<3x192x8xf32, #tpu.memory_space<vmem>>, %arg7: memref<1x8xf32, #tpu.memory_space<vmem>>, %arg8: memref<1x16x16x8xf32, #tpu.memory_space<vmem>>, %arg9: memref<18x32x8xf32, #tpu.memory_space<vmem>>, %arg10: memref<18x32x64xf32, #tpu.memory_space<vmem>>, %arg11: memref<18x32x64xf32, #tpu.memory_space<vmem>>) attributes {dimension_semantics = [#tpu.dimension_semantics<parallel>], iteration_bounds = array<i64: 2>, scalar_prefetch = 0 : i64, scratch_operands = 3 : i64, tpu.core_type = #tpu.core_type<tc>, window_params = [{transform_indices = @transform_0, window_bounds = array<i64: 1, 16, 16, 8>}, {pipeline_mode = #tpu.pipeline_mode<synchronous>, transform_indices = @transform_1, window_bounds = array<i64: 3, 24, 64>}, {pipeline_mode = #tpu.pipeline_mode<synchronous>, transform_indices = @transform_2, window_bounds = array<i64: 1, 64>}, {pipeline_mode = #tpu.pipeline_mode<synchronous>, transform_indices = @transform_3, window_bounds = array<i64: 54, 192, 64>}, {pipeline_mode = #tpu.pipeline_mode<synchronous>, transform_indices = @transform_4, window_bounds = array<i64: 18, 1, 64>}, {pipeline_mode = #tpu.pipeline_mode<synchronous>, transform_indices = @transform_5, window_bounds = array<i64: 3, 192, 8>}, {pipeline_mode = #tpu.pipeline_mode<synchronous>, transform_indices = @transform_6, window_bounds = array<i64: 1, 8>}, {transform_indices = @transform_7, window_bounds = array<i64: 1, 16, 16, 8>}]} {
    %cst = arith.constant 0.000000e+00 : f32
    %0 = vector.broadcast %cst : f32 to vector<18x32x8xf32>
    %c0 = arith.constant 0 : index
    %c0_0 = arith.constant 0 : index
    %c0_1 = arith.constant 0 : index
    %1 = vector.load %arg9[%c0, %c0_0, %c0_1] : memref<18x32x8xf32, #tpu.memory_space<vmem>>, vector<18x32x8xf32>
    tpu.vector_store %arg9[%c0, %c0_0, %c0_1], %0 {strides = array<i32>} : memref<18x32x8xf32, #tpu.memory_space<vmem>>, vector<18x32x8xf32>,
    %cst_2 = arith.constant 0.000000e+00 : f32
    %2 = vector.broadcast %cst_2 : f32 to vector<18x32x64xf32>
    %c0_3 = arith.constant 0 : index
    %c0_4 = arith.constant 0 : index
    %c0_5 = arith.constant 0 : index
    %3 = vector.load %arg10[%c0_3, %c0_4, %c0_5] : memref<18x32x64xf32, #tpu.memory_space<vmem>>, vector<18x32x64xf32>
    tpu.vector_store %arg10[%c0_3, %c0_4, %c0_5], %2 {strides = array<i32>} : memref<18x32x64xf32, #tpu.memory_space<vmem>>, vector<18x32x64xf32>,
    %cst_6 = arith.constant 0.000000e+00 : f32
    %4 = vector.broadcast %cst_6 : f32 to vector<18x32x64xf32>
    %c0_7 = arith.constant 0 : index
    %c0_8 = arith.constant 0 : index
    %c0_9 = arith.constant 0 : index
    %5 = vector.load %arg11[%c0_7, %c0_8, %c0_9] : memref<18x32x64xf32, #tpu.memory_space<vmem>>, vector<18x32x64xf32>
    tpu.vector_store %arg11[%c0_7, %c0_8, %c0_9], %4 {strides = array<i32>} : memref<18x32x64xf32, #tpu.memory_space<vmem>>, vector<18x32x64xf32>,
    %c0_10 = arith.constant 0 : index
    %c0_11 = arith.constant 0 : index
    %c0_12 = arith.constant 0 : index
    %c0_13 = arith.constant 0 : index
    %6 = vector.load %arg1[%c0_10, %c0_11, %c0_12, %c0_13] : memref<1x16x16x8xf32, #tpu.memory_space<vmem>>, vector<1x16x16x8xf32>
    %7 = vector.shape_cast %6 : vector<1x16x16x8xf32> to vector<16x16x8xf32>
    %c1 = arith.constant 1 : index
    %c8 = arith.constant 8 : index
    %c0_14 = arith.constant 0 : index
    %8 = vector.load %arg9[%c1, %c8, %c0_14] : memref<18x32x8xf32, #tpu.memory_space<vmem>>, vector<16x16x8xf32>
    tpu.vector_store %arg9[%c1, %c8, %c0_14], %7 {strides = array<i32>} : memref<18x32x8xf32, #tpu.memory_space<vmem>>, vector<16x16x8xf32>,
    %cst_15 = arith.constant 0.000000e+00 : f32
    %9 = vector.broadcast %cst_15 : f32 to vector<256x64xf32>
    %c0_16 = arith.constant 0 : index
    %c7 = arith.constant 7 : index
    %c0_17 = arith.constant 0 : index
    %10 = vector.load %arg9[%c0_16, %c7, %c0_17] : memref<18x32x8xf32, #tpu.memory_space<vmem>>, vector<16x16x8xf32>
    %11 = vector.shape_cast %10 : vector<16x16x8xf32> to vector<256x8xf32>
    %c0_18 = arith.constant 0 : index
    %c8_19 = arith.constant 8 : index
    %c0_20 = arith.constant 0 : index
    %12 = vector.load %arg9[%c0_18, %c8_19, %c0_20] : memref<18x32x8xf32, #tpu.memory_space<vmem>>, vector<16x16x8xf32>
    %13 = vector.shape_cast %12 : vector<16x16x8xf32> to vector<256x8xf32>
    %c0_21 = arith.constant 0 : index
    %c9 = arith.constant 9 : index
    %c0_22 = arith.constant 0 : index
    %14 = vector.load %arg9[%c0_21, %c9, %c0_22] : memref<18x32x8xf32, #tpu.memory_space<vmem>>, vector<16x16x8xf32>
    %15 = vector.shape_cast %14 : vector<16x16x8xf32> to vector<256x8xf32>
    %16 = tpu.concatenate %11, %13, %15 in 1 : vector<256x8xf32>, vector<256x8xf32>, vector<256x8xf32> -> vector<256x24xf32>
    %c0_23 = arith.constant 0 : index
    %c0_24 = arith.constant 0 : index
    %c0_25 = arith.constant 0 : index
    %17 = vector.load %arg2[%c0_23, %c0_24, %c0_25] : memref<3x24x64xf32, #tpu.memory_space<vmem>>, vector<1x24x64xf32>
    %18 = vector.shape_cast %17 : vector<1x24x64xf32> to vector<24x64xf32>
    %cst_26 = arith.constant dense<0.000000e+00> : vector<256x64xf32>
    %19 = tpu.matmul %16, %18, %cst_26 {dimension_numbers = #tpu.dot_dimension_numbers<[1], [0], [0], [1], [0, 0, 1, 1], [], []>} : vector<256x24xf32>, vector<24x64xf32>, vector<256x64xf32> -> vector<256x64xf32>
    %20 = arith.addf %9, %19 : vector<256x64xf32>
    %c1_27 = arith.constant 1 : index
    %c7_28 = arith.constant 7 : index
    %c0_29 = arith.constant 0 : index
    %21 = vector.load %arg9[%c1_27, %c7_28, %c0_29] : memref<18x32x8xf32, #tpu.memory_space<vmem>>, vector<16x16x8xf32>
    %22 = vector.shape_cast %21 : vector<16x16x8xf32> to vector<256x8xf32>
    %c1_30 = arith.constant 1 : index
    %c8_31 = arith.constant 8 : index
    %c0_32 = arith.constant 0 : index
    %23 = vector.load %arg9[%c1_30, %c8_31, %c0_32] : memref<18x32x8xf32, #tpu.memory_space<vmem>>, vector<16x16x8xf32>
    %24 = vector.shape_cast %23 : vector<16x16x8xf32> to vector<256x8xf32>
    %c1_33 = arith.constant 1 : index
    %c9_34 = arith.constant 9 : index
    %c0_35 = arith.constant 0 : index
    %25 = vector.load %arg9[%c1_33, %c9_34, %c0_35] : memref<18x32x8xf32, #tpu.memory_space<vmem>>, vector<16x16x8xf32>
    %26 = vector.shape_cast %25 : vector<16x16x8xf32> to vector<256x8xf32>
    %27 = tpu.concatenate %22, %24, %26 in 1 : vector<256x8xf32>, vector<256x8xf32>, vector<256x8xf32> -> vector<256x24xf32>
    %c1_36 = arith.constant 1 : index
    %c0_37 = arith.constant 0 : index
    %c0_38 = arith.constant 0 : index
    %28 = vector.load %arg2[%c1_36, %c0_37, %c0_38] : memref<3x24x64xf32, #tpu.memory_space<vmem>>, vector<1x24x64xf32>
    %29 = vector.shape_cast %28 : vector<1x24x64xf32> to vector<24x64xf32>
    %cst_39 = arith.constant dense<0.000000e+00> : vector<256x64xf32>
    %30 = tpu.matmul %27, %29, %cst_39 {dimension_numbers = #tpu.dot_dimension_numbers<[1], [0], [0], [1], [0, 0, 1, 1], [], []>} : vector<256x24xf32>, vector<24x64xf32>, vector<256x64xf32> -> vector<256x64xf32>
    %31 = arith.addf %20, %30 : vector<256x64xf32>
    %c2 = arith.constant 2 : index
    %c7_40 = arith.constant 7 : index
    %c0_41 = arith.constant 0 : index
    %32 = vector.load %arg9[%c2, %c7_40, %c0_41] : memref<18x32x8xf32, #tpu.memory_space<vmem>>, vector<16x16x8xf32>
    %33 = vector.shape_cast %32 : vector<16x16x8xf32> to vector<256x8xf32>
    %c2_42 = arith.constant 2 : index
    %c8_43 = arith.constant 8 : index
    %c0_44 = arith.constant 0 : index
    %34 = vector.load %arg9[%c2_42, %c8_43, %c0_44] : memref<18x32x8xf32, #tpu.memory_space<vmem>>, vector<16x16x8xf32>
    %35 = vector.shape_cast %34 : vector<16x16x8xf32> to vector<256x8xf32>
    %c2_45 = arith.constant 2 : index
    %c9_46 = arith.constant 9 : index
    %c0_47 = arith.constant 0 : index
    %36 = vector.load %arg9[%c2_45, %c9_46, %c0_47] : memref<18x32x8xf32, #tpu.memory_space<vmem>>, vector<16x16x8xf32>
    %37 = vector.shape_cast %36 : vector<16x16x8xf32> to vector<256x8xf32>
    %38 = tpu.concatenate %33, %35, %37 in 1 : vector<256x8xf32>, vector<256x8xf32>, vector<256x8xf32> -> vector<256x24xf32>
    %c2_48 = arith.constant 2 : index
    %c0_49 = arith.constant 0 : index
    %c0_50 = arith.constant 0 : index
    %39 = vector.load %arg2[%c2_48, %c0_49, %c0_50] : memref<3x24x64xf32, #tpu.memory_space<vmem>>, vector<1x24x64xf32>
    %40 = vector.shape_cast %39 : vector<1x24x64xf32> to vector<24x64xf32>
    %cst_51 = arith.constant dense<0.000000e+00> : vector<256x64xf32>
    %41 = tpu.matmul %38, %40, %cst_51 {dimension_numbers = #tpu.dot_dimension_numbers<[1], [0], [0], [1], [0, 0, 1, 1], [], []>} : vector<256x24xf32>, vector<24x64xf32>, vector<256x64xf32> -> vector<256x64xf32>
    %42 = arith.addf %31, %41 : vector<256x64xf32>
    %c0_52 = arith.constant 0 : index
    %c0_53 = arith.constant 0 : index
    %43 = vector.load %arg3[%c0_52, %c0_53] : memref<1x64xf32, #tpu.memory_space<vmem>>, vector<1x64xf32>
    %44 = vector.broadcast %43 : vector<1x64xf32> to vector<256x64xf32>
    %45 = arith.addf %42, %44 : vector<256x64xf32>
    %cst_54 = arith.constant 0.000000e+00 : f32
    %46 = vector.broadcast %cst_54 : f32 to vector<256x64xf32>
    %47 = arith.maximumf %45, %46 : vector<256x64xf32>
    %48 = vector.shape_cast %47 : vector<256x64xf32> to vector<16x16x64xf32>
    %c1_55 = arith.constant 1 : index
    %c8_56 = arith.constant 8 : index
    %c0_57 = arith.constant 0 : index
    %49 = vector.load %arg10[%c1_55, %c8_56, %c0_57] : memref<18x32x64xf32, #tpu.memory_space<vmem>>, vector<16x16x64xf32>
    tpu.vector_store %arg10[%c1_55, %c8_56, %c0_57], %48 {strides = array<i32>} : memref<18x32x64xf32, #tpu.memory_space<vmem>>, vector<16x16x64xf32>,
    %c0_i32 = arith.constant 0 : i32
    %c9_i32 = arith.constant 9 : i32
    %50 = arith.addi %c0_i32, %c9_i32 : i32
    %c1_i32 = arith.constant 1 : i32
    scf.for %arg12 = %c0_i32 to %50 step %c1_i32  : i32 {
      %c6_i32 = arith.constant 6 : i32
      %96 = arith.muli %c6_i32, %arg12 : i32
      %cst_109 = arith.constant 0.000000e+00 : f32
      %97 = vector.broadcast %cst_109 : f32 to vector<256x64xf32>
      %c0_110 = arith.constant 0 : index
      %c7_111 = arith.constant 7 : index
      %c0_112 = arith.constant 0 : index
      %98 = vector.load %arg10[%c0_110, %c7_111, %c0_112] : memref<18x32x64xf32, #tpu.memory_space<vmem>>, vector<16x16x64xf32>
      %99 = vector.shape_cast %98 : vector<16x16x64xf32> to vector<256x64xf32>
      %c0_113 = arith.constant 0 : index
      %c8_114 = arith.constant 8 : index
      %c0_115 = arith.constant 0 : index
      %100 = vector.load %arg10[%c0_113, %c8_114, %c0_115] : memref<18x32x64xf32, #tpu.memory_space<vmem>>, vector<16x16x64xf32>
      %101 = vector.shape_cast %100 : vector<16x16x64xf32> to vector<256x64xf32>
      %c0_116 = arith.constant 0 : index
      %c9_117 = arith.constant 9 : index
      %c0_118 = arith.constant 0 : index
      %102 = vector.load %arg10[%c0_116, %c9_117, %c0_118] : memref<18x32x64xf32, #tpu.memory_space<vmem>>, vector<16x16x64xf32>
      %103 = vector.shape_cast %102 : vector<16x16x64xf32> to vector<256x64xf32>
      %104 = tpu.concatenate %99, %101, %103 in 1 : vector<256x64xf32>, vector<256x64xf32>, vector<256x64xf32> -> vector<256x192xf32>
      %c0_i32_119 = arith.constant 0 : i32
      %105 = arith.addi %96, %c0_i32_119 : i32
      %106 = arith.index_cast %105 : i32 to index
      %c0_120 = arith.constant 0 : index
      %c0_121 = arith.constant 0 : index
      %107 = vector.load %arg4[%106, %c0_120, %c0_121] : memref<54x192x64xf32, #tpu.memory_space<vmem>>, vector<1x192x64xf32>
      %108 = vector.shape_cast %107 : vector<1x192x64xf32> to vector<192x64xf32>
      %cst_122 = arith.constant dense<0.000000e+00> : vector<256x64xf32>
      %109 = tpu.matmul %104, %108, %cst_122 {dimension_numbers = #tpu.dot_dimension_numbers<[1], [0], [0], [1], [0, 0, 1, 1], [], []>} : vector<256x192xf32>, vector<192x64xf32>, vector<256x64xf32> -> vector<256x64xf32>
      %110 = arith.addf %97, %109 : vector<256x64xf32>
      %c1_123 = arith.constant 1 : index
      %c7_124 = arith.constant 7 : index
      %c0_125 = arith.constant 0 : index
      %111 = vector.load %arg10[%c1_123, %c7_124, %c0_125] : memref<18x32x64xf32, #tpu.memory_space<vmem>>, vector<16x16x64xf32>
      %112 = vector.shape_cast %111 : vector<16x16x64xf32> to vector<256x64xf32>
      %c1_126 = arith.constant 1 : index
      %c8_127 = arith.constant 8 : index
      %c0_128 = arith.constant 0 : index
      %113 = vector.load %arg10[%c1_126, %c8_127, %c0_128] : memref<18x32x64xf32, #tpu.memory_space<vmem>>, vector<16x16x64xf32>
      %114 = vector.shape_cast %113 : vector<16x16x64xf32> to vector<256x64xf32>
      %c1_129 = arith.constant 1 : index
      %c9_130 = arith.constant 9 : index
      %c0_131 = arith.constant 0 : index
      %115 = vector.load %arg10[%c1_129, %c9_130, %c0_131] : memref<18x32x64xf32, #tpu.memory_space<vmem>>, vector<16x16x64xf32>
      %116 = vector.shape_cast %115 : vector<16x16x64xf32> to vector<256x64xf32>
      %117 = tpu.concatenate %112, %114, %116 in 1 : vector<256x64xf32>, vector<256x64xf32>, vector<256x64xf32> -> vector<256x192xf32>
      %c1_i32_132 = arith.constant 1 : i32
      %118 = arith.addi %96, %c1_i32_132 : i32
      %119 = arith.index_cast %118 : i32 to index
      %c0_133 = arith.constant 0 : index
      %c0_134 = arith.constant 0 : index
      %120 = vector.load %arg4[%119, %c0_133, %c0_134] : memref<54x192x64xf32, #tpu.memory_space<vmem>>, vector<1x192x64xf32>
      %121 = vector.shape_cast %120 : vector<1x192x64xf32> to vector<192x64xf32>
      %cst_135 = arith.constant dense<0.000000e+00> : vector<256x64xf32>
      %122 = tpu.matmul %117, %121, %cst_135 {dimension_numbers = #tpu.dot_dimension_numbers<[1], [0], [0], [1], [0, 0, 1, 1], [], []>} : vector<256x192xf32>, vector<192x64xf32>, vector<256x64xf32> -> vector<256x64xf32>
      %123 = arith.addf %110, %122 : vector<256x64xf32>
      %c2_136 = arith.constant 2 : index
      %c7_137 = arith.constant 7 : index
      %c0_138 = arith.constant 0 : index
      %124 = vector.load %arg10[%c2_136, %c7_137, %c0_138] : memref<18x32x64xf32, #tpu.memory_space<vmem>>, vector<16x16x64xf32>
      %125 = vector.shape_cast %124 : vector<16x16x64xf32> to vector<256x64xf32>
      %c2_139 = arith.constant 2 : index
      %c8_140 = arith.constant 8 : index
      %c0_141 = arith.constant 0 : index
      %126 = vector.load %arg10[%c2_139, %c8_140, %c0_141] : memref<18x32x64xf32, #tpu.memory_space<vmem>>, vector<16x16x64xf32>
      %127 = vector.shape_cast %126 : vector<16x16x64xf32> to vector<256x64xf32>
      %c2_142 = arith.constant 2 : index
      %c9_143 = arith.constant 9 : index
      %c0_144 = arith.constant 0 : index
      %128 = vector.load %arg10[%c2_142, %c9_143, %c0_144] : memref<18x32x64xf32, #tpu.memory_space<vmem>>, vector<16x16x64xf32>
      %129 = vector.shape_cast %128 : vector<16x16x64xf32> to vector<256x64xf32>
      %130 = tpu.concatenate %125, %127, %129 in 1 : vector<256x64xf32>, vector<256x64xf32>, vector<256x64xf32> -> vector<256x192xf32>
      %c2_i32 = arith.constant 2 : i32
      %131 = arith.addi %96, %c2_i32 : i32
      %132 = arith.index_cast %131 : i32 to index
      %c0_145 = arith.constant 0 : index
      %c0_146 = arith.constant 0 : index
      %133 = vector.load %arg4[%132, %c0_145, %c0_146] : memref<54x192x64xf32, #tpu.memory_space<vmem>>, vector<1x192x64xf32>
      %134 = vector.shape_cast %133 : vector<1x192x64xf32> to vector<192x64xf32>
      %cst_147 = arith.constant dense<0.000000e+00> : vector<256x64xf32>
      %135 = tpu.matmul %130, %134, %cst_147 {dimension_numbers = #tpu.dot_dimension_numbers<[1], [0], [0], [1], [0, 0, 1, 1], [], []>} : vector<256x192xf32>, vector<192x64xf32>, vector<256x64xf32> -> vector<256x64xf32>
      %136 = arith.addf %123, %135 : vector<256x64xf32>
      %c2_i32_148 = arith.constant 2 : i32
      %137 = arith.muli %c2_i32_148, %arg12 : i32
      %138 = arith.index_cast %137 : i32 to index
      %c0_149 = arith.constant 0 : index
      %c0_150 = arith.constant 0 : index
      %139 = vector.load %arg5[%138, %c0_149, %c0_150] : memref<18x1x64xf32, #tpu.memory_space<vmem>>, vector<1x1x64xf32>
      %140 = vector.shape_cast %139 : vector<1x1x64xf32> to vector<1x64xf32>
      %141 = vector.broadcast %140 : vector<1x64xf32> to vector<256x64xf32>
      %142 = arith.addf %136, %141 : vector<256x64xf32>
      %cst_151 = arith.constant 0.000000e+00 : f32
      %143 = vector.broadcast %cst_151 : f32 to vector<256x64xf32>
      %144 = arith.maximumf %142, %143 : vector<256x64xf32>
      %145 = vector.shape_cast %144 : vector<256x64xf32> to vector<16x16x64xf32>
      %c1_152 = arith.constant 1 : index
      %c8_153 = arith.constant 8 : index
      %c0_154 = arith.constant 0 : index
      %146 = vector.load %arg11[%c1_152, %c8_153, %c0_154] : memref<18x32x64xf32, #tpu.memory_space<vmem>>, vector<16x16x64xf32>
      tpu.vector_store %arg11[%c1_152, %c8_153, %c0_154], %145 {strides = array<i32>} : memref<18x32x64xf32, #tpu.memory_space<vmem>>, vector<16x16x64xf32>,
      %c6_i32_155 = arith.constant 6 : i32
      %147 = arith.muli %c6_i32_155, %arg12 : i32
      %c3_i32 = arith.constant 3 : i32
      %148 = arith.addi %147, %c3_i32 : i32
      %cst_156 = arith.constant 0.000000e+00 : f32
      %149 = vector.broadcast %cst_156 : f32 to vector<256x64xf32>
      %c0_157 = arith.constant 0 : index
      %c7_158 = arith.constant 7 : index
      %c0_159 = arith.constant 0 : index
      %150 = vector.load %arg11[%c0_157, %c7_158, %c0_159] : memref<18x32x64xf32, #tpu.memory_space<vmem>>, vector<16x16x64xf32>
      %151 = vector.shape_cast %150 : vector<16x16x64xf32> to vector<256x64xf32>
      %c0_160 = arith.constant 0 : index
      %c8_161 = arith.constant 8 : index
      %c0_162 = arith.constant 0 : index
      %152 = vector.load %arg11[%c0_160, %c8_161, %c0_162] : memref<18x32x64xf32, #tpu.memory_space<vmem>>, vector<16x16x64xf32>
      %153 = vector.shape_cast %152 : vector<16x16x64xf32> to vector<256x64xf32>
      %c0_163 = arith.constant 0 : index
      %c9_164 = arith.constant 9 : index
      %c0_165 = arith.constant 0 : index
      %154 = vector.load %arg11[%c0_163, %c9_164, %c0_165] : memref<18x32x64xf32, #tpu.memory_space<vmem>>, vector<16x16x64xf32>
      %155 = vector.shape_cast %154 : vector<16x16x64xf32> to vector<256x64xf32>
      %156 = tpu.concatenate %151, %153, %155 in 1 : vector<256x64xf32>, vector<256x64xf32>, vector<256x64xf32> -> vector<256x192xf32>
      %c0_i32_166 = arith.constant 0 : i32
      %157 = arith.addi %148, %c0_i32_166 : i32
      %158 = arith.index_cast %157 : i32 to index
      %c0_167 = arith.constant 0 : index
      %c0_168 = arith.constant 0 : index
      %159 = vector.load %arg4[%158, %c0_167, %c0_168] : memref<54x192x64xf32, #tpu.memory_space<vmem>>, vector<1x192x64xf32>
      %160 = vector.shape_cast %159 : vector<1x192x64xf32> to vector<192x64xf32>
      %cst_169 = arith.constant dense<0.000000e+00> : vector<256x64xf32>
      %161 = tpu.matmul %156, %160, %cst_169 {dimension_numbers = #tpu.dot_dimension_numbers<[1], [0], [0], [1], [0, 0, 1, 1], [], []>} : vector<256x192xf32>, vector<192x64xf32>, vector<256x64xf32> -> vector<256x64xf32>
      %162 = arith.addf %149, %161 : vector<256x64xf32>
      %c1_170 = arith.constant 1 : index
      %c7_171 = arith.constant 7 : index
      %c0_172 = arith.constant 0 : index
      %163 = vector.load %arg11[%c1_170, %c7_171, %c0_172] : memref<18x32x64xf32, #tpu.memory_space<vmem>>, vector<16x16x64xf32>
      %164 = vector.shape_cast %163 : vector<16x16x64xf32> to vector<256x64xf32>
      %c1_173 = arith.constant 1 : index
      %c8_174 = arith.constant 8 : index
      %c0_175 = arith.constant 0 : index
      %165 = vector.load %arg11[%c1_173, %c8_174, %c0_175] : memref<18x32x64xf32, #tpu.memory_space<vmem>>, vector<16x16x64xf32>
      %166 = vector.shape_cast %165 : vector<16x16x64xf32> to vector<256x64xf32>
      %c1_176 = arith.constant 1 : index
      %c9_177 = arith.constant 9 : index
      %c0_178 = arith.constant 0 : index
      %167 = vector.load %arg11[%c1_176, %c9_177, %c0_178] : memref<18x32x64xf32, #tpu.memory_space<vmem>>, vector<16x16x64xf32>
      %168 = vector.shape_cast %167 : vector<16x16x64xf32> to vector<256x64xf32>
      %169 = tpu.concatenate %164, %166, %168 in 1 : vector<256x64xf32>, vector<256x64xf32>, vector<256x64xf32> -> vector<256x192xf32>
      %c1_i32_179 = arith.constant 1 : i32
      %170 = arith.addi %148, %c1_i32_179 : i32
      %171 = arith.index_cast %170 : i32 to index
      %c0_180 = arith.constant 0 : index
      %c0_181 = arith.constant 0 : index
      %172 = vector.load %arg4[%171, %c0_180, %c0_181] : memref<54x192x64xf32, #tpu.memory_space<vmem>>, vector<1x192x64xf32>
      %173 = vector.shape_cast %172 : vector<1x192x64xf32> to vector<192x64xf32>
      %cst_182 = arith.constant dense<0.000000e+00> : vector<256x64xf32>
      %174 = tpu.matmul %169, %173, %cst_182 {dimension_numbers = #tpu.dot_dimension_numbers<[1], [0], [0], [1], [0, 0, 1, 1], [], []>} : vector<256x192xf32>, vector<192x64xf32>, vector<256x64xf32> -> vector<256x64xf32>
      %175 = arith.addf %162, %174 : vector<256x64xf32>
      %c2_183 = arith.constant 2 : index
      %c7_184 = arith.constant 7 : index
      %c0_185 = arith.constant 0 : index
      %176 = vector.load %arg11[%c2_183, %c7_184, %c0_185] : memref<18x32x64xf32, #tpu.memory_space<vmem>>, vector<16x16x64xf32>
      %177 = vector.shape_cast %176 : vector<16x16x64xf32> to vector<256x64xf32>
      %c2_186 = arith.constant 2 : index
      %c8_187 = arith.constant 8 : index
      %c0_188 = arith.constant 0 : index
      %178 = vector.load %arg11[%c2_186, %c8_187, %c0_188] : memref<18x32x64xf32, #tpu.memory_space<vmem>>, vector<16x16x64xf32>
      %179 = vector.shape_cast %178 : vector<16x16x64xf32> to vector<256x64xf32>
      %c2_189 = arith.constant 2 : index
      %c9_190 = arith.constant 9 : index
      %c0_191 = arith.constant 0 : index
      %180 = vector.load %arg11[%c2_189, %c9_190, %c0_191] : memref<18x32x64xf32, #tpu.memory_space<vmem>>, vector<16x16x64xf32>
      %181 = vector.shape_cast %180 : vector<16x16x64xf32> to vector<256x64xf32>
      %182 = tpu.concatenate %177, %179, %181 in 1 : vector<256x64xf32>, vector<256x64xf32>, vector<256x64xf32> -> vector<256x192xf32>
      %c2_i32_192 = arith.constant 2 : i32
      %183 = arith.addi %148, %c2_i32_192 : i32
      %184 = arith.index_cast %183 : i32 to index
      %c0_193 = arith.constant 0 : index
      %c0_194 = arith.constant 0 : index
      %185 = vector.load %arg4[%184, %c0_193, %c0_194] : memref<54x192x64xf32, #tpu.memory_space<vmem>>, vector<1x192x64xf32>
      %186 = vector.shape_cast %185 : vector<1x192x64xf32> to vector<192x64xf32>
      %cst_195 = arith.constant dense<0.000000e+00> : vector<256x64xf32>
      %187 = tpu.matmul %182, %186, %cst_195 {dimension_numbers = #tpu.dot_dimension_numbers<[1], [0], [0], [1], [0, 0, 1, 1], [], []>} : vector<256x192xf32>, vector<192x64xf32>, vector<256x64xf32> -> vector<256x64xf32>
      %188 = arith.addf %175, %187 : vector<256x64xf32>
      %c2_i32_196 = arith.constant 2 : i32
      %189 = arith.muli %c2_i32_196, %arg12 : i32
      %c1_i32_197 = arith.constant 1 : i32
      %190 = arith.addi %189, %c1_i32_197 : i32
      %191 = arith.index_cast %190 : i32 to index
      %c0_198 = arith.constant 0 : index
      %c0_199 = arith.constant 0 : index
      %192 = vector.load %arg5[%191, %c0_198, %c0_199] : memref<18x1x64xf32, #tpu.memory_space<vmem>>, vector<1x1x64xf32>
      %193 = vector.shape_cast %192 : vector<1x1x64xf32> to vector<1x64xf32>
      %194 = vector.broadcast %193 : vector<1x64xf32> to vector<256x64xf32>
      %195 = arith.addf %188, %194 : vector<256x64xf32>
      %cst_200 = arith.constant 0.000000e+00 : f32
      %196 = vector.broadcast %cst_200 : f32 to vector<256x64xf32>
      %197 = arith.maximumf %195, %196 : vector<256x64xf32>
      %198 = vector.shape_cast %197 : vector<256x64xf32> to vector<16x16x64xf32>
      %c1_201 = arith.constant 1 : index
      %c8_202 = arith.constant 8 : index
      %c0_203 = arith.constant 0 : index
      %199 = vector.load %arg10[%c1_201, %c8_202, %c0_203] : memref<18x32x64xf32, #tpu.memory_space<vmem>>, vector<16x16x64xf32>
      tpu.vector_store %arg10[%c1_201, %c8_202, %c0_203], %198 {strides = array<i32>} : memref<18x32x64xf32, #tpu.memory_space<vmem>>, vector<16x16x64xf32>,
    }
    %c9_i32_58 = arith.constant 9 : i32
    %cst_59 = arith.constant 0.000000e+00 : f32
    %51 = vector.broadcast %cst_59 : f32 to vector<256x8xf32>
    %c0_60 = arith.constant 0 : index
    %c7_61 = arith.constant 7 : index
    %c0_62 = arith.constant 0 : index
    %52 = vector.load %arg10[%c0_60, %c7_61, %c0_62] : memref<18x32x64xf32, #tpu.memory_space<vmem>>, vector<16x16x64xf32>
    %53 = vector.shape_cast %52 : vector<16x16x64xf32> to vector<256x64xf32>
    %c0_63 = arith.constant 0 : index
    %c8_64 = arith.constant 8 : index
    %c0_65 = arith.constant 0 : index
    %54 = vector.load %arg10[%c0_63, %c8_64, %c0_65] : memref<18x32x64xf32, #tpu.memory_space<vmem>>, vector<16x16x64xf32>
    %55 = vector.shape_cast %54 : vector<16x16x64xf32> to vector<256x64xf32>
    %c0_66 = arith.constant 0 : index
    %c9_67 = arith.constant 9 : index
    %c0_68 = arith.constant 0 : index
    %56 = vector.load %arg10[%c0_66, %c9_67, %c0_68] : memref<18x32x64xf32, #tpu.memory_space<vmem>>, vector<16x16x64xf32>
    %57 = vector.shape_cast %56 : vector<16x16x64xf32> to vector<256x64xf32>
    %58 = tpu.concatenate %53, %55, %57 in 1 : vector<256x64xf32>, vector<256x64xf32>, vector<256x64xf32> -> vector<256x192xf32>
    %c0_69 = arith.constant 0 : index
    %c0_70 = arith.constant 0 : index
    %c0_71 = arith.constant 0 : index
    %59 = vector.load %arg6[%c0_69, %c0_70, %c0_71] : memref<3x192x8xf32, #tpu.memory_space<vmem>>, vector<1x192x8xf32>
    %60 = vector.shape_cast %59 : vector<1x192x8xf32> to vector<192x8xf32>
    %cst_72 = arith.constant dense<0.000000e+00> : vector<256x8xf32>
    %61 = tpu.matmul %58, %60, %cst_72 {dimension_numbers = #tpu.dot_dimension_numbers<[1], [0], [0], [1], [0, 0, 1, 1], [], []>} : vector<256x192xf32>, vector<192x8xf32>, vector<256x8xf32> -> vector<256x8xf32>
    %62 = arith.addf %51, %61 : vector<256x8xf32>
    %c1_73 = arith.constant 1 : index
    %c7_74 = arith.constant 7 : index
    %c0_75 = arith.constant 0 : index
    %63 = vector.load %arg10[%c1_73, %c7_74, %c0_75] : memref<18x32x64xf32, #tpu.memory_space<vmem>>, vector<16x16x64xf32>
    %64 = vector.shape_cast %63 : vector<16x16x64xf32> to vector<256x64xf32>
    %c1_76 = arith.constant 1 : index
    %c8_77 = arith.constant 8 : index
    %c0_78 = arith.constant 0 : index
    %65 = vector.load %arg10[%c1_76, %c8_77, %c0_78] : memref<18x32x64xf32, #tpu.memory_space<vmem>>, vector<16x16x64xf32>
    %66 = vector.shape_cast %65 : vector<16x16x64xf32> to vector<256x64xf32>
    %c1_79 = arith.constant 1 : index
    %c9_80 = arith.constant 9 : index
    %c0_81 = arith.constant 0 : index
    %67 = vector.load %arg10[%c1_79, %c9_80, %c0_81] : memref<18x32x64xf32, #tpu.memory_space<vmem>>, vector<16x16x64xf32>
    %68 = vector.shape_cast %67 : vector<16x16x64xf32> to vector<256x64xf32>
    %69 = tpu.concatenate %64, %66, %68 in 1 : vector<256x64xf32>, vector<256x64xf32>, vector<256x64xf32> -> vector<256x192xf32>
    %c1_82 = arith.constant 1 : index
    %c0_83 = arith.constant 0 : index
    %c0_84 = arith.constant 0 : index
    %70 = vector.load %arg6[%c1_82, %c0_83, %c0_84] : memref<3x192x8xf32, #tpu.memory_space<vmem>>, vector<1x192x8xf32>
    %71 = vector.shape_cast %70 : vector<1x192x8xf32> to vector<192x8xf32>
    %cst_85 = arith.constant dense<0.000000e+00> : vector<256x8xf32>
    %72 = tpu.matmul %69, %71, %cst_85 {dimension_numbers = #tpu.dot_dimension_numbers<[1], [0], [0], [1], [0, 0, 1, 1], [], []>} : vector<256x192xf32>, vector<192x8xf32>, vector<256x8xf32> -> vector<256x8xf32>
    %73 = arith.addf %62, %72 : vector<256x8xf32>
    %c2_86 = arith.constant 2 : index
    %c7_87 = arith.constant 7 : index
    %c0_88 = arith.constant 0 : index
    %74 = vector.load %arg10[%c2_86, %c7_87, %c0_88] : memref<18x32x64xf32, #tpu.memory_space<vmem>>, vector<16x16x64xf32>
    %75 = vector.shape_cast %74 : vector<16x16x64xf32> to vector<256x64xf32>
    %c2_89 = arith.constant 2 : index
    %c8_90 = arith.constant 8 : index
    %c0_91 = arith.constant 0 : index
    %76 = vector.load %arg10[%c2_89, %c8_90, %c0_91] : memref<18x32x64xf32, #tpu.memory_space<vmem>>, vector<16x16x64xf32>
    %77 = vector.shape_cast %76 : vector<16x16x64xf32> to vector<256x64xf32>
    %c2_92 = arith.constant 2 : index
    %c9_93 = arith.constant 9 : index
    %c0_94 = arith.constant 0 : index
    %78 = vector.load %arg10[%c2_92, %c9_93, %c0_94] : memref<18x32x64xf32, #tpu.memory_space<vmem>>, vector<16x16x64xf32>
    %79 = vector.shape_cast %78 : vector<16x16x64xf32> to vector<256x64xf32>
    %80 = tpu.concatenate %75, %77, %79 in 1 : vector<256x64xf32>, vector<256x64xf32>, vector<256x64xf32> -> vector<256x192xf32>
    %c2_95 = arith.constant 2 : index
    %c0_96 = arith.constant 0 : index
    %c0_97 = arith.constant 0 : index
    %81 = vector.load %arg6[%c2_95, %c0_96, %c0_97] : memref<3x192x8xf32, #tpu.memory_space<vmem>>, vector<1x192x8xf32>
    %82 = vector.shape_cast %81 : vector<1x192x8xf32> to vector<192x8xf32>
    %cst_98 = arith.constant dense<0.000000e+00> : vector<256x8xf32>
    %83 = tpu.matmul %80, %82, %cst_98 {dimension_numbers = #tpu.dot_dimension_numbers<[1], [0], [0], [1], [0, 0, 1, 1], [], []>} : vector<256x192xf32>, vector<192x8xf32>, vector<256x8xf32> -> vector<256x8xf32>
    %84 = arith.addf %73, %83 : vector<256x8xf32>
    %c0_99 = arith.constant 0 : index
    %c0_100 = arith.constant 0 : index
    %85 = vector.load %arg7[%c0_99, %c0_100] : memref<1x8xf32, #tpu.memory_space<vmem>>, vector<1x8xf32>
    %86 = vector.broadcast %85 : vector<1x8xf32> to vector<256x8xf32>
    %87 = arith.addf %84, %86 : vector<256x8xf32>
    %c0_101 = arith.constant 0 : index
    %c0_102 = arith.constant 0 : index
    %c0_103 = arith.constant 0 : index
    %c0_104 = arith.constant 0 : index
    %88 = vector.load %arg1[%c0_101, %c0_102, %c0_103, %c0_104] : memref<1x16x16x8xf32, #tpu.memory_space<vmem>>, vector<1x16x16x8xf32>
    %89 = vector.shape_cast %88 : vector<1x16x16x8xf32> to vector<16x16x8xf32>
    %90 = vector.shape_cast %89 : vector<16x16x8xf32> to vector<256x8xf32>
    %91 = arith.addf %87, %90 : vector<256x8xf32>
    %92 = vector.shape_cast %91 : vector<256x8xf32> to vector<16x16x8xf32>
    %c0_105 = arith.constant 0 : index
    %c0_106 = arith.constant 0 : index
    %c0_107 = arith.constant 0 : index
    %c0_108 = arith.constant 0 : index
    %93 = vector.load %arg8[%c0_105, %c0_106, %c0_107, %c0_108] : memref<1x16x16x8xf32, #tpu.memory_space<vmem>>, vector<1x16x16x8xf32>
    %94 = vector.shape_cast %93 : vector<1x16x16x8xf32> to vector<16x16x8xf32>
    %95 = vector.shape_cast %92 : vector<16x16x8xf32> to vector<1x16x16x8xf32>
    tpu.vector_store %arg8[%c0_105, %c0_106, %c0_107, %c0_108], %95 {strides = array<i32>} : memref<1x16x16x8xf32, #tpu.memory_space<vmem>>, vector<1x16x16x8xf32>,
    return
  }
  func.func @transform_0(%arg0: i32) -> (i32, i32, i32, i32) {
    %c0_i32 = arith.constant 0 : i32
    %c0_i32_0 = arith.constant 0 : i32
    %c0_i32_1 = arith.constant 0 : i32
    %c0_i32_2 = arith.constant 0 : i32
    return %arg0, %c0_i32, %c0_i32_0, %c0_i32_1 : i32, i32, i32, i32
  }
  func.func @transform_1(%arg0: i32) -> (i32, i32, i32) {
    %c0_i32 = arith.constant 0 : i32
    %c0_i32_0 = arith.constant 0 : i32
    %c0_i32_1 = arith.constant 0 : i32
    %c0_i32_2 = arith.constant 0 : i32
    return %c0_i32, %c0_i32_0, %c0_i32_1 : i32, i32, i32
  }
  func.func @transform_2(%arg0: i32) -> (i32, i32) {
    %c0_i32 = arith.constant 0 : i32
    %c0_i32_0 = arith.constant 0 : i32
    %c0_i32_1 = arith.constant 0 : i32
    return %c0_i32, %c0_i32_0 : i32, i32
  }
  func.func @transform_3(%arg0: i32) -> (i32, i32, i32) {
    %c0_i32 = arith.constant 0 : i32
    %c0_i32_0 = arith.constant 0 : i32
    %c0_i32_1 = arith.constant 0 : i32
    %c0_i32_2 = arith.constant 0 : i32
    return %c0_i32, %c0_i32_0, %c0_i32_1 : i32, i32, i32
  }
  func.func @transform_4(%arg0: i32) -> (i32, i32, i32) {
    %c0_i32 = arith.constant 0 : i32
    %c0_i32_0 = arith.constant 0 : i32
    %c0_i32_1 = arith.constant 0 : i32
    %c0_i32_2 = arith.constant 0 : i32
    return %c0_i32, %c0_i32_0, %c0_i32_1 : i32, i32, i32
  }
  func.func @transform_5(%arg0: i32) -> (i32, i32, i32) {
    %c0_i32 = arith.constant 0 : i32
    %c0_i32_0 = arith.constant 0 : i32
    %c0_i32_1 = arith.constant 0 : i32
    %c0_i32_2 = arith.constant 0 : i32
    return %c0_i32, %c0_i32_0, %c0_i32_1 : i32, i32, i32
  }
  func.func @transform_6(%arg0: i32) -> (i32, i32) {
    %c0_i32 = arith.constant 0 : i32
    %c0_i32_0 = arith.constant 0 : i32
    %c0_i32_1 = arith.constant 0 : i32
    return %c0_i32, %c0_i32_0 : i32, i32
  }
  func.func @transform_7(%arg0: i32) -> (i32, i32, i32, i32) {
    %c0_i32 = arith.constant 0 : i32
    %c0_i32_0 = arith.constant 0 : i32
    %c0_i32_1 = arith.constant 0 : i32
    %c0_i32_2 = arith.constant 0 : i32
    return %arg0, %c0_i32, %c0_i32_0, %c0_i32_1 : i32, i32, i32, i32
  }
}

</mosaic_0001>

<llo_original>
// kernel: tpu_custom_call.1
$region0: #{tpu_custom_call.1}
  #allocation0 [shape = 'u32[]', space=smem, size = 0x4, offset = 0x4, fixed_abs, tag = 'smem constant byte address 0x4 - core index']
  #allocation1 [shape = 'u32[144,128]{1,0:T(1,128)}', space=vmem, size = 0x12000, scoped, tag = 'internal scratch']
  #allocation2 [shape = 'f32[18,32,8]{2,1,0:T(8,128)}', space=vmem, size = 0x48000, scoped, tag = 'scratch operand']
  #allocation3 [shape = 'f32[18,32,64]{2,1,0:T(8,128)}', space=vmem, size = 0x48000, scoped, tag = 'scratch operand']
  #allocation4 [shape = 'f32[18,32,64]{2,1,0:T(8,128)}', space=vmem, size = 0x48000, scoped, tag = 'scratch operand']
  %s0 = inlined_call_operand.vmem [shape: f32[2,16,16,8], index: 0, kind: input, shape index: {}]
  %s1 = inlined_call_operand.vmem [shape: f32[3,24,64], index: 1, kind: input, shape index: {}]
  %s2 = inlined_call_operand.vmem [shape: f32[1,64], index: 2, kind: input, shape index: {}]
  %s3 = inlined_call_operand.vmem [shape: f32[54,192,64], index: 3, kind: input, shape index: {}]
  %s4 = inlined_call_operand.vmem [shape: f32[18,1,64], index: 4, kind: input, shape index: {}]
  %s5 = inlined_call_operand.vmem [shape: f32[3,192,8], index: 5, kind: input, shape index: {}]
  %s6 = inlined_call_operand.vmem [shape: f32[1,8], index: 6, kind: input, shape index: {}]
  %s7 = inlined_call_operand.vmem [shape: f32[2,16,16,8], index: 7, kind: output, shape index: {}]
  %s8 = sld [smem:[#allocation0]]
  $region68: #{tpu_custom_call.1} parent=0
    _
  %s10 = ssub.s32 1, %s8
  %s11 = scalar_select 0, %s10, %s8
  loop: start=0, step=1, limit=4
  $region2: #{tpu_custom_call.1} parent=0 // loop_pre_header
    _
  $region3: #{tpu_custom_call.1} parent=0 // loop_header
    %s13 = sphi 0, %s17
    %p14 = scmp.ge.s32.totalorder %s13, 4
    %s23 = sphi 0, %s25
    %s26 = sphi 0, %s23
    %s27 = sphi 0, %s26
    %s43 = sphi 0, %s27
    %s47 = sphi 0, %s47
    %s49 = sphi 0, %s47
    %s50 = sphi 0, %s49
    %s64 = sphi 0, %s50
    %s68 = sphi 0, %s68
    %s70 = sphi 0, %s68
    %s71 = sphi 0, %s70
    %s85 = sphi 0, %s71
    %s89 = sphi 0, %s89
    %s91 = sphi 0, %s89
    %s92 = sphi 0, %s91
    %s106 = sphi 0, %s92
    %s110 = sphi 0, %s110
    %s112 = sphi 0, %s110
    %s113 = sphi 0, %s112
    %s127 = sphi 0, %s113
    %s131 = sphi 0, %s131
    %s133 = sphi 0, %s131
    %s134 = sphi 0, %s133
    %s148 = sphi 0, %s134
    %s152 = sphi 0, %s152
    %s154 = sphi 0, %s152
    %s155 = sphi 0, %s154
    %s169 = sphi 0, %s155
    %s175 = sphi 0, %s177
    %s178 = sphi 0, %s175
    %s179 = sphi 0, %s178
    %s195 = sphi 0, %s179
  $region4: #{tpu_custom_call.1} parent=0 // loop_header_branch
    %16 = sbr.rel (%p14) target = $region8
  $region5: #{tpu_custom_call.1} parent=0 // loop_body
    %s18 = ssub.s32 %s13, 1
    %s19 = ssub.s32 %s13, 2
    %s20 = sadd.s32 %s13, 1
    %s21 = ssub.s32 %s13, %s20
    %p22 = scmp.eq.s32.totalorder %s21, 0
    %s24 = sadd.s32 %s23, 1
    %s25 = scalar_select %p22, %s23, %s24
    %p28 = pneg %p22
    %p29 = scmp.eq.s32.totalorder %s13, 1
    %p30 = por %p28, %p29
    %p31 = scmp.ne.s32.totalorder %s23, %s26
    %p32 = scmp.eq.s32.totalorder %s13, 0
    %p33 = por %p31, %p32
    %p34 = scmp.ne.s32.totalorder %s23, %s26
    %p35 = scmp.eq.s32.totalorder %s18, 1
    %p36 = por %p34, %p35
    %p37 = scmp.ne.s32.totalorder %s26, %s27
    %p38 = scmp.eq.s32.totalorder %s18, 0
    %p39 = por %p37, %p38
    %p40 = scmp.ne.s32.totalorder %s26, %s27
    %p41 = scmp.eq.s32.totalorder %s19, 1
    %p42 = por %p40, %p41
    %p44 = scmp.ne.s32.totalorder %s27, %s43
    %p45 = scmp.eq.s32.totalorder %s19, 0
    %p46 = por %p44, %p45
    %s48 = sadd.s32 %s47, 1
    %p51 = scmp.eq.s32.totalorder %s13, 1
    %p52 = scmp.ne.s32.totalorder %s47, %s49
    %p53 = scmp.eq.s32.totalorder %s13, 0
    %p54 = por %p52, %p53
    %p55 = scmp.ne.s32.totalorder %s47, %s49
    %p56 = scmp.eq.s32.totalorder %s18, 1
    %p57 = por %p55, %p56
    %p58 = scmp.ne.s32.totalorder %s49, %s50
    %p59 = scmp.eq.s32.totalorder %s18, 0
    %p60 = por %p58, %p59
    %p61 = scmp.ne.s32.totalorder %s49, %s50
    %p62 = scmp.eq.s32.totalorder %s19, 1
    %p63 = por %p61, %p62
    %p65 = scmp.ne.s32.totalorder %s50, %s64
    %p66 = scmp.eq.s32.totalorder %s19, 0
    %p67 = por %p65, %p66
    %s69 = sadd.s32 %s68, 1
    %p72 = scmp.eq.s32.totalorder %s13, 1
    %p73 = scmp.ne.s32.totalorder %s68, %s70
    %p74 = scmp.eq.s32.totalorder %s13, 0
    %p75 = por %p73, %p74
    %p76 = scmp.ne.s32.totalorder %s68, %s70
    %p77 = scmp.eq.s32.totalorder %s18, 1
    %p78 = por %p76, %p77
    %p79 = scmp.ne.s32.totalorder %s70, %s71
    %p80 = scmp.eq.s32.totalorder %s18, 0
    %p81 = por %p79, %p80
    %p82 = scmp.ne.s32.totalorder %s70, %s71
    %p83 = scmp.eq.s32.totalorder %s19, 1
    %p84 = por %p82, %p83
    %p86 = scmp.ne.s32.totalorder %s71, %s85
    %p87 = scmp.eq.s32.totalorder %s19, 0
    %p88 = por %p86, %p87
    %s90 = sadd.s32 %s89, 1
    %p93 = scmp.eq.s32.totalorder %s13, 1
    %p94 = scmp.ne.s32.totalorder %s89, %s91
    %p95 = scmp.eq.s32.totalorder %s13, 0
    %p96 = por %p94, %p95
    %p97 = scmp.ne.s32.totalorder %s89, %s91
    %p98 = scmp.eq.s32.totalorder %s18, 1
    %p99 = por %p97, %p98
    %p100 = scmp.ne.s32.totalorder %s91, %s92
    %p101 = scmp.eq.s32.totalorder %s18, 0
    %p102 = por %p100, %p101
    %p103 = scmp.ne.s32.totalorder %s91, %s92
    %p104 = scmp.eq.s32.totalorder %s19, 1
    %p105 = por %p103, %p104
    %p107 = scmp.ne.s32.totalorder %s92, %s106
    %p108 = scmp.eq.s32.totalorder %s19, 0
    %p109 = por %p107, %p108
    %s111 = sadd.s32 %s110, 1
    %p114 = scmp.eq.s32.totalorder %s13, 1
    %p115 = scmp.ne.s32.totalorder %s110, %s112
    %p116 = scmp.eq.s32.totalorder %s13, 0
    %p117 = por %p115, %p116
    %p118 = scmp.ne.s32.totalorder %s110, %s112
    %p119 = scmp.eq.s32.totalorder %s18, 1
    %p120 = por %p118, %p119
    %p121 = scmp.ne.s32.totalorder %s112, %s113
    %p122 = scmp.eq.s32.totalorder %s18, 0
    %p123 = por %p121, %p122
    %p124 = scmp.ne.s32.totalorder %s112, %s113
    %p125 = scmp.eq.s32.totalorder %s19, 1
    %p126 = por %p124, %p125
    %p128 = scmp.ne.s32.totalorder %s113, %s127
    %p129 = scmp.eq.s32.totalorder %s19, 0
    %p130 = por %p128, %p129
    %s132 = sadd.s32 %s131, 1
    %p135 = scmp.eq.s32.totalorder %s13, 1
    %p136 = scmp.ne.s32.totalorder %s131, %s133
    %p137 = scmp.eq.s32.totalorder %s13, 0
    %p138 = por %p136, %p137
    %p139 = scmp.ne.s32.totalorder %s131, %s133
    %p140 = scmp.eq.s32.totalorder %s18, 1
    %p141 = por %p139, %p140
    %p142 = scmp.ne.s32.totalorder %s133, %s134
    %p143 = scmp.eq.s32.totalorder %s18, 0
    %p144 = por %p142, %p143
    %p145 = scmp.ne.s32.totalorder %s133, %s134
    %p146 = scmp.eq.s32.totalorder %s19, 1
    %p147 = por %p145, %p146
    %p149 = scmp.ne.s32.totalorder %s134, %s148
    %p150 = scmp.eq.s32.totalorder %s19, 0
    %p151 = por %p149, %p150
    %s153 = sadd.s32 %s152, 1
    %p156 = scmp.eq.s32.totalorder %s13, 1
    %p157 = scmp.ne.s32.totalorder %s152, %s154
    %p158 = scmp.eq.s32.totalorder %s13, 0
    %p159 = por %p157, %p158
    %p160 = scmp.ne.s32.totalorder %s152, %s154
    %p161 = scmp.eq.s32.totalorder %s18, 1
    %p162 = por %p160, %p161
    %p163 = scmp.ne.s32.totalorder %s154, %s155
    %p164 = scmp.eq.s32.totalorder %s18, 0
    %p165 = por %p163, %p164
    %p166 = scmp.ne.s32.totalorder %s154, %s155
    %p167 = scmp.eq.s32.totalorder %s19, 1
    %p168 = por %p166, %p167
    %p170 = scmp.ne.s32.totalorder %s155, %s169
    %p171 = scmp.eq.s32.totalorder %s19, 0
    %p172 = por %p170, %p171
    %s173 = ssub.s32 %s13, %s20
    %p174 = scmp.eq.s32.totalorder %s173, 0
    %s176 = sadd.s32 %s175, 1
    %s177 = scalar_select %p174, %s175, %s176
    %p180 = pneg %p174
    %p181 = scmp.eq.s32.totalorder %s13, 1
    %p182 = por %p180, %p181
    %p183 = scmp.ne.s32.totalorder %s175, %s178
    %p184 = scmp.eq.s32.totalorder %s13, 0
    %p185 = por %p183, %p184
    %p186 = scmp.ne.s32.totalorder %s175, %s178
    %p187 = scmp.eq.s32.totalorder %s18, 1
    %p188 = por %p186, %p187
    %p189 = scmp.ne.s32.totalorder %s178, %s179
    %p190 = scmp.eq.s32.totalorder %s18, 0
    %p191 = por %p189, %p190
    %p192 = scmp.ne.s32.totalorder %s178, %s179
    %p193 = scmp.eq.s32.totalorder %s19, 1
    %p194 = por %p192, %p193
    %p196 = scmp.ne.s32.totalorder %s179, %s195
    %p197 = scmp.eq.s32.totalorder %s19, 0
    %p198 = por %p196, %p197
    %p199 = scmp.le.s32.totalorder 1, %s13
    %p200 = scmp.lt.s32.totalorder %s13, 3
    %p201 = pnand %p199, %p200
    %p202 = pneg %p201
    // Predicated region
    $region9: #{tpu_custom_call.1} parent=5 // pred_check
      _
    $region10: #{tpu_custom_call.1} parent=5 // pred_check_branch
      %204 = sbr.rel (%p201) target = $region12
    $region11: #{tpu_custom_call.1} parent=5 // pred_region
      %s205 = ssub.s32 %s13, 1
      // Predicated region
      $region13: #{tpu_custom_call.1} parent=11 // pred_check
        %p206 = pneg %p60
      $region14: #{tpu_custom_call.1} parent=11 // pred_check_branch
        %208 = sbr.rel (%p206) target = $region16
      $region15: #{tpu_custom_call.1} parent=11 // pred_region
        _
      $region16: #{tpu_custom_call.1} parent=11 // pred_fallthru
        _
      // Predicated region
      $region17: #{tpu_custom_call.1} parent=11 // pred_check
        %p209 = pneg %p81
      $region18: #{tpu_custom_call.1} parent=11 // pred_check_branch
        %211 = sbr.rel (%p209) target = $region20
      $region19: #{tpu_custom_call.1} parent=11 // pred_region
        _
      $region20: #{tpu_custom_call.1} parent=11 // pred_fallthru
        _
      // Predicated region
      $region21: #{tpu_custom_call.1} parent=11 // pred_check
        %p212 = pneg %p102
      $region22: #{tpu_custom_call.1} parent=11 // pred_check_branch
        %214 = sbr.rel (%p212) target = $region24
      $region23: #{tpu_custom_call.1} parent=11 // pred_region
        _
      $region24: #{tpu_custom_call.1} parent=11 // pred_fallthru
        _
      // Predicated region
      $region25: #{tpu_custom_call.1} parent=11 // pred_check
        %p215 = pneg %p123
      $region26: #{tpu_custom_call.1} parent=11 // pred_check_branch
        %217 = sbr.rel (%p215) target = $region28
      $region27: #{tpu_custom_call.1} parent=11 // pred_region
        _
      $region28: #{tpu_custom_call.1} parent=11 // pred_fallthru
        _
      // Predicated region
      $region29: #{tpu_custom_call.1} parent=11 // pred_check
        %p218 = pneg %p144
      $region30: #{tpu_custom_call.1} parent=11 // pred_check_branch
        %220 = sbr.rel (%p218) target = $region32
      $region31: #{tpu_custom_call.1} parent=11 // pred_region
        _
      $region32: #{tpu_custom_call.1} parent=11 // pred_fallthru
        _
      // Predicated region
      $region33: #{tpu_custom_call.1} parent=11 // pred_check
        %p221 = pneg %p165
      $region34: #{tpu_custom_call.1} parent=11 // pred_check_branch
        %223 = sbr.rel (%p221) target = $region36
      $region35: #{tpu_custom_call.1} parent=11 // pred_region
        _
      $region36: #{tpu_custom_call.1} parent=11 // pred_fallthru
        _
    $region12: #{tpu_custom_call.1} parent=5 // pred_fallthru
      _
    %p224 = scmp.lt.s32.totalorder %s13, 2
    // Predicated region
    $region37: #{tpu_custom_call.1} parent=5 // pred_check
      %p225 = pneg %p224
    $region38: #{tpu_custom_call.1} parent=5 // pred_check_branch
      %227 = sbr.rel (%p225) target = $region40
    $region39: #{tpu_custom_call.1} parent=5 // pred_region
      // Predicated region
      $region41: #{tpu_custom_call.1} parent=39 // pred_check
        %p228 = pneg %p33
      $region42: #{tpu_custom_call.1} parent=39 // pred_check_branch
        %230 = sbr.rel (%p228) target = $region44
      $region43: #{tpu_custom_call.1} parent=39 // pred_region
        %p231 = scmp.lt.s32.totalorder %s13, 1
        %s232 = scalar_select %p231, %s13, 1
        %s233 = smul.addr %s232, 32
        %s234 = smul.addr %s233, 8
        %s235 = scalar_lea.vmem %s0, %s234
      $region44: #{tpu_custom_call.1} parent=39 // pred_fallthru
        _
    $region40: #{tpu_custom_call.1} parent=5 // pred_fallthru
      _
    %p236 = scmp.le.s32.totalorder 1, %s13
    %p237 = scmp.lt.s32.totalorder %s13, 3
    %p238 = pnand %p236, %p237
    %p239 = pneg %p238
    // Predicated region
    $region45: #{tpu_custom_call.1} parent=5 // pred_check
      _
    $region46: #{tpu_custom_call.1} parent=5 // pred_check_branch
      %241 = sbr.rel (%p238) target = $region48
    $region47: #{tpu_custom_call.1} parent=5 // pred_region
      %s242 = ssub.s32 %s13, 1
      %p243 = scmp.lt.s32.totalorder %s18, 1
      %s244 = scalar_select %p243, %s18, 1
      %s245 = smul.addr %s244, 32
      %s246 = smul.addr %s245, 8
      %s247 = scalar_lea.vmem %s0, %s246
      %p248 = pneg %p39
      %p249 = pneg %p36
      %p250 = pneg %p60
      %p251 = pneg %p57
      %p252 = pneg %p81
      %p253 = pneg %p78
      %p254 = pneg %p102
      %p255 = pneg %p99
      %p256 = pneg %p123
      %p257 = pneg %p120
      %p258 = pneg %p144
      %p259 = pneg %p141
      %p260 = pneg %p165
      %p261 = pneg %p162
      %p262 = pneg %p191
      %p263 = pneg %p188
      %p264 = scmp.lt.s32.totalorder %s18, 1
      %s265 = scalar_select %p264, %s18, 1
      %s266 = smul.addr %s265, 32
      %s267 = smul.addr %s266, 8
      %s268 = scalar_lea.vmem %s7, %s267
      %p269 = scmp.lt.s32.totalorder %s18, 1
      %s270 = scalar_select %p269, %s18, 1
      %s271 = smul.addr %s270, 32
      %s272 = smul.addr %s271, 8
      %s273 = scalar_lea.vmem %s0, %s272
      %p274 = scmp.lt.s32.totalorder %s18, 1
      %s275 = scalar_select %p274, %s18, 1
      %s276 = smul.addr %s275, 32
      %s277 = smul.addr %s276, 8
      %s278 = scalar_lea.vmem %s7, %s277
      %vm279 = vcmask 64512
      %280 = vst.msk [vmem:[#allocation2] sm:$0xff] %vm279, 0.0
      %281 = vst.msk [vmem:[#allocation2 + $0x8] sm:$0xff] %vm279, 0.0
      %282 = vst.msk [vmem:[#allocation2 + $0x10] sm:$0xff] %vm279, 0.0
      %283 = vst.msk [vmem:[#allocation2 + $0x18] sm:$0xff] %vm279, 0.0
      %284 = vst.msk [vmem:[#allocation2 + $0x20] sm:$0xff] %vm279, 0.0
      %285 = vst.msk [vmem:[#allocation2 + $0x28] sm:$0xff] %vm279, 0.0
      %286 = vst.msk [vmem:[#allocation2 + $0x30] sm:$0xff] %vm279, 0.0
      %287 = vst.msk [vmem:[#allocation2 + $0x38] sm:$0xff] %vm279, 0.0
      %288 = vst.msk [vmem:[#allocation2 + $0x40] sm:$0xff] %vm279, 0.0
      %289 = vst.msk [vmem:[#allocation2 + $0x48] sm:$0xff] %vm279, 0.0
      %290 = vst.msk [vmem:[#allocation2 + $0x50] sm:$0xff] %vm279, 0.0
      %291 = vst.msk [vmem:[#allocation2 + $0x58] sm:$0xff] %vm279, 0.0
      %292 = vst.msk [vmem:[#allocation2 + $0x60] sm:$0xff] %vm279, 0.0
      %293 = vst.msk [vmem:[#allocation2 + $0x68] sm:$0xff] %vm279, 0.0
      %294 = vst.msk [vmem:[#allocation2 + $0x70] sm:$0xff] %vm279, 0.0
      %295 = vst.msk [vmem:[#allocation2 + $0x78] sm:$0xff] %vm279, 0.0
      %296 = vst.msk [vmem:[#allocation2 + $0x80] sm:$0xff] %vm279, 0.0
      %297 = vst.msk [vmem:[#allocation2 + $0x88] sm:$0xff] %vm279, 0.0
      %298 = vst.msk [vmem:[#allocation2 + $0x90] sm:$0xff] %vm279, 0.0
      %299 = vst.msk [vmem:[#allocation2 + $0x98] sm:$0xff] %vm279, 0.0
      %300 = vst.msk [vmem:[#allocation2 + $0xa0] sm:$0xff] %vm279, 0.0
      %301 = vst.msk [vmem:[#allocation2 + $0xa8] sm:$0xff] %vm279, 0.0
      %302 = vst.msk [vmem:[#allocation2 + $0xb0] sm:$0xff] %vm279, 0.0
      %303 = vst.msk [vmem:[#allocation2 + $0xb8] sm:$0xff] %vm279, 0.0
      %304 = vst.msk [vmem:[#allocation2 + $0xc0] sm:$0xff] %vm279, 0.0
      %305 = vst.msk [vmem:[#allocation2 + $0xc8] sm:$0xff] %vm279, 0.0
      %306 = vst.msk [vmem:[#allocation2 + $0xd0] sm:$0xff] %vm279, 0.0
      %307 = vst.msk [vmem:[#allocation2 + $0xd8] sm:$0xff] %vm279, 0.0
      %308 = vst.msk [vmem:[#allocation2 + $0xe0] sm:$0xff] %vm279, 0.0
      %309 = vst.msk [vmem:[#allocation2 + $0xe8] sm:$0xff] %vm279, 0.0
      %310 = vst.msk [vmem:[#allocation2 + $0xf0] sm:$0xff] %vm279, 0.0
      %311 = vst.msk [vmem:[#allocation2 + $0xf8] sm:$0xff] %vm279, 0.0
      %312 = vst.msk [vmem:[#allocation2 + $0x100] sm:$0xff] %vm279, 0.0
      %313 = vst.msk [vmem:[#allocation2 + $0x108] sm:$0xff] %vm279, 0.0
      %314 = vst.msk [vmem:[#allocation2 + $0x110] sm:$0xff] %vm279, 0.0
      %315 = vst.msk [vmem:[#allocation2 + $0x118] sm:$0xff] %vm279, 0.0
      %316 = vst.msk [vmem:[#allocation2 + $0x120] sm:$0xff] %vm279, 0.0
      %317 = vst.msk [vmem:[#allocation2 + $0x128] sm:$0xff] %vm279, 0.0
      %318 = vst.msk [vmem:[#allocation2 + $0x130] sm:$0xff] %vm279, 0.0
      %319 = vst.msk [vmem:[#allocation2 + $0x138] sm:$0xff] %vm279, 0.0
      %320 = vst.msk [vmem:[#allocation2 + $0x140] sm:$0xff] %vm279, 0.0
      %321 = vst.msk [vmem:[#allocation2 + $0x148] sm:$0xff] %vm279, 0.0
      %322 = vst.msk [vmem:[#allocation2 + $0x150] sm:$0xff] %vm279, 0.0
      %323 = vst.msk [vmem:[#allocation2 + $0x158] sm:$0xff] %vm279, 0.0
      %324 = vst.msk [vmem:[#allocation2 + $0x160] sm:$0xff] %vm279, 0.0
      %325 = vst.msk [vmem:[#allocation2 + $0x168] sm:$0xff] %vm279, 0.0
      %326 = vst.msk [vmem:[#allocation2 + $0x170] sm:$0xff] %vm279, 0.0
      %327 = vst.msk [vmem:[#allocation2 + $0x178] sm:$0xff] %vm279, 0.0
      %328 = vst.msk [vmem:[#allocation2 + $0x180] sm:$0xff] %vm279, 0.0
      %329 = vst.msk [vmem:[#allocation2 + $0x188] sm:$0xff] %vm279, 0.0
      %330 = vst.msk [vmem:[#allocation2 + $0x190] sm:$0xff] %vm279, 0.0
      %331 = vst.msk [vmem:[#allocation2 + $0x198] sm:$0xff] %vm279, 0.0
      %332 = vst.msk [vmem:[#allocation2 + $0x1a0] sm:$0xff] %vm279, 0.0
      %333 = vst.msk [vmem:[#allocation2 + $0x1a8] sm:$0xff] %vm279, 0.0
      %334 = vst.msk [vmem:[#allocation2 + $0x1b0] sm:$0xff] %vm279, 0.0
      %335 = vst.msk [vmem:[#allocation2 + $0x1b8] sm:$0xff] %vm279, 0.0
      %336 = vst.msk [vmem:[#allocation2 + $0x1c0] sm:$0xff] %vm279, 0.0
      %337 = vst.msk [vmem:[#allocation2 + $0x1c8] sm:$0xff] %vm279, 0.0
      %338 = vst.msk [vmem:[#allocation2 + $0x1d0] sm:$0xff] %vm279, 0.0
      %339 = vst.msk [vmem:[#allocation2 + $0x1d8] sm:$0xff] %vm279, 0.0
      %340 = vst.msk [vmem:[#allocation2 + $0x1e0] sm:$0xff] %vm279, 0.0
      %341 = vst.msk [vmem:[#allocation2 + $0x1e8] sm:$0xff] %vm279, 0.0
      %342 = vst.msk [vmem:[#allocation2 + $0x1f0] sm:$0xff] %vm279, 0.0
      %343 = vst.msk [vmem:[#allocation2 + $0x1f8] sm:$0xff] %vm279, 0.0
      %344 = vst.msk [vmem:[#allocation2 + $0x200] sm:$0xff] %vm279, 0.0
      %345 = vst.msk [vmem:[#allocation2 + $0x208] sm:$0xff] %vm279, 0.0
      %346 = vst.msk [vmem:[#allocation2 + $0x210] sm:$0xff] %vm279, 0.0
      %347 = vst.msk [vmem:[#allocation2 + $0x218] sm:$0xff] %vm279, 0.0
      %348 = vst.msk [vmem:[#allocation2 + $0x220] sm:$0xff] %vm279, 0.0
      %349 = vst.msk [vmem:[#allocation2 + $0x228] sm:$0xff] %vm279, 0.0
      %350 = vst.msk [vmem:[#allocation2 + $0x230] sm:$0xff] %vm279, 0.0
      %351 = vst.msk [vmem:[#allocation2 + $0x238] sm:$0xff] %vm279, 0.0
      %vm352 = vcmask 523264
      %353 = vst.msk [vmem:[#allocation3] sm:$0xff] %vm352, 0.0
      %354 = vst.msk [vmem:[#allocation3 + $0x8] sm:$0xff] %vm352, 0.0
      %355 = vst.msk [vmem:[#allocation3 + $0x10] sm:$0xff] %vm352, 0.0
      %356 = vst.msk [vmem:[#allocation3 + $0x18] sm:$0xff] %vm352, 0.0
      %357 = vst.msk [vmem:[#allocation3 + $0x20] sm:$0xff] %vm352, 0.0
      %358 = vst.msk [vmem:[#allocation3 + $0x28] sm:$0xff] %vm352, 0.0
      %359 = vst.msk [vmem:[#allocation3 + $0x30] sm:$0xff] %vm352, 0.0
      %360 = vst.msk [vmem:[#allocation3 + $0x38] sm:$0xff] %vm352, 0.0
      %361 = vst.msk [vmem:[#allocation3 + $0x40] sm:$0xff] %vm352, 0.0
      %362 = vst.msk [vmem:[#allocation3 + $0x48] sm:$0xff] %vm352, 0.0
      %363 = vst.msk [vmem:[#allocation3 + $0x50] sm:$0xff] %vm352, 0.0
      %364 = vst.msk [vmem:[#allocation3 + $0x58] sm:$0xff] %vm352, 0.0
      %365 = vst.msk [vmem:[#allocation3 + $0x60] sm:$0xff] %vm352, 0.0
      %366 = vst.msk [vmem:[#allocation3 + $0x68] sm:$0xff] %vm352, 0.0
      %367 = vst.msk [vmem:[#allocation3 + $0x70] sm:$0xff] %vm352, 0.0
      %368 = vst.msk [vmem:[#allocation3 + $0x78] sm:$0xff] %vm352, 0.0
      %369 = vst.msk [vmem:[#allocation3 + $0x80] sm:$0xff] %vm352, 0.0
      %370 = vst.msk [vmem:[#allocation3 + $0x88] sm:$0xff] %vm352, 0.0
      %371 = vst.msk [vmem:[#allocation3 + $0x90] sm:$0xff] %vm352, 0.0
      %372 = vst.msk [vmem:[#allocation3 + $0x98] sm:$0xff] %vm352, 0.0
      %373 = vst.msk [vmem:[#allocation3 + $0xa0] sm:$0xff] %vm352, 0.0
      %374 = vst.msk [vmem:[#allocation3 + $0xa8] sm:$0xff] %vm352, 0.0
      %375 = vst.msk [vmem:[#allocation3 + $0xb0] sm:$0xff] %vm352, 0.0
      %376 = vst.msk [vmem:[#allocation3 + $0xb8] sm:$0xff] %vm352, 0.0
      %377 = vst.msk [vmem:[#allocation3 + $0xc0] sm:$0xff] %vm352, 0.0
      %378 = vst.msk [vmem:[#allocation3 + $0xc8] sm:$0xff] %vm352, 0.0
      %379 = vst.msk [vmem:[#allocation3 + $0xd0] sm:$0xff] %vm352, 0.0
      %380 = vst.msk [vmem:[#allocation3 + $0xd8] sm:$0xff] %vm352, 0.0
      %381 = vst.msk [vmem:[#allocation3 + $0xe0] sm:$0xff] %vm352, 0.0
      %382 = vst.msk [vmem:[#allocation3 + $0xe8] sm:$0xff] %vm352, 0.0
      %383 = vst.msk [vmem:[#allocation3 + $0xf0] sm:$0xff] %vm352, 0.0
      %384 = vst.msk [vmem:[#allocation3 + $0xf8] sm:$0xff] %vm352, 0.0
      %385 = vst.msk [vmem:[#allocation3 + $0x100] sm:$0xff] %vm352, 0.0
      %386 = vst.msk [vmem:[#allocation3 + $0x108] sm:$0xff] %vm352, 0.0
      %387 = vst.msk [vmem:[#allocation3 + $0x110] sm:$0xff] %vm352, 0.0
      %388 = vst.msk [vmem:[#allocation3 + $0x118] sm:$0xff] %vm352, 0.0
      %389 = vst.msk [vmem:[#allocation3 + $0x120] sm:$0xff] %vm352, 0.0
      %390 = vst.msk [vmem:[#allocation3 + $0x128] sm:$0xff] %vm352, 0.0
      %391 = vst.msk [vmem:[#allocation3 + $0x130] sm:$0xff] %vm352, 0.0
      %392 = vst.msk [vmem:[#allocation3 + $0x138] sm:$0xff] %vm352, 0.0
      %393 = vst.msk [vmem:[#allocation3 + $0x140] sm:$0xff] %vm352, 0.0
      %394 = vst.msk [vmem:[#allocation3 + $0x148] sm:$0xff] %vm352, 0.0
      %395 = vst.msk [vmem:[#allocation3 + $0x150] sm:$0xff] %vm352, 0.0
      %396 = vst.msk [vmem:[#allocation3 + $0x158] sm:$0xff] %vm352, 0.0
      %397 = vst.msk [vmem:[#allocation3 + $0x160] sm:$0xff] %vm352, 0.0
      %398 = vst.msk [vmem:[#allocation3 + $0x168] sm:$0xff] %vm352, 0.0
      %399 = vst.msk [vmem:[#allocation3 + $0x170] sm:$0xff] %vm352, 0.0
      %400 = vst.msk [vmem:[#allocation3 + $0x178] sm:$0xff] %vm352, 0.0
      %401 = vst.msk [vmem:[#allocation3 + $0x180] sm:$0xff] %vm352, 0.0
      %402 = vst.msk [vmem:[#allocation3 + $0x188] sm:$0xff] %vm352, 0.0
      %403 = vst.msk [vmem:[#allocation3 + $0x190] sm:$0xff] %vm352, 0.0
      %404 = vst.msk [vmem:[#allocation3 + $0x198] sm:$0xff] %vm352, 0.0
      %405 = vst.msk [vmem:[#allocation3 + $0x1a0] sm:$0xff] %vm352, 0.0
      %406 = vst.msk [vmem:[#allocation3 + $0x1a8] sm:$0xff] %vm352, 0.0
      %407 = vst.msk [vmem:[#allocation3 + $0x1b0] sm:$0xff] %vm352, 0.0
      %408 = vst.msk [vmem:[#allocation3 + $0x1b8] sm:$0xff] %vm352, 0.0
      %409 = vst.msk [vmem:[#allocation3 + $0x1c0] sm:$0xff] %vm352, 0.0
      %410 = vst.msk [vmem:[#allocation3 + $0x1c8] sm:$0xff] %vm352, 0.0
      %411 = vst.msk [vmem:[#allocation3 + $0x1d0] sm:$0xff] %vm352, 0.0
      %412 = vst.msk [vmem:[#allocation3 + $0x1d8] sm:$0xff] %vm352, 0.0
      %413 = vst.msk [vmem:[#allocation3 + $0x1e0] sm:$0xff] %vm352, 0.0
      %414 = vst.msk [vmem:[#allocation3 + $0x1e8] sm:$0xff] %vm352, 0.0
      %415 = vst.msk [vmem:[#allocation3 + $0x1f0] sm:$0xff] %vm352, 0.0
      %416 = vst.msk [vmem:[#allocation3 + $0x1f8] sm:$0xff] %vm352, 0.0
      %417 = vst.msk [vmem:[#allocation3 + $0x200] sm:$0xff] %vm352, 0.0
      %418 = vst.msk [vmem:[#allocation3 + $0x208] sm:$0xff] %vm352, 0.0
      %419 = vst.msk [vmem:[#allocation3 + $0x210] sm:$0xff] %vm352, 0.0
      %420 = vst.msk [vmem:[#allocation3 + $0x218] sm:$0xff] %vm352, 0.0
      %421 = vst.msk [vmem:[#allocation3 + $0x220] sm:$0xff] %vm352, 0.0
      %422 = vst.msk [vmem:[#allocation3 + $0x228] sm:$0xff] %vm352, 0.0
      %423 = vst.msk [vmem:[#allocation3 + $0x230] sm:$0xff] %vm352, 0.0
      %424 = vst.msk [vmem:[#allocation3 + $0x238] sm:$0xff] %vm352, 0.0
      %425 = vst.msk [vmem:[#allocation4] sm:$0xff] %vm352, 0.0
      %426 = vst.msk [vmem:[#allocation4 + $0x8] sm:$0xff] %vm352, 0.0
      %427 = vst.msk [vmem:[#allocation4 + $0x10] sm:$0xff] %vm352, 0.0
      %428 = vst.msk [vmem:[#allocation4 + $0x18] sm:$0xff] %vm352, 0.0
      %429 = vst.msk [vmem:[#allocation4 + $0x20] sm:$0xff] %vm352, 0.0
      %430 = vst.msk [vmem:[#allocation4 + $0x28] sm:$0xff] %vm352, 0.0
      %431 = vst.msk [vmem:[#allocation4 + $0x30] sm:$0xff] %vm352, 0.0
      %432 = vst.msk [vmem:[#allocation4 + $0x38] sm:$0xff] %vm352, 0.0
      %433 = vst.msk [vmem:[#allocation4 + $0x40] sm:$0xff] %vm352, 0.0
      %434 = vst.msk [vmem:[#allocation4 + $0x48] sm:$0xff] %vm352, 0.0
      %435 = vst.msk [vmem:[#allocation4 + $0x50] sm:$0xff] %vm352, 0.0
      %436 = vst.msk [vmem:[#allocation4 + $0x58] sm:$0xff] %vm352, 0.0
      %437 = vst.msk [vmem:[#allocation4 + $0x60] sm:$0xff] %vm352, 0.0
      %438 = vst.msk [vmem:[#allocation4 + $0x68] sm:$0xff] %vm352, 0.0
      %439 = vst.msk [vmem:[#allocation4 + $0x70] sm:$0xff] %vm352, 0.0
      %440 = vst.msk [vmem:[#allocation4 + $0x78] sm:$0xff] %vm352, 0.0
      %441 = vst.msk [vmem:[#allocation4 + $0x80] sm:$0xff] %vm352, 0.0
      %442 = vst.msk [vmem:[#allocation4 + $0x88] sm:$0xff] %vm352, 0.0
      %443 = vst.msk [vmem:[#allocation4 + $0x90] sm:$0xff] %vm352, 0.0
      %444 = vst.msk [vmem:[#allocation4 + $0x98] sm:$0xff] %vm352, 0.0
      %445 = vst.msk [vmem:[#allocation4 + $0xa0] sm:$0xff] %vm352, 0.0
      %446 = vst.msk [vmem:[#allocation4 + $0xa8] sm:$0xff] %vm352, 0.0
      %447 = vst.msk [vmem:[#allocation4 + $0xb0] sm:$0xff] %vm352, 0.0
      %448 = vst.msk [vmem:[#allocation4 + $0xb8] sm:$0xff] %vm352, 0.0
      %449 = vst.msk [vmem:[#allocation4 + $0xc0] sm:$0xff] %vm352, 0.0
      %450 = vst.msk [vmem:[#allocation4 + $0xc8] sm:$0xff] %vm352, 0.0
      %451 = vst.msk [vmem:[#allocation4 + $0xd0] sm:$0xff] %vm352, 0.0
      %452 = vst.msk [vmem:[#allocation4 + $0xd8] sm:$0xff] %vm352, 0.0
      %453 = vst.msk [vmem:[#allocation4 + $0xe0] sm:$0xff] %vm352, 0.0
      %454 = vst.msk [vmem:[#allocation4 + $0xe8] sm:$0xff] %vm352, 0.0
      %455 = vst.msk [vmem:[#allocation4 + $0xf0] sm:$0xff] %vm352, 0.0
      %456 = vst.msk [vmem:[#allocation4 + $0xf8] sm:$0xff] %vm352, 0.0
      %457 = vst.msk [vmem:[#allocation4 + $0x100] sm:$0xff] %vm352, 0.0
      %458 = vst.msk [vmem:[#allocation4 + $0x108] sm:$0xff] %vm352, 0.0
      %459 = vst.msk [vmem:[#allocation4 + $0x110] sm:$0xff] %vm352, 0.0
      %460 = vst.msk [vmem:[#allocation4 + $0x118] sm:$0xff] %vm352, 0.0
      %461 = vst.msk [vmem:[#allocation4 + $0x120] sm:$0xff] %vm352, 0.0
      %462 = vst.msk [vmem:[#allocation4 + $0x128] sm:$0xff] %vm352, 0.0
      %463 = vst.msk [vmem:[#allocation4 + $0x130] sm:$0xff] %vm352, 0.0
      %464 = vst.msk [vmem:[#allocation4 + $0x138] sm:$0xff] %vm352, 0.0
      %465 = vst.msk [vmem:[#allocation4 + $0x140] sm:$0xff] %vm352, 0.0
      %466 = vst.msk [vmem:[#allocation4 + $0x148] sm:$0xff] %vm352, 0.0
      %467 = vst.msk [vmem:[#allocation4 + $0x150] sm:$0xff] %vm352, 0.0
      %468 = vst.msk [vmem:[#allocation4 + $0x158] sm:$0xff] %vm352, 0.0
      %469 = vst.msk [vmem:[#allocation4 + $0x160] sm:$0xff] %vm352, 0.0
      %470 = vst.msk [vmem:[#allocation4 + $0x168] sm:$0xff] %vm352, 0.0
      %471 = vst.msk [vmem:[#allocation4 + $0x170] sm:$0xff] %vm352, 0.0
      %472 = vst.msk [vmem:[#allocation4 + $0x178] sm:$0xff] %vm352, 0.0
      %473 = vst.msk [vmem:[#allocation4 + $0x180] sm:$0xff] %vm352, 0.0
      %474 = vst.msk [vmem:[#allocation4 + $0x188] sm:$0xff] %vm352, 0.0
      %475 = vst.msk [vmem:[#allocation4 + $0x190] sm:$0xff] %vm352, 0.0
      %476 = vst.msk [vmem:[#allocation4 + $0x198] sm:$0xff] %vm352, 0.0
      %477 = vst.msk [vmem:[#allocation4 + $0x1a0] sm:$0xff] %vm352, 0.0
      %478 = vst.msk [vmem:[#allocation4 + $0x1a8] sm:$0xff] %vm352, 0.0
      %479 = vst.msk [vmem:[#allocation4 + $0x1b0] sm:$0xff] %vm352, 0.0
      %480 = vst.msk [vmem:[#allocation4 + $0x1b8] sm:$0xff] %vm352, 0.0
      %481 = vst.msk [vmem:[#allocation4 + $0x1c0] sm:$0xff] %vm352, 0.0
      %482 = vst.msk [vmem:[#allocation4 + $0x1c8] sm:$0xff] %vm352, 0.0
      %483 = vst.msk [vmem:[#allocation4 + $0x1d0] sm:$0xff] %vm352, 0.0
      %484 = vst.msk [vmem:[#allocation4 + $0x1d8] sm:$0xff] %vm352, 0.0
      %485 = vst.msk [vmem:[#allocation4 + $0x1e0] sm:$0xff] %vm352, 0.0
      %486 = vst.msk [vmem:[#allocation4 + $0x1e8] sm:$0xff] %vm352, 0.0
      %487 = vst.msk [vmem:[#allocation4 + $0x1f0] sm:$0xff] %vm352, 0.0
      %488 = vst.msk [vmem:[#allocation4 + $0x1f8] sm:$0xff] %vm352, 0.0
      %489 = vst.msk [vmem:[#allocation4 + $0x200] sm:$0xff] %vm352, 0.0
      %490 = vst.msk [vmem:[#allocation4 + $0x208] sm:$0xff] %vm352, 0.0
      %491 = vst.msk [vmem:[#allocation4 + $0x210] sm:$0xff] %vm352, 0.0
      %492 = vst.msk [vmem:[#allocation4 + $0x218] sm:$0xff] %vm352, 0.0
      %493 = vst.msk [vmem:[#allocation4 + $0x220] sm:$0xff] %vm352, 0.0
      %494 = vst.msk [vmem:[#allocation4 + $0x228] sm:$0xff] %vm352, 0.0
      %495 = vst.msk [vmem:[#allocation4 + $0x230] sm:$0xff] %vm352, 0.0
      %496 = vst.msk [vmem:[#allocation4 + $0x238] sm:$0xff] %vm352, 0.0
      %v497 = vld [vmem:[%s273] sm:$0xff]
      %v498 = vld [vmem:[%s273 + $0x8] sm:$0xff]
      %v499 = vld [vmem:[%s273 + $0x10] sm:$0xff]
      %v500 = vld [vmem:[%s273 + $0x18] sm:$0xff]
      %v501 = vld [vmem:[%s273 + $0x20] sm:$0xff]
      %v502 = vld [vmem:[%s273 + $0x28] sm:$0xff]
      %v503 = vld [vmem:[%s273 + $0x30] sm:$0xff]
      %v504 = vld [vmem:[%s273 + $0x38] sm:$0xff]
      %v505 = vld [vmem:[%s273 + $0x40] sm:$0xff]
      %v506 = vld [vmem:[%s273 + $0x48] sm:$0xff]
      %v507 = vld [vmem:[%s273 + $0x50] sm:$0xff]
      %v508 = vld [vmem:[%s273 + $0x58] sm:$0xff]
      %v509 = vld [vmem:[%s273 + $0x60] sm:$0xff]
      %v510 = vld [vmem:[%s273 + $0x68] sm:$0xff]
      %v511 = vld [vmem:[%s273 + $0x70] sm:$0xff]
      %v512 = vld [vmem:[%s273 + $0x78] sm:$0xff]
      %v513 = vld [vmem:[%s273 + $0x80] sm:$0xff]
      %v514 = vld [vmem:[%s273 + $0x88] sm:$0xff]
      %v515 = vld [vmem:[%s273 + $0x90] sm:$0xff]
      %v516 = vld [vmem:[%s273 + $0x98] sm:$0xff]
      %v517 = vld [vmem:[%s273 + $0xa0] sm:$0xff]
      %v518 = vld [vmem:[%s273 + $0xa8] sm:$0xff]
      %v519 = vld [vmem:[%s273 + $0xb0] sm:$0xff]
      %v520 = vld [vmem:[%s273 + $0xb8] sm:$0xff]
      %v521 = vld [vmem:[%s273 + $0xc0] sm:$0xff]
      %v522 = vld [vmem:[%s273 + $0xc8] sm:$0xff]
      %v523 = vld [vmem:[%s273 + $0xd0] sm:$0xff]
      %v524 = vld [vmem:[%s273 + $0xd8] sm:$0xff]
      %v525 = vld [vmem:[%s273 + $0xe0] sm:$0xff]
      %v526 = vld [vmem:[%s273 + $0xe8] sm:$0xff]
      %v527 = vld [vmem:[%s273 + $0xf0] sm:$0xff]
      %v528 = vld [vmem:[%s273 + $0xf8] sm:$0xff]
      %s529 = scalar_lea.vmem [#allocation2], 32
      %530 = vst.msk [vmem:[%s529 + $0x8] sm:$0xff] %vm279, %v497
      %531 = vst.msk [vmem:[%s529 + $0x10] sm:$0xff] %vm279, %v498
      %532 = vst.msk [vmem:[%s529 + $0x28] sm:$0xff] %vm279, %v499
      %533 = vst.msk [vmem:[%s529 + $0x30] sm:$0xff] %vm279, %v500
      %534 = vst.msk [vmem:[%s529 + $0x48] sm:$0xff] %vm279, %v501
      %535 = vst.msk [vmem:[%s529 + $0x50] sm:$0xff] %vm279, %v502
      %536 = vst.msk [vmem:[%s529 + $0x68] sm:$0xff] %vm279, %v503
      %537 = vst.msk [vmem:[%s529 + $0x70] sm:$0xff] %vm279, %v504
      %538 = vst.msk [vmem:[%s529 + $0x88] sm:$0xff] %vm279, %v505
      %539 = vst.msk [vmem:[%s529 + $0x90] sm:$0xff] %vm279, %v506
      %540 = vst.msk [vmem:[%s529 + $0xa8] sm:$0xff] %vm279, %v507
      %541 = vst.msk [vmem:[%s529 + $0xb0] sm:$0xff] %vm279, %v508
      %542 = vst.msk [vmem:[%s529 + $0xc8] sm:$0xff] %vm279, %v509
      %543 = vst.msk [vmem:[%s529 + $0xd0] sm:$0xff] %vm279, %v510
      %544 = vst.msk [vmem:[%s529 + $0xe8] sm:$0xff] %vm279, %v511
      %545 = vst.msk [vmem:[%s529 + $0xf0] sm:$0xff] %vm279, %v512
      %546 = vst.msk [vmem:[%s529 + $0x108] sm:$0xff] %vm279, %v513
      %547 = vst.msk [vmem:[%s529 + $0x110] sm:$0xff] %vm279, %v514
      %548 = vst.msk [vmem:[%s529 + $0x128] sm:$0xff] %vm279, %v515
      %549 = vst.msk [vmem:[%s529 + $0x130] sm:$0xff] %vm279, %v516
      %550 = vst.msk [vmem:[%s529 + $0x148] sm:$0xff] %vm279, %v517
      %551 = vst.msk [vmem:[%s529 + $0x150] sm:$0xff] %vm279, %v518
      %552 = vst.msk [vmem:[%s529 + $0x168] sm:$0xff] %vm279, %v519
      %553 = vst.msk [vmem:[%s529 + $0x170] sm:$0xff] %vm279, %v520
      %554 = vst.msk [vmem:[%s529 + $0x188] sm:$0xff] %vm279, %v521
      %555 = vst.msk [vmem:[%s529 + $0x190] sm:$0xff] %vm279, %v522
      %556 = vst.msk [vmem:[%s529 + $0x1a8] sm:$0xff] %vm279, %v523
      %557 = vst.msk [vmem:[%s529 + $0x1b0] sm:$0xff] %vm279, %v524
      %558 = vst.msk [vmem:[%s529 + $0x1c8] sm:$0xff] %vm279, %v525
      %559 = vst.msk [vmem:[%s529 + $0x1d0] sm:$0xff] %vm279, %v526
      %560 = vst.msk [vmem:[%s529 + $0x1e8] sm:$0xff] %vm279, %v527
      %561 = vst.msk [vmem:[%s529 + $0x1f0] sm:$0xff] %vm279, %v528
      %v562 = vld [vmem:[#allocation2 + $0x7] sm:$0xff]
      %v563 = vld [vmem:[#allocation2 + $0xf] sm:$0xff]
      %v564 = vld [vmem:[#allocation2 + $0x27] sm:$0xff]
      %v565 = vld [vmem:[#allocation2 + $0x2f] sm:$0xff]
      %v566 = vld [vmem:[#allocation2 + $0x47] sm:$0xff]
      %v567 = vld [vmem:[#allocation2 + $0x4f] sm:$0xff]
      %v568 = vld [vmem:[#allocation2 + $0x67] sm:$0xff]
      %v569 = vld [vmem:[#allocation2 + $0x6f] sm:$0xff]
      %v570 = vld [vmem:[#allocation2 + $0x87] sm:$0xff]
      %v571 = vld [vmem:[#allocation2 + $0x8f] sm:$0xff]
      %v572 = vld [vmem:[#allocation2 + $0xa7] sm:$0xff]
      %v573 = vld [vmem:[#allocation2 + $0xaf] sm:$0xff]
      %v574 = vld [vmem:[#allocation2 + $0xc7] sm:$0xff]
      %v575 = vld [vmem:[#allocation2 + $0xcf] sm:$0xff]
      %v576 = vld [vmem:[#allocation2 + $0xe7] sm:$0xff]
      %v577 = vld [vmem:[#allocation2 + $0xef] sm:$0xff]
      %v578 = vld [vmem:[#allocation2 + $0x107] sm:$0xff]
      %v579 = vld [vmem:[#allocation2 + $0x10f] sm:$0xff]
      %v580 = vld [vmem:[#allocation2 + $0x127] sm:$0xff]
      %v581 = vld [vmem:[#allocation2 + $0x12f] sm:$0xff]
      %v582 = vld [vmem:[#allocation2 + $0x147] sm:$0xff]
      %v583 = vld [vmem:[#allocation2 + $0x14f] sm:$0xff]
      %v584 = vld [vmem:[#allocation2 + $0x167] sm:$0xff]
      %v585 = vld [vmem:[#allocation2 + $0x16f] sm:$0xff]
      %v586 = vld [vmem:[#allocation2 + $0x187] sm:$0xff]
      %v587 = vld [vmem:[#allocation2 + $0x18f] sm:$0xff]
      %v588 = vld [vmem:[#allocation2 + $0x1a7] sm:$0xff]
      %v589 = vld [vmem:[#allocation2 + $0x1af] sm:$0xff]
      %v590 = vld [vmem:[#allocation2 + $0x1c7] sm:$0xff]
      %v591 = vld [vmem:[#allocation2 + $0x1cf] sm:$0xff]
      %v592 = vld [vmem:[#allocation2 + $0x1e7] sm:$0xff]
      %v593 = vld [vmem:[#allocation2 + $0x1ef] sm:$0xff]
      %v594 = vld [vmem:[#allocation2 + $0x8] sm:$0xff]
      %v595 = vld [vmem:[#allocation2 + $0x10] sm:$0xff]
      %v596 = vld [vmem:[#allocation2 + $0x28] sm:$0xff]
      %v597 = vld [vmem:[#allocation2 + $0x30] sm:$0xff]
      %v598 = vld [vmem:[#allocation2 + $0x48] sm:$0xff]
      %v599 = vld [vmem:[#allocation2 + $0x50] sm:$0xff]
      %v600 = vld [vmem:[#allocation2 + $0x68] sm:$0xff]
      %v601 = vld [vmem:[#allocation2 + $0x70] sm:$0xff]
      %v602 = vld [vmem:[#allocation2 + $0x88] sm:$0xff]
      %v603 = vld [vmem:[#allocation2 + $0x90] sm:$0xff]
      %v604 = vld [vmem:[#allocation2 + $0xa8] sm:$0xff]
      %v605 = vld [vmem:[#allocation2 + $0xb0] sm:$0xff]
      %v606 = vld [vmem:[#allocation2 + $0xc8] sm:$0xff]
      %v607 = vld [vmem:[#allocation2 + $0xd0] sm:$0xff]
      %v608 = vld [vmem:[#allocation2 + $0xe8] sm:$0xff]
      %v609 = vld [vmem:[#allocation2 + $0xf0] sm:$0xff]
      %v610 = vld [vmem:[#allocation2 + $0x108] sm:$0xff]
      %v611 = vld [vmem:[#allocation2 + $0x110] sm:$0xff]
      %v612 = vld [vmem:[#allocation2 + $0x128] sm:$0xff]
      %v613 = vld [vmem:[#allocation2 + $0x130] sm:$0xff]
      %v614 = vld [vmem:[#allocation2 + $0x148] sm:$0xff]
      %v615 = vld [vmem:[#allocation2 + $0x150] sm:$0xff]
      %v616 = vld [vmem:[#allocation2 + $0x168] sm:$0xff]
      %v617 = vld [vmem:[#allocation2 + $0x170] sm:$0xff]
      %v618 = vld [vmem:[#allocation2 + $0x188] sm:$0xff]
      %v619 = vld [vmem:[#allocation2 + $0x190] sm:$0xff]
      %v620 = vld [vmem:[#allocation2 + $0x1a8] sm:$0xff]
      %v621 = vld [vmem:[#allocation2 + $0x1b0] sm:$0xff]
      %v622 = vld [vmem:[#allocation2 + $0x1c8] sm:$0xff]
      %v623 = vld [vmem:[#allocation2 + $0x1d0] sm:$0xff]
      %v624 = vld [vmem:[#allocation2 + $0x1e8] sm:$0xff]
      %v625 = vld [vmem:[#allocation2 + $0x1f0] sm:$0xff]
      %v626 = vld [vmem:[#allocation2 + $0x9] sm:$0xff]
      %v627 = vld [vmem:[#allocation2 + $0x11] sm:$0xff]
      %v628 = vld [vmem:[#allocation2 + $0x29] sm:$0xff]
      %v629 = vld [vmem:[#allocation2 + $0x31] sm:$0xff]
      %v630 = vld [vmem:[#allocation2 + $0x49] sm:$0xff]
      %v631 = vld [vmem:[#allocation2 + $0x51] sm:$0xff]
      %v632 = vld [vmem:[#allocation2 + $0x69] sm:$0xff]
      %v633 = vld [vmem:[#allocation2 + $0x71] sm:$0xff]
      %v634 = vld [vmem:[#allocation2 + $0x89] sm:$0xff]
      %v635 = vld [vmem:[#allocation2 + $0x91] sm:$0xff]
      %v636 = vld [vmem:[#allocation2 + $0xa9] sm:$0xff]
      %v637 = vld [vmem:[#allocation2 + $0xb1] sm:$0xff]
      %v638 = vld [vmem:[#allocation2 + $0xc9] sm:$0xff]
      %v639 = vld [vmem:[#allocation2 + $0xd1] sm:$0xff]
      %v640 = vld [vmem:[#allocation2 + $0xe9] sm:$0xff]
      %v641 = vld [vmem:[#allocation2 + $0xf1] sm:$0xff]
      %v642 = vld [vmem:[#allocation2 + $0x109] sm:$0xff]
      %v643 = vld [vmem:[#allocation2 + $0x111] sm:$0xff]
      %v644 = vld [vmem:[#allocation2 + $0x129] sm:$0xff]
      %v645 = vld [vmem:[#allocation2 + $0x131] sm:$0xff]
      %v646 = vld [vmem:[#allocation2 + $0x149] sm:$0xff]
      %v647 = vld [vmem:[#allocation2 + $0x151] sm:$0xff]
      %v648 = vld [vmem:[#allocation2 + $0x169] sm:$0xff]
      %v649 = vld [vmem:[#allocation2 + $0x171] sm:$0xff]
      %v650 = vld [vmem:[#allocation2 + $0x189] sm:$0xff]
      %v651 = vld [vmem:[#allocation2 + $0x191] sm:$0xff]
      %v652 = vld [vmem:[#allocation2 + $0x1a9] sm:$0xff]
      %v653 = vld [vmem:[#allocation2 + $0x1b1] sm:$0xff]
      %v654 = vld [vmem:[#allocation2 + $0x1c9] sm:$0xff]
      %v655 = vld [vmem:[#allocation2 + $0x1d1] sm:$0xff]
      %v656 = vld [vmem:[#allocation2 + $0x1e9] sm:$0xff]
      %v657 = vld [vmem:[#allocation2 + $0x1f1] sm:$0xff]
      %690 = vrot.lane.b32.xlu0 %v594, 8
      %v691 = vpop.permute.xlu0 %690
      %692 = vrot.lane.b32.xlu0 %v595, 8
      %v693 = vpop.permute.xlu0 %692
      %694 = vrot.lane.b32.xlu0 %v596, 8
      %v695 = vpop.permute.xlu0 %694
      %696 = vrot.lane.b32.xlu0 %v597, 8
      %v697 = vpop.permute.xlu0 %696
      %698 = vrot.lane.b32.xlu0 %v598, 8
      %v699 = vpop.permute.xlu0 %698
      %700 = vrot.lane.b32.xlu0 %v599, 8
      %v701 = vpop.permute.xlu0 %700
      %702 = vrot.lane.b32.xlu0 %v600, 8
      %v703 = vpop.permute.xlu0 %702
      %704 = vrot.lane.b32.xlu0 %v601, 8
      %v705 = vpop.permute.xlu0 %704
      %706 = vrot.lane.b32.xlu0 %v602, 8
      %v707 = vpop.permute.xlu0 %706
      %708 = vrot.lane.b32.xlu0 %v603, 8
      %v709 = vpop.permute.xlu0 %708
      %710 = vrot.lane.b32.xlu0 %v604, 8
      %v711 = vpop.permute.xlu0 %710
      %712 = vrot.lane.b32.xlu0 %v605, 8
      %v713 = vpop.permute.xlu0 %712
      %714 = vrot.lane.b32.xlu0 %v606, 8
      %v715 = vpop.permute.xlu0 %714
      %716 = vrot.lane.b32.xlu0 %v607, 8
      %v717 = vpop.permute.xlu0 %716
      %718 = vrot.lane.b32.xlu0 %v608, 8
      %v719 = vpop.permute.xlu0 %718
      %720 = vrot.lane.b32.xlu0 %v609, 8
      %v721 = vpop.permute.xlu0 %720
      %722 = vrot.lane.b32.xlu0 %v610, 8
      %v723 = vpop.permute.xlu0 %722
      %724 = vrot.lane.b32.xlu0 %v611, 8
      %v725 = vpop.permute.xlu0 %724
      %726 = vrot.lane.b32.xlu0 %v612, 8
      %v727 = vpop.permute.xlu0 %726
      %728 = vrot.lane.b32.xlu0 %v613, 8
      %v729 = vpop.permute.xlu0 %728
      %730 = vrot.lane.b32.xlu0 %v614, 8
      %v731 = vpop.permute.xlu0 %730
      %732 = vrot.lane.b32.xlu0 %v615, 8
      %v733 = vpop.permute.xlu0 %732
      %734 = vrot.lane.b32.xlu0 %v616, 8
      %v735 = vpop.permute.xlu0 %734
      %736 = vrot.lane.b32.xlu0 %v617, 8
      %v737 = vpop.permute.xlu0 %736
      %738 = vrot.lane.b32.xlu0 %v618, 8
      %v739 = vpop.permute.xlu0 %738
      %740 = vrot.lane.b32.xlu0 %v619, 8
      %v741 = vpop.permute.xlu0 %740
      %742 = vrot.lane.b32.xlu0 %v620, 8
      %v743 = vpop.permute.xlu0 %742
      %744 = vrot.lane.b32.xlu0 %v621, 8
      %v745 = vpop.permute.xlu0 %744
      %746 = vrot.lane.b32.xlu0 %v622, 8
      %v747 = vpop.permute.xlu0 %746
      %748 = vrot.lane.b32.xlu0 %v623, 8
      %v749 = vpop.permute.xlu0 %748
      %750 = vrot.lane.b32.xlu0 %v624, 8
      %v751 = vpop.permute.xlu0 %750
      %752 = vrot.lane.b32.xlu0 %v625, 8
      %v753 = vpop.permute.xlu0 %752
      %818 = vrot.lane.b32.xlu0 %v626, 16
      %v819 = vpop.permute.xlu0 %818
      %820 = vrot.lane.b32.xlu0 %v627, 16
      %v821 = vpop.permute.xlu0 %820
      %822 = vrot.lane.b32.xlu0 %v628, 16
      %v823 = vpop.permute.xlu0 %822
      %824 = vrot.lane.b32.xlu0 %v629, 16
      %v825 = vpop.permute.xlu0 %824
      %826 = vrot.lane.b32.xlu0 %v630, 16
      %v827 = vpop.permute.xlu0 %826
      %828 = vrot.lane.b32.xlu0 %v631, 16
      %v829 = vpop.permute.xlu0 %828
      %830 = vrot.lane.b32.xlu0 %v632, 16
      %v831 = vpop.permute.xlu0 %830
      %832 = vrot.lane.b32.xlu0 %v633, 16
      %v833 = vpop.permute.xlu0 %832
      %834 = vrot.lane.b32.xlu0 %v634, 16
      %v835 = vpop.permute.xlu0 %834
      %836 = vrot.lane.b32.xlu0 %v635, 16
      %v837 = vpop.permute.xlu0 %836
      %838 = vrot.lane.b32.xlu0 %v636, 16
      %v839 = vpop.permute.xlu0 %838
      %840 = vrot.lane.b32.xlu0 %v637, 16
      %v841 = vpop.permute.xlu0 %840
      %842 = vrot.lane.b32.xlu0 %v638, 16
      %v843 = vpop.permute.xlu0 %842
      %844 = vrot.lane.b32.xlu0 %v639, 16
      %v845 = vpop.permute.xlu0 %844
      %846 = vrot.lane.b32.xlu0 %v640, 16
      %v847 = vpop.permute.xlu0 %846
      %848 = vrot.lane.b32.xlu0 %v641, 16
      %v849 = vpop.permute.xlu0 %848
      %850 = vrot.lane.b32.xlu0 %v642, 16
      %v851 = vpop.permute.xlu0 %850
      %852 = vrot.lane.b32.xlu0 %v643, 16
      %v853 = vpop.permute.xlu0 %852
      %854 = vrot.lane.b32.xlu0 %v644, 16
      %v855 = vpop.permute.xlu0 %854
      %856 = vrot.lane.b32.xlu0 %v645, 16
      %v857 = vpop.permute.xlu0 %856
      %858 = vrot.lane.b32.xlu0 %v646, 16
      %v859 = vpop.permute.xlu0 %858
      %860 = vrot.lane.b32.xlu0 %v647, 16
      %v861 = vpop.permute.xlu0 %860
      %862 = vrot.lane.b32.xlu0 %v648, 16
      %v863 = vpop.permute.xlu0 %862
      %864 = vrot.lane.b32.xlu0 %v649, 16
      %v865 = vpop.permute.xlu0 %864
      %866 = vrot.lane.b32.xlu0 %v650, 16
      %v867 = vpop.permute.xlu0 %866
      %868 = vrot.lane.b32.xlu0 %v651, 16
      %v869 = vpop.permute.xlu0 %868
      %870 = vrot.lane.b32.xlu0 %v652, 16
      %v871 = vpop.permute.xlu0 %870
      %872 = vrot.lane.b32.xlu0 %v653, 16
      %v873 = vpop.permute.xlu0 %872
      %874 = vrot.lane.b32.xlu0 %v654, 16
      %v875 = vpop.permute.xlu0 %874
      %876 = vrot.lane.b32.xlu0 %v655, 16
      %v877 = vpop.permute.xlu0 %876
      %878 = vrot.lane.b32.xlu0 %v656, 16
      %v879 = vpop.permute.xlu0 %878
      %880 = vrot.lane.b32.xlu0 %v657, 16
      %v881 = vpop.permute.xlu0 %880
      %v914 = vsel %vm279, %v562, %v691
      %v915 = vsel %vm279, %v563, %v693
      %v916 = vsel %vm279, %v564, %v695
      %v917 = vsel %vm279, %v565, %v697
      %v918 = vsel %vm279, %v566, %v699
      %v919 = vsel %vm279, %v567, %v701
      %v920 = vsel %vm279, %v568, %v703
      %v921 = vsel %vm279, %v569, %v705
      %v922 = vsel %vm279, %v570, %v707
      %v923 = vsel %vm279, %v571, %v709
      %v924 = vsel %vm279, %v572, %v711
      %v925 = vsel %vm279, %v573, %v713
      %v926 = vsel %vm279, %v574, %v715
      %v927 = vsel %vm279, %v575, %v717
      %v928 = vsel %vm279, %v576, %v719
      %v929 = vsel %vm279, %v577, %v721
      %v930 = vsel %vm279, %v578, %v723
      %v931 = vsel %vm279, %v579, %v725
      %v932 = vsel %vm279, %v580, %v727
      %v933 = vsel %vm279, %v581, %v729
      %v934 = vsel %vm279, %v582, %v731
      %v935 = vsel %vm279, %v583, %v733
      %v936 = vsel %vm279, %v584, %v735
      %v937 = vsel %vm279, %v585, %v737
      %v938 = vsel %vm279, %v586, %v739
      %v939 = vsel %vm279, %v587, %v741
      %v940 = vsel %vm279, %v588, %v743
      %v941 = vsel %vm279, %v589, %v745
      %v942 = vsel %vm279, %v590, %v747
      %v943 = vsel %vm279, %v591, %v749
      %v944 = vsel %vm279, %v592, %v751
      %v945 = vsel %vm279, %v593, %v753
      %vm946 = vcmask 130048
      %v947 = vsel %vm946, %v914, %v819
      %v948 = vsel %vm946, %v915, %v821
      %v949 = vsel %vm946, %v916, %v823
      %v950 = vsel %vm946, %v917, %v825
      %v951 = vsel %vm946, %v918, %v827
      %v952 = vsel %vm946, %v919, %v829
      %v953 = vsel %vm946, %v920, %v831
      %v954 = vsel %vm946, %v921, %v833
      %v955 = vsel %vm946, %v922, %v835
      %v956 = vsel %vm946, %v923, %v837
      %v957 = vsel %vm946, %v924, %v839
      %v958 = vsel %vm946, %v925, %v841
      %v959 = vsel %vm946, %v926, %v843
      %v960 = vsel %vm946, %v927, %v845
      %v961 = vsel %vm946, %v928, %v847
      %v962 = vsel %vm946, %v929, %v849
      %v963 = vsel %vm946, %v930, %v851
      %v964 = vsel %vm946, %v931, %v853
      %v965 = vsel %vm946, %v932, %v855
      %v966 = vsel %vm946, %v933, %v857
      %v967 = vsel %vm946, %v934, %v859
      %v968 = vsel %vm946, %v935, %v861
      %v969 = vsel %vm946, %v936, %v863
      %v970 = vsel %vm946, %v937, %v865
      %v971 = vsel %vm946, %v938, %v867
      %v972 = vsel %vm946, %v939, %v869
      %v973 = vsel %vm946, %v940, %v871
      %v974 = vsel %vm946, %v941, %v873
      %v975 = vsel %vm946, %v942, %v875
      %v976 = vsel %vm946, %v943, %v877
      %v977 = vsel %vm946, %v944, %v879
      %v978 = vsel %vm946, %v945, %v881
      %v979 = vld [vmem:[%s1] sm:$0xff]
      %v980 = vld [vmem:[%s1 + $0x8] sm:$0xff]
      %v981 = vld [vmem:[%s1 + $0x10] sm:$0xff]
      %v982 = vld [vmem:[%s529 + $0x7] sm:$0xff]
      %v983 = vld [vmem:[%s529 + $0xf] sm:$0xff]
      %v984 = vld [vmem:[%s529 + $0x27] sm:$0xff]
      %v985 = vld [vmem:[%s529 + $0x2f] sm:$0xff]
      %v986 = vld [vmem:[%s529 + $0x47] sm:$0xff]
      %v987 = vld [vmem:[%s529 + $0x4f] sm:$0xff]
      %v988 = vld [vmem:[%s529 + $0x67] sm:$0xff]
      %v989 = vld [vmem:[%s529 + $0x6f] sm:$0xff]
      %v990 = vld [vmem:[%s529 + $0x87] sm:$0xff]
      %v991 = vld [vmem:[%s529 + $0x8f] sm:$0xff]
      %v992 = vld [vmem:[%s529 + $0xa7] sm:$0xff]
      %v993 = vld [vmem:[%s529 + $0xaf] sm:$0xff]
      %v994 = vld [vmem:[%s529 + $0xc7] sm:$0xff]
      %v995 = vld [vmem:[%s529 + $0xcf] sm:$0xff]
      %v996 = vld [vmem:[%s529 + $0xe7] sm:$0xff]
      %v997 = vld [vmem:[%s529 + $0xef] sm:$0xff]
      %v998 = vld [vmem:[%s529 + $0x107] sm:$0xff]
      %v999 = vld [vmem:[%s529 + $0x10f] sm:$0xff]
      %v1000 = vld [vmem:[%s529 + $0x127] sm:$0xff]
      %v1001 = vld [vmem:[%s529 + $0x12f] sm:$0xff]
      %v1002 = vld [vmem:[%s529 + $0x147] sm:$0xff]
      %v1003 = vld [vmem:[%s529 + $0x14f] sm:$0xff]
      %v1004 = vld [vmem:[%s529 + $0x167] sm:$0xff]
      %v1005 = vld [vmem:[%s529 + $0x16f] sm:$0xff]
      %v1006 = vld [vmem:[%s529 + $0x187] sm:$0xff]
      %v1007 = vld [vmem:[%s529 + $0x18f] sm:$0xff]
      %v1008 = vld [vmem:[%s529 + $0x1a7] sm:$0xff]
      %v1009 = vld [vmem:[%s529 + $0x1af] sm:$0xff]
      %v1010 = vld [vmem:[%s529 + $0x1c7] sm:$0xff]
      %v1011 = vld [vmem:[%s529 + $0x1cf] sm:$0xff]
      %v1012 = vld [vmem:[%s529 + $0x1e7] sm:$0xff]
      %v1013 = vld [vmem:[%s529 + $0x1ef] sm:$0xff]
      %v1014 = vld [vmem:[%s529 + $0x8] sm:$0xff]
      %v1015 = vld [vmem:[%s529 + $0x10] sm:$0xff]
      %v1016 = vld [vmem:[%s529 + $0x28] sm:$0xff]
      %v1017 = vld [vmem:[%s529 + $0x30] sm:$0xff]
      %v1018 = vld [vmem:[%s529 + $0x48] sm:$0xff]
      %v1019 = vld [vmem:[%s529 + $0x50] sm:$0xff]
      %v1020 = vld [vmem:[%s529 + $0x68] sm:$0xff]
      %v1021 = vld [vmem:[%s529 + $0x70] sm:$0xff]
      %v1022 = vld [vmem:[%s529 + $0x88] sm:$0xff]
      %v1023 = vld [vmem:[%s529 + $0x90] sm:$0xff]
      %v1024 = vld [vmem:[%s529 + $0xa8] sm:$0xff]
      %v1025 = vld [vmem:[%s529 + $0xb0] sm:$0xff]
      %v1026 = vld [vmem:[%s529 + $0xc8] sm:$0xff]
      %v1027 = vld [vmem:[%s529 + $0xd0] sm:$0xff]
      %v1028 = vld [vmem:[%s529 + $0xe8] sm:$0xff]
      %v1029 = vld [vmem:[%s529 + $0xf0] sm:$0xff]
      %v1030 = vld [vmem:[%s529 + $0x108] sm:$0xff]
      %v1031 = vld [vmem:[%s529 + $0x110] sm:$0xff]
      %v1032 = vld [vmem:[%s529 + $0x128] sm:$0xff]
      %v1033 = vld [vmem:[%s529 + $0x130] sm:$0xff]
      %v1034 = vld [vmem:[%s529 + $0x148] sm:$0xff]
      %v1035 = vld [vmem:[%s529 + $0x150] sm:$0xff]
      %v1036 = vld [vmem:[%s529 + $0x168] sm:$0xff]
      %v1037 = vld [vmem:[%s529 + $0x170] sm:$0xff]
      %v1038 = vld [vmem:[%s529 + $0x188] sm:$0xff]
      %v1039 = vld [vmem:[%s529 + $0x190] sm:$0xff]
      %v1040 = vld [vmem:[%s529 + $0x1a8] sm:$0xff]
      %v1041 = vld [vmem:[%s529 + $0x1b0] sm:$0xff]
      %v1042 = vld [vmem:[%s529 + $0x1c8] sm:$0xff]
      %v1043 = vld [vmem:[%s529 + $0x1d0] sm:$0xff]
      %v1044 = vld [vmem:[%s529 + $0x1e8] sm:$0xff]
      %v1045 = vld [vmem:[%s529 + $0x1f0] sm:$0xff]
      %v1046 = vld [vmem:[%s529 + $0x9] sm:$0xff]
      %v1047 = vld [vmem:[%s529 + $0x11] sm:$0xff]
      %v1048 = vld [vmem:[%s529 + $0x29] sm:$0xff]
      %v1049 = vld [vmem:[%s529 + $0x31] sm:$0xff]
      %v1050 = vld [vmem:[%s529 + $0x49] sm:$0xff]
      %v1051 = vld [vmem:[%s529 + $0x51] sm:$0xff]
      %v1052 = vld [vmem:[%s529 + $0x69] sm:$0xff]
      %v1053 = vld [vmem:[%s529 + $0x71] sm:$0xff]
      %v1054 = vld [vmem:[%s529 + $0x89] sm:$0xff]
      %v1055 = vld [vmem:[%s529 + $0x91] sm:$0xff]
      %v1056 = vld [vmem:[%s529 + $0xa9] sm:$0xff]
      %v1057 = vld [vmem:[%s529 + $0xb1] sm:$0xff]
      %v1058 = vld [vmem:[%s529 + $0xc9] sm:$0xff]
      %v1059 = vld [vmem:[%s529 + $0xd1] sm:$0xff]
      %v1060 = vld [vmem:[%s529 + $0xe9] sm:$0xff]
      %v1061 = vld [vmem:[%s529 + $0xf1] sm:$0xff]
      %v1062 = vld [vmem:[%s529 + $0x109] sm:$0xff]
      %v1063 = vld [vmem:[%s529 + $0x111] sm:$0xff]
      %v1064 = vld [vmem:[%s529 + $0x129] sm:$0xff]
      %v1065 = vld [vmem:[%s529 + $0x131] sm:$0xff]
      %v1066 = vld [vmem:[%s529 + $0x149] sm:$0xff]
      %v1067 = vld [vmem:[%s529 + $0x151] sm:$0xff]
      %v1068 = vld [vmem:[%s529 + $0x169] sm:$0xff]
      %v1069 = vld [vmem:[%s529 + $0x171] sm:$0xff]
      %v1070 = vld [vmem:[%s529 + $0x189] sm:$0xff]
      %v1071 = vld [vmem:[%s529 + $0x191] sm:$0xff]
      %v1072 = vld [vmem:[%s529 + $0x1a9] sm:$0xff]
      %v1073 = vld [vmem:[%s529 + $0x1b1] sm:$0xff]
      %v1074 = vld [vmem:[%s529 + $0x1c9] sm:$0xff]
      %v1075 = vld [vmem:[%s529 + $0x1d1] sm:$0xff]
      %v1076 = vld [vmem:[%s529 + $0x1e9] sm:$0xff]
      %v1077 = vld [vmem:[%s529 + $0x1f1] sm:$0xff]
      %1110 = vrot.lane.b32.xlu0 %v1014, 8
      %v1111 = vpop.permute.xlu0 %1110
      %1112 = vrot.lane.b32.xlu0 %v1015, 8
      %v1113 = vpop.permute.xlu0 %1112
      %1114 = vrot.lane.b32.xlu0 %v1016, 8
      %v1115 = vpop.permute.xlu0 %1114
      %1116 = vrot.lane.b32.xlu0 %v1017, 8
      %v1117 = vpop.permute.xlu0 %1116
      %1118 = vrot.lane.b32.xlu0 %v1018, 8
      %v1119 = vpop.permute.xlu0 %1118
      %1120 = vrot.lane.b32.xlu0 %v1019, 8
      %v1121 = vpop.permute.xlu0 %1120
      %1122 = vrot.lane.b32.xlu0 %v1020, 8
      %v1123 = vpop.permute.xlu0 %1122
      %1124 = vrot.lane.b32.xlu0 %v1021, 8
      %v1125 = vpop.permute.xlu0 %1124
      %1126 = vrot.lane.b32.xlu0 %v1022, 8
      %v1127 = vpop.permute.xlu0 %1126
      %1128 = vrot.lane.b32.xlu0 %v1023, 8
      %v1129 = vpop.permute.xlu0 %1128
      %1130 = vrot.lane.b32.xlu0 %v1024, 8
      %v1131 = vpop.permute.xlu0 %1130
      %1132 = vrot.lane.b32.xlu0 %v1025, 8
      %v1133 = vpop.permute.xlu0 %1132
      %1134 = vrot.lane.b32.xlu0 %v1026, 8
      %v1135 = vpop.permute.xlu0 %1134
      %1136 = vrot.lane.b32.xlu0 %v1027, 8
      %v1137 = vpop.permute.xlu0 %1136
      %1138 = vrot.lane.b32.xlu0 %v1028, 8
      %v1139 = vpop.permute.xlu0 %1138
      %1140 = vrot.lane.b32.xlu0 %v1029, 8
      %v1141 = vpop.permute.xlu0 %1140
      %1142 = vrot.lane.b32.xlu0 %v1030, 8
      %v1143 = vpop.permute.xlu0 %1142
      %1144 = vrot.lane.b32.xlu0 %v1031, 8
      %v1145 = vpop.permute.xlu0 %1144
      %1146 = vrot.lane.b32.xlu0 %v1032, 8
      %v1147 = vpop.permute.xlu0 %1146
      %1148 = vrot.lane.b32.xlu0 %v1033, 8
      %v1149 = vpop.permute.xlu0 %1148
      %1150 = vrot.lane.b32.xlu0 %v1034, 8
      %v1151 = vpop.permute.xlu0 %1150
      %1152 = vrot.lane.b32.xlu0 %v1035, 8
      %v1153 = vpop.permute.xlu0 %1152
      %1154 = vrot.lane.b32.xlu0 %v1036, 8
      %v1155 = vpop.permute.xlu0 %1154
      %1156 = vrot.lane.b32.xlu0 %v1037, 8
      %v1157 = vpop.permute.xlu0 %1156
      %1158 = vrot.lane.b32.xlu0 %v1038, 8
      %v1159 = vpop.permute.xlu0 %1158
      %1160 = vrot.lane.b32.xlu0 %v1039, 8
      %v1161 = vpop.permute.xlu0 %1160
      %1162 = vrot.lane.b32.xlu0 %v1040, 8
      %v1163 = vpop.permute.xlu0 %1162
      %1164 = vrot.lane.b32.xlu0 %v1041, 8
      %v1165 = vpop.permute.xlu0 %1164
      %1166 = vrot.lane.b32.xlu0 %v1042, 8
      %v1167 = vpop.permute.xlu0 %1166
      %1168 = vrot.lane.b32.xlu0 %v1043, 8
      %v1169 = vpop.permute.xlu0 %1168
      %1170 = vrot.lane.b32.xlu0 %v1044, 8
      %v1171 = vpop.permute.xlu0 %1170
      %1172 = vrot.lane.b32.xlu0 %v1045, 8
      %v1173 = vpop.permute.xlu0 %1172
      %1238 = vrot.lane.b32.xlu0 %v1046, 16
      %v1239 = vpop.permute.xlu0 %1238
      %1240 = vrot.lane.b32.xlu0 %v1047, 16
      %v1241 = vpop.permute.xlu0 %1240
      %1242 = vrot.lane.b32.xlu0 %v1048, 16
      %v1243 = vpop.permute.xlu0 %1242
      %1244 = vrot.lane.b32.xlu0 %v1049, 16
      %v1245 = vpop.permute.xlu0 %1244
      %1246 = vrot.lane.b32.xlu0 %v1050, 16
      %v1247 = vpop.permute.xlu0 %1246
      %1248 = vrot.lane.b32.xlu0 %v1051, 16
      %v1249 = vpop.permute.xlu0 %1248
      %1250 = vrot.lane.b32.xlu0 %v1052, 16
      %v1251 = vpop.permute.xlu0 %1250
      %1252 = vrot.lane.b32.xlu0 %v1053, 16
      %v1253 = vpop.permute.xlu0 %1252
      %1254 = vrot.lane.b32.xlu0 %v1054, 16
      %v1255 = vpop.permute.xlu0 %1254
      %1256 = vrot.lane.b32.xlu0 %v1055, 16
      %v1257 = vpop.permute.xlu0 %1256
      %1258 = vrot.lane.b32.xlu0 %v1056, 16
      %v1259 = vpop.permute.xlu0 %1258
      %1260 = vrot.lane.b32.xlu0 %v1057, 16
      %v1261 = vpop.permute.xlu0 %1260
      %1262 = vrot.lane.b32.xlu0 %v1058, 16
      %v1263 = vpop.permute.xlu0 %1262
      %1264 = vrot.lane.b32.xlu0 %v1059, 16
      %v1265 = vpop.permute.xlu0 %1264
      %1266 = vrot.lane.b32.xlu0 %v1060, 16
      %v1267 = vpop.permute.xlu0 %1266
      %1268 = vrot.lane.b32.xlu0 %v1061, 16
      %v1269 = vpop.permute.xlu0 %1268
      %1270 = vrot.lane.b32.xlu0 %v1062, 16
      %v1271 = vpop.permute.xlu0 %1270
      %1272 = vrot.lane.b32.xlu0 %v1063, 16
      %v1273 = vpop.permute.xlu0 %1272
      %1274 = vrot.lane.b32.xlu0 %v1064, 16
      %v1275 = vpop.permute.xlu0 %1274
      %1276 = vrot.lane.b32.xlu0 %v1065, 16
      %v1277 = vpop.permute.xlu0 %1276
      %1278 = vrot.lane.b32.xlu0 %v1066, 16
      %v1279 = vpop.permute.xlu0 %1278
      %1280 = vrot.lane.b32.xlu0 %v1067, 16
      %v1281 = vpop.permute.xlu0 %1280
      %1282 = vrot.lane.b32.xlu0 %v1068, 16
      %v1283 = vpop.permute.xlu0 %1282
      %1284 = vrot.lane.b32.xlu0 %v1069, 16
      %v1285 = vpop.permute.xlu0 %1284
      %1286 = vrot.lane.b32.xlu0 %v1070, 16
      %v1287 = vpop.permute.xlu0 %1286
      %1288 = vrot.lane.b32.xlu0 %v1071, 16
      %v1289 = vpop.permute.xlu0 %1288
      %1290 = vrot.lane.b32.xlu0 %v1072, 16
      %v1291 = vpop.permute.xlu0 %1290
      %1292 = vrot.lane.b32.xlu0 %v1073, 16
      %v1293 = vpop.permute.xlu0 %1292
      %1294 = vrot.lane.b32.xlu0 %v1074, 16
      %v1295 = vpop.permute.xlu0 %1294
      %1296 = vrot.lane.b32.xlu0 %v1075, 16
      %v1297 = vpop.permute.xlu0 %1296
      %1298 = vrot.lane.b32.xlu0 %v1076, 16
      %v1299 = vpop.permute.xlu0 %1298
      %1300 = vrot.lane.b32.xlu0 %v1077, 16
      %v1301 = vpop.permute.xlu0 %1300
      %v1334 = vsel %vm279, %v982, %v1111
      %v1335 = vsel %vm279, %v983, %v1113
      %v1336 = vsel %vm279, %v984, %v1115
      %v1337 = vsel %vm279, %v985, %v1117
      %v1338 = vsel %vm279, %v986, %v1119
      %v1339 = vsel %vm279, %v987, %v1121
      %v1340 = vsel %vm279, %v988, %v1123
      %v1341 = vsel %vm279, %v989, %v1125
      %v1342 = vsel %vm279, %v990, %v1127
      %v1343 = vsel %vm279, %v991, %v1129
      %v1344 = vsel %vm279, %v992, %v1131
      %v1345 = vsel %vm279, %v993, %v1133
      %v1346 = vsel %vm279, %v994, %v1135
      %v1347 = vsel %vm279, %v995, %v1137
      %v1348 = vsel %vm279, %v996, %v1139
      %v1349 = vsel %vm279, %v997, %v1141
      %v1350 = vsel %vm279, %v998, %v1143
      %v1351 = vsel %vm279, %v999, %v1145
      %v1352 = vsel %vm279, %v1000, %v1147
      %v1353 = vsel %vm279, %v1001, %v1149
      %v1354 = vsel %vm279, %v1002, %v1151
      %v1355 = vsel %vm279, %v1003, %v1153
      %v1356 = vsel %vm279, %v1004, %v1155
      %v1357 = vsel %vm279, %v1005, %v1157
      %v1358 = vsel %vm279, %v1006, %v1159
      %v1359 = vsel %vm279, %v1007, %v1161
      %v1360 = vsel %vm279, %v1008, %v1163
      %v1361 = vsel %vm279, %v1009, %v1165
      %v1362 = vsel %vm279, %v1010, %v1167
      %v1363 = vsel %vm279, %v1011, %v1169
      %v1364 = vsel %vm279, %v1012, %v1171
      %v1365 = vsel %vm279, %v1013, %v1173
      %v1366 = vsel %vm946, %v1334, %v1239
      %v1367 = vsel %vm946, %v1335, %v1241
      %v1368 = vsel %vm946, %v1336, %v1243
      %v1369 = vsel %vm946, %v1337, %v1245
      %v1370 = vsel %vm946, %v1338, %v1247
      %v1371 = vsel %vm946, %v1339, %v1249
      %v1372 = vsel %vm946, %v1340, %v1251
      %v1373 = vsel %vm946, %v1341, %v1253
      %v1374 = vsel %vm946, %v1342, %v1255
      %v1375 = vsel %vm946, %v1343, %v1257
      %v1376 = vsel %vm946, %v1344, %v1259
      %v1377 = vsel %vm946, %v1345, %v1261
      %v1378 = vsel %vm946, %v1346, %v1263
      %v1379 = vsel %vm946, %v1347, %v1265
      %v1380 = vsel %vm946, %v1348, %v1267
      %v1381 = vsel %vm946, %v1349, %v1269
      %v1382 = vsel %vm946, %v1350, %v1271
      %v1383 = vsel %vm946, %v1351, %v1273
      %v1384 = vsel %vm946, %v1352, %v1275
      %v1385 = vsel %vm946, %v1353, %v1277
      %v1386 = vsel %vm946, %v1354, %v1279
      %v1387 = vsel %vm946, %v1355, %v1281
      %v1388 = vsel %vm946, %v1356, %v1283
      %v1389 = vsel %vm946, %v1357, %v1285
      %v1390 = vsel %vm946, %v1358, %v1287
      %v1391 = vsel %vm946, %v1359, %v1289
      %v1392 = vsel %vm946, %v1360, %v1291
      %v1393 = vsel %vm946, %v1361, %v1293
      %v1394 = vsel %vm946, %v1362, %v1295
      %v1395 = vsel %vm946, %v1363, %v1297
      %v1396 = vsel %vm946, %v1364, %v1299
      %v1397 = vsel %vm946, %v1365, %v1301
      %s1398 = scalar_lea.vmem %s1, 24
      %v1399 = vld [vmem:[%s1398] sm:$0xff]
      %v1400 = vld [vmem:[%s1398 + $0x8] sm:$0xff]
      %v1401 = vld [vmem:[%s1398 + $0x10] sm:$0xff]
      %vm1402 = vcmask 195584
      %v1404 = vsel %vm1402, %v1366, 0
      %v1407 = vsel %vm1402, %v1367, 0
      %v1410 = vsel %vm1402, %v1368, 0
      %v1413 = vsel %vm1402, %v1369, 0
      %v1416 = vsel %vm1402, %v1370, 0
      %v1419 = vsel %vm1402, %v1371, 0
      %v1422 = vsel %vm1402, %v1372, 0
      %v1425 = vsel %vm1402, %v1373, 0
      %v1428 = vsel %vm1402, %v1374, 0
      %v1431 = vsel %vm1402, %v1375, 0
      %v1434 = vsel %vm1402, %v1376, 0
      %v1437 = vsel %vm1402, %v1377, 0
      %v1440 = vsel %vm1402, %v1378, 0
      %v1443 = vsel %vm1402, %v1379, 0
      %v1446 = vsel %vm1402, %v1380, 0
      %v1449 = vsel %vm1402, %v1381, 0
      %v1452 = vsel %vm1402, %v1382, 0
      %v1455 = vsel %vm1402, %v1383, 0
      %v1458 = vsel %vm1402, %v1384, 0
      %v1461 = vsel %vm1402, %v1385, 0
      %v1464 = vsel %vm1402, %v1386, 0
      %v1467 = vsel %vm1402, %v1387, 0
      %v1470 = vsel %vm1402, %v1388, 0
      %v1473 = vsel %vm1402, %v1389, 0
      %v1476 = vsel %vm1402, %v1390, 0
      %v1479 = vsel %vm1402, %v1391, 0
      %v1482 = vsel %vm1402, %v1392, 0
      %v1485 = vsel %vm1402, %v1393, 0
      %v1488 = vsel %vm1402, %v1394, 0
      %v1491 = vsel %vm1402, %v1395, 0
      %v1494 = vsel %vm1402, %v1396, 0
      %v1497 = vsel %vm1402, %v1397, 0
      %1499 = vmatprep.subr.mxu0 0.0
      %1500 = vmatpush1.msra.mxu0 %v1399
      %1501 = vmatprep.subr.mxu0 0.0
      %1502 = vmatpush1.msra.mxu0 %v1400
      %1503 = vmatprep.subr.mxu0 0.0
      %1504 = vmatpush1.msra.mxu0 %v1401
      %1505 = vmatprep.subr.mxu0 0.0
      %1506 = vmatpush1.msra.mxu0 0.0
      %1507 = vmatprep.subr.mxu0 0.0
      %1508 = vmatpush1.msra.mxu0 0.0
      %1509 = vmatprep.subr.mxu0 0.0
      %1510 = vmatpush1.msra.mxu0 0.0
      %1511 = vmatprep.subr.mxu0 0.0
      %1512 = vmatpush1.msra.mxu0 0.0
      %1513 = vmatprep.subr.mxu0 0.0
      %1514 = vmatpush1.msra.mxu0 0.0
      %1515 = vmatprep.subr.mxu0 0.0
      %1516 = vmatpush1.msra.mxu0 0.0
      %1517 = vmatprep.subr.mxu0 0.0
      %1518 = vmatpush1.msra.mxu0 0.0
      %1519 = vmatprep.subr.mxu0 0.0
      %1520 = vmatpush1.msra.mxu0 0.0
      %1521 = vmatprep.subr.mxu0 0.0
      %1522 = vmatpush1.msra.mxu0 0.0
      %1523 = vmatprep.subr.mxu0 0.0
      %1524 = vmatpush1.msra.mxu0 0.0
      %1525 = vmatprep.subr.mxu0 0.0
      %1526 = vmatpush1.msra.mxu0 0.0
      %1527 = vmatprep.subr.mxu0 0.0
      %1528 = vmatpush1.msra.mxu0 0.0
      %1529 = vmatprep.subr.mxu0 0.0
      %1530 = vmatpush1.msra.mxu0 0.0
      %1531 = vmatprep.subr.mxu0 0.0
      %1532 = vmatpush1.msra.mxu0 0.0
      %1533 = vmatprep.subr.mxu0 0.0
      %1534 = vmatpush1.msra.mxu0 0.0
      %1535 = vmatprep.subr.mxu0 0.0
      %1536 = vmatpush1.msra.mxu0 0.0
      %1537 = vmatprep.subr.mxu0 0.0
      %1538 = vmatpush1.msra.mxu0 0.0
      %1539 = vmatprep.subr.mxu0 0.0
      %1540 = vmatpush1.msra.mxu0 0.0
      %1541 = vmatprep.subr.mxu0 0.0
      %1542 = vmatpush1.msra.mxu0 0.0
      %1543 = vmatprep.subr.mxu0 0.0
      %1544 = vmatpush1.msra.mxu0 0.0
      %1545 = vmatprep.subr.mxu0 0.0
      %1546 = vmatpush1.msra.mxu0 0.0
      %1547 = vmatprep.subr.mxu0 0.0
      %1548 = vmatpush1.msra.mxu0 0.0
      %1549 = vmatprep.subr.mxu0 0.0
      %1550 = vmatpush1.msra.mxu0 0.0
      %1551 = vmatprep.subr.mxu0 0.0
      %1552 = vmatpush1.msra.mxu0 0.0
      %1553 = vmatprep.subr.mxu0 0.0
      %1554 = vmatpush1.msra.mxu0 0.0
      %1555 = vmatprep.subr.mxu0 0.0
      %1556 = vmatpush1.msra.mxu0 0.0
      %1557 = vmatprep.subr.mxu0 0.0
      %1558 = vmatpush1.msra.mxu0 0.0
      %1559 = vmatprep.subr.mxu0 0.0
      %1560 = vmatpush1.msra.mxu0 0.0
      %1561 = vmatprep.subr.mxu0 0.0
      %1562 = vmatpush1.msra.mxu0 0.0
      %1563 = vmatprep.mubr.f32.mxu0 0.0
      %1564 = vmatmul.mubr.f32.gmra.mrb[0].mxu0 %v1404
      %v1565 = vpop.f32.mrb[0].mxu0
      %v1566 = vadd.f32 0.0, %v1565
      %v1567 = vpop.f32.mrb[0].mxu0
      %1568 = vmatprep.mubr.f32.mxu0 0.0
      %1569 = vmatmul.mubr.f32.gmra.mrb[0].mxu0 %v1407
      %v1570 = vpop.f32.mrb[0].mxu0
      %v1571 = vadd.f32 0.0, %v1570
      %v1572 = vpop.f32.mrb[0].mxu0
      %1573 = vmatprep.mubr.f32.mxu0 0.0
      %1574 = vmatmul.mubr.f32.gmra.mrb[0].mxu0 %v1410
      %v1575 = vpop.f32.mrb[0].mxu0
      %v1576 = vadd.f32 0.0, %v1575
      %v1577 = vpop.f32.mrb[0].mxu0
      %1578 = vmatprep.mubr.f32.mxu0 0.0
      %1579 = vmatmul.mubr.f32.gmra.mrb[0].mxu0 %v1413
      %v1580 = vpop.f32.mrb[0].mxu0
      %v1581 = vadd.f32 0.0, %v1580
      %v1582 = vpop.f32.mrb[0].mxu0
      %1583 = vmatprep.mubr.f32.mxu0 0.0
      %1584 = vmatmul.mubr.f32.gmra.mrb[0].mxu0 %v1416
      %v1585 = vpop.f32.mrb[0].mxu0
      %v1586 = vadd.f32 0.0, %v1585
      %v1587 = vpop.f32.mrb[0].mxu0
      %1588 = vmatprep.mubr.f32.mxu0 0.0
      %1589 = vmatmul.mubr.f32.gmra.mrb[0].mxu0 %v1419
      %v1590 = vpop.f32.mrb[0].mxu0
      %v1591 = vadd.f32 0.0, %v1590
      %v1592 = vpop.f32.mrb[0].mxu0
      %1593 = vmatprep.mubr.f32.mxu0 0.0
      %1594 = vmatmul.mubr.f32.gmra.mrb[0].mxu0 %v1422
      %v1595 = vpop.f32.mrb[0].mxu0
      %v1596 = vadd.f32 0.0, %v1595
      %v1597 = vpop.f32.mrb[0].mxu0
      %1598 = vmatprep.mubr.f32.mxu0 0.0
      %1599 = vmatmul.mubr.f32.gmra.mrb[0].mxu0 %v1425
      %v1600 = vpop.f32.mrb[0].mxu0
      %v1601 = vadd.f32 0.0, %v1600
      %v1602 = vpop.f32.mrb[0].mxu0
      %1603 = vmatprep.mubr.f32.mxu0 0.0
      %1604 = vmatmul.mubr.f32.gmra.mrb[0].mxu0 %v1428
      %v1605 = vpop.f32.mrb[0].mxu0
      %v1606 = vadd.f32 0.0, %v1605
      %v1607 = vpop.f32.mrb[0].mxu0
      %1608 = vmatprep.mubr.f32.mxu0 0.0
      %1609 = vmatmul.mubr.f32.gmra.mrb[0].mxu0 %v1431
      %v1610 = vpop.f32.mrb[0].mxu0
      %v1611 = vadd.f32 0.0, %v1610
      %v1612 = vpop.f32.mrb[0].mxu0
      %1613 = vmatprep.mubr.f32.mxu0 0.0
      %1614 = vmatmul.mubr.f32.gmra.mrb[0].mxu0 %v1434
      %v1615 = vpop.f32.mrb[0].mxu0
      %v1616 = vadd.f32 0.0, %v1615
      %v1617 = vpop.f32.mrb[0].mxu0
      %1618 = vmatprep.mubr.f32.mxu0 0.0
      %1619 = vmatmul.mubr.f32.gmra.mrb[0].mxu0 %v1437
      %v1620 = vpop.f32.mrb[0].mxu0
      %v1621 = vadd.f32 0.0, %v1620
      %v1622 = vpop.f32.mrb[0].mxu0
      %1623 = vmatprep.mubr.f32.mxu0 0.0
      %1624 = vmatmul.mubr.f32.gmra.mrb[0].mxu0 %v1440
      %v1625 = vpop.f32.mrb[0].mxu0
      %v1626 = vadd.f32 0.0, %v1625
      %v1627 = vpop.f32.mrb[0].mxu0
      %1628 = vmatprep.mubr.f32.mxu0 0.0
      %1629 = vmatmul.mubr.f32.gmra.mrb[0].mxu0 %v1443
      %v1630 = vpop.f32.mrb[0].mxu0
      %v1631 = vadd.f32 0.0, %v1630
      %v1632 = vpop.f32.mrb[0].mxu0
      %1633 = vmatprep.mubr.f32.mxu0 0.0
      %1634 = vmatmul.mubr.f32.gmra.mrb[0].mxu0 %v1446
      %v1635 = vpop.f32.mrb[0].mxu0
      %v1636 = vadd.f32 0.0, %v1635
      %v1637 = vpop.f32.mrb[0].mxu0
      %1638 = vmatprep.mubr.f32.mxu0 0.0
      %1639 = vmatmul.mubr.f32.gmra.mrb[0].mxu0 %v1449
      %v1640 = vpop.f32.mrb[0].mxu0
      %v1641 = vadd.f32 0.0, %v1640
      %v1642 = vpop.f32.mrb[0].mxu0
      %1643 = vmatprep.mubr.f32.mxu0 0.0
      %1644 = vmatmul.mubr.f32.gmra.mrb[0].mxu0 %v1452
      %v1645 = vpop.f32.mrb[0].mxu0
      %v1646 = vadd.f32 0.0, %v1645
      %v1647 = vpop.f32.mrb[0].mxu0
      %1648 = vmatprep.mubr.f32.mxu0 0.0
      %1649 = vmatmul.mubr.f32.gmra.mrb[0].mxu0 %v1455
      %v1650 = vpop.f32.mrb[0].mxu0
      %v1651 = vadd.f32 0.0, %v1650
      %v1652 = vpop.f32.mrb[0].mxu0
      %1653 = vmatprep.mubr.f32.mxu0 0.0
      %1654 = vmatmul.mubr.f32.gmra.mrb[0].mxu0 %v1458
      %v1655 = vpop.f32.mrb[0].mxu0
      %v1656 = vadd.f32 0.0, %v1655
      %v1657 = vpop.f32.mrb[0].mxu0
      %1658 = vmatprep.mubr.f32.mxu0 0.0
      %1659 = vmatmul.mubr.f32.gmra.mrb[0].mxu0 %v1461
      %v1660 = vpop.f32.mrb[0].mxu0
      %v1661 = vadd.f32 0.0, %v1660
      %v1662 = vpop.f32.mrb[0].mxu0
      %1663 = vmatprep.mubr.f32.mxu0 0.0
      %1664 = vmatmul.mubr.f32.gmra.mrb[0].mxu0 %v1464
      %v1665 = vpop.f32.mrb[0].mxu0
      %v1666 = vadd.f32 0.0, %v1665
      %v1667 = vpop.f32.mrb[0].mxu0
      %1668 = vmatprep.mubr.f32.mxu0 0.0
      %1669 = vmatmul.mubr.f32.gmra.mrb[0].mxu0 %v1467
      %v1670 = vpop.f32.mrb[0].mxu0
      %v1671 = vadd.f32 0.0, %v1670
      %v1672 = vpop.f32.mrb[0].mxu0
      %1673 = vmatprep.mubr.f32.mxu0 0.0
      %1674 = vmatmul.mubr.f32.gmra.mrb[0].mxu0 %v1470
      %v1675 = vpop.f32.mrb[0].mxu0
      %v1676 = vadd.f32 0.0, %v1675
      %v1677 = vpop.f32.mrb[0].mxu0
      %1678 = vmatprep.mubr.f32.mxu0 0.0
      %1679 = vmatmul.mubr.f32.gmra.mrb[0].mxu0 %v1473
      %v1680 = vpop.f32.mrb[0].mxu0
      %v1681 = vadd.f32 0.0, %v1680
      %v1682 = vpop.f32.mrb[0].mxu0
      %1683 = vmatprep.mubr.f32.mxu0 0.0
      %1684 = vmatmul.mubr.f32.gmra.mrb[0].mxu0 %v1476
      %v1685 = vpop.f32.mrb[0].mxu0
      %v1686 = vadd.f32 0.0, %v1685
      %v1687 = vpop.f32.mrb[0].mxu0
      %1688 = vmatprep.mubr.f32.mxu0 0.0
      %1689 = vmatmul.mubr.f32.gmra.mrb[0].mxu0 %v1479
      %v1690 = vpop.f32.mrb[0].mxu0
      %v1691 = vadd.f32 0.0, %v1690
      %v1692 = vpop.f32.mrb[0].mxu0
      %1693 = vmatprep.mubr.f32.mxu0 0.0
      %1694 = vmatmul.mubr.f32.gmra.mrb[0].mxu0 %v1482
      %v1695 = vpop.f32.mrb[0].mxu0
      %v1696 = vadd.f32 0.0, %v1695
      %v1697 = vpop.f32.mrb[0].mxu0
      %1698 = vmatprep.mubr.f32.mxu0 0.0
      %1699 = vmatmul.mubr.f32.gmra.mrb[0].mxu0 %v1485
      %v1700 = vpop.f32.mrb[0].mxu0
      %v1701 = vadd.f32 0.0, %v1700
      %v1702 = vpop.f32.mrb[0].mxu0
      %1703 = vmatprep.mubr.f32.mxu0 0.0
      %1704 = vmatmul.mubr.f32.gmra.mrb[0].mxu0 %v1488
      %v1705 = vpop.f32.mrb[0].mxu0
      %v1706 = vadd.f32 0.0, %v1705
      %v1707 = vpop.f32.mrb[0].mxu0
      %1708 = vmatprep.mubr.f32.mxu0 0.0
      %1709 = vmatmul.mubr.f32.gmra.mrb[0].mxu0 %v1491
      %v1710 = vpop.f32.mrb[0].mxu0
      %v1711 = vadd.f32 0.0, %v1710
      %v1712 = vpop.f32.mrb[0].mxu0
      %1713 = vmatprep.mubr.f32.mxu0 0.0
      %1714 = vmatmul.mubr.f32.gmra.mrb[0].mxu0 %v1494
      %v1715 = vpop.f32.mrb[0].mxu0
      %v1716 = vadd.f32 0.0, %v1715
      %v1717 = vpop.f32.mrb[0].mxu0
      %1718 = vmatprep.mubr.f32.mxu0 0.0
      %1719 = vmatmul.mubr.f32.gmra.mrb[0].mxu0 %v1497
      %v1720 = vpop.f32.mrb[0].mxu0
      %v1721 = vadd.f32 0.0, %v1720
      %v1722 = vpop.f32.mrb[0].mxu0
      %1723 = vdwg.mxu0
      %v1725 = vsel %vm1402, %v947, 0
      %v1728 = vsel %vm1402, %v948, 0
      %v1731 = vsel %vm1402, %v949, 0
      %v1734 = vsel %vm1402, %v950, 0
      %v1737 = vsel %vm1402, %v951, 0
      %v1740 = vsel %vm1402, %v952, 0
      %v1743 = vsel %vm1402, %v953, 0
      %v1746 = vsel %vm1402, %v954, 0
      %v1749 = vsel %vm1402, %v955, 0
      %v1752 = vsel %vm1402, %v956, 0
      %v1755 = vsel %vm1402, %v957, 0
      %v1758 = vsel %vm1402, %v958, 0
      %v1761 = vsel %vm1402, %v959, 0
      %v1764 = vsel %vm1402, %v960, 0
      %v1767 = vsel %vm1402, %v961, 0
      %v1770 = vsel %vm1402, %v962, 0
      %v1773 = vsel %vm1402, %v963, 0
      %v1776 = vsel %vm1402, %v964, 0
      %v1779 = vsel %vm1402, %v965, 0
      %v1782 = vsel %vm1402, %v966, 0
      %v1785 = vsel %vm1402, %v967, 0
      %v1788 = vsel %vm1402, %v968, 0
      %v1791 = vsel %vm1402, %v969, 0
      %v1794 = vsel %vm1402, %v970, 0
      %v1797 = vsel %vm1402, %v971, 0
      %v1800 = vsel %vm1402, %v972, 0
      %v1803 = vsel %vm1402, %v973, 0
      %v1806 = vsel %vm1402, %v974, 0
      %v1809 = vsel %vm1402, %v975, 0
      %v1812 = vsel %vm1402, %v976, 0
      %v1815 = vsel %vm1402, %v977, 0
      %v1818 = vsel %vm1402, %v978, 0
      %1820 = vmatprep.subr.mxu0 0.0
      %1821 = vmatpush1.msra.mxu0 %v979
      %1822 = vmatprep.subr.mxu0 0.0
      %1823 = vmatpush1.msra.mxu0 %v980
      %1824 = vmatprep.subr.mxu0 0.0
      %1825 = vmatpush1.msra.mxu0 %v981
      %1826 = vmatprep.subr.mxu0 0.0
      %1827 = vmatpush1.msra.mxu0 0.0
      %1828 = vmatprep.subr.mxu0 0.0
      %1829 = vmatpush1.msra.mxu0 0.0
      %1830 = vmatprep.subr.mxu0 0.0
      %1831 = vmatpush1.msra.mxu0 0.0
      %1832 = vmatprep.subr.mxu0 0.0
      %1833 = vmatpush1.msra.mxu0 0.0
      %1834 = vmatprep.subr.mxu0 0.0
      %1835 = vmatpush1.msra.mxu0 0.0
      %1836 = vmatprep.subr.mxu0 0.0
      %1837 = vmatpush1.msra.mxu0 0.0
      %1838 = vmatprep.subr.mxu0 0.0
      %1839 = vmatpush1.msra.mxu0 0.0
      %1840 = vmatprep.subr.mxu0 0.0
      %1841 = vmatpush1.msra.mxu0 0.0
      %1842 = vmatprep.subr.mxu0 0.0
      %1843 = vmatpush1.msra.mxu0 0.0
      %1844 = vmatprep.subr.mxu0 0.0
      %1845 = vmatpush1.msra.mxu0 0.0
      %1846 = vmatprep.subr.mxu0 0.0
      %1847 = vmatpush1.msra.mxu0 0.0
      %1848 = vmatprep.subr.mxu0 0.0
      %1849 = vmatpush1.msra.mxu0 0.0
      %1850 = vmatprep.subr.mxu0 0.0
      %1851 = vmatpush1.msra.mxu0 0.0
      %1852 = vmatprep.subr.mxu0 0.0
      %1853 = vmatpush1.msra.mxu0 0.0
      %1854 = vmatprep.subr.mxu0 0.0
      %1855 = vmatpush1.msra.mxu0 0.0
      %1856 = vmatprep.subr.mxu0 0.0
      %1857 = vmatpush1.msra.mxu0 0.0
      %1858 = vmatprep.subr.mxu0 0.0
      %1859 = vmatpush1.msra.mxu0 0.0
      %1860 = vmatprep.subr.mxu0 0.0
      %1861 = vmatpush1.msra.mxu0 0.0
      %1862 = vmatprep.subr.mxu0 0.0
      %1863 = vmatpush1.msra.mxu0 0.0
      %1864 = vmatprep.subr.mxu0 0.0
      %1865 = vmatpush1.msra.mxu0 0.0
      %1866 = vmatprep.subr.mxu0 0.0
      %1867 = vmatpush1.msra.mxu0 0.0
      %1868 = vmatprep.subr.mxu0 0.0
      %1869 = vmatpush1.msra.mxu0 0.0
      %1870 = vmatprep.subr.mxu0 0.0
      %1871 = vmatpush1.msra.mxu0 0.0
      %1872 = vmatprep.subr.mxu0 0.0
      %1873 = vmatpush1.msra.mxu0 0.0
      %1874 = vmatprep.subr.mxu0 0.0
      %1875 = vmatpush1.msra.mxu0 0.0
      %1876 = vmatprep.subr.mxu0 0.0
      %1877 = vmatpush1.msra.mxu0 0.0
      %1878 = vmatprep.subr.mxu0 0.0
      %1879 = vmatpush1.msra.mxu0 0.0
      %1880 = vmatprep.subr.mxu0 0.0
      %1881 = vmatpush1.msra.mxu0 0.0
      %1882 = vmatprep.subr.mxu0 0.0
      %1883 = vmatpush1.msra.mxu0 0.0
      %1884 = vmatprep.mubr.f32.mxu0 0.0
      %1885 = vmatmul.mubr.f32.gmra.mrb[0].mxu0 %v1725
      %v1886 = vpop.f32.mrb[0].mxu0
      %v1887 = vadd.f32 %v1566, %v1886
      %v1888 = vpop.f32.mrb[0].mxu0
      %1889 = vmatprep.mubr.f32.mxu0 0.0
      %1890 = vmatmul.mubr.f32.gmra.mrb[0].mxu0 %v1728
      %v1891 = vpop.f32.mrb[0].mxu0
      %v1892 = vadd.f32 %v1571, %v1891
      %v1893 = vpop.f32.mrb[0].mxu0
      %1894 = vmatprep.mubr.f32.mxu0 0.0
      %1895 = vmatmul.mubr.f32.gmra.mrb[0].mxu0 %v1731
      %v1896 = vpop.f32.mrb[0].mxu0
      %v1897 = vadd.f32 %v1576, %v1896
      %v1898 = vpop.f32.mrb[0].mxu0
      %1899 = vmatprep.mubr.f32.mxu0 0.0
      %1900 = vmatmul.mubr.f32.gmra.mrb[0].mxu0 %v1734
      %v1901 = vpop.f32.mrb[0].mxu0
      %v1902 = vadd.f32 %v1581, %v1901
      %v1903 = vpop.f32.mrb[0].mxu0
      %1904 = vmatprep.mubr.f32.mxu0 0.0
      %1905 = vmatmul.mubr.f32.gmra.mrb[0].mxu0 %v1737
      %v1906 = vpop.f32.mrb[0].mxu0
      %v1907 = vadd.f32 %v1586, %v1906
      %v1908 = vpop.f32.mrb[0].mxu0
      %1909 = vmatprep.mubr.f32.mxu0 0.0
      %1910 = vmatmul.mubr.f32.gmra.mrb[0].mxu0 %v1740
      %v1911 = vpop.f32.mrb[0].mxu0
      %v1912 = vadd.f32 %v1591, %v1911
      %v1913 = vpop.f32.mrb[0].mxu0
      %1914 = vmatprep.mubr.f32.mxu0 0.0
      %1915 = vmatmul.mubr.f32.gmra.mrb[0].mxu0 %v1743
      %v1916 = vpop.f32.mrb[0].mxu0
      %v1917 = vadd.f32 %v1596, %v1916
      %v1918 = vpop.f32.mrb[0].mxu0
      %1919 = vmatprep.mubr.f32.mxu0 0.0
      %1920 = vmatmul.mubr.f32.gmra.mrb[0].mxu0 %v1746
      %v1921 = vpop.f32.mrb[0].mxu0
      %v1922 = vadd.f32 %v1601, %v1921
      %v1923 = vpop.f32.mrb[0].mxu0
      %1924 = vmatprep.mubr.f32.mxu0 0.0
      %1925 = vmatmul.mubr.f32.gmra.mrb[0].mxu0 %v1749
      %v1926 = vpop.f32.mrb[0].mxu0
      %v1927 = vadd.f32 %v1606, %v1926
      %v1928 = vpop.f32.mrb[0].mxu0
      %1929 = vmatprep.mubr.f32.mxu0 0.0
      %1930 = vmatmul.mubr.f32.gmra.mrb[0].mxu0 %v1752
      %v1931 = vpop.f32.mrb[0].mxu0
      %v1932 = vadd.f32 %v1611, %v1931
      %v1933 = vpop.f32.mrb[0].mxu0
      %1934 = vmatprep.mubr.f32.mxu0 0.0
      %1935 = vmatmul.mubr.f32.gmra.mrb[0].mxu0 %v1755
      %v1936 = vpop.f32.mrb[0].mxu0
      %v1937 = vadd.f32 %v1616, %v1936
      %v1938 = vpop.f32.mrb[0].mxu0
      %1939 = vmatprep.mubr.f32.mxu0 0.0
      %1940 = vmatmul.mubr.f32.gmra.mrb[0].mxu0 %v1758
      %v1941 = vpop.f32.mrb[0].mxu0
      %v1942 = vadd.f32 %v1621, %v1941
      %v1943 = vpop.f32.mrb[0].mxu0
      %1944 = vmatprep.mubr.f32.mxu0 0.0
      %1945 = vmatmul.mubr.f32.gmra.mrb[0].mxu0 %v1761
      %v1946 = vpop.f32.mrb[0].mxu0
      %v1947 = vadd.f32 %v1626, %v1946
      %v1948 = vpop.f32.mrb[0].mxu0
      %1949 = vmatprep.mubr.f32.mxu0 0.0
      %1950 = vmatmul.mubr.f32.gmra.mrb[0].mxu0 %v1764
      %v1951 = vpop.f32.mrb[0].mxu0
      %v1952 = vadd.f32 %v1631, %v1951
      %v1953 = vpop.f32.mrb[0].mxu0
      %1954 = vmatprep.mubr.f32.mxu0 0.0
      %1955 = vmatmul.mubr.f32.gmra.mrb[0].mxu0 %v1767
      %v1956 = vpop.f32.mrb[0].mxu0
      %v1957 = vadd.f32 %v1636, %v1956
      %v1958 = vpop.f32.mrb[0].mxu0
      %1959 = vmatprep.mubr.f32.mxu0 0.0
      %1960 = vmatmul.mubr.f32.gmra.mrb[0].mxu0 %v1770
      %v1961 = vpop.f32.mrb[0].mxu0
      %v1962 = vadd.f32 %v1641, %v1961
      %v1963 = vpop.f32.mrb[0].mxu0
      %1964 = vmatprep.mubr.f32.mxu0 0.0
      %1965 = vmatmul.mubr.f32.gmra.mrb[0].mxu0 %v1773
      %v1966 = vpop.f32.mrb[0].mxu0
      %v1967 = vadd.f32 %v1646, %v1966
      %v1968 = vpop.f32.mrb[0].mxu0
      %1969 = vmatprep.mubr.f32.mxu0 0.0
      %1970 = vmatmul.mubr.f32.gmra.mrb[0].mxu0 %v1776
      %v1971 = vpop.f32.mrb[0].mxu0
      %v1972 = vadd.f32 %v1651, %v1971
      %v1973 = vpop.f32.mrb[0].mxu0
      %1974 = vmatprep.mubr.f32.mxu0 0.0
      %1975 = vmatmul.mubr.f32.gmra.mrb[0].mxu0 %v1779
      %v1976 = vpop.f32.mrb[0].mxu0
      %v1977 = vadd.f32 %v1656, %v1976
      %v1978 = vpop.f32.mrb[0].mxu0
      %1979 = vmatprep.mubr.f32.mxu0 0.0
      %1980 = vmatmul.mubr.f32.gmra.mrb[0].mxu0 %v1782
      %v1981 = vpop.f32.mrb[0].mxu0
      %v1982 = vadd.f32 %v1661, %v1981
      %v1983 = vpop.f32.mrb[0].mxu0
      %1984 = vmatprep.mubr.f32.mxu0 0.0
      %1985 = vmatmul.mubr.f32.gmra.mrb[0].mxu0 %v1785
      %v1986 = vpop.f32.mrb[0].mxu0
      %v1987 = vadd.f32 %v1666, %v1986
      %v1988 = vpop.f32.mrb[0].mxu0
      %1989 = vmatprep.mubr.f32.mxu0 0.0
      %1990 = vmatmul.mubr.f32.gmra.mrb[0].mxu0 %v1788
      %v1991 = vpop.f32.mrb[0].mxu0
      %v1992 = vadd.f32 %v1671, %v1991
      %v1993 = vpop.f32.mrb[0].mxu0
      %1994 = vmatprep.mubr.f32.mxu0 0.0
      %1995 = vmatmul.mubr.f32.gmra.mrb[0].mxu0 %v1791
      %v1996 = vpop.f32.mrb[0].mxu0
      %v1997 = vadd.f32 %v1676, %v1996
      %v1998 = vpop.f32.mrb[0].mxu0
      %1999 = vmatprep.mubr.f32.mxu0 0.0
      %2000 = vmatmul.mubr.f32.gmra.mrb[0].mxu0 %v1794
      %v2001 = vpop.f32.mrb[0].mxu0
      %v2002 = vadd.f32 %v1681, %v2001
      %v2003 = vpop.f32.mrb[0].mxu0
      %2004 = vmatprep.mubr.f32.mxu0 0.0
      %2005 = vmatmul.mubr.f32.gmra.mrb[0].mxu0 %v1797
      %v2006 = vpop.f32.mrb[0].mxu0
      %v2007 = vadd.f32 %v1686, %v2006
      %v2008 = vpop.f32.mrb[0].mxu0
      %2009 = vmatprep.mubr.f32.mxu0 0.0
      %2010 = vmatmul.mubr.f32.gmra.mrb[0].mxu0 %v1800
      %v2011 = vpop.f32.mrb[0].mxu0
      %v2012 = vadd.f32 %v1691, %v2011
      %v2013 = vpop.f32.mrb[0].mxu0
      %2014 = vmatprep.mubr.f32.mxu0 0.0
      %2015 = vmatmul.mubr.f32.gmra.mrb[0].mxu0 %v1803
      %v2016 = vpop.f32.mrb[0].mxu0
      %v2017 = vadd.f32 %v1696, %v2016
      %v2018 = vpop.f32.mrb[0].mxu0
      %2019 = vmatprep.mubr.f32.mxu0 0.0
      %2020 = vmatmul.mubr.f32.gmra.mrb[0].mxu0 %v1806
      %v2021 = vpop.f32.mrb[0].mxu0
      %v2022 = vadd.f32 %v1701, %v2021
      %v2023 = vpop.f32.mrb[0].mxu0
      %2024 = vmatprep.mubr.f32.mxu0 0.0
      %2025 = vmatmul.mubr.f32.gmra.mrb[0].mxu0 %v1809
      %v2026 = vpop.f32.mrb[0].mxu0
      %v2027 = vadd.f32 %v1706, %v2026
      %v2028 = vpop.f32.mrb[0].mxu0
      %2029 = vmatprep.mubr.f32.mxu0 0.0
      %2030 = vmatmul.mubr.f32.gmra.mrb[0].mxu0 %v1812
      %v2031 = vpop.f32.mrb[0].mxu0
      %v2032 = vadd.f32 %v1711, %v2031
      %v2033 = vpop.f32.mrb[0].mxu0
      %2034 = vmatprep.mubr.f32.mxu0 0.0
      %2035 = vmatmul.mubr.f32.gmra.mrb[0].mxu0 %v1815
      %v2036 = vpop.f32.mrb[0].mxu0
      %v2037 = vadd.f32 %v1716, %v2036
      %v2038 = vpop.f32.mrb[0].mxu0
      %2039 = vmatprep.mubr.f32.mxu0 0.0
      %2040 = vmatmul.mubr.f32.gmra.mrb[0].mxu0 %v1818
      %v2041 = vpop.f32.mrb[0].mxu0
      %v2042 = vadd.f32 %v1721, %v2041
      %v2043 = vpop.f32.mrb[0].mxu0
      %2044 = vdwg.mxu0
      %s2045 = scalar_lea.vmem [#allocation2], 64
      %v2046 = vld [vmem:[%s2045 + $0x7] sm:$0xff]
      %v2047 = vld [vmem:[%s2045 + $0xf] sm:$0xff]
      %v2048 = vld [vmem:[%s2045 + $0x27] sm:$0xff]
      %v2049 = vld [vmem:[%s2045 + $0x2f] sm:$0xff]
      %v2050 = vld [vmem:[%s2045 + $0x47] sm:$0xff]
      %v2051 = vld [vmem:[%s2045 + $0x4f] sm:$0xff]
      %v2052 = vld [vmem:[%s2045 + $0x67] sm:$0xff]
      %v2053 = vld [vmem:[%s2045 + $0x6f] sm:$0xff]
      %v2054 = vld [vmem:[%s2045 + $0x87] sm:$0xff]
      %v2055 = vld [vmem:[%s2045 + $0x8f] sm:$0xff]
      %v2056 = vld [vmem:[%s2045 + $0xa7] sm:$0xff]
      %v2057 = vld [vmem:[%s2045 + $0xaf] sm:$0xff]
      %v2058 = vld [vmem:[%s2045 + $0xc7] sm:$0xff]
      %v2059 = vld [vmem:[%s2045 + $0xcf] sm:$0xff]
      %v2060 = vld [vmem:[%s2045 + $0xe7] sm:$0xff]
      %v2061 = vld [vmem:[%s2045 + $0xef] sm:$0xff]
      %v2062 = vld [vmem:[%s2045 + $0x107] sm:$0xff]
      %v2063 = vld [vmem:[%s2045 + $0x10f] sm:$0xff]
      %v2064 = vld [vmem:[%s2045 + $0x127] sm:$0xff]
      %v2065 = vld [vmem:[%s2045 + $0x12f] sm:$0xff]
      %v2066 = vld [vmem:[%s2045 + $0x147] sm:$0xff]
      %v2067 = vld [vmem:[%s2045 + $0x14f] sm:$0xff]
      %v2068 = vld [vmem:[%s2045 + $0x167] sm:$0xff]
      %v2069 = vld [vmem:[%s2045 + $0x16f] sm:$0xff]
      %v2070 = vld [vmem:[%s2045 + $0x187] sm:$0xff]
      %v2071 = vld [vmem:[%s2045 + $0x18f] sm:$0xff]
      %v2072 = vld [vmem:[%s2045 + $0x1a7] sm:$0xff]
      %v2073 = vld [vmem:[%s2045 + $0x1af] sm:$0xff]
      %v2074 = vld [vmem:[%s2045 + $0x1c7] sm:$0xff]
      %v2075 = vld [vmem:[%s2045 + $0x1cf] sm:$0xff]
      %v2076 = vld [vmem:[%s2045 + $0x1e7] sm:$0xff]
      %v2077 = vld [vmem:[%s2045 + $0x1ef] sm:$0xff]
      %v2078 = vld [vmem:[%s2045 + $0x8] sm:$0xff]
      %v2079 = vld [vmem:[%s2045 + $0x10] sm:$0xff]
      %v2080 = vld [vmem:[%s2045 + $0x28] sm:$0xff]
      %v2081 = vld [vmem:[%s2045 + $0x30] sm:$0xff]
      %v2082 = vld [vmem:[%s2045 + $0x48] sm:$0xff]
      %v2083 = vld [vmem:[%s2045 + $0x50] sm:$0xff]
      %v2084 = vld [vmem:[%s2045 + $0x68] sm:$0xff]
      %v2085 = vld [vmem:[%s2045 + $0x70] sm:$0xff]
      %v2086 = vld [vmem:[%s2045 + $0x88] sm:$0xff]
      %v2087 = vld [vmem:[%s2045 + $0x90] sm:$0xff]
      %v2088 = vld [vmem:[%s2045 + $0xa8] sm:$0xff]
      %v2089 = vld [vmem:[%s2045 + $0xb0] sm:$0xff]
      %v2090 = vld [vmem:[%s2045 + $0xc8] sm:$0xff]
      %v2091 = vld [vmem:[%s2045 + $0xd0] sm:$0xff]
      %v2092 = vld [vmem:[%s2045 + $0xe8] sm:$0xff]
      %v2093 = vld [vmem:[%s2045 + $0xf0] sm:$0xff]
      %v2094 = vld [vmem:[%s2045 + $0x108] sm:$0xff]
      %v2095 = vld [vmem:[%s2045 + $0x110] sm:$0xff]
      %v2096 = vld [vmem:[%s2045 + $0x128] sm:$0xff]
      %v2097 = vld [vmem:[%s2045 + $0x130] sm:$0xff]
      %v2098 = vld [vmem:[%s2045 + $0x148] sm:$0xff]
      %v2099 = vld [vmem:[%s2045 + $0x150] sm:$0xff]
      %v2100 = vld [vmem:[%s2045 + $0x168] sm:$0xff]
      %v2101 = vld [vmem:[%s2045 + $0x170] sm:$0xff]
      %v2102 = vld [vmem:[%s2045 + $0x188] sm:$0xff]
      %v2103 = vld [vmem:[%s2045 + $0x190] sm:$0xff]
      %v2104 = vld [vmem:[%s2045 + $0x1a8] sm:$0xff]
      %v2105 = vld [vmem:[%s2045 + $0x1b0] sm:$0xff]
      %v2106 = vld [vmem:[%s2045 + $0x1c8] sm:$0xff]
      %v2107 = vld [vmem:[%s2045 + $0x1d0] sm:$0xff]
      %v2108 = vld [vmem:[%s2045 + $0x1e8] sm:$0xff]
      %v2109 = vld [vmem:[%s2045 + $0x1f0] sm:$0xff]
      %v2110 = vld [vmem:[%s2045 + $0x9] sm:$0xff]
      %v2111 = vld [vmem:[%s2045 + $0x11] sm:$0xff]
      %v2112 = vld [vmem:[%s2045 + $0x29] sm:$0xff]
      %v2113 = vld [vmem:[%s2045 + $0x31] sm:$0xff]
      %v2114 = vld [vmem:[%s2045 + $0x49] sm:$0xff]
      %v2115 = vld [vmem:[%s2045 + $0x51] sm:$0xff]
      %v2116 = vld [vmem:[%s2045 + $0x69] sm:$0xff]
      %v2117 = vld [vmem:[%s2045 + $0x71] sm:$0xff]
      %v2118 = vld [vmem:[%s2045 + $0x89] sm:$0xff]
      %v2119 = vld [vmem:[%s2045 + $0x91] sm:$0xff]
      %v2120 = vld [vmem:[%s2045 + $0xa9] sm:$0xff]
      %v2121 = vld [vmem:[%s2045 + $0xb1] sm:$0xff]
      %v2122 = vld [vmem:[%s2045 + $0xc9] sm:$0xff]
      %v2123 = vld [vmem:[%s2045 + $0xd1] sm:$0xff]
      %v2124 = vld [vmem:[%s2045 + $0xe9] sm:$0xff]
      %v2125 = vld [vmem:[%s2045 + $0xf1] sm:$0xff]
      %v2126 = vld [vmem:[%s2045 + $0x109] sm:$0xff]
      %v2127 = vld [vmem:[%s2045 + $0x111] sm:$0xff]
      %v2128 = vld [vmem:[%s2045 + $0x129] sm:$0xff]
      %v2129 = vld [vmem:[%s2045 + $0x131] sm:$0xff]
      %v2130 = vld [vmem:[%s2045 + $0x149] sm:$0xff]
      %v2131 = vld [vmem:[%s2045 + $0x151] sm:$0xff]
      %v2132 = vld [vmem:[%s2045 + $0x169] sm:$0xff]
      %v2133 = vld [vmem:[%s2045 + $0x171] sm:$0xff]
      %v2134 = vld [vmem:[%s2045 + $0x189] sm:$0xff]
      %v2135 = vld [vmem:[%s2045 + $0x191] sm:$0xff]
      %v2136 = vld [vmem:[%s2045 + $0x1a9] sm:$0xff]
      %v2137 = vld [vmem:[%s2045 + $0x1b1] sm:$0xff]
      %v2138 = vld [vmem:[%s2045 + $0x1c9] sm:$0xff]
      %v2139 = vld [vmem:[%s2045 + $0x1d1] sm:$0xff]
      %v2140 = vld [vmem:[%s2045 + $0x1e9] sm:$0xff]
      %v2141 = vld [vmem:[%s2045 + $0x1f1] sm:$0xff]
      %2174 = vrot.lane.b32.xlu0 %v2078, 8
      %v2175 = vpop.permute.xlu0 %2174
      %2176 = vrot.lane.b32.xlu0 %v2079, 8
      %v2177 = vpop.permute.xlu0 %2176
      %2178 = vrot.lane.b32.xlu0 %v2080, 8
      %v2179 = vpop.permute.xlu0 %2178
      %2180 = vrot.lane.b32.xlu0 %v2081, 8
      %v2181 = vpop.permute.xlu0 %2180
      %2182 = vrot.lane.b32.xlu0 %v2082, 8
      %v2183 = vpop.permute.xlu0 %2182
      %2184 = vrot.lane.b32.xlu0 %v2083, 8
      %v2185 = vpop.permute.xlu0 %2184
      %2186 = vrot.lane.b32.xlu0 %v2084, 8
      %v2187 = vpop.permute.xlu0 %2186
      %2188 = vrot.lane.b32.xlu0 %v2085, 8
      %v2189 = vpop.permute.xlu0 %2188
      %2190 = vrot.lane.b32.xlu0 %v2086, 8
      %v2191 = vpop.permute.xlu0 %2190
      %2192 = vrot.lane.b32.xlu0 %v2087, 8
      %v2193 = vpop.permute.xlu0 %2192
      %2194 = vrot.lane.b32.xlu0 %v2088, 8
      %v2195 = vpop.permute.xlu0 %2194
      %2196 = vrot.lane.b32.xlu0 %v2089, 8
      %v2197 = vpop.permute.xlu0 %2196
      %2198 = vrot.lane.b32.xlu0 %v2090, 8
      %v2199 = vpop.permute.xlu0 %2198
      %2200 = vrot.lane.b32.xlu0 %v2091, 8
      %v2201 = vpop.permute.xlu0 %2200
      %2202 = vrot.lane.b32.xlu0 %v2092, 8
      %v2203 = vpop.permute.xlu0 %2202
      %2204 = vrot.lane.b32.xlu0 %v2093, 8
      %v2205 = vpop.permute.xlu0 %2204
      %2206 = vrot.lane.b32.xlu0 %v2094, 8
      %v2207 = vpop.permute.xlu0 %2206
      %2208 = vrot.lane.b32.xlu0 %v2095, 8
      %v2209 = vpop.permute.xlu0 %2208
      %2210 = vrot.lane.b32.xlu0 %v2096, 8
      %v2211 = vpop.permute.xlu0 %2210
      %2212 = vrot.lane.b32.xlu0 %v2097, 8
      %v2213 = vpop.permute.xlu0 %2212
      %2214 = vrot.lane.b32.xlu0 %v2098, 8
      %v2215 = vpop.permute.xlu0 %2214
      %2216 = vrot.lane.b32.xlu0 %v2099, 8
      %v2217 = vpop.permute.xlu0 %2216
      %2218 = vrot.lane.b32.xlu0 %v2100, 8
      %v2219 = vpop.permute.xlu0 %2218
      %2220 = vrot.lane.b32.xlu0 %v2101, 8
      %v2221 = vpop.permute.xlu0 %2220
      %2222 = vrot.lane.b32.xlu0 %v2102, 8
      %v2223 = vpop.permute.xlu0 %2222
      %2224 = vrot.lane.b32.xlu0 %v2103, 8
      %v2225 = vpop.permute.xlu0 %2224
      %2226 = vrot.lane.b32.xlu0 %v2104, 8
      %v2227 = vpop.permute.xlu0 %2226
      %2228 = vrot.lane.b32.xlu0 %v2105, 8
      %v2229 = vpop.permute.xlu0 %2228
      %2230 = vrot.lane.b32.xlu0 %v2106, 8
      %v2231 = vpop.permute.xlu0 %2230
      %2232 = vrot.lane.b32.xlu0 %v2107, 8
      %v2233 = vpop.permute.xlu0 %2232
      %2234 = vrot.lane.b32.xlu0 %v2108, 8
      %v2235 = vpop.permute.xlu0 %2234
      %2236 = vrot.lane.b32.xlu0 %v2109, 8
      %v2237 = vpop.permute.xlu0 %2236
      %2302 = vrot.lane.b32.xlu0 %v2110, 16
      %v2303 = vpop.permute.xlu0 %2302
      %2304 = vrot.lane.b32.xlu0 %v2111, 16
      %v2305 = vpop.permute.xlu0 %2304
      %2306 = vrot.lane.b32.xlu0 %v2112, 16
      %v2307 = vpop.permute.xlu0 %2306
      %2308 = vrot.lane.b32.xlu0 %v2113, 16
      %v2309 = vpop.permute.xlu0 %2308
      %2310 = vrot.lane.b32.xlu0 %v2114, 16
      %v2311 = vpop.permute.xlu0 %2310
      %2312 = vrot.lane.b32.xlu0 %v2115, 16
      %v2313 = vpop.permute.xlu0 %2312
      %2314 = vrot.lane.b32.xlu0 %v2116, 16
      %v2315 = vpop.permute.xlu0 %2314
      %2316 = vrot.lane.b32.xlu0 %v2117, 16
      %v2317 = vpop.permute.xlu0 %2316
      %2318 = vrot.lane.b32.xlu0 %v2118, 16
      %v2319 = vpop.permute.xlu0 %2318
      %2320 = vrot.lane.b32.xlu0 %v2119, 16
      %v2321 = vpop.permute.xlu0 %2320
      %2322 = vrot.lane.b32.xlu0 %v2120, 16
      %v2323 = vpop.permute.xlu0 %2322
      %2324 = vrot.lane.b32.xlu0 %v2121, 16
      %v2325 = vpop.permute.xlu0 %2324
      %2326 = vrot.lane.b32.xlu0 %v2122, 16
      %v2327 = vpop.permute.xlu0 %2326
      %2328 = vrot.lane.b32.xlu0 %v2123, 16
      %v2329 = vpop.permute.xlu0 %2328
      %2330 = vrot.lane.b32.xlu0 %v2124, 16
      %v2331 = vpop.permute.xlu0 %2330
      %2332 = vrot.lane.b32.xlu0 %v2125, 16
      %v2333 = vpop.permute.xlu0 %2332
      %2334 = vrot.lane.b32.xlu0 %v2126, 16
      %v2335 = vpop.permute.xlu0 %2334
      %2336 = vrot.lane.b32.xlu0 %v2127, 16
      %v2337 = vpop.permute.xlu0 %2336
      %2338 = vrot.lane.b32.xlu0 %v2128, 16
      %v2339 = vpop.permute.xlu0 %2338
      %2340 = vrot.lane.b32.xlu0 %v2129, 16
      %v2341 = vpop.permute.xlu0 %2340
      %2342 = vrot.lane.b32.xlu0 %v2130, 16
      %v2343 = vpop.permute.xlu0 %2342
      %2344 = vrot.lane.b32.xlu0 %v2131, 16
      %v2345 = vpop.permute.xlu0 %2344
      %2346 = vrot.lane.b32.xlu0 %v2132, 16
      %v2347 = vpop.permute.xlu0 %2346
      %2348 = vrot.lane.b32.xlu0 %v2133, 16
      %v2349 = vpop.permute.xlu0 %2348
      %2350 = vrot.lane.b32.xlu0 %v2134, 16
      %v2351 = vpop.permute.xlu0 %2350
      %2352 = vrot.lane.b32.xlu0 %v2135, 16
      %v2353 = vpop.permute.xlu0 %2352
      %2354 = vrot.lane.b32.xlu0 %v2136, 16
      %v2355 = vpop.permute.xlu0 %2354
      %2356 = vrot.lane.b32.xlu0 %v2137, 16
      %v2357 = vpop.permute.xlu0 %2356
      %2358 = vrot.lane.b32.xlu0 %v2138, 16
      %v2359 = vpop.permute.xlu0 %2358
      %2360 = vrot.lane.b32.xlu0 %v2139, 16
      %v2361 = vpop.permute.xlu0 %2360
      %2362 = vrot.lane.b32.xlu0 %v2140, 16
      %v2363 = vpop.permute.xlu0 %2362
      %2364 = vrot.lane.b32.xlu0 %v2141, 16
      %v2365 = vpop.permute.xlu0 %2364
      %v2398 = vsel %vm279, %v2046, %v2175
      %v2399 = vsel %vm279, %v2047, %v2177
      %v2400 = vsel %vm279, %v2048, %v2179
      %v2401 = vsel %vm279, %v2049, %v2181
      %v2402 = vsel %vm279, %v2050, %v2183
      %v2403 = vsel %vm279, %v2051, %v2185
      %v2404 = vsel %vm279, %v2052, %v2187
      %v2405 = vsel %vm279, %v2053, %v2189
      %v2406 = vsel %vm279, %v2054, %v2191
      %v2407 = vsel %vm279, %v2055, %v2193
      %v2408 = vsel %vm279, %v2056, %v2195
      %v2409 = vsel %vm279, %v2057, %v2197
      %v2410 = vsel %vm279, %v2058, %v2199
      %v2411 = vsel %vm279, %v2059, %v2201
      %v2412 = vsel %vm279, %v2060, %v2203
      %v2413 = vsel %vm279, %v2061, %v2205
      %v2414 = vsel %vm279, %v2062, %v2207
      %v2415 = vsel %vm279, %v2063, %v2209
      %v2416 = vsel %vm279, %v2064, %v2211
      %v2417 = vsel %vm279, %v2065, %v2213
      %v2418 = vsel %vm279, %v2066, %v2215
      %v2419 = vsel %vm279, %v2067, %v2217
      %v2420 = vsel %vm279, %v2068, %v2219
      %v2421 = vsel %vm279, %v2069, %v2221
      %v2422 = vsel %vm279, %v2070, %v2223
      %v2423 = vsel %vm279, %v2071, %v2225
      %v2424 = vsel %vm279, %v2072, %v2227
      %v2425 = vsel %vm279, %v2073, %v2229
      %v2426 = vsel %vm279, %v2074, %v2231
      %v2427 = vsel %vm279, %v2075, %v2233
      %v2428 = vsel %vm279, %v2076, %v2235
      %v2429 = vsel %vm279, %v2077, %v2237
      %v2430 = vsel %vm946, %v2398, %v2303
      %v2431 = vsel %vm946, %v2399, %v2305
      %v2432 = vsel %vm946, %v2400, %v2307
      %v2433 = vsel %vm946, %v2401, %v2309
      %v2434 = vsel %vm946, %v2402, %v2311
      %v2435 = vsel %vm946, %v2403, %v2313
      %v2436 = vsel %vm946, %v2404, %v2315
      %v2437 = vsel %vm946, %v2405, %v2317
      %v2438 = vsel %vm946, %v2406, %v2319
      %v2439 = vsel %vm946, %v2407, %v2321
      %v2440 = vsel %vm946, %v2408, %v2323
      %v2441 = vsel %vm946, %v2409, %v2325
      %v2442 = vsel %vm946, %v2410, %v2327
      %v2443 = vsel %vm946, %v2411, %v2329
      %v2444 = vsel %vm946, %v2412, %v2331
      %v2445 = vsel %vm946, %v2413, %v2333
      %v2446 = vsel %vm946, %v2414, %v2335
      %v2447 = vsel %vm946, %v2415, %v2337
      %v2448 = vsel %vm946, %v2416, %v2339
      %v2449 = vsel %vm946, %v2417, %v2341
      %v2450 = vsel %vm946, %v2418, %v2343
      %v2451 = vsel %vm946, %v2419, %v2345
      %v2452 = vsel %vm946, %v2420, %v2347
      %v2453 = vsel %vm946, %v2421, %v2349
      %v2454 = vsel %vm946, %v2422, %v2351
      %v2455 = vsel %vm946, %v2423, %v2353
      %v2456 = vsel %vm946, %v2424, %v2355
      %v2457 = vsel %vm946, %v2425, %v2357
      %v2458 = vsel %vm946, %v2426, %v2359
      %v2459 = vsel %vm946, %v2427, %v2361
      %v2460 = vsel %vm946, %v2428, %v2363
      %v2461 = vsel %vm946, %v2429, %v2365
      %s2462 = scalar_lea.vmem %s1, 48
      %v2463 = vld [vmem:[%s2462] sm:$0xff]
      %v2464 = vld [vmem:[%s2462 + $0x8] sm:$0xff]
      %v2465 = vld [vmem:[%s2462 + $0x10] sm:$0xff]
      %v2467 = vsel %vm1402, %v2430, 0
      %v2470 = vsel %vm1402, %v2431, 0
      %v2473 = vsel %vm1402, %v2432, 0
      %v2476 = vsel %vm1402, %v2433, 0
      %v2479 = vsel %vm1402, %v2434, 0
      %v2482 = vsel %vm1402, %v2435, 0
      %v2485 = vsel %vm1402, %v2436, 0
      %v2488 = vsel %vm1402, %v2437, 0
      %v2491 = vsel %vm1402, %v2438, 0
      %v2494 = vsel %vm1402, %v2439, 0
      %v2497 = vsel %vm1402, %v2440, 0
      %v2500 = vsel %vm1402, %v2441, 0
      %v2503 = vsel %vm1402, %v2442, 0
      %v2506 = vsel %vm1402, %v2443, 0
      %v2509 = vsel %vm1402, %v2444, 0
      %v2512 = vsel %vm1402, %v2445, 0
      %v2515 = vsel %vm1402, %v2446, 0
      %v2518 = vsel %vm1402, %v2447, 0
      %v2521 = vsel %vm1402, %v2448, 0
      %v2524 = vsel %vm1402, %v2449, 0
      %v2527 = vsel %vm1402, %v2450, 0
      %v2530 = vsel %vm1402, %v2451, 0
      %v2533 = vsel %vm1402, %v2452, 0
      %v2536 = vsel %vm1402, %v2453, 0
      %v2539 = vsel %vm1402, %v2454, 0
      %v2542 = vsel %vm1402, %v2455, 0
      %v2545 = vsel %vm1402, %v2456, 0
      %v2548 = vsel %vm1402, %v2457, 0
      %v2551 = vsel %vm1402, %v2458, 0
      %v2554 = vsel %vm1402, %v2459, 0
      %v2557 = vsel %vm1402, %v2460, 0
      %v2560 = vsel %vm1402, %v2461, 0
      %2562 = vmatprep.subr.mxu0 0.0
      %2563 = vmatpush1.msra.mxu0 %v2463
      %2564 = vmatprep.subr.mxu0 0.0
      %2565 = vmatpush1.msra.mxu0 %v2464
      %2566 = vmatprep.subr.mxu0 0.0
      %2567 = vmatpush1.msra.mxu0 %v2465
      %2568 = vmatprep.subr.mxu0 0.0
      %2569 = vmatpush1.msra.mxu0 0.0
      %2570 = vmatprep.subr.mxu0 0.0
      %2571 = vmatpush1.msra.mxu0 0.0
      %2572 = vmatprep.subr.mxu0 0.0
      %2573 = vmatpush1.msra.mxu0 0.0
      %2574 = vmatprep.subr.mxu0 0.0
      %2575 = vmatpush1.msra.mxu0 0.0
      %2576 = vmatprep.subr.mxu0 0.0
      %2577 = vmatpush1.msra.mxu0 0.0
      %2578 = vmatprep.subr.mxu0 0.0
      %2579 = vmatpush1.msra.mxu0 0.0
      %2580 = vmatprep.subr.mxu0 0.0
      %2581 = vmatpush1.msra.mxu0 0.0
      %2582 = vmatprep.subr.mxu0 0.0
      %2583 = vmatpush1.msra.mxu0 0.0
      %2584 = vmatprep.subr.mxu0 0.0
      %2585 = vmatpush1.msra.mxu0 0.0
      %2586 = vmatprep.subr.mxu0 0.0
      %2587 = vmatpush1.msra.mxu0 0.0
      %2588 = vmatprep.subr.mxu0 0.0
      %2589 = vmatpush1.msra.mxu0 0.0
      %2590 = vmatprep.subr.mxu0 0.0
      %2591 = vmatpush1.msra.mxu0 0.0
      %2592 = vmatprep.subr.mxu0 0.0
      %2593 = vmatpush1.msra.mxu0 0.0
      %2594 = vmatprep.subr.mxu0 0.0
      %2595 = vmatpush1.msra.mxu0 0.0
      %2596 = vmatprep.subr.mxu0 0.0
      %2597 = vmatpush1.msra.mxu0 0.0
      %2598 = vmatprep.subr.mxu0 0.0
      %2599 = vmatpush1.msra.mxu0 0.0
      %2600 = vmatprep.subr.mxu0 0.0
      %2601 = vmatpush1.msra.mxu0 0.0
      %2602 = vmatprep.subr.mxu0 0.0
      %2603 = vmatpush1.msra.mxu0 0.0
      %2604 = vmatprep.subr.mxu0 0.0
      %2605 = vmatpush1.msra.mxu0 0.0
      %2606 = vmatprep.subr.mxu0 0.0
      %2607 = vmatpush1.msra.mxu0 0.0
      %2608 = vmatprep.subr.mxu0 0.0
      %2609 = vmatpush1.msra.mxu0 0.0
      %2610 = vmatprep.subr.mxu0 0.0
      %2611 = vmatpush1.msra.mxu0 0.0
      %2612 = vmatprep.subr.mxu0 0.0
      %2613 = vmatpush1.msra.mxu0 0.0
      %2614 = vmatprep.subr.mxu0 0.0
      %2615 = vmatpush1.msra.mxu0 0.0
      %2616 = vmatprep.subr.mxu0 0.0
      %2617 = vmatpush1.msra.mxu0 0.0
      %2618 = vmatprep.subr.mxu0 0.0
      %2619 = vmatpush1.msra.mxu0 0.0
      %2620 = vmatprep.subr.mxu0 0.0
      %2621 = vmatpush1.msra.mxu0 0.0
      %2622 = vmatprep.subr.mxu0 0.0
      %2623 = vmatpush1.msra.mxu0 0.0
      %2624 = vmatprep.subr.mxu0 0.0
      %2625 = vmatpush1.msra.mxu0 0.0
      %2626 = vmatprep.mubr.f32.mxu0 0.0
      %2627 = vmatmul.mubr.f32.gmra.mrb[0].mxu0 %v2467
      %v2628 = vpop.f32.mrb[0].mxu0
      %v2629 = vadd.f32 0.0, %v2628
      %v2630 = vpop.f32.mrb[0].mxu0
      %2631 = vmatprep.mubr.f32.mxu0 0.0
      %2632 = vmatmul.mubr.f32.gmra.mrb[0].mxu0 %v2470
      %v2633 = vpop.f32.mrb[0].mxu0
      %v2634 = vadd.f32 0.0, %v2633
      %v2635 = vpop.f32.mrb[0].mxu0
      %2636 = vmatprep.mubr.f32.mxu0 0.0
      %2637 = vmatmul.mubr.f32.gmra.mrb[0].mxu0 %v2473
      %v2638 = vpop.f32.mrb[0].mxu0
      %v2639 = vadd.f32 0.0, %v2638
      %v2640 = vpop.f32.mrb[0].mxu0
      %2641 = vmatprep.mubr.f32.mxu0 0.0
      %2642 = vmatmul.mubr.f32.gmra.mrb[0].mxu0 %v2476
      %v2643 = vpop.f32.mrb[0].mxu0
      %v2644 = vadd.f32 0.0, %v2643
      %v2645 = vpop.f32.mrb[0].mxu0
      %2646 = vmatprep.mubr.f32.mxu0 0.0
      %2647 = vmatmul.mubr.f32.gmra.mrb[0].mxu0 %v2479
      %v2648 = vpop.f32.mrb[0].mxu0
      %v2649 = vadd.f32 0.0, %v2648
      %v2650 = vpop.f32.mrb[0].mxu0
      %2651 = vmatprep.mubr.f32.mxu0 0.0
      %2652 = vmatmul.mubr.f32.gmra.mrb[0].mxu0 %v2482
      %v2653 = vpop.f32.mrb[0].mxu0
      %v2654 = vadd.f32 0.0, %v2653
      %v2655 = vpop.f32.mrb[0].mxu0
      %2656 = vmatprep.mubr.f32.mxu0 0.0
      %2657 = vmatmul.mubr.f32.gmra.mrb[0].mxu0 %v2485
      %v2658 = vpop.f32.mrb[0].mxu0
      %v2659 = vadd.f32 0.0, %v2658
      %v2660 = vpop.f32.mrb[0].mxu0
      %2661 = vmatprep.mubr.f32.mxu0 0.0
      %2662 = vmatmul.mubr.f32.gmra.mrb[0].mxu0 %v2488
      %v2663 = vpop.f32.mrb[0].mxu0
      %v2664 = vadd.f32 0.0, %v2663
      %v2665 = vpop.f32.mrb[0].mxu0
      %2666 = vmatprep.mubr.f32.mxu0 0.0
      %2667 = vmatmul.mubr.f32.gmra.mrb[0].mxu0 %v2491
      %v2668 = vpop.f32.mrb[0].mxu0
      %v2669 = vadd.f32 0.0, %v2668
      %v2670 = vpop.f32.mrb[0].mxu0
      %2671 = vmatprep.mubr.f32.mxu0 0.0
      %2672 = vmatmul.mubr.f32.gmra.mrb[0].mxu0 %v2494
      %v2673 = vpop.f32.mrb[0].mxu0
      %v2674 = vadd.f32 0.0, %v2673
      %v2675 = vpop.f32.mrb[0].mxu0
      %2676 = vmatprep.mubr.f32.mxu0 0.0
      %2677 = vmatmul.mubr.f32.gmra.mrb[0].mxu0 %v2497
      %v2678 = vpop.f32.mrb[0].mxu0
      %v2679 = vadd.f32 0.0, %v2678
      %v2680 = vpop.f32.mrb[0].mxu0
      %2681 = vmatprep.mubr.f32.mxu0 0.0
      %2682 = vmatmul.mubr.f32.gmra.mrb[0].mxu0 %v2500
      %v2683 = vpop.f32.mrb[0].mxu0
      %v2684 = vadd.f32 0.0, %v2683
      %v2685 = vpop.f32.mrb[0].mxu0
      %2686 = vmatprep.mubr.f32.mxu0 0.0
      %2687 = vmatmul.mubr.f32.gmra.mrb[0].mxu0 %v2503
      %v2688 = vpop.f32.mrb[0].mxu0
      %v2689 = vadd.f32 0.0, %v2688
      %v2690 = vpop.f32.mrb[0].mxu0
      %2691 = vmatprep.mubr.f32.mxu0 0.0
      %2692 = vmatmul.mubr.f32.gmra.mrb[0].mxu0 %v2506
      %v2693 = vpop.f32.mrb[0].mxu0
      %v2694 = vadd.f32 0.0, %v2693
      %v2695 = vpop.f32.mrb[0].mxu0
      %2696 = vmatprep.mubr.f32.mxu0 0.0
      %2697 = vmatmul.mubr.f32.gmra.mrb[0].mxu0 %v2509
      %v2698 = vpop.f32.mrb[0].mxu0
      %v2699 = vadd.f32 0.0, %v2698
      %v2700 = vpop.f32.mrb[0].mxu0
      %2701 = vmatprep.mubr.f32.mxu0 0.0
      %2702 = vmatmul.mubr.f32.gmra.mrb[0].mxu0 %v2512
      %v2703 = vpop.f32.mrb[0].mxu0
      %v2704 = vadd.f32 0.0, %v2703
      %v2705 = vpop.f32.mrb[0].mxu0
      %2706 = vmatprep.mubr.f32.mxu0 0.0
      %2707 = vmatmul.mubr.f32.gmra.mrb[0].mxu0 %v2515
      %v2708 = vpop.f32.mrb[0].mxu0
      %v2709 = vadd.f32 0.0, %v2708
      %v2710 = vpop.f32.mrb[0].mxu0
      %2711 = vmatprep.mubr.f32.mxu0 0.0
      %2712 = vmatmul.mubr.f32.gmra.mrb[0].mxu0 %v2518
      %v2713 = vpop.f32.mrb[0].mxu0
      %v2714 = vadd.f32 0.0, %v2713
      %v2715 = vpop.f32.mrb[0].mxu0
      %2716 = vmatprep.mubr.f32.mxu0 0.0
      %2717 = vmatmul.mubr.f32.gmra.mrb[0].mxu0 %v2521
      %v2718 = vpop.f32.mrb[0].mxu0
      %v2719 = vadd.f32 0.0, %v2718
      %v2720 = vpop.f32.mrb[0].mxu0
      %2721 = vmatprep.mubr.f32.mxu0 0.0
      %2722 = vmatmul.mubr.f32.gmra.mrb[0].mxu0 %v2524
      %v2723 = vpop.f32.mrb[0].mxu0
      %v2724 = vadd.f32 0.0, %v2723
      %v2725 = vpop.f32.mrb[0].mxu0
      %2726 = vmatprep.mubr.f32.mxu0 0.0
      %2727 = vmatmul.mubr.f32.gmra.mrb[0].mxu0 %v2527
      %v2728 = vpop.f32.mrb[0].mxu0
      %v2729 = vadd.f32 0.0, %v2728
      %v2730 = vpop.f32.mrb[0].mxu0
      %2731 = vmatprep.mubr.f32.mxu0 0.0
      %2732 = vmatmul.mubr.f32.gmra.mrb[0].mxu0 %v2530
      %v2733 = vpop.f32.mrb[0].mxu0
      %v2734 = vadd.f32 0.0, %v2733
      %v2735 = vpop.f32.mrb[0].mxu0
      %2736 = vmatprep.mubr.f32.mxu0 0.0
      %2737 = vmatmul.mubr.f32.gmra.mrb[0].mxu0 %v2533
      %v2738 = vpop.f32.mrb[0].mxu0
      %v2739 = vadd.f32 0.0, %v2738
      %v2740 = vpop.f32.mrb[0].mxu0
      %2741 = vmatprep.mubr.f32.mxu0 0.0
      %2742 = vmatmul.mubr.f32.gmra.mrb[0].mxu0 %v2536
      %v2743 = vpop.f32.mrb[0].mxu0
      %v2744 = vadd.f32 0.0, %v2743
      %v2745 = vpop.f32.mrb[0].mxu0
      %2746 = vmatprep.mubr.f32.mxu0 0.0
      %2747 = vmatmul.mubr.f32.gmra.mrb[0].mxu0 %v2539
      %v2748 = vpop.f32.mrb[0].mxu0
      %v2749 = vadd.f32 0.0, %v2748
      %v2750 = vpop.f32.mrb[0].mxu0
      %2751 = vmatprep.mubr.f32.mxu0 0.0
      %2752 = vmatmul.mubr.f32.gmra.mrb[0].mxu0 %v2542
      %v2753 = vpop.f32.mrb[0].mxu0
      %v2754 = vadd.f32 0.0, %v2753
      %v2755 = vpop.f32.mrb[0].mxu0
      %2756 = vmatprep.mubr.f32.mxu0 0.0
      %2757 = vmatmul.mubr.f32.gmra.mrb[0].mxu0 %v2545
      %v2758 = vpop.f32.mrb[0].mxu0
      %v2759 = vadd.f32 0.0, %v2758
      %v2760 = vpop.f32.mrb[0].mxu0
      %2761 = vmatprep.mubr.f32.mxu0 0.0
      %2762 = vmatmul.mubr.f32.gmra.mrb[0].mxu0 %v2548
      %v2763 = vpop.f32.mrb[0].mxu0
      %v2764 = vadd.f32 0.0, %v2763
      %v2765 = vpop.f32.mrb[0].mxu0
      %2766 = vmatprep.mubr.f32.mxu0 0.0
      %2767 = vmatmul.mubr.f32.gmra.mrb[0].mxu0 %v2551
      %v2768 = vpop.f32.mrb[0].mxu0
      %v2769 = vadd.f32 0.0, %v2768
      %v2770 = vpop.f32.mrb[0].mxu0
      %2771 = vmatprep.mubr.f32.mxu0 0.0
      %2772 = vmatmul.mubr.f32.gmra.mrb[0].mxu0 %v2554
      %v2773 = vpop.f32.mrb[0].mxu0
      %v2774 = vadd.f32 0.0, %v2773
      %v2775 = vpop.f32.mrb[0].mxu0
      %2776 = vmatprep.mubr.f32.mxu0 0.0
      %2777 = vmatmul.mubr.f32.gmra.mrb[0].mxu0 %v2557
      %v2778 = vpop.f32.mrb[0].mxu0
      %v2779 = vadd.f32 0.0, %v2778
      %v2780 = vpop.f32.mrb[0].mxu0
      %2781 = vmatprep.mubr.f32.mxu0 0.0
      %2782 = vmatmul.mubr.f32.gmra.mrb[0].mxu0 %v2560
      %v2783 = vpop.f32.mrb[0].mxu0
      %v2784 = vadd.f32 0.0, %v2783
      %v2785 = vpop.f32.mrb[0].mxu0
      %2786 = vdwg.mxu0
      %v2787 = vadd.f32 %v1887, %v2629
      %v2788 = vadd.f32 %v1892, %v2634
      %v2789 = vadd.f32 %v1897, %v2639
      %v2790 = vadd.f32 %v1902, %v2644
      %v2791 = vadd.f32 %v1907, %v2649
      %v2792 = vadd.f32 %v1912, %v2654
      %v2793 = vadd.f32 %v1917, %v2659
      %v2794 = vadd.f32 %v1922, %v2664
      %v2795 = vadd.f32 %v1927, %v2669
      %v2796 = vadd.f32 %v1932, %v2674
      %v2797 = vadd.f32 %v1937, %v2679
      %v2798 = vadd.f32 %v1942, %v2684
      %v2799 = vadd.f32 %v1947, %v2689
      %v2800 = vadd.f32 %v1952, %v2694
      %v2801 = vadd.f32 %v1957, %v2699
      %v2802 = vadd.f32 %v1962, %v2704
      %v2803 = vadd.f32 %v1967, %v2709
      %v2804 = vadd.f32 %v1972, %v2714
      %v2805 = vadd.f32 %v1977, %v2719
      %v2806 = vadd.f32 %v1982, %v2724
      %v2807 = vadd.f32 %v1987, %v2729
      %v2808 = vadd.f32 %v1992, %v2734
      %v2809 = vadd.f32 %v1997, %v2739
      %v2810 = vadd.f32 %v2002, %v2744
      %v2811 = vadd.f32 %v2007, %v2749
      %v2812 = vadd.f32 %v2012, %v2754
      %v2813 = vadd.f32 %v2017, %v2759
      %v2814 = vadd.f32 %v2022, %v2764
      %v2815 = vadd.f32 %v2027, %v2769
      %v2816 = vadd.f32 %v2032, %v2774
      %v2817 = vadd.f32 %v2037, %v2779
      %v2818 = vadd.f32 %v2042, %v2784
      %v2819 = vld [vmem:[%s2] sm:$0x1]
      %v2821 = vlaneseq
      %v2822 = vshrl.u32 %v2821, 7
      %v2823 = vsub.s32 0, %v2822
      %v2824 = vrot.slane %v2819, %v2823
      %v2826 = vadd.f32 %v2787, %v2824
      %v2827 = vadd.f32 %v2788, %v2824
      %v2828 = vadd.f32 %v2789, %v2824
      %v2829 = vadd.f32 %v2790, %v2824
      %v2830 = vadd.f32 %v2791, %v2824
      %v2831 = vadd.f32 %v2792, %v2824
      %v2832 = vadd.f32 %v2793, %v2824
      %v2833 = vadd.f32 %v2794, %v2824
      %v2834 = vadd.f32 %v2795, %v2824
      %v2835 = vadd.f32 %v2796, %v2824
      %v2836 = vadd.f32 %v2797, %v2824
      %v2837 = vadd.f32 %v2798, %v2824
      %v2838 = vadd.f32 %v2799, %v2824
      %v2839 = vadd.f32 %v2800, %v2824
      %v2840 = vadd.f32 %v2801, %v2824
      %v2841 = vadd.f32 %v2802, %v2824
      %v2842 = vadd.f32 %v2803, %v2824
      %v2843 = vadd.f32 %v2804, %v2824
      %v2844 = vadd.f32 %v2805, %v2824
      %v2845 = vadd.f32 %v2806, %v2824
      %v2846 = vadd.f32 %v2807, %v2824
      %v2847 = vadd.f32 %v2808, %v2824
      %v2848 = vadd.f32 %v2809, %v2824
      %v2849 = vadd.f32 %v2810, %v2824
      %v2850 = vadd.f32 %v2811, %v2824
      %v2851 = vadd.f32 %v2812, %v2824
      %v2852 = vadd.f32 %v2813, %v2824
      %v2853 = vadd.f32 %v2814, %v2824
      %v2854 = vadd.f32 %v2815, %v2824
      %v2855 = vadd.f32 %v2816, %v2824
      %v2856 = vadd.f32 %v2817, %v2824
      %v2857 = vadd.f32 %v2818, %v2824
      %v2858 = vmax.f32 %v2826, 0.0
      %v2859 = vmax.f32 %v2827, 0.0
      %v2860 = vmax.f32 %v2828, 0.0
      %v2861 = vmax.f32 %v2829, 0.0
      %v2862 = vmax.f32 %v2830, 0.0
      %v2863 = vmax.f32 %v2831, 0.0
      %v2864 = vmax.f32 %v2832, 0.0
      %v2865 = vmax.f32 %v2833, 0.0
      %v2866 = vmax.f32 %v2834, 0.0
      %v2867 = vmax.f32 %v2835, 0.0
      %v2868 = vmax.f32 %v2836, 0.0
      %v2869 = vmax.f32 %v2837, 0.0
      %v2870 = vmax.f32 %v2838, 0.0
      %v2871 = vmax.f32 %v2839, 0.0
      %v2872 = vmax.f32 %v2840, 0.0
      %v2873 = vmax.f32 %v2841, 0.0
      %v2874 = vmax.f32 %v2842, 0.0
      %v2875 = vmax.f32 %v2843, 0.0
      %v2876 = vmax.f32 %v2844, 0.0
      %v2877 = vmax.f32 %v2845, 0.0
      %v2878 = vmax.f32 %v2846, 0.0
      %v2879 = vmax.f32 %v2847, 0.0
      %v2880 = vmax.f32 %v2848, 0.0
      %v2881 = vmax.f32 %v2849, 0.0
      %v2882 = vmax.f32 %v2850, 0.0
      %v2883 = vmax.f32 %v2851, 0.0
      %v2884 = vmax.f32 %v2852, 0.0
      %v2885 = vmax.f32 %v2853, 0.0
      %v2886 = vmax.f32 %v2854, 0.0
      %v2887 = vmax.f32 %v2855, 0.0
      %v2888 = vmax.f32 %v2856, 0.0
      %v2889 = vmax.f32 %v2857, 0.0
      %s2890 = scalar_lea.vmem [#allocation3], 32
      %2891 = vst.msk [vmem:[%s2890 + $0x8] sm:$0xff] %vm352, %v2858
      %2892 = vst.msk [vmem:[%s2890 + $0x10] sm:$0xff] %vm352, %v2859
      %2893 = vst.msk [vmem:[%s2890 + $0x28] sm:$0xff] %vm352, %v2860
      %2894 = vst.msk [vmem:[%s2890 + $0x30] sm:$0xff] %vm352, %v2861
      %2895 = vst.msk [vmem:[%s2890 + $0x48] sm:$0xff] %vm352, %v2862
      %2896 = vst.msk [vmem:[%s2890 + $0x50] sm:$0xff] %vm352, %v2863
      %2897 = vst.msk [vmem:[%s2890 + $0x68] sm:$0xff] %vm352, %v2864
      %2898 = vst.msk [vmem:[%s2890 + $0x70] sm:$0xff] %vm352, %v2865
      %2899 = vst.msk [vmem:[%s2890 + $0x88] sm:$0xff] %vm352, %v2866
      %2900 = vst.msk [vmem:[%s2890 + $0x90] sm:$0xff] %vm352, %v2867
      %2901 = vst.msk [vmem:[%s2890 + $0xa8] sm:$0xff] %vm352, %v2868
      %2902 = vst.msk [vmem:[%s2890 + $0xb0] sm:$0xff] %vm352, %v2869
      %2903 = vst.msk [vmem:[%s2890 + $0xc8] sm:$0xff] %vm352, %v2870
      %2904 = vst.msk [vmem:[%s2890 + $0xd0] sm:$0xff] %vm352, %v2871
      %2905 = vst.msk [vmem:[%s2890 + $0xe8] sm:$0xff] %vm352, %v2872
      %2906 = vst.msk [vmem:[%s2890 + $0xf0] sm:$0xff] %vm352, %v2873
      %2907 = vst.msk [vmem:[%s2890 + $0x108] sm:$0xff] %vm352, %v2874
      %2908 = vst.msk [vmem:[%s2890 + $0x110] sm:$0xff] %vm352, %v2875
      %2909 = vst.msk [vmem:[%s2890 + $0x128] sm:$0xff] %vm352, %v2876
      %2910 = vst.msk [vmem:[%s2890 + $0x130] sm:$0xff] %vm352, %v2877
      %2911 = vst.msk [vmem:[%s2890 + $0x148] sm:$0xff] %vm352, %v2878
      %2912 = vst.msk [vmem:[%s2890 + $0x150] sm:$0xff] %vm352, %v2879
      %2913 = vst.msk [vmem:[%s2890 + $0x168] sm:$0xff] %vm352, %v2880
      %2914 = vst.msk [vmem:[%s2890 + $0x170] sm:$0xff] %vm352, %v2881
      %2915 = vst.msk [vmem:[%s2890 + $0x188] sm:$0xff] %vm352, %v2882
      %2916 = vst.msk [vmem:[%s2890 + $0x190] sm:$0xff] %vm352, %v2883
      %2917 = vst.msk [vmem:[%s2890 + $0x1a8] sm:$0xff] %vm352, %v2884
      %2918 = vst.msk [vmem:[%s2890 + $0x1b0] sm:$0xff] %vm352, %v2885
      %2919 = vst.msk [vmem:[%s2890 + $0x1c8] sm:$0xff] %vm352, %v2886
      %2920 = vst.msk [vmem:[%s2890 + $0x1d0] sm:$0xff] %vm352, %v2887
      %2921 = vst.msk [vmem:[%s2890 + $0x1e8] sm:$0xff] %vm352, %v2888
      %2922 = vst.msk [vmem:[%s2890 + $0x1f0] sm:$0xff] %vm352, %v2889
      loop: start=0, step=1, limit=9
      $region49: #{tpu_custom_call.1} parent=47 // loop_pre_header
        _
      $region50: #{tpu_custom_call.1} parent=47 // loop_header
        %s2924 = sphi 0, %s2928
        %p2925 = scmp.ge.s32.totalorder %s2924, 9
      $region51: #{tpu_custom_call.1} parent=47 // loop_header_branch
        %2927 = sbr.rel (%p2925) target = $region55
      $region52: #{tpu_custom_call.1} parent=47 // loop_body
        %s2929 = smul.u32 %s2924, 6
        %v2930 = vld [vmem:[#allocation3 + $0x7] sm:$0xff]
        %v2931 = vld [vmem:[#allocation3 + $0xf] sm:$0xff]
        %v2932 = vld [vmem:[#allocation3 + $0x27] sm:$0xff]
        %v2933 = vld [vmem:[#allocation3 + $0x2f] sm:$0xff]
        %v2934 = vld [vmem:[#allocation3 + $0x47] sm:$0xff]
        %v2935 = vld [vmem:[#allocation3 + $0x4f] sm:$0xff]
        %v2936 = vld [vmem:[#allocation3 + $0x67] sm:$0xff]
        %v2937 = vld [vmem:[#allocation3 + $0x6f] sm:$0xff]
        %v2938 = vld [vmem:[#allocation3 + $0x87] sm:$0xff]
        %v2939 = vld [vmem:[#allocation3 + $0x8f] sm:$0xff]
        %v2940 = vld [vmem:[#allocation3 + $0xa7] sm:$0xff]
        %v2941 = vld [vmem:[#allocation3 + $0xaf] sm:$0xff]
        %v2942 = vld [vmem:[#allocation3 + $0xc7] sm:$0xff]
        %v2943 = vld [vmem:[#allocation3 + $0xcf] sm:$0xff]
        %v2944 = vld [vmem:[#allocation3 + $0xe7] sm:$0xff]
        %v2945 = vld [vmem:[#allocation3 + $0xef] sm:$0xff]
        %v2946 = vld [vmem:[#allocation3 + $0x107] sm:$0xff]
        %v2947 = vld [vmem:[#allocation3 + $0x10f] sm:$0xff]
        %v2948 = vld [vmem:[#allocation3 + $0x127] sm:$0xff]
        %v2949 = vld [vmem:[#allocation3 + $0x12f] sm:$0xff]
        %v2950 = vld [vmem:[#allocation3 + $0x147] sm:$0xff]
        %v2951 = vld [vmem:[#allocation3 + $0x14f] sm:$0xff]
        %v2952 = vld [vmem:[#allocation3 + $0x167] sm:$0xff]
        %v2953 = vld [vmem:[#allocation3 + $0x16f] sm:$0xff]
        %v2954 = vld [vmem:[#allocation3 + $0x187] sm:$0xff]
        %v2955 = vld [vmem:[#allocation3 + $0x18f] sm:$0xff]
        %v2956 = vld [vmem:[#allocation3 + $0x1a7] sm:$0xff]
        %v2957 = vld [vmem:[#allocation3 + $0x1af] sm:$0xff]
        %v2958 = vld [vmem:[#allocation3 + $0x1c7] sm:$0xff]
        %v2959 = vld [vmem:[#allocation3 + $0x1cf] sm:$0xff]
        %v2960 = vld [vmem:[#allocation3 + $0x1e7] sm:$0xff]
        %v2961 = vld [vmem:[#allocation3 + $0x1ef] sm:$0xff]
        %v2962 = vld [vmem:[#allocation3 + $0x8] sm:$0xff]
        %v2963 = vld [vmem:[#allocation3 + $0x10] sm:$0xff]
        %v2964 = vld [vmem:[#allocation3 + $0x28] sm:$0xff]
        %v2965 = vld [vmem:[#allocation3 + $0x30] sm:$0xff]
        %v2966 = vld [vmem:[#allocation3 + $0x48] sm:$0xff]
        %v2967 = vld [vmem:[#allocation3 + $0x50] sm:$0xff]
        %v2968 = vld [vmem:[#allocation3 + $0x68] sm:$0xff]
        %v2969 = vld [vmem:[#allocation3 + $0x70] sm:$0xff]
        %v2970 = vld [vmem:[#allocation3 + $0x88] sm:$0xff]
        %v2971 = vld [vmem:[#allocation3 + $0x90] sm:$0xff]
        %v2972 = vld [vmem:[#allocation3 + $0xa8] sm:$0xff]
        %v2973 = vld [vmem:[#allocation3 + $0xb0] sm:$0xff]
        %v2974 = vld [vmem:[#allocation3 + $0xc8] sm:$0xff]
        %v2975 = vld [vmem:[#allocation3 + $0xd0] sm:$0xff]
        %v2976 = vld [vmem:[#allocation3 + $0xe8] sm:$0xff]
        %v2977 = vld [vmem:[#allocation3 + $0xf0] sm:$0xff]
        %v2978 = vld [vmem:[#allocation3 + $0x108] sm:$0xff]
        %v2979 = vld [vmem:[#allocation3 + $0x110] sm:$0xff]
        %v2980 = vld [vmem:[#allocation3 + $0x128] sm:$0xff]
        %v2981 = vld [vmem:[#allocation3 + $0x130] sm:$0xff]
        %v2982 = vld [vmem:[#allocation3 + $0x148] sm:$0xff]
        %v2983 = vld [vmem:[#allocation3 + $0x150] sm:$0xff]
        %v2984 = vld [vmem:[#allocation3 + $0x168] sm:$0xff]
        %v2985 = vld [vmem:[#allocation3 + $0x170] sm:$0xff]
        %v2986 = vld [vmem:[#allocation3 + $0x188] sm:$0xff]
        %v2987 = vld [vmem:[#allocation3 + $0x190] sm:$0xff]
        %v2988 = vld [vmem:[#allocation3 + $0x1a8] sm:$0xff]
        %v2989 = vld [vmem:[#allocation3 + $0x1b0] sm:$0xff]
        %v2990 = vld [vmem:[#allocation3 + $0x1c8] sm:$0xff]
        %v2991 = vld [vmem:[#allocation3 + $0x1d0] sm:$0xff]
        %v2992 = vld [vmem:[#allocation3 + $0x1e8] sm:$0xff]
        %v2993 = vld [vmem:[#allocation3 + $0x1f0] sm:$0xff]
        %v2994 = vld [vmem:[#allocation3 + $0x9] sm:$0xff]
        %v2995 = vld [vmem:[#allocation3 + $0x11] sm:$0xff]
        %v2996 = vld [vmem:[#allocation3 + $0x29] sm:$0xff]
        %v2997 = vld [vmem:[#allocation3 + $0x31] sm:$0xff]
        %v2998 = vld [vmem:[#allocation3 + $0x49] sm:$0xff]
        %v2999 = vld [vmem:[#allocation3 + $0x51] sm:$0xff]
        %v3000 = vld [vmem:[#allocation3 + $0x69] sm:$0xff]
        %v3001 = vld [vmem:[#allocation3 + $0x71] sm:$0xff]
        %v3002 = vld [vmem:[#allocation3 + $0x89] sm:$0xff]
        %v3003 = vld [vmem:[#allocation3 + $0x91] sm:$0xff]
        %v3004 = vld [vmem:[#allocation3 + $0xa9] sm:$0xff]
        %v3005 = vld [vmem:[#allocation3 + $0xb1] sm:$0xff]
        %v3006 = vld [vmem:[#allocation3 + $0xc9] sm:$0xff]
        %v3007 = vld [vmem:[#allocation3 + $0xd1] sm:$0xff]
        %v3008 = vld [vmem:[#allocation3 + $0xe9] sm:$0xff]
        %v3009 = vld [vmem:[#allocation3 + $0xf1] sm:$0xff]
        %v3010 = vld [vmem:[#allocation3 + $0x109] sm:$0xff]
        %v3011 = vld [vmem:[#allocation3 + $0x111] sm:$0xff]
        %v3012 = vld [vmem:[#allocation3 + $0x129] sm:$0xff]
        %v3013 = vld [vmem:[#allocation3 + $0x131] sm:$0xff]
        %v3014 = vld [vmem:[#allocation3 + $0x149] sm:$0xff]
        %v3015 = vld [vmem:[#allocation3 + $0x151] sm:$0xff]
        %v3016 = vld [vmem:[#allocation3 + $0x169] sm:$0xff]
        %v3017 = vld [vmem:[#allocation3 + $0x171] sm:$0xff]
        %v3018 = vld [vmem:[#allocation3 + $0x189] sm:$0xff]
        %v3019 = vld [vmem:[#allocation3 + $0x191] sm:$0xff]
        %v3020 = vld [vmem:[#allocation3 + $0x1a9] sm:$0xff]
        %v3021 = vld [vmem:[#allocation3 + $0x1b1] sm:$0xff]
        %v3022 = vld [vmem:[#allocation3 + $0x1c9] sm:$0xff]
        %v3023 = vld [vmem:[#allocation3 + $0x1d1] sm:$0xff]
        %v3024 = vld [vmem:[#allocation3 + $0x1e9] sm:$0xff]
        %v3025 = vld [vmem:[#allocation3 + $0x1f1] sm:$0xff]
        %3058 = vrot.lane.b32.xlu0 %v2962, 64
        %v3059 = vpop.permute.xlu0 %3058
        %3060 = vrot.lane.b32.xlu0 %v2963, 64
        %v3061 = vpop.permute.xlu0 %3060
        %3062 = vrot.lane.b32.xlu0 %v2964, 64
        %v3063 = vpop.permute.xlu0 %3062
        %3064 = vrot.lane.b32.xlu0 %v2965, 64
        %v3065 = vpop.permute.xlu0 %3064
        %3066 = vrot.lane.b32.xlu0 %v2966, 64
        %v3067 = vpop.permute.xlu0 %3066
        %3068 = vrot.lane.b32.xlu0 %v2967, 64
        %v3069 = vpop.permute.xlu0 %3068
        %3070 = vrot.lane.b32.xlu0 %v2968, 64
        %v3071 = vpop.permute.xlu0 %3070
        %3072 = vrot.lane.b32.xlu0 %v2969, 64
        %v3073 = vpop.permute.xlu0 %3072
        %3074 = vrot.lane.b32.xlu0 %v2970, 64
        %v3075 = vpop.permute.xlu0 %3074
        %3076 = vrot.lane.b32.xlu0 %v2971, 64
        %v3077 = vpop.permute.xlu0 %3076
        %3078 = vrot.lane.b32.xlu0 %v2972, 64
        %v3079 = vpop.permute.xlu0 %3078
        %3080 = vrot.lane.b32.xlu0 %v2973, 64
        %v3081 = vpop.permute.xlu0 %3080
        %3082 = vrot.lane.b32.xlu0 %v2974, 64
        %v3083 = vpop.permute.xlu0 %3082
        %3084 = vrot.lane.b32.xlu0 %v2975, 64
        %v3085 = vpop.permute.xlu0 %3084
        %3086 = vrot.lane.b32.xlu0 %v2976, 64
        %v3087 = vpop.permute.xlu0 %3086
        %3088 = vrot.lane.b32.xlu0 %v2977, 64
        %v3089 = vpop.permute.xlu0 %3088
        %3090 = vrot.lane.b32.xlu0 %v2978, 64
        %v3091 = vpop.permute.xlu0 %3090
        %3092 = vrot.lane.b32.xlu0 %v2979, 64
        %v3093 = vpop.permute.xlu0 %3092
        %3094 = vrot.lane.b32.xlu0 %v2980, 64
        %v3095 = vpop.permute.xlu0 %3094
        %3096 = vrot.lane.b32.xlu0 %v2981, 64
        %v3097 = vpop.permute.xlu0 %3096
        %3098 = vrot.lane.b32.xlu0 %v2982, 64
        %v3099 = vpop.permute.xlu0 %3098
        %3100 = vrot.lane.b32.xlu0 %v2983, 64
        %v3101 = vpop.permute.xlu0 %3100
        %3102 = vrot.lane.b32.xlu0 %v2984, 64
        %v3103 = vpop.permute.xlu0 %3102
        %3104 = vrot.lane.b32.xlu0 %v2985, 64
        %v3105 = vpop.permute.xlu0 %3104
        %3106 = vrot.lane.b32.xlu0 %v2986, 64
        %v3107 = vpop.permute.xlu0 %3106
        %3108 = vrot.lane.b32.xlu0 %v2987, 64
        %v3109 = vpop.permute.xlu0 %3108
        %3110 = vrot.lane.b32.xlu0 %v2988, 64
        %v3111 = vpop.permute.xlu0 %3110
        %3112 = vrot.lane.b32.xlu0 %v2989, 64
        %v3113 = vpop.permute.xlu0 %3112
        %3114 = vrot.lane.b32.xlu0 %v2990, 64
        %v3115 = vpop.permute.xlu0 %3114
        %3116 = vrot.lane.b32.xlu0 %v2991, 64
        %v3117 = vpop.permute.xlu0 %3116
        %3118 = vrot.lane.b32.xlu0 %v2992, 64
        %v3119 = vpop.permute.xlu0 %3118
        %3120 = vrot.lane.b32.xlu0 %v2993, 64
        %v3121 = vpop.permute.xlu0 %3120
        %v3154 = vsel %vm352, %v2930, %v3059
        %v3155 = vsel %vm352, %v2931, %v3061
        %v3156 = vsel %vm352, %v2932, %v3063
        %v3157 = vsel %vm352, %v2933, %v3065
        %v3158 = vsel %vm352, %v2934, %v3067
        %v3159 = vsel %vm352, %v2935, %v3069
        %v3160 = vsel %vm352, %v2936, %v3071
        %v3161 = vsel %vm352, %v2937, %v3073
        %v3162 = vsel %vm352, %v2938, %v3075
        %v3163 = vsel %vm352, %v2939, %v3077
        %v3164 = vsel %vm352, %v2940, %v3079
        %v3165 = vsel %vm352, %v2941, %v3081
        %v3166 = vsel %vm352, %v2942, %v3083
        %v3167 = vsel %vm352, %v2943, %v3085
        %v3168 = vsel %vm352, %v2944, %v3087
        %v3169 = vsel %vm352, %v2945, %v3089
        %v3170 = vsel %vm352, %v2946, %v3091
        %v3171 = vsel %vm352, %v2947, %v3093
        %v3172 = vsel %vm352, %v2948, %v3095
        %v3173 = vsel %vm352, %v2949, %v3097
        %v3174 = vsel %vm352, %v2950, %v3099
        %v3175 = vsel %vm352, %v2951, %v3101
        %v3176 = vsel %vm352, %v2952, %v3103
        %v3177 = vsel %vm352, %v2953, %v3105
        %v3178 = vsel %vm352, %v2954, %v3107
        %v3179 = vsel %vm352, %v2955, %v3109
        %v3180 = vsel %vm352, %v2956, %v3111
        %v3181 = vsel %vm352, %v2957, %v3113
        %v3182 = vsel %vm352, %v2958, %v3115
        %v3183 = vsel %vm352, %v2959, %v3117
        %v3184 = vsel %vm352, %v2960, %v3119
        %v3185 = vsel %vm352, %v2961, %v3121
        %s3186 = smul.u32 %s2929, 192
        %s3187 = scalar_lea.vmem %s3, %s3186
        %v3188 = vld [vmem:[%s3187] sm:$0xff]
        %v3189 = vld [vmem:[%s3187 + $0x8] sm:$0xff]
        %v3190 = vld [vmem:[%s3187 + $0x10] sm:$0xff]
        %v3191 = vld [vmem:[%s3187 + $0x18] sm:$0xff]
        %v3192 = vld [vmem:[%s3187 + $0x20] sm:$0xff]
        %v3193 = vld [vmem:[%s3187 + $0x28] sm:$0xff]
        %v3194 = vld [vmem:[%s3187 + $0x30] sm:$0xff]
        %v3195 = vld [vmem:[%s3187 + $0x38] sm:$0xff]
        %v3196 = vld [vmem:[%s3187 + $0x40] sm:$0xff]
        %v3197 = vld [vmem:[%s3187 + $0x48] sm:$0xff]
        %v3198 = vld [vmem:[%s3187 + $0x50] sm:$0xff]
        %v3199 = vld [vmem:[%s3187 + $0x58] sm:$0xff]
        %v3200 = vld [vmem:[%s3187 + $0x60] sm:$0xff]
        %v3201 = vld [vmem:[%s3187 + $0x68] sm:$0xff]
        %v3202 = vld [vmem:[%s3187 + $0x70] sm:$0xff]
        %v3203 = vld [vmem:[%s3187 + $0x78] sm:$0xff]
        %v3204 = vld [vmem:[%s3187 + $0x80] sm:$0xff]
        %v3205 = vld [vmem:[%s3187 + $0x88] sm:$0xff]
        %v3206 = vld [vmem:[%s3187 + $0x90] sm:$0xff]
        %v3207 = vld [vmem:[%s3187 + $0x98] sm:$0xff]
        %v3208 = vld [vmem:[%s3187 + $0xa0] sm:$0xff]
        %v3209 = vld [vmem:[%s3187 + $0xa8] sm:$0xff]
        %v3210 = vld [vmem:[%s3187 + $0xb0] sm:$0xff]
        %v3211 = vld [vmem:[%s3187 + $0xb8] sm:$0xff]
        %v3212 = vld [vmem:[%s2890 + $0x7] sm:$0xff]
        %v3213 = vld [vmem:[%s2890 + $0xf] sm:$0xff]
        %v3214 = vld [vmem:[%s2890 + $0x27] sm:$0xff]
        %v3215 = vld [vmem:[%s2890 + $0x2f] sm:$0xff]
        %v3216 = vld [vmem:[%s2890 + $0x47] sm:$0xff]
        %v3217 = vld [vmem:[%s2890 + $0x4f] sm:$0xff]
        %v3218 = vld [vmem:[%s2890 + $0x67] sm:$0xff]
        %v3219 = vld [vmem:[%s2890 + $0x6f] sm:$0xff]
        %v3220 = vld [vmem:[%s2890 + $0x87] sm:$0xff]
        %v3221 = vld [vmem:[%s2890 + $0x8f] sm:$0xff]
        %v3222 = vld [vmem:[%s2890 + $0xa7] sm:$0xff]
        %v3223 = vld [vmem:[%s2890 + $0xaf] sm:$0xff]
        %v3224 = vld [vmem:[%s2890 + $0xc7] sm:$0xff]
        %v3225 = vld [vmem:[%s2890 + $0xcf] sm:$0xff]
        %v3226 = vld [vmem:[%s2890 + $0xe7] sm:$0xff]
        %v3227 = vld [vmem:[%s2890 + $0xef] sm:$0xff]
        %v3228 = vld [vmem:[%s2890 + $0x107] sm:$0xff]
        %v3229 = vld [vmem:[%s2890 + $0x10f] sm:$0xff]
        %v3230 = vld [vmem:[%s2890 + $0x127] sm:$0xff]
        %v3231 = vld [vmem:[%s2890 + $0x12f] sm:$0xff]
        %v3232 = vld [vmem:[%s2890 + $0x147] sm:$0xff]
        %v3233 = vld [vmem:[%s2890 + $0x14f] sm:$0xff]
        %v3234 = vld [vmem:[%s2890 + $0x167] sm:$0xff]
        %v3235 = vld [vmem:[%s2890 + $0x16f] sm:$0xff]
        %v3236 = vld [vmem:[%s2890 + $0x187] sm:$0xff]
        %v3237 = vld [vmem:[%s2890 + $0x18f] sm:$0xff]
        %v3238 = vld [vmem:[%s2890 + $0x1a7] sm:$0xff]
        %v3239 = vld [vmem:[%s2890 + $0x1af] sm:$0xff]
        %v3240 = vld [vmem:[%s2890 + $0x1c7] sm:$0xff]
        %v3241 = vld [vmem:[%s2890 + $0x1cf] sm:$0xff]
        %v3242 = vld [vmem:[%s2890 + $0x1e7] sm:$0xff]
        %v3243 = vld [vmem:[%s2890 + $0x1ef] sm:$0xff]
        %v3244 = vld [vmem:[%s2890 + $0x8] sm:$0xff]
        %v3245 = vld [vmem:[%s2890 + $0x10] sm:$0xff]
        %v3246 = vld [vmem:[%s2890 + $0x28] sm:$0xff]
        %v3247 = vld [vmem:[%s2890 + $0x30] sm:$0xff]
        %v3248 = vld [vmem:[%s2890 + $0x48] sm:$0xff]
        %v3249 = vld [vmem:[%s2890 + $0x50] sm:$0xff]
        %v3250 = vld [vmem:[%s2890 + $0x68] sm:$0xff]
        %v3251 = vld [vmem:[%s2890 + $0x70] sm:$0xff]
        %v3252 = vld [vmem:[%s2890 + $0x88] sm:$0xff]
        %v3253 = vld [vmem:[%s2890 + $0x90] sm:$0xff]
        %v3254 = vld [vmem:[%s2890 + $0xa8] sm:$0xff]
        %v3255 = vld [vmem:[%s2890 + $0xb0] sm:$0xff]
        %v3256 = vld [vmem:[%s2890 + $0xc8] sm:$0xff]
        %v3257 = vld [vmem:[%s2890 + $0xd0] sm:$0xff]
        %v3258 = vld [vmem:[%s2890 + $0xe8] sm:$0xff]
        %v3259 = vld [vmem:[%s2890 + $0xf0] sm:$0xff]
        %v3260 = vld [vmem:[%s2890 + $0x108] sm:$0xff]
        %v3261 = vld [vmem:[%s2890 + $0x110] sm:$0xff]
        %v3262 = vld [vmem:[%s2890 + $0x128] sm:$0xff]
        %v3263 = vld [vmem:[%s2890 + $0x130] sm:$0xff]
        %v3264 = vld [vmem:[%s2890 + $0x148] sm:$0xff]
        %v3265 = vld [vmem:[%s2890 + $0x150] sm:$0xff]
        %v3266 = vld [vmem:[%s2890 + $0x168] sm:$0xff]
        %v3267 = vld [vmem:[%s2890 + $0x170] sm:$0xff]
        %v3268 = vld [vmem:[%s2890 + $0x188] sm:$0xff]
        %v3269 = vld [vmem:[%s2890 + $0x190] sm:$0xff]
        %v3270 = vld [vmem:[%s2890 + $0x1a8] sm:$0xff]
        %v3271 = vld [vmem:[%s2890 + $0x1b0] sm:$0xff]
        %v3272 = vld [vmem:[%s2890 + $0x1c8] sm:$0xff]
        %v3273 = vld [vmem:[%s2890 + $0x1d0] sm:$0xff]
        %v3274 = vld [vmem:[%s2890 + $0x1e8] sm:$0xff]
        %v3275 = vld [vmem:[%s2890 + $0x1f0] sm:$0xff]
        %v3276 = vld [vmem:[%s2890 + $0x9] sm:$0xff]
        %v3277 = vld [vmem:[%s2890 + $0x11] sm:$0xff]
        %v3278 = vld [vmem:[%s2890 + $0x29] sm:$0xff]
        %v3279 = vld [vmem:[%s2890 + $0x31] sm:$0xff]
        %v3280 = vld [vmem:[%s2890 + $0x49] sm:$0xff]
        %v3281 = vld [vmem:[%s2890 + $0x51] sm:$0xff]
        %v3282 = vld [vmem:[%s2890 + $0x69] sm:$0xff]
        %v3283 = vld [vmem:[%s2890 + $0x71] sm:$0xff]
        %v3284 = vld [vmem:[%s2890 + $0x89] sm:$0xff]
        %v3285 = vld [vmem:[%s2890 + $0x91] sm:$0xff]
        %v3286 = vld [vmem:[%s2890 + $0xa9] sm:$0xff]
        %v3287 = vld [vmem:[%s2890 + $0xb1] sm:$0xff]
        %v3288 = vld [vmem:[%s2890 + $0xc9] sm:$0xff]
        %v3289 = vld [vmem:[%s2890 + $0xd1] sm:$0xff]
        %v3290 = vld [vmem:[%s2890 + $0xe9] sm:$0xff]
        %v3291 = vld [vmem:[%s2890 + $0xf1] sm:$0xff]
        %v3292 = vld [vmem:[%s2890 + $0x109] sm:$0xff]
        %v3293 = vld [vmem:[%s2890 + $0x111] sm:$0xff]
        %v3294 = vld [vmem:[%s2890 + $0x129] sm:$0xff]
        %v3295 = vld [vmem:[%s2890 + $0x131] sm:$0xff]
        %v3296 = vld [vmem:[%s2890 + $0x149] sm:$0xff]
        %v3297 = vld [vmem:[%s2890 + $0x151] sm:$0xff]
        %v3298 = vld [vmem:[%s2890 + $0x169] sm:$0xff]
        %v3299 = vld [vmem:[%s2890 + $0x171] sm:$0xff]
        %v3300 = vld [vmem:[%s2890 + $0x189] sm:$0xff]
        %v3301 = vld [vmem:[%s2890 + $0x191] sm:$0xff]
        %v3302 = vld [vmem:[%s2890 + $0x1a9] sm:$0xff]
        %v3303 = vld [vmem:[%s2890 + $0x1b1] sm:$0xff]
        %v3304 = vld [vmem:[%s2890 + $0x1c9] sm:$0xff]
        %v3305 = vld [vmem:[%s2890 + $0x1d1] sm:$0xff]
        %v3306 = vld [vmem:[%s2890 + $0x1e9] sm:$0xff]
        %v3307 = vld [vmem:[%s2890 + $0x1f1] sm:$0xff]
        %3340 = vrot.lane.b32.xlu0 %v3244, 64
        %v3341 = vpop.permute.xlu0 %3340
        %3342 = vrot.lane.b32.xlu0 %v3245, 64
        %v3343 = vpop.permute.xlu0 %3342
        %3344 = vrot.lane.b32.xlu0 %v3246, 64
        %v3345 = vpop.permute.xlu0 %3344
        %3346 = vrot.lane.b32.xlu0 %v3247, 64
        %v3347 = vpop.permute.xlu0 %3346
        %3348 = vrot.lane.b32.xlu0 %v3248, 64
        %v3349 = vpop.permute.xlu0 %3348
        %3350 = vrot.lane.b32.xlu0 %v3249, 64
        %v3351 = vpop.permute.xlu0 %3350
        %3352 = vrot.lane.b32.xlu0 %v3250, 64
        %v3353 = vpop.permute.xlu0 %3352
        %3354 = vrot.lane.b32.xlu0 %v3251, 64
        %v3355 = vpop.permute.xlu0 %3354
        %3356 = vrot.lane.b32.xlu0 %v3252, 64
        %v3357 = vpop.permute.xlu0 %3356
        %3358 = vrot.lane.b32.xlu0 %v3253, 64
        %v3359 = vpop.permute.xlu0 %3358
        %3360 = vrot.lane.b32.xlu0 %v3254, 64
        %v3361 = vpop.permute.xlu0 %3360
        %3362 = vrot.lane.b32.xlu0 %v3255, 64
        %v3363 = vpop.permute.xlu0 %3362
        %3364 = vrot.lane.b32.xlu0 %v3256, 64
        %v3365 = vpop.permute.xlu0 %3364
        %3366 = vrot.lane.b32.xlu0 %v3257, 64
        %v3367 = vpop.permute.xlu0 %3366
        %3368 = vrot.lane.b32.xlu0 %v3258, 64
        %v3369 = vpop.permute.xlu0 %3368
        %3370 = vrot.lane.b32.xlu0 %v3259, 64
        %v3371 = vpop.permute.xlu0 %3370
        %3372 = vrot.lane.b32.xlu0 %v3260, 64
        %v3373 = vpop.permute.xlu0 %3372
        %3374 = vrot.lane.b32.xlu0 %v3261, 64
        %v3375 = vpop.permute.xlu0 %3374
        %3376 = vrot.lane.b32.xlu0 %v3262, 64
        %v3377 = vpop.permute.xlu0 %3376
        %3378 = vrot.lane.b32.xlu0 %v3263, 64
        %v3379 = vpop.permute.xlu0 %3378
        %3380 = vrot.lane.b32.xlu0 %v3264, 64
        %v3381 = vpop.permute.xlu0 %3380
        %3382 = vrot.lane.b32.xlu0 %v3265, 64
        %v3383 = vpop.permute.xlu0 %3382
        %3384 = vrot.lane.b32.xlu0 %v3266, 64
        %v3385 = vpop.permute.xlu0 %3384
        %3386 = vrot.lane.b32.xlu0 %v3267, 64
        %v3387 = vpop.permute.xlu0 %3386
        %3388 = vrot.lane.b32.xlu0 %v3268, 64
        %v3389 = vpop.permute.xlu0 %3388
        %3390 = vrot.lane.b32.xlu0 %v3269, 64
        %v3391 = vpop.permute.xlu0 %3390
        %3392 = vrot.lane.b32.xlu0 %v3270, 64
        %v3393 = vpop.permute.xlu0 %3392
        %3394 = vrot.lane.b32.xlu0 %v3271, 64
        %v3395 = vpop.permute.xlu0 %3394
        %3396 = vrot.lane.b32.xlu0 %v3272, 64
        %v3397 = vpop.permute.xlu0 %3396
        %3398 = vrot.lane.b32.xlu0 %v3273, 64
        %v3399 = vpop.permute.xlu0 %3398
        %3400 = vrot.lane.b32.xlu0 %v3274, 64
        %v3401 = vpop.permute.xlu0 %3400
        %3402 = vrot.lane.b32.xlu0 %v3275, 64
        %v3403 = vpop.permute.xlu0 %3402
        %v3436 = vsel %vm352, %v3212, %v3341
        %v3437 = vsel %vm352, %v3213, %v3343
        %v3438 = vsel %vm352, %v3214, %v3345
        %v3439 = vsel %vm352, %v3215, %v3347
        %v3440 = vsel %vm352, %v3216, %v3349
        %v3441 = vsel %vm352, %v3217, %v3351
        %v3442 = vsel %vm352, %v3218, %v3353
        %v3443 = vsel %vm352, %v3219, %v3355
        %v3444 = vsel %vm352, %v3220, %v3357
        %v3445 = vsel %vm352, %v3221, %v3359
        %v3446 = vsel %vm352, %v3222, %v3361
        %v3447 = vsel %vm352, %v3223, %v3363
        %v3448 = vsel %vm352, %v3224, %v3365
        %v3449 = vsel %vm352, %v3225, %v3367
        %v3450 = vsel %vm352, %v3226, %v3369
        %v3451 = vsel %vm352, %v3227, %v3371
        %v3452 = vsel %vm352, %v3228, %v3373
        %v3453 = vsel %vm352, %v3229, %v3375
        %v3454 = vsel %vm352, %v3230, %v3377
        %v3455 = vsel %vm352, %v3231, %v3379
        %v3456 = vsel %vm352, %v3232, %v3381
        %v3457 = vsel %vm352, %v3233, %v3383
        %v3458 = vsel %vm352, %v3234, %v3385
        %v3459 = vsel %vm352, %v3235, %v3387
        %v3460 = vsel %vm352, %v3236, %v3389
        %v3461 = vsel %vm352, %v3237, %v3391
        %v3462 = vsel %vm352, %v3238, %v3393
        %v3463 = vsel %vm352, %v3239, %v3395
        %v3464 = vsel %vm352, %v3240, %v3397
        %v3465 = vsel %vm352, %v3241, %v3399
        %v3466 = vsel %vm352, %v3242, %v3401
        %v3467 = vsel %vm352, %v3243, %v3403
        %s3468 = sadd.s32 %s2929, 1
        %s3469 = smul.u32 %s3468, 192
        %s3470 = scalar_lea.vmem %s3, %s3469
        %v3471 = vld [vmem:[%s3470] sm:$0xff]
        %v3472 = vld [vmem:[%s3470 + $0x8] sm:$0xff]
        %v3473 = vld [vmem:[%s3470 + $0x10] sm:$0xff]
        %v3474 = vld [vmem:[%s3470 + $0x18] sm:$0xff]
        %v3475 = vld [vmem:[%s3470 + $0x20] sm:$0xff]
        %v3476 = vld [vmem:[%s3470 + $0x28] sm:$0xff]
        %v3477 = vld [vmem:[%s3470 + $0x30] sm:$0xff]
        %v3478 = vld [vmem:[%s3470 + $0x38] sm:$0xff]
        %v3479 = vld [vmem:[%s3470 + $0x40] sm:$0xff]
        %v3480 = vld [vmem:[%s3470 + $0x48] sm:$0xff]
        %v3481 = vld [vmem:[%s3470 + $0x50] sm:$0xff]
        %v3482 = vld [vmem:[%s3470 + $0x58] sm:$0xff]
        %v3483 = vld [vmem:[%s3470 + $0x60] sm:$0xff]
        %v3484 = vld [vmem:[%s3470 + $0x68] sm:$0xff]
        %v3485 = vld [vmem:[%s3470 + $0x70] sm:$0xff]
        %v3486 = vld [vmem:[%s3470 + $0x78] sm:$0xff]
        %v3487 = vld [vmem:[%s3470 + $0x80] sm:$0xff]
        %v3488 = vld [vmem:[%s3470 + $0x88] sm:$0xff]
        %v3489 = vld [vmem:[%s3470 + $0x90] sm:$0xff]
        %v3490 = vld [vmem:[%s3470 + $0x98] sm:$0xff]
        %v3491 = vld [vmem:[%s3470 + $0xa0] sm:$0xff]
        %v3492 = vld [vmem:[%s3470 + $0xa8] sm:$0xff]
        %v3493 = vld [vmem:[%s3470 + $0xb0] sm:$0xff]
        %v3494 = vld [vmem:[%s3470 + $0xb8] sm:$0xff]
        %v3496 = vsel %vm352, %v3276, 0
        %v3499 = vsel %vm352, %v3277, 0
        %v3502 = vsel %vm352, %v3278, 0
        %v3505 = vsel %vm352, %v3279, 0
        %v3508 = vsel %vm352, %v3280, 0
        %v3511 = vsel %vm352, %v3281, 0
        %v3514 = vsel %vm352, %v3282, 0
        %v3517 = vsel %vm352, %v3283, 0
        %v3520 = vsel %vm352, %v3284, 0
        %v3523 = vsel %vm352, %v3285, 0
        %v3526 = vsel %vm352, %v3286, 0
        %v3529 = vsel %vm352, %v3287, 0
        %v3532 = vsel %vm352, %v3288, 0
        %v3535 = vsel %vm352, %v3289, 0
        %v3538 = vsel %vm352, %v3290, 0
        %v3541 = vsel %vm352, %v3291, 0
        %v3544 = vsel %vm352, %v3292, 0
        %v3547 = vsel %vm352, %v3293, 0
        %v3550 = vsel %vm352, %v3294, 0
        %v3553 = vsel %vm352, %v3295, 0
        %v3556 = vsel %vm352, %v3296, 0
        %v3559 = vsel %vm352, %v3297, 0
        %v3562 = vsel %vm352, %v3298, 0
        %v3565 = vsel %vm352, %v3299, 0
        %v3568 = vsel %vm352, %v3300, 0
        %v3571 = vsel %vm352, %v3301, 0
        %v3574 = vsel %vm352, %v3302, 0
        %v3577 = vsel %vm352, %v3303, 0
        %v3580 = vsel %vm352, %v3304, 0
        %v3583 = vsel %vm352, %v3305, 0
        %v3586 = vsel %vm352, %v3306, 0
        %v3589 = vsel %vm352, %v3307, 0
        %3591 = vmatprep.subr.mxu0 0.0
        %3592 = vmatpush1.msra.mxu0 %v3471
        %3593 = vmatprep.subr.mxu0 0.0
        %3594 = vmatpush1.msra.mxu0 %v3472
        %3595 = vmatprep.subr.mxu0 0.0
        %3596 = vmatpush1.msra.mxu0 %v3473
        %3597 = vmatprep.subr.mxu0 0.0
        %3598 = vmatpush1.msra.mxu0 %v3474
        %3599 = vmatprep.subr.mxu0 0.0
        %3600 = vmatpush1.msra.mxu0 %v3475
        %3601 = vmatprep.subr.mxu0 0.0
        %3602 = vmatpush1.msra.mxu0 %v3476
        %3603 = vmatprep.subr.mxu0 0.0
        %3604 = vmatpush1.msra.mxu0 %v3477
        %3605 = vmatprep.subr.mxu0 0.0
        %3606 = vmatpush1.msra.mxu0 %v3478
        %3607 = vmatprep.subr.mxu0 0.0
        %3608 = vmatpush1.msra.mxu0 %v3479
        %3609 = vmatprep.subr.mxu0 0.0
        %3610 = vmatpush1.msra.mxu0 %v3480
        %3611 = vmatprep.subr.mxu0 0.0
        %3612 = vmatpush1.msra.mxu0 %v3481
        %3613 = vmatprep.subr.mxu0 0.0
        %3614 = vmatpush1.msra.mxu0 %v3482
        %3615 = vmatprep.subr.mxu0 0.0
        %3616 = vmatpush1.msra.mxu0 %v3483
        %3617 = vmatprep.subr.mxu0 0.0
        %3618 = vmatpush1.msra.mxu0 %v3484
        %3619 = vmatprep.subr.mxu0 0.0
        %3620 = vmatpush1.msra.mxu0 %v3485
        %3621 = vmatprep.subr.mxu0 0.0
        %3622 = vmatpush1.msra.mxu0 %v3486
        %3623 = vmatprep.subr.mxu0 0.0
        %3624 = vmatpush1.msra.mxu0 %v3487
        %3625 = vmatprep.subr.mxu0 0.0
        %3626 = vmatpush1.msra.mxu0 %v3488
        %3627 = vmatprep.subr.mxu0 0.0
        %3628 = vmatpush1.msra.mxu0 %v3489
        %3629 = vmatprep.subr.mxu0 0.0
        %3630 = vmatpush1.msra.mxu0 %v3490
        %3631 = vmatprep.subr.mxu0 0.0
        %3632 = vmatpush1.msra.mxu0 %v3491
        %3633 = vmatprep.subr.mxu0 0.0
        %3634 = vmatpush1.msra.mxu0 %v3492
        %3635 = vmatprep.subr.mxu0 0.0
        %3636 = vmatpush1.msra.mxu0 %v3493
        %3637 = vmatprep.subr.mxu0 0.0
        %3638 = vmatpush1.msra.mxu0 %v3494
        %3639 = vmatprep.subr.mxu0 0.0
        %3640 = vmatpush1.msra.mxu0 0.0
        %3641 = vmatprep.subr.mxu0 0.0
        %3642 = vmatpush1.msra.mxu0 0.0
        %3643 = vmatprep.subr.mxu0 0.0
        %3644 = vmatpush1.msra.mxu0 0.0
        %3645 = vmatprep.subr.mxu0 0.0
        %3646 = vmatpush1.msra.mxu0 0.0
        %3647 = vmatprep.subr.mxu0 0.0
        %3648 = vmatpush1.msra.mxu0 0.0
        %3649 = vmatprep.subr.mxu0 0.0
        %3650 = vmatpush1.msra.mxu0 0.0
        %3651 = vmatprep.subr.mxu0 0.0
        %3652 = vmatpush1.msra.mxu0 0.0
        %3653 = vmatprep.subr.mxu0 0.0
        %3654 = vmatpush1.msra.mxu0 0.0
        %3655 = vmatprep.mubr.f32.mxu0 %v3496
        %3656 = vmatmul.mubr.f32.gmra.mrb[0].mxu0 %v3436
        %v3657 = vpop.f32.mrb[0].mxu0
        %v3658 = vadd.f32 0.0, %v3657
        %v3659 = vpop.f32.mrb[0].mxu0
        %3660 = vmatprep.mubr.f32.mxu0 %v3499
        %3661 = vmatmul.mubr.f32.gmra.mrb[0].mxu0 %v3437
        %v3662 = vpop.f32.mrb[0].mxu0
        %v3663 = vadd.f32 0.0, %v3662
        %v3664 = vpop.f32.mrb[0].mxu0
        %3665 = vmatprep.mubr.f32.mxu0 %v3502
        %3666 = vmatmul.mubr.f32.gmra.mrb[0].mxu0 %v3438
        %v3667 = vpop.f32.mrb[0].mxu0
        %v3668 = vadd.f32 0.0, %v3667
        %v3669 = vpop.f32.mrb[0].mxu0
        %3670 = vmatprep.mubr.f32.mxu0 %v3505
        %3671 = vmatmul.mubr.f32.gmra.mrb[0].mxu0 %v3439
        %v3672 = vpop.f32.mrb[0].mxu0
        %v3673 = vadd.f32 0.0, %v3672
        %v3674 = vpop.f32.mrb[0].mxu0
        %3675 = vmatprep.mubr.f32.mxu0 %v3508
        %3676 = vmatmul.mubr.f32.gmra.mrb[0].mxu0 %v3440
        %v3677 = vpop.f32.mrb[0].mxu0
        %v3678 = vadd.f32 0.0, %v3677
        %v3679 = vpop.f32.mrb[0].mxu0
        %3680 = vmatprep.mubr.f32.mxu0 %v3511
        %3681 = vmatmul.mubr.f32.gmra.mrb[0].mxu0 %v3441
        %v3682 = vpop.f32.mrb[0].mxu0
        %v3683 = vadd.f32 0.0, %v3682
        %v3684 = vpop.f32.mrb[0].mxu0
        %3685 = vmatprep.mubr.f32.mxu0 %v3514
        %3686 = vmatmul.mubr.f32.gmra.mrb[0].mxu0 %v3442
        %v3687 = vpop.f32.mrb[0].mxu0
        %v3688 = vadd.f32 0.0, %v3687
        %v3689 = vpop.f32.mrb[0].mxu0
        %3690 = vmatprep.mubr.f32.mxu0 %v3517
        %3691 = vmatmul.mubr.f32.gmra.mrb[0].mxu0 %v3443
        %v3692 = vpop.f32.mrb[0].mxu0
        %v3693 = vadd.f32 0.0, %v3692
        %v3694 = vpop.f32.mrb[0].mxu0
        %3695 = vmatprep.mubr.f32.mxu0 %v3520
        %3696 = vmatmul.mubr.f32.gmra.mrb[0].mxu0 %v3444
        %v3697 = vpop.f32.mrb[0].mxu0
        %v3698 = vadd.f32 0.0, %v3697
        %v3699 = vpop.f32.mrb[0].mxu0
        %3700 = vmatprep.mubr.f32.mxu0 %v3523
        %3701 = vmatmul.mubr.f32.gmra.mrb[0].mxu0 %v3445
        %v3702 = vpop.f32.mrb[0].mxu0
        %v3703 = vadd.f32 0.0, %v3702
        %v3704 = vpop.f32.mrb[0].mxu0
        %3705 = vmatprep.mubr.f32.mxu0 %v3526
        %3706 = vmatmul.mubr.f32.gmra.mrb[0].mxu0 %v3446
        %v3707 = vpop.f32.mrb[0].mxu0
        %v3708 = vadd.f32 0.0, %v3707
        %v3709 = vpop.f32.mrb[0].mxu0
        %3710 = vmatprep.mubr.f32.mxu0 %v3529
        %3711 = vmatmul.mubr.f32.gmra.mrb[0].mxu0 %v3447
        %v3712 = vpop.f32.mrb[0].mxu0
        %v3713 = vadd.f32 0.0, %v3712
        %v3714 = vpop.f32.mrb[0].mxu0
        %3715 = vmatprep.mubr.f32.mxu0 %v3532
        %3716 = vmatmul.mubr.f32.gmra.mrb[0].mxu0 %v3448
        %v3717 = vpop.f32.mrb[0].mxu0
        %v3718 = vadd.f32 0.0, %v3717
        %v3719 = vpop.f32.mrb[0].mxu0
        %3720 = vmatprep.mubr.f32.mxu0 %v3535
        %3721 = vmatmul.mubr.f32.gmra.mrb[0].mxu0 %v3449
        %v3722 = vpop.f32.mrb[0].mxu0
        %v3723 = vadd.f32 0.0, %v3722
        %v3724 = vpop.f32.mrb[0].mxu0
        %3725 = vmatprep.mubr.f32.mxu0 %v3538
        %3726 = vmatmul.mubr.f32.gmra.mrb[0].mxu0 %v3450
        %v3727 = vpop.f32.mrb[0].mxu0
        %v3728 = vadd.f32 0.0, %v3727
        %v3729 = vpop.f32.mrb[0].mxu0
        %3730 = vmatprep.mubr.f32.mxu0 %v3541
        %3731 = vmatmul.mubr.f32.gmra.mrb[0].mxu0 %v3451
        %v3732 = vpop.f32.mrb[0].mxu0
        %v3733 = vadd.f32 0.0, %v3732
        %v3734 = vpop.f32.mrb[0].mxu0
        %3735 = vmatprep.mubr.f32.mxu0 %v3544
        %3736 = vmatmul.mubr.f32.gmra.mrb[0].mxu0 %v3452
        %v3737 = vpop.f32.mrb[0].mxu0
        %v3738 = vadd.f32 0.0, %v3737
        %v3739 = vpop.f32.mrb[0].mxu0
        %3740 = vmatprep.mubr.f32.mxu0 %v3547
        %3741 = vmatmul.mubr.f32.gmra.mrb[0].mxu0 %v3453
        %v3742 = vpop.f32.mrb[0].mxu0
        %v3743 = vadd.f32 0.0, %v3742
        %v3744 = vpop.f32.mrb[0].mxu0
        %3745 = vmatprep.mubr.f32.mxu0 %v3550
        %3746 = vmatmul.mubr.f32.gmra.mrb[0].mxu0 %v3454
        %v3747 = vpop.f32.mrb[0].mxu0
        %v3748 = vadd.f32 0.0, %v3747
        %v3749 = vpop.f32.mrb[0].mxu0
        %3750 = vmatprep.mubr.f32.mxu0 %v3553
        %3751 = vmatmul.mubr.f32.gmra.mrb[0].mxu0 %v3455
        %v3752 = vpop.f32.mrb[0].mxu0
        %v3753 = vadd.f32 0.0, %v3752
        %v3754 = vpop.f32.mrb[0].mxu0
        %3755 = vmatprep.mubr.f32.mxu0 %v3556
        %3756 = vmatmul.mubr.f32.gmra.mrb[0].mxu0 %v3456
        %v3757 = vpop.f32.mrb[0].mxu0
        %v3758 = vadd.f32 0.0, %v3757
        %v3759 = vpop.f32.mrb[0].mxu0
        %3760 = vmatprep.mubr.f32.mxu0 %v3559
        %3761 = vmatmul.mubr.f32.gmra.mrb[0].mxu0 %v3457
        %v3762 = vpop.f32.mrb[0].mxu0
        %v3763 = vadd.f32 0.0, %v3762
        %v3764 = vpop.f32.mrb[0].mxu0
        %3765 = vmatprep.mubr.f32.mxu0 %v3562
        %3766 = vmatmul.mubr.f32.gmra.mrb[0].mxu0 %v3458
        %v3767 = vpop.f32.mrb[0].mxu0
        %v3768 = vadd.f32 0.0, %v3767
        %v3769 = vpop.f32.mrb[0].mxu0
        %3770 = vmatprep.mubr.f32.mxu0 %v3565
        %3771 = vmatmul.mubr.f32.gmra.mrb[0].mxu0 %v3459
        %v3772 = vpop.f32.mrb[0].mxu0
        %v3773 = vadd.f32 0.0, %v3772
        %v3774 = vpop.f32.mrb[0].mxu0
        %3775 = vmatprep.mubr.f32.mxu0 %v3568
        %3776 = vmatmul.mubr.f32.gmra.mrb[0].mxu0 %v3460
        %v3777 = vpop.f32.mrb[0].mxu0
        %v3778 = vadd.f32 0.0, %v3777
        %v3779 = vpop.f32.mrb[0].mxu0
        %3780 = vmatprep.mubr.f32.mxu0 %v3571
        %3781 = vmatmul.mubr.f32.gmra.mrb[0].mxu0 %v3461
        %v3782 = vpop.f32.mrb[0].mxu0
        %v3783 = vadd.f32 0.0, %v3782
        %v3784 = vpop.f32.mrb[0].mxu0
        %3785 = vmatprep.mubr.f32.mxu0 %v3574
        %3786 = vmatmul.mubr.f32.gmra.mrb[0].mxu0 %v3462
        %v3787 = vpop.f32.mrb[0].mxu0
        %v3788 = vadd.f32 0.0, %v3787
        %v3789 = vpop.f32.mrb[0].mxu0
        %3790 = vmatprep.mubr.f32.mxu0 %v3577
        %3791 = vmatmul.mubr.f32.gmra.mrb[0].mxu0 %v3463
        %v3792 = vpop.f32.mrb[0].mxu0
        %v3793 = vadd.f32 0.0, %v3792
        %v3794 = vpop.f32.mrb[0].mxu0
        %3795 = vmatprep.mubr.f32.mxu0 %v3580
        %3796 = vmatmul.mubr.f32.gmra.mrb[0].mxu0 %v3464
        %v3797 = vpop.f32.mrb[0].mxu0
        %v3798 = vadd.f32 0.0, %v3797
        %v3799 = vpop.f32.mrb[0].mxu0
        %3800 = vmatprep.mubr.f32.mxu0 %v3583
        %3801 = vmatmul.mubr.f32.gmra.mrb[0].mxu0 %v3465
        %v3802 = vpop.f32.mrb[0].mxu0
        %v3803 = vadd.f32 0.0, %v3802
        %v3804 = vpop.f32.mrb[0].mxu0
        %3805 = vmatprep.mubr.f32.mxu0 %v3586
        %3806 = vmatmul.mubr.f32.gmra.mrb[0].mxu0 %v3466
        %v3807 = vpop.f32.mrb[0].mxu0
        %v3808 = vadd.f32 0.0, %v3807
        %v3809 = vpop.f32.mrb[0].mxu0
        %3810 = vmatprep.mubr.f32.mxu0 %v3589
        %3811 = vmatmul.mubr.f32.gmra.mrb[0].mxu0 %v3467
        %v3812 = vpop.f32.mrb[0].mxu0
        %v3813 = vadd.f32 0.0, %v3812
        %v3814 = vpop.f32.mrb[0].mxu0
        %3815 = vdwg.mxu0
        %v3817 = vsel %vm352, %v2994, 0
        %v3820 = vsel %vm352, %v2995, 0
        %v3823 = vsel %vm352, %v2996, 0
        %v3826 = vsel %vm352, %v2997, 0
        %v3829 = vsel %vm352, %v2998, 0
        %v3832 = vsel %vm352, %v2999, 0
        %v3835 = vsel %vm352, %v3000, 0
        %v3838 = vsel %vm352, %v3001, 0
        %v3841 = vsel %vm352, %v3002, 0
        %v3844 = vsel %vm352, %v3003, 0
        %v3847 = vsel %vm352, %v3004, 0
        %v3850 = vsel %vm352, %v3005, 0
        %v3853 = vsel %vm352, %v3006, 0
        %v3856 = vsel %vm352, %v3007, 0
        %v3859 = vsel %vm352, %v3008, 0
        %v3862 = vsel %vm352, %v3009, 0
        %v3865 = vsel %vm352, %v3010, 0
        %v3868 = vsel %vm352, %v3011, 0
        %v3871 = vsel %vm352, %v3012, 0
        %v3874 = vsel %vm352, %v3013, 0
        %v3877 = vsel %vm352, %v3014, 0
        %v3880 = vsel %vm352, %v3015, 0
        %v3883 = vsel %vm352, %v3016, 0
        %v3886 = vsel %vm352, %v3017, 0
        %v3889 = vsel %vm352, %v3018, 0
        %v3892 = vsel %vm352, %v3019, 0
        %v3895 = vsel %vm352, %v3020, 0
        %v3898 = vsel %vm352, %v3021, 0
        %v3901 = vsel %vm352, %v3022, 0
        %v3904 = vsel %vm352, %v3023, 0
        %v3907 = vsel %vm352, %v3024, 0
        %v3910 = vsel %vm352, %v3025, 0
        %3912 = vmatprep.subr.mxu0 0.0
        %3913 = vmatpush1.msra.mxu0 %v3188
        %3914 = vmatprep.subr.mxu0 0.0
        %3915 = vmatpush1.msra.mxu0 %v3189
        %3916 = vmatprep.subr.mxu0 0.0
        %3917 = vmatpush1.msra.mxu0 %v3190
        %3918 = vmatprep.subr.mxu0 0.0
        %3919 = vmatpush1.msra.mxu0 %v3191
        %3920 = vmatprep.subr.mxu0 0.0
        %3921 = vmatpush1.msra.mxu0 %v3192
        %3922 = vmatprep.subr.mxu0 0.0
        %3923 = vmatpush1.msra.mxu0 %v3193
        %3924 = vmatprep.subr.mxu0 0.0
        %3925 = vmatpush1.msra.mxu0 %v3194
        %3926 = vmatprep.subr.mxu0 0.0
        %3927 = vmatpush1.msra.mxu0 %v3195
        %3928 = vmatprep.subr.mxu0 0.0
        %3929 = vmatpush1.msra.mxu0 %v3196
        %3930 = vmatprep.subr.mxu0 0.0
        %3931 = vmatpush1.msra.mxu0 %v3197
        %3932 = vmatprep.subr.mxu0 0.0
        %3933 = vmatpush1.msra.mxu0 %v3198
        %3934 = vmatprep.subr.mxu0 0.0
        %3935 = vmatpush1.msra.mxu0 %v3199
        %3936 = vmatprep.subr.mxu0 0.0
        %3937 = vmatpush1.msra.mxu0 %v3200
        %3938 = vmatprep.subr.mxu0 0.0
        %3939 = vmatpush1.msra.mxu0 %v3201
        %3940 = vmatprep.subr.mxu0 0.0
        %3941 = vmatpush1.msra.mxu0 %v3202
        %3942 = vmatprep.subr.mxu0 0.0
        %3943 = vmatpush1.msra.mxu0 %v3203
        %3944 = vmatprep.subr.mxu0 0.0
        %3945 = vmatpush1.msra.mxu0 %v3204
        %3946 = vmatprep.subr.mxu0 0.0
        %3947 = vmatpush1.msra.mxu0 %v3205
        %3948 = vmatprep.subr.mxu0 0.0
        %3949 = vmatpush1.msra.mxu0 %v3206
        %3950 = vmatprep.subr.mxu0 0.0
        %3951 = vmatpush1.msra.mxu0 %v3207
        %3952 = vmatprep.subr.mxu0 0.0
        %3953 = vmatpush1.msra.mxu0 %v3208
        %3954 = vmatprep.subr.mxu0 0.0
        %3955 = vmatpush1.msra.mxu0 %v3209
        %3956 = vmatprep.subr.mxu0 0.0
        %3957 = vmatpush1.msra.mxu0 %v3210
        %3958 = vmatprep.subr.mxu0 0.0
        %3959 = vmatpush1.msra.mxu0 %v3211
        %3960 = vmatprep.subr.mxu0 0.0
        %3961 = vmatpush1.msra.mxu0 0.0
        %3962 = vmatprep.subr.mxu0 0.0
        %3963 = vmatpush1.msra.mxu0 0.0
        %3964 = vmatprep.subr.mxu0 0.0
        %3965 = vmatpush1.msra.mxu0 0.0
        %3966 = vmatprep.subr.mxu0 0.0
        %3967 = vmatpush1.msra.mxu0 0.0
        %3968 = vmatprep.subr.mxu0 0.0
        %3969 = vmatpush1.msra.mxu0 0.0
        %3970 = vmatprep.subr.mxu0 0.0
        %3971 = vmatpush1.msra.mxu0 0.0
        %3972 = vmatprep.subr.mxu0 0.0
        %3973 = vmatpush1.msra.mxu0 0.0
        %3974 = vmatprep.subr.mxu0 0.0
        %3975 = vmatpush1.msra.mxu0 0.0
        %3976 = vmatprep.mubr.f32.mxu0 %v3817
        %3977 = vmatmul.mubr.f32.gmra.mrb[0].mxu0 %v3154
        %v3978 = vpop.f32.mrb[0].mxu0
        %v3979 = vadd.f32 %v3658, %v3978
        %v3980 = vpop.f32.mrb[0].mxu0
        %3981 = vmatprep.mubr.f32.mxu0 %v3820
        %3982 = vmatmul.mubr.f32.gmra.mrb[0].mxu0 %v3155
        %v3983 = vpop.f32.mrb[0].mxu0
        %v3984 = vadd.f32 %v3663, %v3983
        %v3985 = vpop.f32.mrb[0].mxu0
        %3986 = vmatprep.mubr.f32.mxu0 %v3823
        %3987 = vmatmul.mubr.f32.gmra.mrb[0].mxu0 %v3156
        %v3988 = vpop.f32.mrb[0].mxu0
        %v3989 = vadd.f32 %v3668, %v3988
        %v3990 = vpop.f32.mrb[0].mxu0
        %3991 = vmatprep.mubr.f32.mxu0 %v3826
        %3992 = vmatmul.mubr.f32.gmra.mrb[0].mxu0 %v3157
        %v3993 = vpop.f32.mrb[0].mxu0
        %v3994 = vadd.f32 %v3673, %v3993
        %v3995 = vpop.f32.mrb[0].mxu0
        %3996 = vmatprep.mubr.f32.mxu0 %v3829
        %3997 = vmatmul.mubr.f32.gmra.mrb[0].mxu0 %v3158
        %v3998 = vpop.f32.mrb[0].mxu0
        %v3999 = vadd.f32 %v3678, %v3998
        %v4000 = vpop.f32.mrb[0].mxu0
        %4001 = vmatprep.mubr.f32.mxu0 %v3832
        %4002 = vmatmul.mubr.f32.gmra.mrb[0].mxu0 %v3159
        %v4003 = vpop.f32.mrb[0].mxu0
        %v4004 = vadd.f32 %v3683, %v4003
        %v4005 = vpop.f32.mrb[0].mxu0
        %4006 = vmatprep.mubr.f32.mxu0 %v3835
        %4007 = vmatmul.mubr.f32.gmra.mrb[0].mxu0 %v3160
        %v4008 = vpop.f32.mrb[0].mxu0
        %v4009 = vadd.f32 %v3688, %v4008
        %v4010 = vpop.f32.mrb[0].mxu0
        %4011 = vmatprep.mubr.f32.mxu0 %v3838
        %4012 = vmatmul.mubr.f32.gmra.mrb[0].mxu0 %v3161
        %v4013 = vpop.f32.mrb[0].mxu0
        %v4014 = vadd.f32 %v3693, %v4013
        %v4015 = vpop.f32.mrb[0].mxu0
        %4016 = vmatprep.mubr.f32.mxu0 %v3841
        %4017 = vmatmul.mubr.f32.gmra.mrb[0].mxu0 %v3162
        %v4018 = vpop.f32.mrb[0].mxu0
        %v4019 = vadd.f32 %v3698, %v4018
        %v4020 = vpop.f32.mrb[0].mxu0
        %4021 = vmatprep.mubr.f32.mxu0 %v3844
        %4022 = vmatmul.mubr.f32.gmra.mrb[0].mxu0 %v3163
        %v4023 = vpop.f32.mrb[0].mxu0
        %v4024 = vadd.f32 %v3703, %v4023
        %v4025 = vpop.f32.mrb[0].mxu0
        %4026 = vmatprep.mubr.f32.mxu0 %v3847
        %4027 = vmatmul.mubr.f32.gmra.mrb[0].mxu0 %v3164
        %v4028 = vpop.f32.mrb[0].mxu0
        %v4029 = vadd.f32 %v3708, %v4028
        %v4030 = vpop.f32.mrb[0].mxu0
        %4031 = vmatprep.mubr.f32.mxu0 %v3850
        %4032 = vmatmul.mubr.f32.gmra.mrb[0].mxu0 %v3165
        %v4033 = vpop.f32.mrb[0].mxu0
        %v4034 = vadd.f32 %v3713, %v4033
        %v4035 = vpop.f32.mrb[0].mxu0
        %4036 = vmatprep.mubr.f32.mxu0 %v3853
        %4037 = vmatmul.mubr.f32.gmra.mrb[0].mxu0 %v3166
        %v4038 = vpop.f32.mrb[0].mxu0
        %v4039 = vadd.f32 %v3718, %v4038
        %v4040 = vpop.f32.mrb[0].mxu0
        %4041 = vmatprep.mubr.f32.mxu0 %v3856
        %4042 = vmatmul.mubr.f32.gmra.mrb[0].mxu0 %v3167
        %v4043 = vpop.f32.mrb[0].mxu0
        %v4044 = vadd.f32 %v3723, %v4043
        %v4045 = vpop.f32.mrb[0].mxu0
        %4046 = vmatprep.mubr.f32.mxu0 %v3859
        %4047 = vmatmul.mubr.f32.gmra.mrb[0].mxu0 %v3168
        %v4048 = vpop.f32.mrb[0].mxu0
        %v4049 = vadd.f32 %v3728, %v4048
        %v4050 = vpop.f32.mrb[0].mxu0
        %4051 = vmatprep.mubr.f32.mxu0 %v3862
        %4052 = vmatmul.mubr.f32.gmra.mrb[0].mxu0 %v3169
        %v4053 = vpop.f32.mrb[0].mxu0
        %v4054 = vadd.f32 %v3733, %v4053
        %v4055 = vpop.f32.mrb[0].mxu0
        %4056 = vmatprep.mubr.f32.mxu0 %v3865
        %4057 = vmatmul.mubr.f32.gmra.mrb[0].mxu0 %v3170
        %v4058 = vpop.f32.mrb[0].mxu0
        %v4059 = vadd.f32 %v3738, %v4058
        %v4060 = vpop.f32.mrb[0].mxu0
        %4061 = vmatprep.mubr.f32.mxu0 %v3868
        %4062 = vmatmul.mubr.f32.gmra.mrb[0].mxu0 %v3171
        %v4063 = vpop.f32.mrb[0].mxu0
        %v4064 = vadd.f32 %v3743, %v4063
        %v4065 = vpop.f32.mrb[0].mxu0
        %4066 = vmatprep.mubr.f32.mxu0 %v3871
        %4067 = vmatmul.mubr.f32.gmra.mrb[0].mxu0 %v3172
        %v4068 = vpop.f32.mrb[0].mxu0
        %v4069 = vadd.f32 %v3748, %v4068
        %v4070 = vpop.f32.mrb[0].mxu0
        %4071 = vmatprep.mubr.f32.mxu0 %v3874
        %4072 = vmatmul.mubr.f32.gmra.mrb[0].mxu0 %v3173
        %v4073 = vpop.f32.mrb[0].mxu0
        %v4074 = vadd.f32 %v3753, %v4073
        %v4075 = vpop.f32.mrb[0].mxu0
        %4076 = vmatprep.mubr.f32.mxu0 %v3877
        %4077 = vmatmul.mubr.f32.gmra.mrb[0].mxu0 %v3174
        %v4078 = vpop.f32.mrb[0].mxu0
        %v4079 = vadd.f32 %v3758, %v4078
        %v4080 = vpop.f32.mrb[0].mxu0
        %4081 = vmatprep.mubr.f32.mxu0 %v3880
        %4082 = vmatmul.mubr.f32.gmra.mrb[0].mxu0 %v3175
        %v4083 = vpop.f32.mrb[0].mxu0
        %v4084 = vadd.f32 %v3763, %v4083
        %v4085 = vpop.f32.mrb[0].mxu0
        %4086 = vmatprep.mubr.f32.mxu0 %v3883
        %4087 = vmatmul.mubr.f32.gmra.mrb[0].mxu0 %v3176
        %v4088 = vpop.f32.mrb[0].mxu0
        %v4089 = vadd.f32 %v3768, %v4088
        %v4090 = vpop.f32.mrb[0].mxu0
        %4091 = vmatprep.mubr.f32.mxu0 %v3886
        %4092 = vmatmul.mubr.f32.gmra.mrb[0].mxu0 %v3177
        %v4093 = vpop.f32.mrb[0].mxu0
        %v4094 = vadd.f32 %v3773, %v4093
        %v4095 = vpop.f32.mrb[0].mxu0
        %4096 = vmatprep.mubr.f32.mxu0 %v3889
        %4097 = vmatmul.mubr.f32.gmra.mrb[0].mxu0 %v3178
        %v4098 = vpop.f32.mrb[0].mxu0
        %v4099 = vadd.f32 %v3778, %v4098
        %v4100 = vpop.f32.mrb[0].mxu0
        %4101 = vmatprep.mubr.f32.mxu0 %v3892
        %4102 = vmatmul.mubr.f32.gmra.mrb[0].mxu0 %v3179
        %v4103 = vpop.f32.mrb[0].mxu0
        %v4104 = vadd.f32 %v3783, %v4103
        %v4105 = vpop.f32.mrb[0].mxu0
        %4106 = vmatprep.mubr.f32.mxu0 %v3895
        %4107 = vmatmul.mubr.f32.gmra.mrb[0].mxu0 %v3180
        %v4108 = vpop.f32.mrb[0].mxu0
        %v4109 = vadd.f32 %v3788, %v4108
        %v4110 = vpop.f32.mrb[0].mxu0
        %4111 = vmatprep.mubr.f32.mxu0 %v3898
        %4112 = vmatmul.mubr.f32.gmra.mrb[0].mxu0 %v3181
        %v4113 = vpop.f32.mrb[0].mxu0
        %v4114 = vadd.f32 %v3793, %v4113
        %v4115 = vpop.f32.mrb[0].mxu0
        %4116 = vmatprep.mubr.f32.mxu0 %v3901
        %4117 = vmatmul.mubr.f32.gmra.mrb[0].mxu0 %v3182
        %v4118 = vpop.f32.mrb[0].mxu0
        %v4119 = vadd.f32 %v3798, %v4118
        %v4120 = vpop.f32.mrb[0].mxu0
        %4121 = vmatprep.mubr.f32.mxu0 %v3904
        %4122 = vmatmul.mubr.f32.gmra.mrb[0].mxu0 %v3183
        %v4123 = vpop.f32.mrb[0].mxu0
        %v4124 = vadd.f32 %v3803, %v4123
        %v4125 = vpop.f32.mrb[0].mxu0
        %4126 = vmatprep.mubr.f32.mxu0 %v3907
        %4127 = vmatmul.mubr.f32.gmra.mrb[0].mxu0 %v3184
        %v4128 = vpop.f32.mrb[0].mxu0
        %v4129 = vadd.f32 %v3808, %v4128
        %v4130 = vpop.f32.mrb[0].mxu0
        %4131 = vmatprep.mubr.f32.mxu0 %v3910
        %4132 = vmatmul.mubr.f32.gmra.mrb[0].mxu0 %v3185
        %v4133 = vpop.f32.mrb[0].mxu0
        %v4134 = vadd.f32 %v3813, %v4133
        %v4135 = vpop.f32.mrb[0].mxu0
        %4136 = vdwg.mxu0
        %s4137 = scalar_lea.vmem [#allocation3], 64
        %v4138 = vld [vmem:[%s4137 + $0x7] sm:$0xff]
        %v4139 = vld [vmem:[%s4137 + $0xf] sm:$0xff]
        %v4140 = vld [vmem:[%s4137 + $0x27] sm:$0xff]
        %v4141 = vld [vmem:[%s4137 + $0x2f] sm:$0xff]
        %v4142 = vld [vmem:[%s4137 + $0x47] sm:$0xff]
        %v4143 = vld [vmem:[%s4137 + $0x4f] sm:$0xff]
        %v4144 = vld [vmem:[%s4137 + $0x67] sm:$0xff]
        %v4145 = vld [vmem:[%s4137 + $0x6f] sm:$0xff]
        %v4146 = vld [vmem:[%s4137 + $0x87] sm:$0xff]
        %v4147 = vld [vmem:[%s4137 + $0x8f] sm:$0xff]
        %v4148 = vld [vmem:[%s4137 + $0xa7] sm:$0xff]
        %v4149 = vld [vmem:[%s4137 + $0xaf] sm:$0xff]
        %v4150 = vld [vmem:[%s4137 + $0xc7] sm:$0xff]
        %v4151 = vld [vmem:[%s4137 + $0xcf] sm:$0xff]
        %v4152 = vld [vmem:[%s4137 + $0xe7] sm:$0xff]
        %v4153 = vld [vmem:[%s4137 + $0xef] sm:$0xff]
        %v4154 = vld [vmem:[%s4137 + $0x107] sm:$0xff]
        %v4155 = vld [vmem:[%s4137 + $0x10f] sm:$0xff]
        %v4156 = vld [vmem:[%s4137 + $0x127] sm:$0xff]
        %v4157 = vld [vmem:[%s4137 + $0x12f] sm:$0xff]
        %v4158 = vld [vmem:[%s4137 + $0x147] sm:$0xff]
        %v4159 = vld [vmem:[%s4137 + $0x14f] sm:$0xff]
        %v4160 = vld [vmem:[%s4137 + $0x167] sm:$0xff]
        %v4161 = vld [vmem:[%s4137 + $0x16f] sm:$0xff]
        %v4162 = vld [vmem:[%s4137 + $0x187] sm:$0xff]
        %v4163 = vld [vmem:[%s4137 + $0x18f] sm:$0xff]
        %v4164 = vld [vmem:[%s4137 + $0x1a7] sm:$0xff]
        %v4165 = vld [vmem:[%s4137 + $0x1af] sm:$0xff]
        %v4166 = vld [vmem:[%s4137 + $0x1c7] sm:$0xff]
        %v4167 = vld [vmem:[%s4137 + $0x1cf] sm:$0xff]
        %v4168 = vld [vmem:[%s4137 + $0x1e7] sm:$0xff]
        %v4169 = vld [vmem:[%s4137 + $0x1ef] sm:$0xff]
        %v4170 = vld [vmem:[%s4137 + $0x8] sm:$0xff]
        %v4171 = vld [vmem:[%s4137 + $0x10] sm:$0xff]
        %v4172 = vld [vmem:[%s4137 + $0x28] sm:$0xff]
        %v4173 = vld [vmem:[%s4137 + $0x30] sm:$0xff]
        %v4174 = vld [vmem:[%s4137 + $0x48] sm:$0xff]
        %v4175 = vld [vmem:[%s4137 + $0x50] sm:$0xff]
        %v4176 = vld [vmem:[%s4137 + $0x68] sm:$0xff]
        %v4177 = vld [vmem:[%s4137 + $0x70] sm:$0xff]
        %v4178 = vld [vmem:[%s4137 + $0x88] sm:$0xff]
        %v4179 = vld [vmem:[%s4137 + $0x90] sm:$0xff]
        %v4180 = vld [vmem:[%s4137 + $0xa8] sm:$0xff]
        %v4181 = vld [vmem:[%s4137 + $0xb0] sm:$0xff]
        %v4182 = vld [vmem:[%s4137 + $0xc8] sm:$0xff]
        %v4183 = vld [vmem:[%s4137 + $0xd0] sm:$0xff]
        %v4184 = vld [vmem:[%s4137 + $0xe8] sm:$0xff]
        %v4185 = vld [vmem:[%s4137 + $0xf0] sm:$0xff]
        %v4186 = vld [vmem:[%s4137 + $0x108] sm:$0xff]
        %v4187 = vld [vmem:[%s4137 + $0x110] sm:$0xff]
        %v4188 = vld [vmem:[%s4137 + $0x128] sm:$0xff]
        %v4189 = vld [vmem:[%s4137 + $0x130] sm:$0xff]
        %v4190 = vld [vmem:[%s4137 + $0x148] sm:$0xff]
        %v4191 = vld [vmem:[%s4137 + $0x150] sm:$0xff]
        %v4192 = vld [vmem:[%s4137 + $0x168] sm:$0xff]
        %v4193 = vld [vmem:[%s4137 + $0x170] sm:$0xff]
        %v4194 = vld [vmem:[%s4137 + $0x188] sm:$0xff]
        %v4195 = vld [vmem:[%s4137 + $0x190] sm:$0xff]
        %v4196 = vld [vmem:[%s4137 + $0x1a8] sm:$0xff]
        %v4197 = vld [vmem:[%s4137 + $0x1b0] sm:$0xff]
        %v4198 = vld [vmem:[%s4137 + $0x1c8] sm:$0xff]
        %v4199 = vld [vmem:[%s4137 + $0x1d0] sm:$0xff]
        %v4200 = vld [vmem:[%s4137 + $0x1e8] sm:$0xff]
        %v4201 = vld [vmem:[%s4137 + $0x1f0] sm:$0xff]
        %v4202 = vld [vmem:[%s4137 + $0x9] sm:$0xff]
        %v4203 = vld [vmem:[%s4137 + $0x11] sm:$0xff]
        %v4204 = vld [vmem:[%s4137 + $0x29] sm:$0xff]
        %v4205 = vld [vmem:[%s4137 + $0x31] sm:$0xff]
        %v4206 = vld [vmem:[%s4137 + $0x49] sm:$0xff]
        %v4207 = vld [vmem:[%s4137 + $0x51] sm:$0xff]
        %v4208 = vld [vmem:[%s4137 + $0x69] sm:$0xff]
        %v4209 = vld [vmem:[%s4137 + $0x71] sm:$0xff]
        %v4210 = vld [vmem:[%s4137 + $0x89] sm:$0xff]
        %v4211 = vld [vmem:[%s4137 + $0x91] sm:$0xff]
        %v4212 = vld [vmem:[%s4137 + $0xa9] sm:$0xff]
        %v4213 = vld [vmem:[%s4137 + $0xb1] sm:$0xff]
        %v4214 = vld [vmem:[%s4137 + $0xc9] sm:$0xff]
        %v4215 = vld [vmem:[%s4137 + $0xd1] sm:$0xff]
        %v4216 = vld [vmem:[%s4137 + $0xe9] sm:$0xff]
        %v4217 = vld [vmem:[%s4137 + $0xf1] sm:$0xff]
        %v4218 = vld [vmem:[%s4137 + $0x109] sm:$0xff]
        %v4219 = vld [vmem:[%s4137 + $0x111] sm:$0xff]
        %v4220 = vld [vmem:[%s4137 + $0x129] sm:$0xff]
        %v4221 = vld [vmem:[%s4137 + $0x131] sm:$0xff]
        %v4222 = vld [vmem:[%s4137 + $0x149] sm:$0xff]
        %v4223 = vld [vmem:[%s4137 + $0x151] sm:$0xff]
        %v4224 = vld [vmem:[%s4137 + $0x169] sm:$0xff]
        %v4225 = vld [vmem:[%s4137 + $0x171] sm:$0xff]
        %v4226 = vld [vmem:[%s4137 + $0x189] sm:$0xff]
        %v4227 = vld [vmem:[%s4137 + $0x191] sm:$0xff]
        %v4228 = vld [vmem:[%s4137 + $0x1a9] sm:$0xff]
        %v4229 = vld [vmem:[%s4137 + $0x1b1] sm:$0xff]
        %v4230 = vld [vmem:[%s4137 + $0x1c9] sm:$0xff]
        %v4231 = vld [vmem:[%s4137 + $0x1d1] sm:$0xff]
        %v4232 = vld [vmem:[%s4137 + $0x1e9] sm:$0xff]
        %v4233 = vld [vmem:[%s4137 + $0x1f1] sm:$0xff]
        %4266 = vrot.lane.b32.xlu0 %v4170, 64
        %v4267 = vpop.permute.xlu0 %4266
        %4268 = vrot.lane.b32.xlu0 %v4171, 64
        %v4269 = vpop.permute.xlu0 %4268
        %4270 = vrot.lane.b32.xlu0 %v4172, 64
        %v4271 = vpop.permute.xlu0 %4270
        %4272 = vrot.lane.b32.xlu0 %v4173, 64
        %v4273 = vpop.permute.xlu0 %4272
        %4274 = vrot.lane.b32.xlu0 %v4174, 64
        %v4275 = vpop.permute.xlu0 %4274
        %4276 = vrot.lane.b32.xlu0 %v4175, 64
        %v4277 = vpop.permute.xlu0 %4276
        %4278 = vrot.lane.b32.xlu0 %v4176, 64
        %v4279 = vpop.permute.xlu0 %4278
        %4280 = vrot.lane.b32.xlu0 %v4177, 64
        %v4281 = vpop.permute.xlu0 %4280
        %4282 = vrot.lane.b32.xlu0 %v4178, 64
        %v4283 = vpop.permute.xlu0 %4282
        %4284 = vrot.lane.b32.xlu0 %v4179, 64
        %v4285 = vpop.permute.xlu0 %4284
        %4286 = vrot.lane.b32.xlu0 %v4180, 64
        %v4287 = vpop.permute.xlu0 %4286
        %4288 = vrot.lane.b32.xlu0 %v4181, 64
        %v4289 = vpop.permute.xlu0 %4288
        %4290 = vrot.lane.b32.xlu0 %v4182, 64
        %v4291 = vpop.permute.xlu0 %4290
        %4292 = vrot.lane.b32.xlu0 %v4183, 64
        %v4293 = vpop.permute.xlu0 %4292
        %4294 = vrot.lane.b32.xlu0 %v4184, 64
        %v4295 = vpop.permute.xlu0 %4294
        %4296 = vrot.lane.b32.xlu0 %v4185, 64
        %v4297 = vpop.permute.xlu0 %4296
        %4298 = vrot.lane.b32.xlu0 %v4186, 64
        %v4299 = vpop.permute.xlu0 %4298
        %4300 = vrot.lane.b32.xlu0 %v4187, 64
        %v4301 = vpop.permute.xlu0 %4300
        %4302 = vrot.lane.b32.xlu0 %v4188, 64
        %v4303 = vpop.permute.xlu0 %4302
        %4304 = vrot.lane.b32.xlu0 %v4189, 64
        %v4305 = vpop.permute.xlu0 %4304
        %4306 = vrot.lane.b32.xlu0 %v4190, 64
        %v4307 = vpop.permute.xlu0 %4306
        %4308 = vrot.lane.b32.xlu0 %v4191, 64
        %v4309 = vpop.permute.xlu0 %4308
        %4310 = vrot.lane.b32.xlu0 %v4192, 64
        %v4311 = vpop.permute.xlu0 %4310
        %4312 = vrot.lane.b32.xlu0 %v4193, 64
        %v4313 = vpop.permute.xlu0 %4312
        %4314 = vrot.lane.b32.xlu0 %v4194, 64
        %v4315 = vpop.permute.xlu0 %4314
        %4316 = vrot.lane.b32.xlu0 %v4195, 64
        %v4317 = vpop.permute.xlu0 %4316
        %4318 = vrot.lane.b32.xlu0 %v4196, 64
        %v4319 = vpop.permute.xlu0 %4318
        %4320 = vrot.lane.b32.xlu0 %v4197, 64
        %v4321 = vpop.permute.xlu0 %4320
        %4322 = vrot.lane.b32.xlu0 %v4198, 64
        %v4323 = vpop.permute.xlu0 %4322
        %4324 = vrot.lane.b32.xlu0 %v4199, 64
        %v4325 = vpop.permute.xlu0 %4324
        %4326 = vrot.lane.b32.xlu0 %v4200, 64
        %v4327 = vpop.permute.xlu0 %4326
        %4328 = vrot.lane.b32.xlu0 %v4201, 64
        %v4329 = vpop.permute.xlu0 %4328
        %v4362 = vsel %vm352, %v4138, %v4267
        %v4363 = vsel %vm352, %v4139, %v4269
        %v4364 = vsel %vm352, %v4140, %v4271
        %v4365 = vsel %vm352, %v4141, %v4273
        %v4366 = vsel %vm352, %v4142, %v4275
        %v4367 = vsel %vm352, %v4143, %v4277
        %v4368 = vsel %vm352, %v4144, %v4279
        %v4369 = vsel %vm352, %v4145, %v4281
        %v4370 = vsel %vm352, %v4146, %v4283
        %v4371 = vsel %vm352, %v4147, %v4285
        %v4372 = vsel %vm352, %v4148, %v4287
        %v4373 = vsel %vm352, %v4149, %v4289
        %v4374 = vsel %vm352, %v4150, %v4291
        %v4375 = vsel %vm352, %v4151, %v4293
        %v4376 = vsel %vm352, %v4152, %v4295
        %v4377 = vsel %vm352, %v4153, %v4297
        %v4378 = vsel %vm352, %v4154, %v4299
        %v4379 = vsel %vm352, %v4155, %v4301
        %v4380 = vsel %vm352, %v4156, %v4303
        %v4381 = vsel %vm352, %v4157, %v4305
        %v4382 = vsel %vm352, %v4158, %v4307
        %v4383 = vsel %vm352, %v4159, %v4309
        %v4384 = vsel %vm352, %v4160, %v4311
        %v4385 = vsel %vm352, %v4161, %v4313
        %v4386 = vsel %vm352, %v4162, %v4315
        %v4387 = vsel %vm352, %v4163, %v4317
        %v4388 = vsel %vm352, %v4164, %v4319
        %v4389 = vsel %vm352, %v4165, %v4321
        %v4390 = vsel %vm352, %v4166, %v4323
        %v4391 = vsel %vm352, %v4167, %v4325
        %v4392 = vsel %vm352, %v4168, %v4327
        %v4393 = vsel %vm352, %v4169, %v4329
        %s4394 = sadd.s32 %s2929, 2
        %s4395 = smul.u32 %s4394, 192
        %s4396 = scalar_lea.vmem %s3, %s4395
        %v4397 = vld [vmem:[%s4396] sm:$0xff]
        %v4398 = vld [vmem:[%s4396 + $0x8] sm:$0xff]
        %v4399 = vld [vmem:[%s4396 + $0x10] sm:$0xff]
        %v4400 = vld [vmem:[%s4396 + $0x18] sm:$0xff]
        %v4401 = vld [vmem:[%s4396 + $0x20] sm:$0xff]
        %v4402 = vld [vmem:[%s4396 + $0x28] sm:$0xff]
        %v4403 = vld [vmem:[%s4396 + $0x30] sm:$0xff]
        %v4404 = vld [vmem:[%s4396 + $0x38] sm:$0xff]
        %v4405 = vld [vmem:[%s4396 + $0x40] sm:$0xff]
        %v4406 = vld [vmem:[%s4396 + $0x48] sm:$0xff]
        %v4407 = vld [vmem:[%s4396 + $0x50] sm:$0xff]
        %v4408 = vld [vmem:[%s4396 + $0x58] sm:$0xff]
        %v4409 = vld [vmem:[%s4396 + $0x60] sm:$0xff]
        %v4410 = vld [vmem:[%s4396 + $0x68] sm:$0xff]
        %v4411 = vld [vmem:[%s4396 + $0x70] sm:$0xff]
        %v4412 = vld [vmem:[%s4396 + $0x78] sm:$0xff]
        %v4413 = vld [vmem:[%s4396 + $0x80] sm:$0xff]
        %v4414 = vld [vmem:[%s4396 + $0x88] sm:$0xff]
        %v4415 = vld [vmem:[%s4396 + $0x90] sm:$0xff]
        %v4416 = vld [vmem:[%s4396 + $0x98] sm:$0xff]
        %v4417 = vld [vmem:[%s4396 + $0xa0] sm:$0xff]
        %v4418 = vld [vmem:[%s4396 + $0xa8] sm:$0xff]
        %v4419 = vld [vmem:[%s4396 + $0xb0] sm:$0xff]
        %v4420 = vld [vmem:[%s4396 + $0xb8] sm:$0xff]
        %v4422 = vsel %vm352, %v4202, 0
        %v4425 = vsel %vm352, %v4203, 0
        %v4428 = vsel %vm352, %v4204, 0
        %v4431 = vsel %vm352, %v4205, 0
        %v4434 = vsel %vm352, %v4206, 0
        %v4437 = vsel %vm352, %v4207, 0
        %v4440 = vsel %vm352, %v4208, 0
        %v4443 = vsel %vm352, %v4209, 0
        %v4446 = vsel %vm352, %v4210, 0
        %v4449 = vsel %vm352, %v4211, 0
        %v4452 = vsel %vm352, %v4212, 0
        %v4455 = vsel %vm352, %v4213, 0
        %v4458 = vsel %vm352, %v4214, 0
        %v4461 = vsel %vm352, %v4215, 0
        %v4464 = vsel %vm352, %v4216, 0
        %v4467 = vsel %vm352, %v4217, 0
        %v4470 = vsel %vm352, %v4218, 0
        %v4473 = vsel %vm352, %v4219, 0
        %v4476 = vsel %vm352, %v4220, 0
        %v4479 = vsel %vm352, %v4221, 0
        %v4482 = vsel %vm352, %v4222, 0
        %v4485 = vsel %vm352, %v4223, 0
        %v4488 = vsel %vm352, %v4224, 0
        %v4491 = vsel %vm352, %v4225, 0
        %v4494 = vsel %vm352, %v4226, 0
        %v4497 = vsel %vm352, %v4227, 0
        %v4500 = vsel %vm352, %v4228, 0
        %v4503 = vsel %vm352, %v4229, 0
        %v4506 = vsel %vm352, %v4230, 0
        %v4509 = vsel %vm352, %v4231, 0
        %v4512 = vsel %vm352, %v4232, 0
        %v4515 = vsel %vm352, %v4233, 0
        %4517 = vmatprep.subr.mxu0 0.0
        %4518 = vmatpush1.msra.mxu0 %v4397
        %4519 = vmatprep.subr.mxu0 0.0
        %4520 = vmatpush1.msra.mxu0 %v4398
        %4521 = vmatprep.subr.mxu0 0.0
        %4522 = vmatpush1.msra.mxu0 %v4399
        %4523 = vmatprep.subr.mxu0 0.0
        %4524 = vmatpush1.msra.mxu0 %v4400
        %4525 = vmatprep.subr.mxu0 0.0
        %4526 = vmatpush1.msra.mxu0 %v4401
        %4527 = vmatprep.subr.mxu0 0.0
        %4528 = vmatpush1.msra.mxu0 %v4402
        %4529 = vmatprep.subr.mxu0 0.0
        %4530 = vmatpush1.msra.mxu0 %v4403
        %4531 = vmatprep.subr.mxu0 0.0
        %4532 = vmatpush1.msra.mxu0 %v4404
        %4533 = vmatprep.subr.mxu0 0.0
        %4534 = vmatpush1.msra.mxu0 %v4405
        %4535 = vmatprep.subr.mxu0 0.0
        %4536 = vmatpush1.msra.mxu0 %v4406
        %4537 = vmatprep.subr.mxu0 0.0
        %4538 = vmatpush1.msra.mxu0 %v4407
        %4539 = vmatprep.subr.mxu0 0.0
        %4540 = vmatpush1.msra.mxu0 %v4408
        %4541 = vmatprep.subr.mxu0 0.0
        %4542 = vmatpush1.msra.mxu0 %v4409
        %4543 = vmatprep.subr.mxu0 0.0
        %4544 = vmatpush1.msra.mxu0 %v4410
        %4545 = vmatprep.subr.mxu0 0.0
        %4546 = vmatpush1.msra.mxu0 %v4411
        %4547 = vmatprep.subr.mxu0 0.0
        %4548 = vmatpush1.msra.mxu0 %v4412
        %4549 = vmatprep.subr.mxu0 0.0
        %4550 = vmatpush1.msra.mxu0 %v4413
        %4551 = vmatprep.subr.mxu0 0.0
        %4552 = vmatpush1.msra.mxu0 %v4414
        %4553 = vmatprep.subr.mxu0 0.0
        %4554 = vmatpush1.msra.mxu0 %v4415
        %4555 = vmatprep.subr.mxu0 0.0
        %4556 = vmatpush1.msra.mxu0 %v4416
        %4557 = vmatprep.subr.mxu0 0.0
        %4558 = vmatpush1.msra.mxu0 %v4417
        %4559 = vmatprep.subr.mxu0 0.0
        %4560 = vmatpush1.msra.mxu0 %v4418
        %4561 = vmatprep.subr.mxu0 0.0
        %4562 = vmatpush1.msra.mxu0 %v4419
        %4563 = vmatprep.subr.mxu0 0.0
        %4564 = vmatpush1.msra.mxu0 %v4420
        %4565 = vmatprep.subr.mxu0 0.0
        %4566 = vmatpush1.msra.mxu0 0.0
        %4567 = vmatprep.subr.mxu0 0.0
        %4568 = vmatpush1.msra.mxu0 0.0
        %4569 = vmatprep.subr.mxu0 0.0
        %4570 = vmatpush1.msra.mxu0 0.0
        %4571 = vmatprep.subr.mxu0 0.0
        %4572 = vmatpush1.msra.mxu0 0.0
        %4573 = vmatprep.subr.mxu0 0.0
        %4574 = vmatpush1.msra.mxu0 0.0
        %4575 = vmatprep.subr.mxu0 0.0
        %4576 = vmatpush1.msra.mxu0 0.0
        %4577 = vmatprep.subr.mxu0 0.0
        %4578 = vmatpush1.msra.mxu0 0.0
        %4579 = vmatprep.subr.mxu0 0.0
        %4580 = vmatpush1.msra.mxu0 0.0
        %4581 = vmatprep.mubr.f32.mxu0 %v4422
        %4582 = vmatmul.mubr.f32.gmra.mrb[0].mxu0 %v4362
        %v4583 = vpop.f32.mrb[0].mxu0
        %v4584 = vadd.f32 0.0, %v4583
        %v4585 = vpop.f32.mrb[0].mxu0
        %4586 = vmatprep.mubr.f32.mxu0 %v4425
        %4587 = vmatmul.mubr.f32.gmra.mrb[0].mxu0 %v4363
        %v4588 = vpop.f32.mrb[0].mxu0
        %v4589 = vadd.f32 0.0, %v4588
        %v4590 = vpop.f32.mrb[0].mxu0
        %4591 = vmatprep.mubr.f32.mxu0 %v4428
        %4592 = vmatmul.mubr.f32.gmra.mrb[0].mxu0 %v4364
        %v4593 = vpop.f32.mrb[0].mxu0
        %v4594 = vadd.f32 0.0, %v4593
        %v4595 = vpop.f32.mrb[0].mxu0
        %4596 = vmatprep.mubr.f32.mxu0 %v4431
        %4597 = vmatmul.mubr.f32.gmra.mrb[0].mxu0 %v4365
        %v4598 = vpop.f32.mrb[0].mxu0
        %v4599 = vadd.f32 0.0, %v4598
        %v4600 = vpop.f32.mrb[0].mxu0
        %4601 = vmatprep.mubr.f32.mxu0 %v4434
        %4602 = vmatmul.mubr.f32.gmra.mrb[0].mxu0 %v4366
        %v4603 = vpop.f32.mrb[0].mxu0
        %v4604 = vadd.f32 0.0, %v4603
        %v4605 = vpop.f32.mrb[0].mxu0
        %4606 = vmatprep.mubr.f32.mxu0 %v4437
        %4607 = vmatmul.mubr.f32.gmra.mrb[0].mxu0 %v4367
        %v4608 = vpop.f32.mrb[0].mxu0
        %v4609 = vadd.f32 0.0, %v4608
        %v4610 = vpop.f32.mrb[0].mxu0
        %4611 = vmatprep.mubr.f32.mxu0 %v4440
        %4612 = vmatmul.mubr.f32.gmra.mrb[0].mxu0 %v4368
        %v4613 = vpop.f32.mrb[0].mxu0
        %v4614 = vadd.f32 0.0, %v4613
        %v4615 = vpop.f32.mrb[0].mxu0
        %4616 = vmatprep.mubr.f32.mxu0 %v4443
        %4617 = vmatmul.mubr.f32.gmra.mrb[0].mxu0 %v4369
        %v4618 = vpop.f32.mrb[0].mxu0
        %v4619 = vadd.f32 0.0, %v4618
        %v4620 = vpop.f32.mrb[0].mxu0
        %4621 = vmatprep.mubr.f32.mxu0 %v4446
        %4622 = vmatmul.mubr.f32.gmra.mrb[0].mxu0 %v4370
        %v4623 = vpop.f32.mrb[0].mxu0
        %v4624 = vadd.f32 0.0, %v4623
        %v4625 = vpop.f32.mrb[0].mxu0
        %4626 = vmatprep.mubr.f32.mxu0 %v4449
        %4627 = vmatmul.mubr.f32.gmra.mrb[0].mxu0 %v4371
        %v4628 = vpop.f32.mrb[0].mxu0
        %v4629 = vadd.f32 0.0, %v4628
        %v4630 = vpop.f32.mrb[0].mxu0
        %4631 = vmatprep.mubr.f32.mxu0 %v4452
        %4632 = vmatmul.mubr.f32.gmra.mrb[0].mxu0 %v4372
        %v4633 = vpop.f32.mrb[0].mxu0
        %v4634 = vadd.f32 0.0, %v4633
        %v4635 = vpop.f32.mrb[0].mxu0
        %4636 = vmatprep.mubr.f32.mxu0 %v4455
        %4637 = vmatmul.mubr.f32.gmra.mrb[0].mxu0 %v4373
        %v4638 = vpop.f32.mrb[0].mxu0
        %v4639 = vadd.f32 0.0, %v4638
        %v4640 = vpop.f32.mrb[0].mxu0
        %4641 = vmatprep.mubr.f32.mxu0 %v4458
        %4642 = vmatmul.mubr.f32.gmra.mrb[0].mxu0 %v4374
        %v4643 = vpop.f32.mrb[0].mxu0
        %v4644 = vadd.f32 0.0, %v4643
        %v4645 = vpop.f32.mrb[0].mxu0
        %4646 = vmatprep.mubr.f32.mxu0 %v4461
        %4647 = vmatmul.mubr.f32.gmra.mrb[0].mxu0 %v4375
        %v4648 = vpop.f32.mrb[0].mxu0
        %v4649 = vadd.f32 0.0, %v4648
        %v4650 = vpop.f32.mrb[0].mxu0
        %4651 = vmatprep.mubr.f32.mxu0 %v4464
        %4652 = vmatmul.mubr.f32.gmra.mrb[0].mxu0 %v4376
        %v4653 = vpop.f32.mrb[0].mxu0
        %v4654 = vadd.f32 0.0, %v4653
        %v4655 = vpop.f32.mrb[0].mxu0
        %4656 = vmatprep.mubr.f32.mxu0 %v4467
        %4657 = vmatmul.mubr.f32.gmra.mrb[0].mxu0 %v4377
        %v4658 = vpop.f32.mrb[0].mxu0
        %v4659 = vadd.f32 0.0, %v4658
        %v4660 = vpop.f32.mrb[0].mxu0
        %4661 = vmatprep.mubr.f32.mxu0 %v4470
        %4662 = vmatmul.mubr.f32.gmra.mrb[0].mxu0 %v4378
        %v4663 = vpop.f32.mrb[0].mxu0
        %v4664 = vadd.f32 0.0, %v4663
        %v4665 = vpop.f32.mrb[0].mxu0
        %4666 = vmatprep.mubr.f32.mxu0 %v4473
        %4667 = vmatmul.mubr.f32.gmra.mrb[0].mxu0 %v4379
        %v4668 = vpop.f32.mrb[0].mxu0
        %v4669 = vadd.f32 0.0, %v4668
        %v4670 = vpop.f32.mrb[0].mxu0
        %4671 = vmatprep.mubr.f32.mxu0 %v4476
        %4672 = vmatmul.mubr.f32.gmra.mrb[0].mxu0 %v4380
        %v4673 = vpop.f32.mrb[0].mxu0
        %v4674 = vadd.f32 0.0, %v4673
        %v4675 = vpop.f32.mrb[0].mxu0
        %4676 = vmatprep.mubr.f32.mxu0 %v4479
        %4677 = vmatmul.mubr.f32.gmra.mrb[0].mxu0 %v4381
        %v4678 = vpop.f32.mrb[0].mxu0
        %v4679 = vadd.f32 0.0, %v4678
        %v4680 = vpop.f32.mrb[0].mxu0
        %4681 = vmatprep.mubr.f32.mxu0 %v4482
        %4682 = vmatmul.mubr.f32.gmra.mrb[0].mxu0 %v4382
        %v4683 = vpop.f32.mrb[0].mxu0
        %v4684 = vadd.f32 0.0, %v4683
        %v4685 = vpop.f32.mrb[0].mxu0
        %4686 = vmatprep.mubr.f32.mxu0 %v4485
        %4687 = vmatmul.mubr.f32.gmra.mrb[0].mxu0 %v4383
        %v4688 = vpop.f32.mrb[0].mxu0
        %v4689 = vadd.f32 0.0, %v4688
        %v4690 = vpop.f32.mrb[0].mxu0
        %4691 = vmatprep.mubr.f32.mxu0 %v4488
        %4692 = vmatmul.mubr.f32.gmra.mrb[0].mxu0 %v4384
        %v4693 = vpop.f32.mrb[0].mxu0
        %v4694 = vadd.f32 0.0, %v4693
        %v4695 = vpop.f32.mrb[0].mxu0
        %4696 = vmatprep.mubr.f32.mxu0 %v4491
        %4697 = vmatmul.mubr.f32.gmra.mrb[0].mxu0 %v4385
        %v4698 = vpop.f32.mrb[0].mxu0
        %v4699 = vadd.f32 0.0, %v4698
        %v4700 = vpop.f32.mrb[0].mxu0
        %4701 = vmatprep.mubr.f32.mxu0 %v4494
        %4702 = vmatmul.mubr.f32.gmra.mrb[0].mxu0 %v4386
        %v4703 = vpop.f32.mrb[0].mxu0
        %v4704 = vadd.f32 0.0, %v4703
        %v4705 = vpop.f32.mrb[0].mxu0
        %4706 = vmatprep.mubr.f32.mxu0 %v4497
        %4707 = vmatmul.mubr.f32.gmra.mrb[0].mxu0 %v4387
        %v4708 = vpop.f32.mrb[0].mxu0
        %v4709 = vadd.f32 0.0, %v4708
        %v4710 = vpop.f32.mrb[0].mxu0
        %4711 = vmatprep.mubr.f32.mxu0 %v4500
        %4712 = vmatmul.mubr.f32.gmra.mrb[0].mxu0 %v4388
        %v4713 = vpop.f32.mrb[0].mxu0
        %v4714 = vadd.f32 0.0, %v4713
        %v4715 = vpop.f32.mrb[0].mxu0
        %4716 = vmatprep.mubr.f32.mxu0 %v4503
        %4717 = vmatmul.mubr.f32.gmra.mrb[0].mxu0 %v4389
        %v4718 = vpop.f32.mrb[0].mxu0
        %v4719 = vadd.f32 0.0, %v4718
        %v4720 = vpop.f32.mrb[0].mxu0
        %4721 = vmatprep.mubr.f32.mxu0 %v4506
        %4722 = vmatmul.mubr.f32.gmra.mrb[0].mxu0 %v4390
        %v4723 = vpop.f32.mrb[0].mxu0
        %v4724 = vadd.f32 0.0, %v4723
        %v4725 = vpop.f32.mrb[0].mxu0
        %4726 = vmatprep.mubr.f32.mxu0 %v4509
        %4727 = vmatmul.mubr.f32.gmra.mrb[0].mxu0 %v4391
        %v4728 = vpop.f32.mrb[0].mxu0
        %v4729 = vadd.f32 0.0, %v4728
        %v4730 = vpop.f32.mrb[0].mxu0
        %4731 = vmatprep.mubr.f32.mxu0 %v4512
        %4732 = vmatmul.mubr.f32.gmra.mrb[0].mxu0 %v4392
        %v4733 = vpop.f32.mrb[0].mxu0
        %v4734 = vadd.f32 0.0, %v4733
        %v4735 = vpop.f32.mrb[0].mxu0
        %4736 = vmatprep.mubr.f32.mxu0 %v4515
        %4737 = vmatmul.mubr.f32.gmra.mrb[0].mxu0 %v4393
        %v4738 = vpop.f32.mrb[0].mxu0
        %v4739 = vadd.f32 0.0, %v4738
        %v4740 = vpop.f32.mrb[0].mxu0
        %4741 = vdwg.mxu0
        %v4742 = vadd.f32 %v3979, %v4584
        %v4743 = vadd.f32 %v3984, %v4589
        %v4744 = vadd.f32 %v3989, %v4594
        %v4745 = vadd.f32 %v3994, %v4599
        %v4746 = vadd.f32 %v3999, %v4604
        %v4747 = vadd.f32 %v4004, %v4609
        %v4748 = vadd.f32 %v4009, %v4614
        %v4749 = vadd.f32 %v4014, %v4619
        %v4750 = vadd.f32 %v4019, %v4624
        %v4751 = vadd.f32 %v4024, %v4629
        %v4752 = vadd.f32 %v4029, %v4634
        %v4753 = vadd.f32 %v4034, %v4639
        %v4754 = vadd.f32 %v4039, %v4644
        %v4755 = vadd.f32 %v4044, %v4649
        %v4756 = vadd.f32 %v4049, %v4654
        %v4757 = vadd.f32 %v4054, %v4659
        %v4758 = vadd.f32 %v4059, %v4664
        %v4759 = vadd.f32 %v4064, %v4669
        %v4760 = vadd.f32 %v4069, %v4674
        %v4761 = vadd.f32 %v4074, %v4679
        %v4762 = vadd.f32 %v4079, %v4684
        %v4763 = vadd.f32 %v4084, %v4689
        %v4764 = vadd.f32 %v4089, %v4694
        %v4765 = vadd.f32 %v4094, %v4699
        %v4766 = vadd.f32 %v4099, %v4704
        %v4767 = vadd.f32 %v4104, %v4709
        %v4768 = vadd.f32 %v4109, %v4714
        %v4769 = vadd.f32 %v4114, %v4719
        %v4770 = vadd.f32 %v4119, %v4724
        %v4771 = vadd.f32 %v4124, %v4729
        %v4772 = vadd.f32 %v4129, %v4734
        %v4773 = vadd.f32 %v4134, %v4739
        %s4774 = smul.u32 %s2924, 2
        %s4775 = scalar_lea.vmem %s4, %s4774
        %v4776 = vld [vmem:[%s4775] sm:$0x1]
        %v4778 = vlaneseq
        %v4779 = vshrl.u32 %v4778, 7
        %v4780 = vsub.s32 0, %v4779
        %v4781 = vrot.slane %v4776, %v4780
        %v4783 = vadd.f32 %v4742, %v4781
        %v4784 = vadd.f32 %v4743, %v4781
        %v4785 = vadd.f32 %v4744, %v4781
        %v4786 = vadd.f32 %v4745, %v4781
        %v4787 = vadd.f32 %v4746, %v4781
        %v4788 = vadd.f32 %v4747, %v4781
        %v4789 = vadd.f32 %v4748, %v4781
        %v4790 = vadd.f32 %v4749, %v4781
        %v4791 = vadd.f32 %v4750, %v4781
        %v4792 = vadd.f32 %v4751, %v4781
        %v4793 = vadd.f32 %v4752, %v4781
        %v4794 = vadd.f32 %v4753, %v4781
        %v4795 = vadd.f32 %v4754, %v4781
        %v4796 = vadd.f32 %v4755, %v4781
        %v4797 = vadd.f32 %v4756, %v4781
        %v4798 = vadd.f32 %v4757, %v4781
        %v4799 = vadd.f32 %v4758, %v4781
        %v4800 = vadd.f32 %v4759, %v4781
        %v4801 = vadd.f32 %v4760, %v4781
        %v4802 = vadd.f32 %v4761, %v4781
        %v4803 = vadd.f32 %v4762, %v4781
        %v4804 = vadd.f32 %v4763, %v4781
        %v4805 = vadd.f32 %v4764, %v4781
        %v4806 = vadd.f32 %v4765, %v4781
        %v4807 = vadd.f32 %v4766, %v4781
        %v4808 = vadd.f32 %v4767, %v4781
        %v4809 = vadd.f32 %v4768, %v4781
        %v4810 = vadd.f32 %v4769, %v4781
        %v4811 = vadd.f32 %v4770, %v4781
        %v4812 = vadd.f32 %v4771, %v4781
        %v4813 = vadd.f32 %v4772, %v4781
        %v4814 = vadd.f32 %v4773, %v4781
        %v4815 = vmax.f32 %v4783, 0.0
        %v4816 = vmax.f32 %v4784, 0.0
        %v4817 = vmax.f32 %v4785, 0.0
        %v4818 = vmax.f32 %v4786, 0.0
        %v4819 = vmax.f32 %v4787, 0.0
        %v4820 = vmax.f32 %v4788, 0.0
        %v4821 = vmax.f32 %v4789, 0.0
        %v4822 = vmax.f32 %v4790, 0.0
        %v4823 = vmax.f32 %v4791, 0.0
        %v4824 = vmax.f32 %v4792, 0.0
        %v4825 = vmax.f32 %v4793, 0.0
        %v4826 = vmax.f32 %v4794, 0.0
        %v4827 = vmax.f32 %v4795, 0.0
        %v4828 = vmax.f32 %v4796, 0.0
        %v4829 = vmax.f32 %v4797, 0.0
        %v4830 = vmax.f32 %v4798, 0.0
        %v4831 = vmax.f32 %v4799, 0.0
        %v4832 = vmax.f32 %v4800, 0.0
        %v4833 = vmax.f32 %v4801, 0.0
        %v4834 = vmax.f32 %v4802, 0.0
        %v4835 = vmax.f32 %v4803, 0.0
        %v4836 = vmax.f32 %v4804, 0.0
        %v4837 = vmax.f32 %v4805, 0.0
        %v4838 = vmax.f32 %v4806, 0.0
        %v4839 = vmax.f32 %v4807, 0.0
        %v4840 = vmax.f32 %v4808, 0.0
        %v4841 = vmax.f32 %v4809, 0.0
        %v4842 = vmax.f32 %v4810, 0.0
        %v4843 = vmax.f32 %v4811, 0.0
        %v4844 = vmax.f32 %v4812, 0.0
        %v4845 = vmax.f32 %v4813, 0.0
        %v4846 = vmax.f32 %v4814, 0.0
        %s4847 = scalar_lea.vmem [#allocation4], 32
        %4848 = vst.msk [vmem:[%s4847 + $0x8] sm:$0xff] %vm352, %v4815
        %4849 = vst.msk [vmem:[%s4847 + $0x10] sm:$0xff] %vm352, %v4816
        %4850 = vst.msk [vmem:[%s4847 + $0x28] sm:$0xff] %vm352, %v4817
        %4851 = vst.msk [vmem:[%s4847 + $0x30] sm:$0xff] %vm352, %v4818
        %4852 = vst.msk [vmem:[%s4847 + $0x48] sm:$0xff] %vm352, %v4819
        %4853 = vst.msk [vmem:[%s4847 + $0x50] sm:$0xff] %vm352, %v4820
        %4854 = vst.msk [vmem:[%s4847 + $0x68] sm:$0xff] %vm352, %v4821
        %4855 = vst.msk [vmem:[%s4847 + $0x70] sm:$0xff] %vm352, %v4822
        %4856 = vst.msk [vmem:[%s4847 + $0x88] sm:$0xff] %vm352, %v4823
        %4857 = vst.msk [vmem:[%s4847 + $0x90] sm:$0xff] %vm352, %v4824
        %4858 = vst.msk [vmem:[%s4847 + $0xa8] sm:$0xff] %vm352, %v4825
        %4859 = vst.msk [vmem:[%s4847 + $0xb0] sm:$0xff] %vm352, %v4826
        %4860 = vst.msk [vmem:[%s4847 + $0xc8] sm:$0xff] %vm352, %v4827
        %4861 = vst.msk [vmem:[%s4847 + $0xd0] sm:$0xff] %vm352, %v4828
        %4862 = vst.msk [vmem:[%s4847 + $0xe8] sm:$0xff] %vm352, %v4829
        %4863 = vst.msk [vmem:[%s4847 + $0xf0] sm:$0xff] %vm352, %v4830
        %4864 = vst.msk [vmem:[%s4847 + $0x108] sm:$0xff] %vm352, %v4831
        %4865 = vst.msk [vmem:[%s4847 + $0x110] sm:$0xff] %vm352, %v4832
        %4866 = vst.msk [vmem:[%s4847 + $0x128] sm:$0xff] %vm352, %v4833
        %4867 = vst.msk [vmem:[%s4847 + $0x130] sm:$0xff] %vm352, %v4834
        %4868 = vst.msk [vmem:[%s4847 + $0x148] sm:$0xff] %vm352, %v4835
        %4869 = vst.msk [vmem:[%s4847 + $0x150] sm:$0xff] %vm352, %v4836
        %4870 = vst.msk [vmem:[%s4847 + $0x168] sm:$0xff] %vm352, %v4837
        %4871 = vst.msk [vmem:[%s4847 + $0x170] sm:$0xff] %vm352, %v4838
        %4872 = vst.msk [vmem:[%s4847 + $0x188] sm:$0xff] %vm352, %v4839
        %4873 = vst.msk [vmem:[%s4847 + $0x190] sm:$0xff] %vm352, %v4840
        %4874 = vst.msk [vmem:[%s4847 + $0x1a8] sm:$0xff] %vm352, %v4841
        %4875 = vst.msk [vmem:[%s4847 + $0x1b0] sm:$0xff] %vm352, %v4842
        %4876 = vst.msk [vmem:[%s4847 + $0x1c8] sm:$0xff] %vm352, %v4843
        %4877 = vst.msk [vmem:[%s4847 + $0x1d0] sm:$0xff] %vm352, %v4844
        %4878 = vst.msk [vmem:[%s4847 + $0x1e8] sm:$0xff] %vm352, %v4845
        %4879 = vst.msk [vmem:[%s4847 + $0x1f0] sm:$0xff] %vm352, %v4846
        %s4880 = sadd.s32 %s2929, 3
        %v4881 = vld [vmem:[#allocation4 + $0x7] sm:$0xff]
        %v4882 = vld [vmem:[#allocation4 + $0xf] sm:$0xff]
        %v4883 = vld [vmem:[#allocation4 + $0x27] sm:$0xff]
        %v4884 = vld [vmem:[#allocation4 + $0x2f] sm:$0xff]
        %v4885 = vld [vmem:[#allocation4 + $0x47] sm:$0xff]
        %v4886 = vld [vmem:[#allocation4 + $0x4f] sm:$0xff]
        %v4887 = vld [vmem:[#allocation4 + $0x67] sm:$0xff]
        %v4888 = vld [vmem:[#allocation4 + $0x6f] sm:$0xff]
        %v4889 = vld [vmem:[#allocation4 + $0x87] sm:$0xff]
        %v4890 = vld [vmem:[#allocation4 + $0x8f] sm:$0xff]
        %v4891 = vld [vmem:[#allocation4 + $0xa7] sm:$0xff]
        %v4892 = vld [vmem:[#allocation4 + $0xaf] sm:$0xff]
        %v4893 = vld [vmem:[#allocation4 + $0xc7] sm:$0xff]
        %v4894 = vld [vmem:[#allocation4 + $0xcf] sm:$0xff]
        %v4895 = vld [vmem:[#allocation4 + $0xe7] sm:$0xff]
        %v4896 = vld [vmem:[#allocation4 + $0xef] sm:$0xff]
        %v4897 = vld [vmem:[#allocation4 + $0x107] sm:$0xff]
        %v4898 = vld [vmem:[#allocation4 + $0x10f] sm:$0xff]
        %v4899 = vld [vmem:[#allocation4 + $0x127] sm:$0xff]
        %v4900 = vld [vmem:[#allocation4 + $0x12f] sm:$0xff]
        %v4901 = vld [vmem:[#allocation4 + $0x147] sm:$0xff]
        %v4902 = vld [vmem:[#allocation4 + $0x14f] sm:$0xff]
        %v4903 = vld [vmem:[#allocation4 + $0x167] sm:$0xff]
        %v4904 = vld [vmem:[#allocation4 + $0x16f] sm:$0xff]
        %v4905 = vld [vmem:[#allocation4 + $0x187] sm:$0xff]
        %v4906 = vld [vmem:[#allocation4 + $0x18f] sm:$0xff]
        %v4907 = vld [vmem:[#allocation4 + $0x1a7] sm:$0xff]
        %v4908 = vld [vmem:[#allocation4 + $0x1af] sm:$0xff]
        %v4909 = vld [vmem:[#allocation4 + $0x1c7] sm:$0xff]
        %v4910 = vld [vmem:[#allocation4 + $0x1cf] sm:$0xff]
        %v4911 = vld [vmem:[#allocation4 + $0x1e7] sm:$0xff]
        %v4912 = vld [vmem:[#allocation4 + $0x1ef] sm:$0xff]
        %v4913 = vld [vmem:[#allocation4 + $0x8] sm:$0xff]
        %v4914 = vld [vmem:[#allocation4 + $0x10] sm:$0xff]
        %v4915 = vld [vmem:[#allocation4 + $0x28] sm:$0xff]
        %v4916 = vld [vmem:[#allocation4 + $0x30] sm:$0xff]
        %v4917 = vld [vmem:[#allocation4 + $0x48] sm:$0xff]
        %v4918 = vld [vmem:[#allocation4 + $0x50] sm:$0xff]
        %v4919 = vld [vmem:[#allocation4 + $0x68] sm:$0xff]
        %v4920 = vld [vmem:[#allocation4 + $0x70] sm:$0xff]
        %v4921 = vld [vmem:[#allocation4 + $0x88] sm:$0xff]
        %v4922 = vld [vmem:[#allocation4 + $0x90] sm:$0xff]
        %v4923 = vld [vmem:[#allocation4 + $0xa8] sm:$0xff]
        %v4924 = vld [vmem:[#allocation4 + $0xb0] sm:$0xff]
        %v4925 = vld [vmem:[#allocation4 + $0xc8] sm:$0xff]
        %v4926 = vld [vmem:[#allocation4 + $0xd0] sm:$0xff]
        %v4927 = vld [vmem:[#allocation4 + $0xe8] sm:$0xff]
        %v4928 = vld [vmem:[#allocation4 + $0xf0] sm:$0xff]
        %v4929 = vld [vmem:[#allocation4 + $0x108] sm:$0xff]
        %v4930 = vld [vmem:[#allocation4 + $0x110] sm:$0xff]
        %v4931 = vld [vmem:[#allocation4 + $0x128] sm:$0xff]
        %v4932 = vld [vmem:[#allocation4 + $0x130] sm:$0xff]
        %v4933 = vld [vmem:[#allocation4 + $0x148] sm:$0xff]
        %v4934 = vld [vmem:[#allocation4 + $0x150] sm:$0xff]
        %v4935 = vld [vmem:[#allocation4 + $0x168] sm:$0xff]
        %v4936 = vld [vmem:[#allocation4 + $0x170] sm:$0xff]
        %v4937 = vld [vmem:[#allocation4 + $0x188] sm:$0xff]
        %v4938 = vld [vmem:[#allocation4 + $0x190] sm:$0xff]
        %v4939 = vld [vmem:[#allocation4 + $0x1a8] sm:$0xff]
        %v4940 = vld [vmem:[#allocation4 + $0x1b0] sm:$0xff]
        %v4941 = vld [vmem:[#allocation4 + $0x1c8] sm:$0xff]
        %v4942 = vld [vmem:[#allocation4 + $0x1d0] sm:$0xff]
        %v4943 = vld [vmem:[#allocation4 + $0x1e8] sm:$0xff]
        %v4944 = vld [vmem:[#allocation4 + $0x1f0] sm:$0xff]
        %v4945 = vld [vmem:[#allocation4 + $0x9] sm:$0xff]
        %v4946 = vld [vmem:[#allocation4 + $0x11] sm:$0xff]
        %v4947 = vld [vmem:[#allocation4 + $0x29] sm:$0xff]
        %v4948 = vld [vmem:[#allocation4 + $0x31] sm:$0xff]
        %v4949 = vld [vmem:[#allocation4 + $0x49] sm:$0xff]
        %v4950 = vld [vmem:[#allocation4 + $0x51] sm:$0xff]
        %v4951 = vld [vmem:[#allocation4 + $0x69] sm:$0xff]
        %v4952 = vld [vmem:[#allocation4 + $0x71] sm:$0xff]
        %v4953 = vld [vmem:[#allocation4 + $0x89] sm:$0xff]
        %v4954 = vld [vmem:[#allocation4 + $0x91] sm:$0xff]
        %v4955 = vld [vmem:[#allocation4 + $0xa9] sm:$0xff]
        %v4956 = vld [vmem:[#allocation4 + $0xb1] sm:$0xff]
        %v4957 = vld [vmem:[#allocation4 + $0xc9] sm:$0xff]
        %v4958 = vld [vmem:[#allocation4 + $0xd1] sm:$0xff]
        %v4959 = vld [vmem:[#allocation4 + $0xe9] sm:$0xff]
        %v4960 = vld [vmem:[#allocation4 + $0xf1] sm:$0xff]
        %v4961 = vld [vmem:[#allocation4 + $0x109] sm:$0xff]
        %v4962 = vld [vmem:[#allocation4 + $0x111] sm:$0xff]
        %v4963 = vld [vmem:[#allocation4 + $0x129] sm:$0xff]
        %v4964 = vld [vmem:[#allocation4 + $0x131] sm:$0xff]
        %v4965 = vld [vmem:[#allocation4 + $0x149] sm:$0xff]
        %v4966 = vld [vmem:[#allocation4 + $0x151] sm:$0xff]
        %v4967 = vld [vmem:[#allocation4 + $0x169] sm:$0xff]
        %v4968 = vld [vmem:[#allocation4 + $0x171] sm:$0xff]
        %v4969 = vld [vmem:[#allocation4 + $0x189] sm:$0xff]
        %v4970 = vld [vmem:[#allocation4 + $0x191] sm:$0xff]
        %v4971 = vld [vmem:[#allocation4 + $0x1a9] sm:$0xff]
        %v4972 = vld [vmem:[#allocation4 + $0x1b1] sm:$0xff]
        %v4973 = vld [vmem:[#allocation4 + $0x1c9] sm:$0xff]
        %v4974 = vld [vmem:[#allocation4 + $0x1d1] sm:$0xff]
        %v4975 = vld [vmem:[#allocation4 + $0x1e9] sm:$0xff]
        %v4976 = vld [vmem:[#allocation4 + $0x1f1] sm:$0xff]
        %5009 = vrot.lane.b32.xlu0 %v4913, 64
        %v5010 = vpop.permute.xlu0 %5009
        %5011 = vrot.lane.b32.xlu0 %v4914, 64
        %v5012 = vpop.permute.xlu0 %5011
        %5013 = vrot.lane.b32.xlu0 %v4915, 64
        %v5014 = vpop.permute.xlu0 %5013
        %5015 = vrot.lane.b32.xlu0 %v4916, 64
        %v5016 = vpop.permute.xlu0 %5015
        %5017 = vrot.lane.b32.xlu0 %v4917, 64
        %v5018 = vpop.permute.xlu0 %5017
        %5019 = vrot.lane.b32.xlu0 %v4918, 64
        %v5020 = vpop.permute.xlu0 %5019
        %5021 = vrot.lane.b32.xlu0 %v4919, 64
        %v5022 = vpop.permute.xlu0 %5021
        %5023 = vrot.lane.b32.xlu0 %v4920, 64
        %v5024 = vpop.permute.xlu0 %5023
        %5025 = vrot.lane.b32.xlu0 %v4921, 64
        %v5026 = vpop.permute.xlu0 %5025
        %5027 = vrot.lane.b32.xlu0 %v4922, 64
        %v5028 = vpop.permute.xlu0 %5027
        %5029 = vrot.lane.b32.xlu0 %v4923, 64
        %v5030 = vpop.permute.xlu0 %5029
        %5031 = vrot.lane.b32.xlu0 %v4924, 64
        %v5032 = vpop.permute.xlu0 %5031
        %5033 = vrot.lane.b32.xlu0 %v4925, 64
        %v5034 = vpop.permute.xlu0 %5033
        %5035 = vrot.lane.b32.xlu0 %v4926, 64
        %v5036 = vpop.permute.xlu0 %5035
        %5037 = vrot.lane.b32.xlu0 %v4927, 64
        %v5038 = vpop.permute.xlu0 %5037
        %5039 = vrot.lane.b32.xlu0 %v4928, 64
        %v5040 = vpop.permute.xlu0 %5039
        %5041 = vrot.lane.b32.xlu0 %v4929, 64
        %v5042 = vpop.permute.xlu0 %5041
        %5043 = vrot.lane.b32.xlu0 %v4930, 64
        %v5044 = vpop.permute.xlu0 %5043
        %5045 = vrot.lane.b32.xlu0 %v4931, 64
        %v5046 = vpop.permute.xlu0 %5045
        %5047 = vrot.lane.b32.xlu0 %v4932, 64
        %v5048 = vpop.permute.xlu0 %5047
        %5049 = vrot.lane.b32.xlu0 %v4933, 64
        %v5050 = vpop.permute.xlu0 %5049
        %5051 = vrot.lane.b32.xlu0 %v4934, 64
        %v5052 = vpop.permute.xlu0 %5051
        %5053 = vrot.lane.b32.xlu0 %v4935, 64
        %v5054 = vpop.permute.xlu0 %5053
        %5055 = vrot.lane.b32.xlu0 %v4936, 64
        %v5056 = vpop.permute.xlu0 %5055
        %5057 = vrot.lane.b32.xlu0 %v4937, 64
        %v5058 = vpop.permute.xlu0 %5057
        %5059 = vrot.lane.b32.xlu0 %v4938, 64
        %v5060 = vpop.permute.xlu0 %5059
        %5061 = vrot.lane.b32.xlu0 %v4939, 64
        %v5062 = vpop.permute.xlu0 %5061
        %5063 = vrot.lane.b32.xlu0 %v4940, 64
        %v5064 = vpop.permute.xlu0 %5063
        %5065 = vrot.lane.b32.xlu0 %v4941, 64
        %v5066 = vpop.permute.xlu0 %5065
        %5067 = vrot.lane.b32.xlu0 %v4942, 64
        %v5068 = vpop.permute.xlu0 %5067
        %5069 = vrot.lane.b32.xlu0 %v4943, 64
        %v5070 = vpop.permute.xlu0 %5069
        %5071 = vrot.lane.b32.xlu0 %v4944, 64
        %v5072 = vpop.permute.xlu0 %5071
        %v5105 = vsel %vm352, %v4881, %v5010
        %v5106 = vsel %vm352, %v4882, %v5012
        %v5107 = vsel %vm352, %v4883, %v5014
        %v5108 = vsel %vm352, %v4884, %v5016
        %v5109 = vsel %vm352, %v4885, %v5018
        %v5110 = vsel %vm352, %v4886, %v5020
        %v5111 = vsel %vm352, %v4887, %v5022
        %v5112 = vsel %vm352, %v4888, %v5024
        %v5113 = vsel %vm352, %v4889, %v5026
        %v5114 = vsel %vm352, %v4890, %v5028
        %v5115 = vsel %vm352, %v4891, %v5030
        %v5116 = vsel %vm352, %v4892, %v5032
        %v5117 = vsel %vm352, %v4893, %v5034
        %v5118 = vsel %vm352, %v4894, %v5036
        %v5119 = vsel %vm352, %v4895, %v5038
        %v5120 = vsel %vm352, %v4896, %v5040
        %v5121 = vsel %vm352, %v4897, %v5042
        %v5122 = vsel %vm352, %v4898, %v5044
        %v5123 = vsel %vm352, %v4899, %v5046
        %v5124 = vsel %vm352, %v4900, %v5048
        %v5125 = vsel %vm352, %v4901, %v5050
        %v5126 = vsel %vm352, %v4902, %v5052
        %v5127 = vsel %vm352, %v4903, %v5054
        %v5128 = vsel %vm352, %v4904, %v5056
        %v5129 = vsel %vm352, %v4905, %v5058
        %v5130 = vsel %vm352, %v4906, %v5060
        %v5131 = vsel %vm352, %v4907, %v5062
        %v5132 = vsel %vm352, %v4908, %v5064
        %v5133 = vsel %vm352, %v4909, %v5066
        %v5134 = vsel %vm352, %v4910, %v5068
        %v5135 = vsel %vm352, %v4911, %v5070
        %v5136 = vsel %vm352, %v4912, %v5072
        %s5137 = smul.u32 %s4880, 192
        %s5138 = scalar_lea.vmem %s3, %s5137
        %v5139 = vld [vmem:[%s5138] sm:$0xff]
        %v5140 = vld [vmem:[%s5138 + $0x8] sm:$0xff]
        %v5141 = vld [vmem:[%s5138 + $0x10] sm:$0xff]
        %v5142 = vld [vmem:[%s5138 + $0x18] sm:$0xff]
        %v5143 = vld [vmem:[%s5138 + $0x20] sm:$0xff]
        %v5144 = vld [vmem:[%s5138 + $0x28] sm:$0xff]
        %v5145 = vld [vmem:[%s5138 + $0x30] sm:$0xff]
        %v5146 = vld [vmem:[%s5138 + $0x38] sm:$0xff]
        %v5147 = vld [vmem:[%s5138 + $0x40] sm:$0xff]
        %v5148 = vld [vmem:[%s5138 + $0x48] sm:$0xff]
        %v5149 = vld [vmem:[%s5138 + $0x50] sm:$0xff]
        %v5150 = vld [vmem:[%s5138 + $0x58] sm:$0xff]
        %v5151 = vld [vmem:[%s5138 + $0x60] sm:$0xff]
        %v5152 = vld [vmem:[%s5138 + $0x68] sm:$0xff]
        %v5153 = vld [vmem:[%s5138 + $0x70] sm:$0xff]
        %v5154 = vld [vmem:[%s5138 + $0x78] sm:$0xff]
        %v5155 = vld [vmem:[%s5138 + $0x80] sm:$0xff]
        %v5156 = vld [vmem:[%s5138 + $0x88] sm:$0xff]
        %v5157 = vld [vmem:[%s5138 + $0x90] sm:$0xff]
        %v5158 = vld [vmem:[%s5138 + $0x98] sm:$0xff]
        %v5159 = vld [vmem:[%s5138 + $0xa0] sm:$0xff]
        %v5160 = vld [vmem:[%s5138 + $0xa8] sm:$0xff]
        %v5161 = vld [vmem:[%s5138 + $0xb0] sm:$0xff]
        %v5162 = vld [vmem:[%s5138 + $0xb8] sm:$0xff]
        %v5163 = vld [vmem:[%s4847 + $0x7] sm:$0xff]
        %v5164 = vld [vmem:[%s4847 + $0xf] sm:$0xff]
        %v5165 = vld [vmem:[%s4847 + $0x27] sm:$0xff]
        %v5166 = vld [vmem:[%s4847 + $0x2f] sm:$0xff]
        %v5167 = vld [vmem:[%s4847 + $0x47] sm:$0xff]
        %v5168 = vld [vmem:[%s4847 + $0x4f] sm:$0xff]
        %v5169 = vld [vmem:[%s4847 + $0x67] sm:$0xff]
        %v5170 = vld [vmem:[%s4847 + $0x6f] sm:$0xff]
        %v5171 = vld [vmem:[%s4847 + $0x87] sm:$0xff]
        %v5172 = vld [vmem:[%s4847 + $0x8f] sm:$0xff]
        %v5173 = vld [vmem:[%s4847 + $0xa7] sm:$0xff]
        %v5174 = vld [vmem:[%s4847 + $0xaf] sm:$0xff]
        %v5175 = vld [vmem:[%s4847 + $0xc7] sm:$0xff]
        %v5176 = vld [vmem:[%s4847 + $0xcf] sm:$0xff]
        %v5177 = vld [vmem:[%s4847 + $0xe7] sm:$0xff]
        %v5178 = vld [vmem:[%s4847 + $0xef] sm:$0xff]
        %v5179 = vld [vmem:[%s4847 + $0x107] sm:$0xff]
        %v5180 = vld [vmem:[%s4847 + $0x10f] sm:$0xff]
        %v5181 = vld [vmem:[%s4847 + $0x127] sm:$0xff]
        %v5182 = vld [vmem:[%s4847 + $0x12f] sm:$0xff]
        %v5183 = vld [vmem:[%s4847 + $0x147] sm:$0xff]
        %v5184 = vld [vmem:[%s4847 + $0x14f] sm:$0xff]
        %v5185 = vld [vmem:[%s4847 + $0x167] sm:$0xff]
        %v5186 = vld [vmem:[%s4847 + $0x16f] sm:$0xff]
        %v5187 = vld [vmem:[%s4847 + $0x187] sm:$0xff]
        %v5188 = vld [vmem:[%s4847 + $0x18f] sm:$0xff]
        %v5189 = vld [vmem:[%s4847 + $0x1a7] sm:$0xff]
        %v5190 = vld [vmem:[%s4847 + $0x1af] sm:$0xff]
        %v5191 = vld [vmem:[%s4847 + $0x1c7] sm:$0xff]
        %v5192 = vld [vmem:[%s4847 + $0x1cf] sm:$0xff]
        %v5193 = vld [vmem:[%s4847 + $0x1e7] sm:$0xff]
        %v5194 = vld [vmem:[%s4847 + $0x1ef] sm:$0xff]
        %v5195 = vld [vmem:[%s4847 + $0x8] sm:$0xff]
        %v5196 = vld [vmem:[%s4847 + $0x10] sm:$0xff]
        %v5197 = vld [vmem:[%s4847 + $0x28] sm:$0xff]
        %v5198 = vld [vmem:[%s4847 + $0x30] sm:$0xff]
        %v5199 = vld [vmem:[%s4847 + $0x48] sm:$0xff]
        %v5200 = vld [vmem:[%s4847 + $0x50] sm:$0xff]
        %v5201 = vld [vmem:[%s4847 + $0x68] sm:$0xff]
        %v5202 = vld [vmem:[%s4847 + $0x70] sm:$0xff]
        %v5203 = vld [vmem:[%s4847 + $0x88] sm:$0xff]
        %v5204 = vld [vmem:[%s4847 + $0x90] sm:$0xff]
        %v5205 = vld [vmem:[%s4847 + $0xa8] sm:$0xff]
        %v5206 = vld [vmem:[%s4847 + $0xb0] sm:$0xff]
        %v5207 = vld [vmem:[%s4847 + $0xc8] sm:$0xff]
        %v5208 = vld [vmem:[%s4847 + $0xd0] sm:$0xff]
        %v5209 = vld [vmem:[%s4847 + $0xe8] sm:$0xff]
        %v5210 = vld [vmem:[%s4847 + $0xf0] sm:$0xff]
        %v5211 = vld [vmem:[%s4847 + $0x108] sm:$0xff]
        %v5212 = vld [vmem:[%s4847 + $0x110] sm:$0xff]
        %v5213 = vld [vmem:[%s4847 + $0x128] sm:$0xff]
        %v5214 = vld [vmem:[%s4847 + $0x130] sm:$0xff]
        %v5215 = vld [vmem:[%s4847 + $0x148] sm:$0xff]
        %v5216 = vld [vmem:[%s4847 + $0x150] sm:$0xff]
        %v5217 = vld [vmem:[%s4847 + $0x168] sm:$0xff]
        %v5218 = vld [vmem:[%s4847 + $0x170] sm:$0xff]
        %v5219 = vld [vmem:[%s4847 + $0x188] sm:$0xff]
        %v5220 = vld [vmem:[%s4847 + $0x190] sm:$0xff]
        %v5221 = vld [vmem:[%s4847 + $0x1a8] sm:$0xff]
        %v5222 = vld [vmem:[%s4847 + $0x1b0] sm:$0xff]
        %v5223 = vld [vmem:[%s4847 + $0x1c8] sm:$0xff]
        %v5224 = vld [vmem:[%s4847 + $0x1d0] sm:$0xff]
        %v5225 = vld [vmem:[%s4847 + $0x1e8] sm:$0xff]
        %v5226 = vld [vmem:[%s4847 + $0x1f0] sm:$0xff]
        %v5227 = vld [vmem:[%s4847 + $0x9] sm:$0xff]
        %v5228 = vld [vmem:[%s4847 + $0x11] sm:$0xff]
        %v5229 = vld [vmem:[%s4847 + $0x29] sm:$0xff]
        %v5230 = vld [vmem:[%s4847 + $0x31] sm:$0xff]
        %v5231 = vld [vmem:[%s4847 + $0x49] sm:$0xff]
        %v5232 = vld [vmem:[%s4847 + $0x51] sm:$0xff]
        %v5233 = vld [vmem:[%s4847 + $0x69] sm:$0xff]
        %v5234 = vld [vmem:[%s4847 + $0x71] sm:$0xff]
        %v5235 = vld [vmem:[%s4847 + $0x89] sm:$0xff]
        %v5236 = vld [vmem:[%s4847 + $0x91] sm:$0xff]
        %v5237 = vld [vmem:[%s4847 + $0xa9] sm:$0xff]
        %v5238 = vld [vmem:[%s4847 + $0xb1] sm:$0xff]
        %v5239 = vld [vmem:[%s4847 + $0xc9] sm:$0xff]
        %v5240 = vld [vmem:[%s4847 + $0xd1] sm:$0xff]
        %v5241 = vld [vmem:[%s4847 + $0xe9] sm:$0xff]
        %v5242 = vld [vmem:[%s4847 + $0xf1] sm:$0xff]
        %v5243 = vld [vmem:[%s4847 + $0x109] sm:$0xff]
        %v5244 = vld [vmem:[%s4847 + $0x111] sm:$0xff]
        %v5245 = vld [vmem:[%s4847 + $0x129] sm:$0xff]
        %v5246 = vld [vmem:[%s4847 + $0x131] sm:$0xff]
        %v5247 = vld [vmem:[%s4847 + $0x149] sm:$0xff]
        %v5248 = vld [vmem:[%s4847 + $0x151] sm:$0xff]
        %v5249 = vld [vmem:[%s4847 + $0x169] sm:$0xff]
        %v5250 = vld [vmem:[%s4847 + $0x171] sm:$0xff]
        %v5251 = vld [vmem:[%s4847 + $0x189] sm:$0xff]
        %v5252 = vld [vmem:[%s4847 + $0x191] sm:$0xff]
        %v5253 = vld [vmem:[%s4847 + $0x1a9] sm:$0xff]
        %v5254 = vld [vmem:[%s4847 + $0x1b1] sm:$0xff]
        %v5255 = vld [vmem:[%s4847 + $0x1c9] sm:$0xff]
        %v5256 = vld [vmem:[%s4847 + $0x1d1] sm:$0xff]
        %v5257 = vld [vmem:[%s4847 + $0x1e9] sm:$0xff]
        %v5258 = vld [vmem:[%s4847 + $0x1f1] sm:$0xff]
        %5291 = vrot.lane.b32.xlu0 %v5195, 64
        %v5292 = vpop.permute.xlu0 %5291
        %5293 = vrot.lane.b32.xlu0 %v5196, 64
        %v5294 = vpop.permute.xlu0 %5293
        %5295 = vrot.lane.b32.xlu0 %v5197, 64
        %v5296 = vpop.permute.xlu0 %5295
        %5297 = vrot.lane.b32.xlu0 %v5198, 64
        %v5298 = vpop.permute.xlu0 %5297
        %5299 = vrot.lane.b32.xlu0 %v5199, 64
        %v5300 = vpop.permute.xlu0 %5299
        %5301 = vrot.lane.b32.xlu0 %v5200, 64
        %v5302 = vpop.permute.xlu0 %5301
        %5303 = vrot.lane.b32.xlu0 %v5201, 64
        %v5304 = vpop.permute.xlu0 %5303
        %5305 = vrot.lane.b32.xlu0 %v5202, 64
        %v5306 = vpop.permute.xlu0 %5305
        %5307 = vrot.lane.b32.xlu0 %v5203, 64
        %v5308 = vpop.permute.xlu0 %5307
        %5309 = vrot.lane.b32.xlu0 %v5204, 64
        %v5310 = vpop.permute.xlu0 %5309
        %5311 = vrot.lane.b32.xlu0 %v5205, 64
        %v5312 = vpop.permute.xlu0 %5311
        %5313 = vrot.lane.b32.xlu0 %v5206, 64
        %v5314 = vpop.permute.xlu0 %5313
        %5315 = vrot.lane.b32.xlu0 %v5207, 64
        %v5316 = vpop.permute.xlu0 %5315
        %5317 = vrot.lane.b32.xlu0 %v5208, 64
        %v5318 = vpop.permute.xlu0 %5317
        %5319 = vrot.lane.b32.xlu0 %v5209, 64
        %v5320 = vpop.permute.xlu0 %5319
        %5321 = vrot.lane.b32.xlu0 %v5210, 64
        %v5322 = vpop.permute.xlu0 %5321
        %5323 = vrot.lane.b32.xlu0 %v5211, 64
        %v5324 = vpop.permute.xlu0 %5323
        %5325 = vrot.lane.b32.xlu0 %v5212, 64
        %v5326 = vpop.permute.xlu0 %5325
        %5327 = vrot.lane.b32.xlu0 %v5213, 64
        %v5328 = vpop.permute.xlu0 %5327
        %5329 = vrot.lane.b32.xlu0 %v5214, 64
        %v5330 = vpop.permute.xlu0 %5329
        %5331 = vrot.lane.b32.xlu0 %v5215, 64
        %v5332 = vpop.permute.xlu0 %5331
        %5333 = vrot.lane.b32.xlu0 %v5216, 64
        %v5334 = vpop.permute.xlu0 %5333
        %5335 = vrot.lane.b32.xlu0 %v5217, 64
        %v5336 = vpop.permute.xlu0 %5335
        %5337 = vrot.lane.b32.xlu0 %v5218, 64
        %v5338 = vpop.permute.xlu0 %5337
        %5339 = vrot.lane.b32.xlu0 %v5219, 64
        %v5340 = vpop.permute.xlu0 %5339
        %5341 = vrot.lane.b32.xlu0 %v5220, 64
        %v5342 = vpop.permute.xlu0 %5341
        %5343 = vrot.lane.b32.xlu0 %v5221, 64
        %v5344 = vpop.permute.xlu0 %5343
        %5345 = vrot.lane.b32.xlu0 %v5222, 64
        %v5346 = vpop.permute.xlu0 %5345
        %5347 = vrot.lane.b32.xlu0 %v5223, 64
        %v5348 = vpop.permute.xlu0 %5347
        %5349 = vrot.lane.b32.xlu0 %v5224, 64
        %v5350 = vpop.permute.xlu0 %5349
        %5351 = vrot.lane.b32.xlu0 %v5225, 64
        %v5352 = vpop.permute.xlu0 %5351
        %5353 = vrot.lane.b32.xlu0 %v5226, 64
        %v5354 = vpop.permute.xlu0 %5353
        %v5387 = vsel %vm352, %v5163, %v5292
        %v5388 = vsel %vm352, %v5164, %v5294
        %v5389 = vsel %vm352, %v5165, %v5296
        %v5390 = vsel %vm352, %v5166, %v5298
        %v5391 = vsel %vm352, %v5167, %v5300
        %v5392 = vsel %vm352, %v5168, %v5302
        %v5393 = vsel %vm352, %v5169, %v5304
        %v5394 = vsel %vm352, %v5170, %v5306
        %v5395 = vsel %vm352, %v5171, %v5308
        %v5396 = vsel %vm352, %v5172, %v5310
        %v5397 = vsel %vm352, %v5173, %v5312
        %v5398 = vsel %vm352, %v5174, %v5314
        %v5399 = vsel %vm352, %v5175, %v5316
        %v5400 = vsel %vm352, %v5176, %v5318
        %v5401 = vsel %vm352, %v5177, %v5320
        %v5402 = vsel %vm352, %v5178, %v5322
        %v5403 = vsel %vm352, %v5179, %v5324
        %v5404 = vsel %vm352, %v5180, %v5326
        %v5405 = vsel %vm352, %v5181, %v5328
        %v5406 = vsel %vm352, %v5182, %v5330
        %v5407 = vsel %vm352, %v5183, %v5332
        %v5408 = vsel %vm352, %v5184, %v5334
        %v5409 = vsel %vm352, %v5185, %v5336
        %v5410 = vsel %vm352, %v5186, %v5338
        %v5411 = vsel %vm352, %v5187, %v5340
        %v5412 = vsel %vm352, %v5188, %v5342
        %v5413 = vsel %vm352, %v5189, %v5344
        %v5414 = vsel %vm352, %v5190, %v5346
        %v5415 = vsel %vm352, %v5191, %v5348
        %v5416 = vsel %vm352, %v5192, %v5350
        %v5417 = vsel %vm352, %v5193, %v5352
        %v5418 = vsel %vm352, %v5194, %v5354
        %s5419 = sadd.s32 %s2929, 4
        %s5420 = smul.u32 %s5419, 192
        %s5421 = scalar_lea.vmem %s3, %s5420
        %v5422 = vld [vmem:[%s5421] sm:$0xff]
        %v5423 = vld [vmem:[%s5421 + $0x8] sm:$0xff]
        %v5424 = vld [vmem:[%s5421 + $0x10] sm:$0xff]
        %v5425 = vld [vmem:[%s5421 + $0x18] sm:$0xff]
        %v5426 = vld [vmem:[%s5421 + $0x20] sm:$0xff]
        %v5427 = vld [vmem:[%s5421 + $0x28] sm:$0xff]
        %v5428 = vld [vmem:[%s5421 + $0x30] sm:$0xff]
        %v5429 = vld [vmem:[%s5421 + $0x38] sm:$0xff]
        %v5430 = vld [vmem:[%s5421 + $0x40] sm:$0xff]
        %v5431 = vld [vmem:[%s5421 + $0x48] sm:$0xff]
        %v5432 = vld [vmem:[%s5421 + $0x50] sm:$0xff]
        %v5433 = vld [vmem:[%s5421 + $0x58] sm:$0xff]
        %v5434 = vld [vmem:[%s5421 + $0x60] sm:$0xff]
        %v5435 = vld [vmem:[%s5421 + $0x68] sm:$0xff]
        %v5436 = vld [vmem:[%s5421 + $0x70] sm:$0xff]
        %v5437 = vld [vmem:[%s5421 + $0x78] sm:$0xff]
        %v5438 = vld [vmem:[%s5421 + $0x80] sm:$0xff]
        %v5439 = vld [vmem:[%s5421 + $0x88] sm:$0xff]
        %v5440 = vld [vmem:[%s5421 + $0x90] sm:$0xff]
        %v5441 = vld [vmem:[%s5421 + $0x98] sm:$0xff]
        %v5442 = vld [vmem:[%s5421 + $0xa0] sm:$0xff]
        %v5443 = vld [vmem:[%s5421 + $0xa8] sm:$0xff]
        %v5444 = vld [vmem:[%s5421 + $0xb0] sm:$0xff]
        %v5445 = vld [vmem:[%s5421 + $0xb8] sm:$0xff]
        %v5447 = vsel %vm352, %v5227, 0
        %v5450 = vsel %vm352, %v5228, 0
        %v5453 = vsel %vm352, %v5229, 0
        %v5456 = vsel %vm352, %v5230, 0
        %v5459 = vsel %vm352, %v5231, 0
        %v5462 = vsel %vm352, %v5232, 0
        %v5465 = vsel %vm352, %v5233, 0
        %v5468 = vsel %vm352, %v5234, 0
        %v5471 = vsel %vm352, %v5235, 0
        %v5474 = vsel %vm352, %v5236, 0
        %v5477 = vsel %vm352, %v5237, 0
        %v5480 = vsel %vm352, %v5238, 0
        %v5483 = vsel %vm352, %v5239, 0
        %v5486 = vsel %vm352, %v5240, 0
        %v5489 = vsel %vm352, %v5241, 0
        %v5492 = vsel %vm352, %v5242, 0
        %v5495 = vsel %vm352, %v5243, 0
        %v5498 = vsel %vm352, %v5244, 0
        %v5501 = vsel %vm352, %v5245, 0
        %v5504 = vsel %vm352, %v5246, 0
        %v5507 = vsel %vm352, %v5247, 0
        %v5510 = vsel %vm352, %v5248, 0
        %v5513 = vsel %vm352, %v5249, 0
        %v5516 = vsel %vm352, %v5250, 0
        %v5519 = vsel %vm352, %v5251, 0
        %v5522 = vsel %vm352, %v5252, 0
        %v5525 = vsel %vm352, %v5253, 0
        %v5528 = vsel %vm352, %v5254, 0
        %v5531 = vsel %vm352, %v5255, 0
        %v5534 = vsel %vm352, %v5256, 0
        %v5537 = vsel %vm352, %v5257, 0
        %v5540 = vsel %vm352, %v5258, 0
        %5542 = vmatprep.subr.mxu0 0.0
        %5543 = vmatpush1.msra.mxu0 %v5422
        %5544 = vmatprep.subr.mxu0 0.0
        %5545 = vmatpush1.msra.mxu0 %v5423
        %5546 = vmatprep.subr.mxu0 0.0
        %5547 = vmatpush1.msra.mxu0 %v5424
        %5548 = vmatprep.subr.mxu0 0.0
        %5549 = vmatpush1.msra.mxu0 %v5425
        %5550 = vmatprep.subr.mxu0 0.0
        %5551 = vmatpush1.msra.mxu0 %v5426
        %5552 = vmatprep.subr.mxu0 0.0
        %5553 = vmatpush1.msra.mxu0 %v5427
        %5554 = vmatprep.subr.mxu0 0.0
        %5555 = vmatpush1.msra.mxu0 %v5428
        %5556 = vmatprep.subr.mxu0 0.0
        %5557 = vmatpush1.msra.mxu0 %v5429
        %5558 = vmatprep.subr.mxu0 0.0
        %5559 = vmatpush1.msra.mxu0 %v5430
        %5560 = vmatprep.subr.mxu0 0.0
        %5561 = vmatpush1.msra.mxu0 %v5431
        %5562 = vmatprep.subr.mxu0 0.0
        %5563 = vmatpush1.msra.mxu0 %v5432
        %5564 = vmatprep.subr.mxu0 0.0
        %5565 = vmatpush1.msra.mxu0 %v5433
        %5566 = vmatprep.subr.mxu0 0.0
        %5567 = vmatpush1.msra.mxu0 %v5434
        %5568 = vmatprep.subr.mxu0 0.0
        %5569 = vmatpush1.msra.mxu0 %v5435
        %5570 = vmatprep.subr.mxu0 0.0
        %5571 = vmatpush1.msra.mxu0 %v5436
        %5572 = vmatprep.subr.mxu0 0.0
        %5573 = vmatpush1.msra.mxu0 %v5437
        %5574 = vmatprep.subr.mxu0 0.0
        %5575 = vmatpush1.msra.mxu0 %v5438
        %5576 = vmatprep.subr.mxu0 0.0
        %5577 = vmatpush1.msra.mxu0 %v5439
        %5578 = vmatprep.subr.mxu0 0.0
        %5579 = vmatpush1.msra.mxu0 %v5440
        %5580 = vmatprep.subr.mxu0 0.0
        %5581 = vmatpush1.msra.mxu0 %v5441
        %5582 = vmatprep.subr.mxu0 0.0
        %5583 = vmatpush1.msra.mxu0 %v5442
        %5584 = vmatprep.subr.mxu0 0.0
        %5585 = vmatpush1.msra.mxu0 %v5443
        %5586 = vmatprep.subr.mxu0 0.0
        %5587 = vmatpush1.msra.mxu0 %v5444
        %5588 = vmatprep.subr.mxu0 0.0
        %5589 = vmatpush1.msra.mxu0 %v5445
        %5590 = vmatprep.subr.mxu0 0.0
        %5591 = vmatpush1.msra.mxu0 0.0
        %5592 = vmatprep.subr.mxu0 0.0
        %5593 = vmatpush1.msra.mxu0 0.0
        %5594 = vmatprep.subr.mxu0 0.0
        %5595 = vmatpush1.msra.mxu0 0.0
        %5596 = vmatprep.subr.mxu0 0.0
        %5597 = vmatpush1.msra.mxu0 0.0
        %5598 = vmatprep.subr.mxu0 0.0
        %5599 = vmatpush1.msra.mxu0 0.0
        %5600 = vmatprep.subr.mxu0 0.0
        %5601 = vmatpush1.msra.mxu0 0.0
        %5602 = vmatprep.subr.mxu0 0.0
        %5603 = vmatpush1.msra.mxu0 0.0
        %5604 = vmatprep.subr.mxu0 0.0
        %5605 = vmatpush1.msra.mxu0 0.0
        %5606 = vmatprep.mubr.f32.mxu0 %v5447
        %5607 = vmatmul.mubr.f32.gmra.mrb[0].mxu0 %v5387
        %v5608 = vpop.f32.mrb[0].mxu0
        %v5609 = vadd.f32 0.0, %v5608
        %v5610 = vpop.f32.mrb[0].mxu0
        %5611 = vmatprep.mubr.f32.mxu0 %v5450
        %5612 = vmatmul.mubr.f32.gmra.mrb[0].mxu0 %v5388
        %v5613 = vpop.f32.mrb[0].mxu0
        %v5614 = vadd.f32 0.0, %v5613
        %v5615 = vpop.f32.mrb[0].mxu0
        %5616 = vmatprep.mubr.f32.mxu0 %v5453
        %5617 = vmatmul.mubr.f32.gmra.mrb[0].mxu0 %v5389
        %v5618 = vpop.f32.mrb[0].mxu0
        %v5619 = vadd.f32 0.0, %v5618
        %v5620 = vpop.f32.mrb[0].mxu0
        %5621 = vmatprep.mubr.f32.mxu0 %v5456
        %5622 = vmatmul.mubr.f32.gmra.mrb[0].mxu0 %v5390
        %v5623 = vpop.f32.mrb[0].mxu0
        %v5624 = vadd.f32 0.0, %v5623
        %v5625 = vpop.f32.mrb[0].mxu0
        %5626 = vmatprep.mubr.f32.mxu0 %v5459
        %5627 = vmatmul.mubr.f32.gmra.mrb[0].mxu0 %v5391
        %v5628 = vpop.f32.mrb[0].mxu0
        %v5629 = vadd.f32 0.0, %v5628
        %v5630 = vpop.f32.mrb[0].mxu0
        %5631 = vmatprep.mubr.f32.mxu0 %v5462
        %5632 = vmatmul.mubr.f32.gmra.mrb[0].mxu0 %v5392
        %v5633 = vpop.f32.mrb[0].mxu0
        %v5634 = vadd.f32 0.0, %v5633
        %v5635 = vpop.f32.mrb[0].mxu0
        %5636 = vmatprep.mubr.f32.mxu0 %v5465
        %5637 = vmatmul.mubr.f32.gmra.mrb[0].mxu0 %v5393
        %v5638 = vpop.f32.mrb[0].mxu0
        %v5639 = vadd.f32 0.0, %v5638
        %v5640 = vpop.f32.mrb[0].mxu0
        %5641 = vmatprep.mubr.f32.mxu0 %v5468
        %5642 = vmatmul.mubr.f32.gmra.mrb[0].mxu0 %v5394
        %v5643 = vpop.f32.mrb[0].mxu0
        %v5644 = vadd.f32 0.0, %v5643
        %v5645 = vpop.f32.mrb[0].mxu0
        %5646 = vmatprep.mubr.f32.mxu0 %v5471
        %5647 = vmatmul.mubr.f32.gmra.mrb[0].mxu0 %v5395
        %v5648 = vpop.f32.mrb[0].mxu0
        %v5649 = vadd.f32 0.0, %v5648
        %v5650 = vpop.f32.mrb[0].mxu0
        %5651 = vmatprep.mubr.f32.mxu0 %v5474
        %5652 = vmatmul.mubr.f32.gmra.mrb[0].mxu0 %v5396
        %v5653 = vpop.f32.mrb[0].mxu0
        %v5654 = vadd.f32 0.0, %v5653
        %v5655 = vpop.f32.mrb[0].mxu0
        %5656 = vmatprep.mubr.f32.mxu0 %v5477
        %5657 = vmatmul.mubr.f32.gmra.mrb[0].mxu0 %v5397
        %v5658 = vpop.f32.mrb[0].mxu0
        %v5659 = vadd.f32 0.0, %v5658
        %v5660 = vpop.f32.mrb[0].mxu0
        %5661 = vmatprep.mubr.f32.mxu0 %v5480
        %5662 = vmatmul.mubr.f32.gmra.mrb[0].mxu0 %v5398
        %v5663 = vpop.f32.mrb[0].mxu0
        %v5664 = vadd.f32 0.0, %v5663
        %v5665 = vpop.f32.mrb[0].mxu0
        %5666 = vmatprep.mubr.f32.mxu0 %v5483
        %5667 = vmatmul.mubr.f32.gmra.mrb[0].mxu0 %v5399
        %v5668 = vpop.f32.mrb[0].mxu0
        %v5669 = vadd.f32 0.0, %v5668
        %v5670 = vpop.f32.mrb[0].mxu0
        %5671 = vmatprep.mubr.f32.mxu0 %v5486
        %5672 = vmatmul.mubr.f32.gmra.mrb[0].mxu0 %v5400
        %v5673 = vpop.f32.mrb[0].mxu0
        %v5674 = vadd.f32 0.0, %v5673
        %v5675 = vpop.f32.mrb[0].mxu0
        %5676 = vmatprep.mubr.f32.mxu0 %v5489
        %5677 = vmatmul.mubr.f32.gmra.mrb[0].mxu0 %v5401
        %v5678 = vpop.f32.mrb[0].mxu0
        %v5679 = vadd.f32 0.0, %v5678
        %v5680 = vpop.f32.mrb[0].mxu0
        %5681 = vmatprep.mubr.f32.mxu0 %v5492
        %5682 = vmatmul.mubr.f32.gmra.mrb[0].mxu0 %v5402
        %v5683 = vpop.f32.mrb[0].mxu0
        %v5684 = vadd.f32 0.0, %v5683
        %v5685 = vpop.f32.mrb[0].mxu0
        %5686 = vmatprep.mubr.f32.mxu0 %v5495
        %5687 = vmatmul.mubr.f32.gmra.mrb[0].mxu0 %v5403
        %v5688 = vpop.f32.mrb[0].mxu0
        %v5689 = vadd.f32 0.0, %v5688
        %v5690 = vpop.f32.mrb[0].mxu0
        %5691 = vmatprep.mubr.f32.mxu0 %v5498
        %5692 = vmatmul.mubr.f32.gmra.mrb[0].mxu0 %v5404
        %v5693 = vpop.f32.mrb[0].mxu0
        %v5694 = vadd.f32 0.0, %v5693
        %v5695 = vpop.f32.mrb[0].mxu0
        %5696 = vmatprep.mubr.f32.mxu0 %v5501
        %5697 = vmatmul.mubr.f32.gmra.mrb[0].mxu0 %v5405
        %v5698 = vpop.f32.mrb[0].mxu0
        %v5699 = vadd.f32 0.0, %v5698
        %v5700 = vpop.f32.mrb[0].mxu0
        %5701 = vmatprep.mubr.f32.mxu0 %v5504
        %5702 = vmatmul.mubr.f32.gmra.mrb[0].mxu0 %v5406
        %v5703 = vpop.f32.mrb[0].mxu0
        %v5704 = vadd.f32 0.0, %v5703
        %v5705 = vpop.f32.mrb[0].mxu0
        %5706 = vmatprep.mubr.f32.mxu0 %v5507
        %5707 = vmatmul.mubr.f32.gmra.mrb[0].mxu0 %v5407
        %v5708 = vpop.f32.mrb[0].mxu0
        %v5709 = vadd.f32 0.0, %v5708
        %v5710 = vpop.f32.mrb[0].mxu0
        %5711 = vmatprep.mubr.f32.mxu0 %v5510
        %5712 = vmatmul.mubr.f32.gmra.mrb[0].mxu0 %v5408
        %v5713 = vpop.f32.mrb[0].mxu0
        %v5714 = vadd.f32 0.0, %v5713
        %v5715 = vpop.f32.mrb[0].mxu0
        %5716 = vmatprep.mubr.f32.mxu0 %v5513
        %5717 = vmatmul.mubr.f32.gmra.mrb[0].mxu0 %v5409
        %v5718 = vpop.f32.mrb[0].mxu0
        %v5719 = vadd.f32 0.0, %v5718
        %v5720 = vpop.f32.mrb[0].mxu0
        %5721 = vmatprep.mubr.f32.mxu0 %v5516
        %5722 = vmatmul.mubr.f32.gmra.mrb[0].mxu0 %v5410
        %v5723 = vpop.f32.mrb[0].mxu0
        %v5724 = vadd.f32 0.0, %v5723
        %v5725 = vpop.f32.mrb[0].mxu0
        %5726 = vmatprep.mubr.f32.mxu0 %v5519
        %5727 = vmatmul.mubr.f32.gmra.mrb[0].mxu0 %v5411
        %v5728 = vpop.f32.mrb[0].mxu0
        %v5729 = vadd.f32 0.0, %v5728
        %v5730 = vpop.f32.mrb[0].mxu0
        %5731 = vmatprep.mubr.f32.mxu0 %v5522
        %5732 = vmatmul.mubr.f32.gmra.mrb[0].mxu0 %v5412
        %v5733 = vpop.f32.mrb[0].mxu0
        %v5734 = vadd.f32 0.0, %v5733
        %v5735 = vpop.f32.mrb[0].mxu0
        %5736 = vmatprep.mubr.f32.mxu0 %v5525
        %5737 = vmatmul.mubr.f32.gmra.mrb[0].mxu0 %v5413
        %v5738 = vpop.f32.mrb[0].mxu0
        %v5739 = vadd.f32 0.0, %v5738
        %v5740 = vpop.f32.mrb[0].mxu0
        %5741 = vmatprep.mubr.f32.mxu0 %v5528
        %5742 = vmatmul.mubr.f32.gmra.mrb[0].mxu0 %v5414
        %v5743 = vpop.f32.mrb[0].mxu0
        %v5744 = vadd.f32 0.0, %v5743
        %v5745 = vpop.f32.mrb[0].mxu0
        %5746 = vmatprep.mubr.f32.mxu0 %v5531
        %5747 = vmatmul.mubr.f32.gmra.mrb[0].mxu0 %v5415
        %v5748 = vpop.f32.mrb[0].mxu0
        %v5749 = vadd.f32 0.0, %v5748
        %v5750 = vpop.f32.mrb[0].mxu0
        %5751 = vmatprep.mubr.f32.mxu0 %v5534
        %5752 = vmatmul.mubr.f32.gmra.mrb[0].mxu0 %v5416
        %v5753 = vpop.f32.mrb[0].mxu0
        %v5754 = vadd.f32 0.0, %v5753
        %v5755 = vpop.f32.mrb[0].mxu0
        %5756 = vmatprep.mubr.f32.mxu0 %v5537
        %5757 = vmatmul.mubr.f32.gmra.mrb[0].mxu0 %v5417
        %v5758 = vpop.f32.mrb[0].mxu0
        %v5759 = vadd.f32 0.0, %v5758
        %v5760 = vpop.f32.mrb[0].mxu0
        %5761 = vmatprep.mubr.f32.mxu0 %v5540
        %5762 = vmatmul.mubr.f32.gmra.mrb[0].mxu0 %v5418
        %v5763 = vpop.f32.mrb[0].mxu0
        %v5764 = vadd.f32 0.0, %v5763
        %v5765 = vpop.f32.mrb[0].mxu0
        %5766 = vdwg.mxu0
        %v5768 = vsel %vm352, %v4945, 0
        %v5771 = vsel %vm352, %v4946, 0
        %v5774 = vsel %vm352, %v4947, 0
        %v5777 = vsel %vm352, %v4948, 0
        %v5780 = vsel %vm352, %v4949, 0
        %v5783 = vsel %vm352, %v4950, 0
        %v5786 = vsel %vm352, %v4951, 0
        %v5789 = vsel %vm352, %v4952, 0
        %v5792 = vsel %vm352, %v4953, 0
        %v5795 = vsel %vm352, %v4954, 0
        %v5798 = vsel %vm352, %v4955, 0
        %v5801 = vsel %vm352, %v4956, 0
        %v5804 = vsel %vm352, %v4957, 0
        %v5807 = vsel %vm352, %v4958, 0
        %v5810 = vsel %vm352, %v4959, 0
        %v5813 = vsel %vm352, %v4960, 0
        %v5816 = vsel %vm352, %v4961, 0
        %v5819 = vsel %vm352, %v4962, 0
        %v5822 = vsel %vm352, %v4963, 0
        %v5825 = vsel %vm352, %v4964, 0
        %v5828 = vsel %vm352, %v4965, 0
        %v5831 = vsel %vm352, %v4966, 0
        %v5834 = vsel %vm352, %v4967, 0
        %v5837 = vsel %vm352, %v4968, 0
        %v5840 = vsel %vm352, %v4969, 0
        %v5843 = vsel %vm352, %v4970, 0
        %v5846 = vsel %vm352, %v4971, 0
        %v5849 = vsel %vm352, %v4972, 0
        %v5852 = vsel %vm352, %v4973, 0
        %v5855 = vsel %vm352, %v4974, 0
        %v5858 = vsel %vm352, %v4975, 0
        %v5861 = vsel %vm352, %v4976, 0
        %5863 = vmatprep.subr.mxu0 0.0
        %5864 = vmatpush1.msra.mxu0 %v5139
        %5865 = vmatprep.subr.mxu0 0.0
        %5866 = vmatpush1.msra.mxu0 %v5140
        %5867 = vmatprep.subr.mxu0 0.0
        %5868 = vmatpush1.msra.mxu0 %v5141
        %5869 = vmatprep.subr.mxu0 0.0
        %5870 = vmatpush1.msra.mxu0 %v5142
        %5871 = vmatprep.subr.mxu0 0.0
        %5872 = vmatpush1.msra.mxu0 %v5143
        %5873 = vmatprep.subr.mxu0 0.0
        %5874 = vmatpush1.msra.mxu0 %v5144
        %5875 = vmatprep.subr.mxu0 0.0
        %5876 = vmatpush1.msra.mxu0 %v5145
        %5877 = vmatprep.subr.mxu0 0.0
        %5878 = vmatpush1.msra.mxu0 %v5146
        %5879 = vmatprep.subr.mxu0 0.0
        %5880 = vmatpush1.msra.mxu0 %v5147
        %5881 = vmatprep.subr.mxu0 0.0
        %5882 = vmatpush1.msra.mxu0 %v5148
        %5883 = vmatprep.subr.mxu0 0.0
        %5884 = vmatpush1.msra.mxu0 %v5149
        %5885 = vmatprep.subr.mxu0 0.0
        %5886 = vmatpush1.msra.mxu0 %v5150
        %5887 = vmatprep.subr.mxu0 0.0
        %5888 = vmatpush1.msra.mxu0 %v5151
        %5889 = vmatprep.subr.mxu0 0.0
        %5890 = vmatpush1.msra.mxu0 %v5152
        %5891 = vmatprep.subr.mxu0 0.0
        %5892 = vmatpush1.msra.mxu0 %v5153
        %5893 = vmatprep.subr.mxu0 0.0
        %5894 = vmatpush1.msra.mxu0 %v5154
        %5895 = vmatprep.subr.mxu0 0.0
        %5896 = vmatpush1.msra.mxu0 %v5155
        %5897 = vmatprep.subr.mxu0 0.0
        %5898 = vmatpush1.msra.mxu0 %v5156
        %5899 = vmatprep.subr.mxu0 0.0
        %5900 = vmatpush1.msra.mxu0 %v5157
        %5901 = vmatprep.subr.mxu0 0.0
        %5902 = vmatpush1.msra.mxu0 %v5158
        %5903 = vmatprep.subr.mxu0 0.0
        %5904 = vmatpush1.msra.mxu0 %v5159
        %5905 = vmatprep.subr.mxu0 0.0
        %5906 = vmatpush1.msra.mxu0 %v5160
        %5907 = vmatprep.subr.mxu0 0.0
        %5908 = vmatpush1.msra.mxu0 %v5161
        %5909 = vmatprep.subr.mxu0 0.0
        %5910 = vmatpush1.msra.mxu0 %v5162
        %5911 = vmatprep.subr.mxu0 0.0
        %5912 = vmatpush1.msra.mxu0 0.0
        %5913 = vmatprep.subr.mxu0 0.0
        %5914 = vmatpush1.msra.mxu0 0.0
        %5915 = vmatprep.subr.mxu0 0.0
        %5916 = vmatpush1.msra.mxu0 0.0
        %5917 = vmatprep.subr.mxu0 0.0
        %5918 = vmatpush1.msra.mxu0 0.0
        %5919 = vmatprep.subr.mxu0 0.0
        %5920 = vmatpush1.msra.mxu0 0.0
        %5921 = vmatprep.subr.mxu0 0.0
        %5922 = vmatpush1.msra.mxu0 0.0
        %5923 = vmatprep.subr.mxu0 0.0
        %5924 = vmatpush1.msra.mxu0 0.0
        %5925 = vmatprep.subr.mxu0 0.0
        %5926 = vmatpush1.msra.mxu0 0.0
        %5927 = vmatprep.mubr.f32.mxu0 %v5768
        %5928 = vmatmul.mubr.f32.gmra.mrb[0].mxu0 %v5105
        %v5929 = vpop.f32.mrb[0].mxu0
        %v5930 = vadd.f32 %v5609, %v5929
        %v5931 = vpop.f32.mrb[0].mxu0
        %5932 = vmatprep.mubr.f32.mxu0 %v5771
        %5933 = vmatmul.mubr.f32.gmra.mrb[0].mxu0 %v5106
        %v5934 = vpop.f32.mrb[0].mxu0
        %v5935 = vadd.f32 %v5614, %v5934
        %v5936 = vpop.f32.mrb[0].mxu0
        %5937 = vmatprep.mubr.f32.mxu0 %v5774
        %5938 = vmatmul.mubr.f32.gmra.mrb[0].mxu0 %v5107
        %v5939 = vpop.f32.mrb[0].mxu0
        %v5940 = vadd.f32 %v5619, %v5939
        %v5941 = vpop.f32.mrb[0].mxu0
        %5942 = vmatprep.mubr.f32.mxu0 %v5777
        %5943 = vmatmul.mubr.f32.gmra.mrb[0].mxu0 %v5108
        %v5944 = vpop.f32.mrb[0].mxu0
        %v5945 = vadd.f32 %v5624, %v5944
        %v5946 = vpop.f32.mrb[0].mxu0
        %5947 = vmatprep.mubr.f32.mxu0 %v5780
        %5948 = vmatmul.mubr.f32.gmra.mrb[0].mxu0 %v5109
        %v5949 = vpop.f32.mrb[0].mxu0
        %v5950 = vadd.f32 %v5629, %v5949
        %v5951 = vpop.f32.mrb[0].mxu0
        %5952 = vmatprep.mubr.f32.mxu0 %v5783
        %5953 = vmatmul.mubr.f32.gmra.mrb[0].mxu0 %v5110
        %v5954 = vpop.f32.mrb[0].mxu0
        %v5955 = vadd.f32 %v5634, %v5954
        %v5956 = vpop.f32.mrb[0].mxu0
        %5957 = vmatprep.mubr.f32.mxu0 %v5786
        %5958 = vmatmul.mubr.f32.gmra.mrb[0].mxu0 %v5111
        %v5959 = vpop.f32.mrb[0].mxu0
        %v5960 = vadd.f32 %v5639, %v5959
        %v5961 = vpop.f32.mrb[0].mxu0
        %5962 = vmatprep.mubr.f32.mxu0 %v5789
        %5963 = vmatmul.mubr.f32.gmra.mrb[0].mxu0 %v5112
        %v5964 = vpop.f32.mrb[0].mxu0
        %v5965 = vadd.f32 %v5644, %v5964
        %v5966 = vpop.f32.mrb[0].mxu0
        %5967 = vmatprep.mubr.f32.mxu0 %v5792
        %5968 = vmatmul.mubr.f32.gmra.mrb[0].mxu0 %v5113
        %v5969 = vpop.f32.mrb[0].mxu0
        %v5970 = vadd.f32 %v5649, %v5969
        %v5971 = vpop.f32.mrb[0].mxu0
        %5972 = vmatprep.mubr.f32.mxu0 %v5795
        %5973 = vmatmul.mubr.f32.gmra.mrb[0].mxu0 %v5114
        %v5974 = vpop.f32.mrb[0].mxu0
        %v5975 = vadd.f32 %v5654, %v5974
        %v5976 = vpop.f32.mrb[0].mxu0
        %5977 = vmatprep.mubr.f32.mxu0 %v5798
        %5978 = vmatmul.mubr.f32.gmra.mrb[0].mxu0 %v5115
        %v5979 = vpop.f32.mrb[0].mxu0
        %v5980 = vadd.f32 %v5659, %v5979
        %v5981 = vpop.f32.mrb[0].mxu0
        %5982 = vmatprep.mubr.f32.mxu0 %v5801
        %5983 = vmatmul.mubr.f32.gmra.mrb[0].mxu0 %v5116
        %v5984 = vpop.f32.mrb[0].mxu0
        %v5985 = vadd.f32 %v5664, %v5984
        %v5986 = vpop.f32.mrb[0].mxu0
        %5987 = vmatprep.mubr.f32.mxu0 %v5804
        %5988 = vmatmul.mubr.f32.gmra.mrb[0].mxu0 %v5117
        %v5989 = vpop.f32.mrb[0].mxu0
        %v5990 = vadd.f32 %v5669, %v5989
        %v5991 = vpop.f32.mrb[0].mxu0
        %5992 = vmatprep.mubr.f32.mxu0 %v5807
        %5993 = vmatmul.mubr.f32.gmra.mrb[0].mxu0 %v5118
        %v5994 = vpop.f32.mrb[0].mxu0
        %v5995 = vadd.f32 %v5674, %v5994
        %v5996 = vpop.f32.mrb[0].mxu0
        %5997 = vmatprep.mubr.f32.mxu0 %v5810
        %5998 = vmatmul.mubr.f32.gmra.mrb[0].mxu0 %v5119
        %v5999 = vpop.f32.mrb[0].mxu0
        %v6000 = vadd.f32 %v5679, %v5999
        %v6001 = vpop.f32.mrb[0].mxu0
        %6002 = vmatprep.mubr.f32.mxu0 %v5813
        %6003 = vmatmul.mubr.f32.gmra.mrb[0].mxu0 %v5120
        %v6004 = vpop.f32.mrb[0].mxu0
        %v6005 = vadd.f32 %v5684, %v6004
        %v6006 = vpop.f32.mrb[0].mxu0
        %6007 = vmatprep.mubr.f32.mxu0 %v5816
        %6008 = vmatmul.mubr.f32.gmra.mrb[0].mxu0 %v5121
        %v6009 = vpop.f32.mrb[0].mxu0
        %v6010 = vadd.f32 %v5689, %v6009
        %v6011 = vpop.f32.mrb[0].mxu0
        %6012 = vmatprep.mubr.f32.mxu0 %v5819
        %6013 = vmatmul.mubr.f32.gmra.mrb[0].mxu0 %v5122
        %v6014 = vpop.f32.mrb[0].mxu0
        %v6015 = vadd.f32 %v5694, %v6014
        %v6016 = vpop.f32.mrb[0].mxu0
        %6017 = vmatprep.mubr.f32.mxu0 %v5822
        %6018 = vmatmul.mubr.f32.gmra.mrb[0].mxu0 %v5123
        %v6019 = vpop.f32.mrb[0].mxu0
        %v6020 = vadd.f32 %v5699, %v6019
        %v6021 = vpop.f32.mrb[0].mxu0
        %6022 = vmatprep.mubr.f32.mxu0 %v5825
        %6023 = vmatmul.mubr.f32.gmra.mrb[0].mxu0 %v5124
        %v6024 = vpop.f32.mrb[0].mxu0
        %v6025 = vadd.f32 %v5704, %v6024
        %v6026 = vpop.f32.mrb[0].mxu0
        %6027 = vmatprep.mubr.f32.mxu0 %v5828
        %6028 = vmatmul.mubr.f32.gmra.mrb[0].mxu0 %v5125
        %v6029 = vpop.f32.mrb[0].mxu0
        %v6030 = vadd.f32 %v5709, %v6029
        %v6031 = vpop.f32.mrb[0].mxu0
        %6032 = vmatprep.mubr.f32.mxu0 %v5831
        %6033 = vmatmul.mubr.f32.gmra.mrb[0].mxu0 %v5126
        %v6034 = vpop.f32.mrb[0].mxu0
        %v6035 = vadd.f32 %v5714, %v6034
        %v6036 = vpop.f32.mrb[0].mxu0
        %6037 = vmatprep.mubr.f32.mxu0 %v5834
        %6038 = vmatmul.mubr.f32.gmra.mrb[0].mxu0 %v5127
        %v6039 = vpop.f32.mrb[0].mxu0
        %v6040 = vadd.f32 %v5719, %v6039
        %v6041 = vpop.f32.mrb[0].mxu0
        %6042 = vmatprep.mubr.f32.mxu0 %v5837
        %6043 = vmatmul.mubr.f32.gmra.mrb[0].mxu0 %v5128
        %v6044 = vpop.f32.mrb[0].mxu0
        %v6045 = vadd.f32 %v5724, %v6044
        %v6046 = vpop.f32.mrb[0].mxu0
        %6047 = vmatprep.mubr.f32.mxu0 %v5840
        %6048 = vmatmul.mubr.f32.gmra.mrb[0].mxu0 %v5129
        %v6049 = vpop.f32.mrb[0].mxu0
        %v6050 = vadd.f32 %v5729, %v6049
        %v6051 = vpop.f32.mrb[0].mxu0
        %6052 = vmatprep.mubr.f32.mxu0 %v5843
        %6053 = vmatmul.mubr.f32.gmra.mrb[0].mxu0 %v5130
        %v6054 = vpop.f32.mrb[0].mxu0
        %v6055 = vadd.f32 %v5734, %v6054
        %v6056 = vpop.f32.mrb[0].mxu0
        %6057 = vmatprep.mubr.f32.mxu0 %v5846
        %6058 = vmatmul.mubr.f32.gmra.mrb[0].mxu0 %v5131
        %v6059 = vpop.f32.mrb[0].mxu0
        %v6060 = vadd.f32 %v5739, %v6059
        %v6061 = vpop.f32.mrb[0].mxu0
        %6062 = vmatprep.mubr.f32.mxu0 %v5849
        %6063 = vmatmul.mubr.f32.gmra.mrb[0].mxu0 %v5132
        %v6064 = vpop.f32.mrb[0].mxu0
        %v6065 = vadd.f32 %v5744, %v6064
        %v6066 = vpop.f32.mrb[0].mxu0
        %6067 = vmatprep.mubr.f32.mxu0 %v5852
        %6068 = vmatmul.mubr.f32.gmra.mrb[0].mxu0 %v5133
        %v6069 = vpop.f32.mrb[0].mxu0
        %v6070 = vadd.f32 %v5749, %v6069
        %v6071 = vpop.f32.mrb[0].mxu0
        %6072 = vmatprep.mubr.f32.mxu0 %v5855
        %6073 = vmatmul.mubr.f32.gmra.mrb[0].mxu0 %v5134
        %v6074 = vpop.f32.mrb[0].mxu0
        %v6075 = vadd.f32 %v5754, %v6074
        %v6076 = vpop.f32.mrb[0].mxu0
        %6077 = vmatprep.mubr.f32.mxu0 %v5858
        %6078 = vmatmul.mubr.f32.gmra.mrb[0].mxu0 %v5135
        %v6079 = vpop.f32.mrb[0].mxu0
        %v6080 = vadd.f32 %v5759, %v6079
        %v6081 = vpop.f32.mrb[0].mxu0
        %6082 = vmatprep.mubr.f32.mxu0 %v5861
        %6083 = vmatmul.mubr.f32.gmra.mrb[0].mxu0 %v5136
        %v6084 = vpop.f32.mrb[0].mxu0
        %v6085 = vadd.f32 %v5764, %v6084
        %v6086 = vpop.f32.mrb[0].mxu0
        %6087 = vdwg.mxu0
        %s6088 = scalar_lea.vmem [#allocation4], 64
        %v6089 = vld [vmem:[%s6088 + $0x7] sm:$0xff]
        %v6090 = vld [vmem:[%s6088 + $0xf] sm:$0xff]
        %v6091 = vld [vmem:[%s6088 + $0x27] sm:$0xff]
        %v6092 = vld [vmem:[%s6088 + $0x2f] sm:$0xff]
        %v6093 = vld [vmem:[%s6088 + $0x47] sm:$0xff]
        %v6094 = vld [vmem:[%s6088 + $0x4f] sm:$0xff]
        %v6095 = vld [vmem:[%s6088 + $0x67] sm:$0xff]
        %v6096 = vld [vmem:[%s6088 + $0x6f] sm:$0xff]
        %v6097 = vld [vmem:[%s6088 + $0x87] sm:$0xff]
        %v6098 = vld [vmem:[%s6088 + $0x8f] sm:$0xff]
        %v6099 = vld [vmem:[%s6088 + $0xa7] sm:$0xff]
        %v6100 = vld [vmem:[%s6088 + $0xaf] sm:$0xff]
        %v6101 = vld [vmem:[%s6088 + $0xc7] sm:$0xff]
        %v6102 = vld [vmem:[%s6088 + $0xcf] sm:$0xff]
        %v6103 = vld [vmem:[%s6088 + $0xe7] sm:$0xff]
        %v6104 = vld [vmem:[%s6088 + $0xef] sm:$0xff]
        %v6105 = vld [vmem:[%s6088 + $0x107] sm:$0xff]
        %v6106 = vld [vmem:[%s6088 + $0x10f] sm:$0xff]
        %v6107 = vld [vmem:[%s6088 + $0x127] sm:$0xff]
        %v6108 = vld [vmem:[%s6088 + $0x12f] sm:$0xff]
        %v6109 = vld [vmem:[%s6088 + $0x147] sm:$0xff]
        %v6110 = vld [vmem:[%s6088 + $0x14f] sm:$0xff]
        %v6111 = vld [vmem:[%s6088 + $0x167] sm:$0xff]
        %v6112 = vld [vmem:[%s6088 + $0x16f] sm:$0xff]
        %v6113 = vld [vmem:[%s6088 + $0x187] sm:$0xff]
        %v6114 = vld [vmem:[%s6088 + $0x18f] sm:$0xff]
        %v6115 = vld [vmem:[%s6088 + $0x1a7] sm:$0xff]
        %v6116 = vld [vmem:[%s6088 + $0x1af] sm:$0xff]
        %v6117 = vld [vmem:[%s6088 + $0x1c7] sm:$0xff]
        %v6118 = vld [vmem:[%s6088 + $0x1cf] sm:$0xff]
        %v6119 = vld [vmem:[%s6088 + $0x1e7] sm:$0xff]
        %v6120 = vld [vmem:[%s6088 + $0x1ef] sm:$0xff]
        %v6121 = vld [vmem:[%s6088 + $0x8] sm:$0xff]
        %v6122 = vld [vmem:[%s6088 + $0x10] sm:$0xff]
        %v6123 = vld [vmem:[%s6088 + $0x28] sm:$0xff]
        %v6124 = vld [vmem:[%s6088 + $0x30] sm:$0xff]
        %v6125 = vld [vmem:[%s6088 + $0x48] sm:$0xff]
        %v6126 = vld [vmem:[%s6088 + $0x50] sm:$0xff]
        %v6127 = vld [vmem:[%s6088 + $0x68] sm:$0xff]
        %v6128 = vld [vmem:[%s6088 + $0x70] sm:$0xff]
        %v6129 = vld [vmem:[%s6088 + $0x88] sm:$0xff]
        %v6130 = vld [vmem:[%s6088 + $0x90] sm:$0xff]
        %v6131 = vld [vmem:[%s6088 + $0xa8] sm:$0xff]
        %v6132 = vld [vmem:[%s6088 + $0xb0] sm:$0xff]
        %v6133 = vld [vmem:[%s6088 + $0xc8] sm:$0xff]
        %v6134 = vld [vmem:[%s6088 + $0xd0] sm:$0xff]
        %v6135 = vld [vmem:[%s6088 + $0xe8] sm:$0xff]
        %v6136 = vld [vmem:[%s6088 + $0xf0] sm:$0xff]
        %v6137 = vld [vmem:[%s6088 + $0x108] sm:$0xff]
        %v6138 = vld [vmem:[%s6088 + $0x110] sm:$0xff]
        %v6139 = vld [vmem:[%s6088 + $0x128] sm:$0xff]
        %v6140 = vld [vmem:[%s6088 + $0x130] sm:$0xff]
        %v6141 = vld [vmem:[%s6088 + $0x148] sm:$0xff]
        %v6142 = vld [vmem:[%s6088 + $0x150] sm:$0xff]
        %v6143 = vld [vmem:[%s6088 + $0x168] sm:$0xff]
        %v6144 = vld [vmem:[%s6088 + $0x170] sm:$0xff]
        %v6145 = vld [vmem:[%s6088 + $0x188] sm:$0xff]
        %v6146 = vld [vmem:[%s6088 + $0x190] sm:$0xff]
        %v6147 = vld [vmem:[%s6088 + $0x1a8] sm:$0xff]
        %v6148 = vld [vmem:[%s6088 + $0x1b0] sm:$0xff]
        %v6149 = vld [vmem:[%s6088 + $0x1c8] sm:$0xff]
        %v6150 = vld [vmem:[%s6088 + $0x1d0] sm:$0xff]
        %v6151 = vld [vmem:[%s6088 + $0x1e8] sm:$0xff]
        %v6152 = vld [vmem:[%s6088 + $0x1f0] sm:$0xff]
        %v6153 = vld [vmem:[%s6088 + $0x9] sm:$0xff]
        %v6154 = vld [vmem:[%s6088 + $0x11] sm:$0xff]
        %v6155 = vld [vmem:[%s6088 + $0x29] sm:$0xff]
        %v6156 = vld [vmem:[%s6088 + $0x31] sm:$0xff]
        %v6157 = vld [vmem:[%s6088 + $0x49] sm:$0xff]
        %v6158 = vld [vmem:[%s6088 + $0x51] sm:$0xff]
        %v6159 = vld [vmem:[%s6088 + $0x69] sm:$0xff]
        %v6160 = vld [vmem:[%s6088 + $0x71] sm:$0xff]
        %v6161 = vld [vmem:[%s6088 + $0x89] sm:$0xff]
        %v6162 = vld [vmem:[%s6088 + $0x91] sm:$0xff]
        %v6163 = vld [vmem:[%s6088 + $0xa9] sm:$0xff]
        %v6164 = vld [vmem:[%s6088 + $0xb1] sm:$0xff]
        %v6165 = vld [vmem:[%s6088 + $0xc9] sm:$0xff]
        %v6166 = vld [vmem:[%s6088 + $0xd1] sm:$0xff]
        %v6167 = vld [vmem:[%s6088 + $0xe9] sm:$0xff]
        %v6168 = vld [vmem:[%s6088 + $0xf1] sm:$0xff]
        %v6169 = vld [vmem:[%s6088 + $0x109] sm:$0xff]
        %v6170 = vld [vmem:[%s6088 + $0x111] sm:$0xff]
        %v6171 = vld [vmem:[%s6088 + $0x129] sm:$0xff]
        %v6172 = vld [vmem:[%s6088 + $0x131] sm:$0xff]
        %v6173 = vld [vmem:[%s6088 + $0x149] sm:$0xff]
        %v6174 = vld [vmem:[%s6088 + $0x151] sm:$0xff]
        %v6175 = vld [vmem:[%s6088 + $0x169] sm:$0xff]
        %v6176 = vld [vmem:[%s6088 + $0x171] sm:$0xff]
        %v6177 = vld [vmem:[%s6088 + $0x189] sm:$0xff]
        %v6178 = vld [vmem:[%s6088 + $0x191] sm:$0xff]
        %v6179 = vld [vmem:[%s6088 + $0x1a9] sm:$0xff]
        %v6180 = vld [vmem:[%s6088 + $0x1b1] sm:$0xff]
        %v6181 = vld [vmem:[%s6088 + $0x1c9] sm:$0xff]
        %v6182 = vld [vmem:[%s6088 + $0x1d1] sm:$0xff]
        %v6183 = vld [vmem:[%s6088 + $0x1e9] sm:$0xff]
        %v6184 = vld [vmem:[%s6088 + $0x1f1] sm:$0xff]
        %6217 = vrot.lane.b32.xlu0 %v6121, 64
        %v6218 = vpop.permute.xlu0 %6217
        %6219 = vrot.lane.b32.xlu0 %v6122, 64
        %v6220 = vpop.permute.xlu0 %6219
        %6221 = vrot.lane.b32.xlu0 %v6123, 64
        %v6222 = vpop.permute.xlu0 %6221
        %6223 = vrot.lane.b32.xlu0 %v6124, 64
        %v6224 = vpop.permute.xlu0 %6223
        %6225 = vrot.lane.b32.xlu0 %v6125, 64
        %v6226 = vpop.permute.xlu0 %6225
        %6227 = vrot.lane.b32.xlu0 %v6126, 64
        %v6228 = vpop.permute.xlu0 %6227
        %6229 = vrot.lane.b32.xlu0 %v6127, 64
        %v6230 = vpop.permute.xlu0 %6229
        %6231 = vrot.lane.b32.xlu0 %v6128, 64
        %v6232 = vpop.permute.xlu0 %6231
        %6233 = vrot.lane.b32.xlu0 %v6129, 64
        %v6234 = vpop.permute.xlu0 %6233
        %6235 = vrot.lane.b32.xlu0 %v6130, 64
        %v6236 = vpop.permute.xlu0 %6235
        %6237 = vrot.lane.b32.xlu0 %v6131, 64
        %v6238 = vpop.permute.xlu0 %6237
        %6239 = vrot.lane.b32.xlu0 %v6132, 64
        %v6240 = vpop.permute.xlu0 %6239
        %6241 = vrot.lane.b32.xlu0 %v6133, 64
        %v6242 = vpop.permute.xlu0 %6241
        %6243 = vrot.lane.b32.xlu0 %v6134, 64
        %v6244 = vpop.permute.xlu0 %6243
        %6245 = vrot.lane.b32.xlu0 %v6135, 64
        %v6246 = vpop.permute.xlu0 %6245
        %6247 = vrot.lane.b32.xlu0 %v6136, 64
        %v6248 = vpop.permute.xlu0 %6247
        %6249 = vrot.lane.b32.xlu0 %v6137, 64
        %v6250 = vpop.permute.xlu0 %6249
        %6251 = vrot.lane.b32.xlu0 %v6138, 64
        %v6252 = vpop.permute.xlu0 %6251
        %6253 = vrot.lane.b32.xlu0 %v6139, 64
        %v6254 = vpop.permute.xlu0 %6253
        %6255 = vrot.lane.b32.xlu0 %v6140, 64
        %v6256 = vpop.permute.xlu0 %6255
        %6257 = vrot.lane.b32.xlu0 %v6141, 64
        %v6258 = vpop.permute.xlu0 %6257
        %6259 = vrot.lane.b32.xlu0 %v6142, 64
        %v6260 = vpop.permute.xlu0 %6259
        %6261 = vrot.lane.b32.xlu0 %v6143, 64
        %v6262 = vpop.permute.xlu0 %6261
        %6263 = vrot.lane.b32.xlu0 %v6144, 64
        %v6264 = vpop.permute.xlu0 %6263
        %6265 = vrot.lane.b32.xlu0 %v6145, 64
        %v6266 = vpop.permute.xlu0 %6265
        %6267 = vrot.lane.b32.xlu0 %v6146, 64
        %v6268 = vpop.permute.xlu0 %6267
        %6269 = vrot.lane.b32.xlu0 %v6147, 64
        %v6270 = vpop.permute.xlu0 %6269
        %6271 = vrot.lane.b32.xlu0 %v6148, 64
        %v6272 = vpop.permute.xlu0 %6271
        %6273 = vrot.lane.b32.xlu0 %v6149, 64
        %v6274 = vpop.permute.xlu0 %6273
        %6275 = vrot.lane.b32.xlu0 %v6150, 64
        %v6276 = vpop.permute.xlu0 %6275
        %6277 = vrot.lane.b32.xlu0 %v6151, 64
        %v6278 = vpop.permute.xlu0 %6277
        %6279 = vrot.lane.b32.xlu0 %v6152, 64
        %v6280 = vpop.permute.xlu0 %6279
        %v6313 = vsel %vm352, %v6089, %v6218
        %v6314 = vsel %vm352, %v6090, %v6220
        %v6315 = vsel %vm352, %v6091, %v6222
        %v6316 = vsel %vm352, %v6092, %v6224
        %v6317 = vsel %vm352, %v6093, %v6226
        %v6318 = vsel %vm352, %v6094, %v6228
        %v6319 = vsel %vm352, %v6095, %v6230
        %v6320 = vsel %vm352, %v6096, %v6232
        %v6321 = vsel %vm352, %v6097, %v6234
        %v6322 = vsel %vm352, %v6098, %v6236
        %v6323 = vsel %vm352, %v6099, %v6238
        %v6324 = vsel %vm352, %v6100, %v6240
        %v6325 = vsel %vm352, %v6101, %v6242
        %v6326 = vsel %vm352, %v6102, %v6244
        %v6327 = vsel %vm352, %v6103, %v6246
        %v6328 = vsel %vm352, %v6104, %v6248
        %v6329 = vsel %vm352, %v6105, %v6250
        %v6330 = vsel %vm352, %v6106, %v6252
        %v6331 = vsel %vm352, %v6107, %v6254
        %v6332 = vsel %vm352, %v6108, %v6256
        %v6333 = vsel %vm352, %v6109, %v6258
        %v6334 = vsel %vm352, %v6110, %v6260
        %v6335 = vsel %vm352, %v6111, %v6262
        %v6336 = vsel %vm352, %v6112, %v6264
        %v6337 = vsel %vm352, %v6113, %v6266
        %v6338 = vsel %vm352, %v6114, %v6268
        %v6339 = vsel %vm352, %v6115, %v6270
        %v6340 = vsel %vm352, %v6116, %v6272
        %v6341 = vsel %vm352, %v6117, %v6274
        %v6342 = vsel %vm352, %v6118, %v6276
        %v6343 = vsel %vm352, %v6119, %v6278
        %v6344 = vsel %vm352, %v6120, %v6280
        %s6345 = sadd.s32 %s2929, 5
        %s6346 = smul.u32 %s6345, 192
        %s6347 = scalar_lea.vmem %s3, %s6346
        %v6348 = vld [vmem:[%s6347] sm:$0xff]
        %v6349 = vld [vmem:[%s6347 + $0x8] sm:$0xff]
        %v6350 = vld [vmem:[%s6347 + $0x10] sm:$0xff]
        %v6351 = vld [vmem:[%s6347 + $0x18] sm:$0xff]
        %v6352 = vld [vmem:[%s6347 + $0x20] sm:$0xff]
        %v6353 = vld [vmem:[%s6347 + $0x28] sm:$0xff]
        %v6354 = vld [vmem:[%s6347 + $0x30] sm:$0xff]
        %v6355 = vld [vmem:[%s6347 + $0x38] sm:$0xff]
        %v6356 = vld [vmem:[%s6347 + $0x40] sm:$0xff]
        %v6357 = vld [vmem:[%s6347 + $0x48] sm:$0xff]
        %v6358 = vld [vmem:[%s6347 + $0x50] sm:$0xff]
        %v6359 = vld [vmem:[%s6347 + $0x58] sm:$0xff]
        %v6360 = vld [vmem:[%s6347 + $0x60] sm:$0xff]
        %v6361 = vld [vmem:[%s6347 + $0x68] sm:$0xff]
        %v6362 = vld [vmem:[%s6347 + $0x70] sm:$0xff]
        %v6363 = vld [vmem:[%s6347 + $0x78] sm:$0xff]
        %v6364 = vld [vmem:[%s6347 + $0x80] sm:$0xff]
        %v6365 = vld [vmem:[%s6347 + $0x88] sm:$0xff]
        %v6366 = vld [vmem:[%s6347 + $0x90] sm:$0xff]
        %v6367 = vld [vmem:[%s6347 + $0x98] sm:$0xff]
        %v6368 = vld [vmem:[%s6347 + $0xa0] sm:$0xff]
        %v6369 = vld [vmem:[%s6347 + $0xa8] sm:$0xff]
        %v6370 = vld [vmem:[%s6347 + $0xb0] sm:$0xff]
        %v6371 = vld [vmem:[%s6347 + $0xb8] sm:$0xff]
        %v6373 = vsel %vm352, %v6153, 0
        %v6376 = vsel %vm352, %v6154, 0
        %v6379 = vsel %vm352, %v6155, 0
        %v6382 = vsel %vm352, %v6156, 0
        %v6385 = vsel %vm352, %v6157, 0
        %v6388 = vsel %vm352, %v6158, 0
        %v6391 = vsel %vm352, %v6159, 0
        %v6394 = vsel %vm352, %v6160, 0
        %v6397 = vsel %vm352, %v6161, 0
        %v6400 = vsel %vm352, %v6162, 0
        %v6403 = vsel %vm352, %v6163, 0
        %v6406 = vsel %vm352, %v6164, 0
        %v6409 = vsel %vm352, %v6165, 0
        %v6412 = vsel %vm352, %v6166, 0
        %v6415 = vsel %vm352, %v6167, 0
        %v6418 = vsel %vm352, %v6168, 0
        %v6421 = vsel %vm352, %v6169, 0
        %v6424 = vsel %vm352, %v6170, 0
        %v6427 = vsel %vm352, %v6171, 0
        %v6430 = vsel %vm352, %v6172, 0
        %v6433 = vsel %vm352, %v6173, 0
        %v6436 = vsel %vm352, %v6174, 0
        %v6439 = vsel %vm352, %v6175, 0
        %v6442 = vsel %vm352, %v6176, 0
        %v6445 = vsel %vm352, %v6177, 0
        %v6448 = vsel %vm352, %v6178, 0
        %v6451 = vsel %vm352, %v6179, 0
        %v6454 = vsel %vm352, %v6180, 0
        %v6457 = vsel %vm352, %v6181, 0
        %v6460 = vsel %vm352, %v6182, 0
        %v6463 = vsel %vm352, %v6183, 0
        %v6466 = vsel %vm352, %v6184, 0
        %6468 = vmatprep.subr.mxu0 0.0
        %6469 = vmatpush1.msra.mxu0 %v6348
        %6470 = vmatprep.subr.mxu0 0.0
        %6471 = vmatpush1.msra.mxu0 %v6349
        %6472 = vmatprep.subr.mxu0 0.0
        %6473 = vmatpush1.msra.mxu0 %v6350
        %6474 = vmatprep.subr.mxu0 0.0
        %6475 = vmatpush1.msra.mxu0 %v6351
        %6476 = vmatprep.subr.mxu0 0.0
        %6477 = vmatpush1.msra.mxu0 %v6352
        %6478 = vmatprep.subr.mxu0 0.0
        %6479 = vmatpush1.msra.mxu0 %v6353
        %6480 = vmatprep.subr.mxu0 0.0
        %6481 = vmatpush1.msra.mxu0 %v6354
        %6482 = vmatprep.subr.mxu0 0.0
        %6483 = vmatpush1.msra.mxu0 %v6355
        %6484 = vmatprep.subr.mxu0 0.0
        %6485 = vmatpush1.msra.mxu0 %v6356
        %6486 = vmatprep.subr.mxu0 0.0
        %6487 = vmatpush1.msra.mxu0 %v6357
        %6488 = vmatprep.subr.mxu0 0.0
        %6489 = vmatpush1.msra.mxu0 %v6358
        %6490 = vmatprep.subr.mxu0 0.0
        %6491 = vmatpush1.msra.mxu0 %v6359
        %6492 = vmatprep.subr.mxu0 0.0
        %6493 = vmatpush1.msra.mxu0 %v6360
        %6494 = vmatprep.subr.mxu0 0.0
        %6495 = vmatpush1.msra.mxu0 %v6361
        %6496 = vmatprep.subr.mxu0 0.0
        %6497 = vmatpush1.msra.mxu0 %v6362
        %6498 = vmatprep.subr.mxu0 0.0
        %6499 = vmatpush1.msra.mxu0 %v6363
        %6500 = vmatprep.subr.mxu0 0.0
        %6501 = vmatpush1.msra.mxu0 %v6364
        %6502 = vmatprep.subr.mxu0 0.0
        %6503 = vmatpush1.msra.mxu0 %v6365
        %6504 = vmatprep.subr.mxu0 0.0
        %6505 = vmatpush1.msra.mxu0 %v6366
        %6506 = vmatprep.subr.mxu0 0.0
        %6507 = vmatpush1.msra.mxu0 %v6367
        %6508 = vmatprep.subr.mxu0 0.0
        %6509 = vmatpush1.msra.mxu0 %v6368
        %6510 = vmatprep.subr.mxu0 0.0
        %6511 = vmatpush1.msra.mxu0 %v6369
        %6512 = vmatprep.subr.mxu0 0.0
        %6513 = vmatpush1.msra.mxu0 %v6370
        %6514 = vmatprep.subr.mxu0 0.0
        %6515 = vmatpush1.msra.mxu0 %v6371
        %6516 = vmatprep.subr.mxu0 0.0
        %6517 = vmatpush1.msra.mxu0 0.0
        %6518 = vmatprep.subr.mxu0 0.0
        %6519 = vmatpush1.msra.mxu0 0.0
        %6520 = vmatprep.subr.mxu0 0.0
        %6521 = vmatpush1.msra.mxu0 0.0
        %6522 = vmatprep.subr.mxu0 0.0
        %6523 = vmatpush1.msra.mxu0 0.0
        %6524 = vmatprep.subr.mxu0 0.0
        %6525 = vmatpush1.msra.mxu0 0.0
        %6526 = vmatprep.subr.mxu0 0.0
        %6527 = vmatpush1.msra.mxu0 0.0
        %6528 = vmatprep.subr.mxu0 0.0
        %6529 = vmatpush1.msra.mxu0 0.0
        %6530 = vmatprep.subr.mxu0 0.0
        %6531 = vmatpush1.msra.mxu0 0.0
        %6532 = vmatprep.mubr.f32.mxu0 %v6373
        %6533 = vmatmul.mubr.f32.gmra.mrb[0].mxu0 %v6313
        %v6534 = vpop.f32.mrb[0].mxu0
        %v6535 = vadd.f32 0.0, %v6534
        %v6536 = vpop.f32.mrb[0].mxu0
        %6537 = vmatprep.mubr.f32.mxu0 %v6376
        %6538 = vmatmul.mubr.f32.gmra.mrb[0].mxu0 %v6314
        %v6539 = vpop.f32.mrb[0].mxu0
        %v6540 = vadd.f32 0.0, %v6539
        %v6541 = vpop.f32.mrb[0].mxu0
        %6542 = vmatprep.mubr.f32.mxu0 %v6379
        %6543 = vmatmul.mubr.f32.gmra.mrb[0].mxu0 %v6315
        %v6544 = vpop.f32.mrb[0].mxu0
        %v6545 = vadd.f32 0.0, %v6544
        %v6546 = vpop.f32.mrb[0].mxu0
        %6547 = vmatprep.mubr.f32.mxu0 %v6382
        %6548 = vmatmul.mubr.f32.gmra.mrb[0].mxu0 %v6316
        %v6549 = vpop.f32.mrb[0].mxu0
        %v6550 = vadd.f32 0.0, %v6549
        %v6551 = vpop.f32.mrb[0].mxu0
        %6552 = vmatprep.mubr.f32.mxu0 %v6385
        %6553 = vmatmul.mubr.f32.gmra.mrb[0].mxu0 %v6317
        %v6554 = vpop.f32.mrb[0].mxu0
        %v6555 = vadd.f32 0.0, %v6554
        %v6556 = vpop.f32.mrb[0].mxu0
        %6557 = vmatprep.mubr.f32.mxu0 %v6388
        %6558 = vmatmul.mubr.f32.gmra.mrb[0].mxu0 %v6318
        %v6559 = vpop.f32.mrb[0].mxu0
        %v6560 = vadd.f32 0.0, %v6559
        %v6561 = vpop.f32.mrb[0].mxu0
        %6562 = vmatprep.mubr.f32.mxu0 %v6391
        %6563 = vmatmul.mubr.f32.gmra.mrb[0].mxu0 %v6319
        %v6564 = vpop.f32.mrb[0].mxu0
        %v6565 = vadd.f32 0.0, %v6564
        %v6566 = vpop.f32.mrb[0].mxu0
        %6567 = vmatprep.mubr.f32.mxu0 %v6394
        %6568 = vmatmul.mubr.f32.gmra.mrb[0].mxu0 %v6320
        %v6569 = vpop.f32.mrb[0].mxu0
        %v6570 = vadd.f32 0.0, %v6569
        %v6571 = vpop.f32.mrb[0].mxu0
        %6572 = vmatprep.mubr.f32.mxu0 %v6397
        %6573 = vmatmul.mubr.f32.gmra.mrb[0].mxu0 %v6321
        %v6574 = vpop.f32.mrb[0].mxu0
        %v6575 = vadd.f32 0.0, %v6574
        %v6576 = vpop.f32.mrb[0].mxu0
        %6577 = vmatprep.mubr.f32.mxu0 %v6400
        %6578 = vmatmul.mubr.f32.gmra.mrb[0].mxu0 %v6322
        %v6579 = vpop.f32.mrb[0].mxu0
        %v6580 = vadd.f32 0.0, %v6579
        %v6581 = vpop.f32.mrb[0].mxu0
        %6582 = vmatprep.mubr.f32.mxu0 %v6403
        %6583 = vmatmul.mubr.f32.gmra.mrb[0].mxu0 %v6323
        %v6584 = vpop.f32.mrb[0].mxu0
        %v6585 = vadd.f32 0.0, %v6584
        %v6586 = vpop.f32.mrb[0].mxu0
        %6587 = vmatprep.mubr.f32.mxu0 %v6406
        %6588 = vmatmul.mubr.f32.gmra.mrb[0].mxu0 %v6324
        %v6589 = vpop.f32.mrb[0].mxu0
        %v6590 = vadd.f32 0.0, %v6589
        %v6591 = vpop.f32.mrb[0].mxu0
        %6592 = vmatprep.mubr.f32.mxu0 %v6409
        %6593 = vmatmul.mubr.f32.gmra.mrb[0].mxu0 %v6325
        %v6594 = vpop.f32.mrb[0].mxu0
        %v6595 = vadd.f32 0.0, %v6594
        %v6596 = vpop.f32.mrb[0].mxu0
        %6597 = vmatprep.mubr.f32.mxu0 %v6412
        %6598 = vmatmul.mubr.f32.gmra.mrb[0].mxu0 %v6326
        %v6599 = vpop.f32.mrb[0].mxu0
        %v6600 = vadd.f32 0.0, %v6599
        %v6601 = vpop.f32.mrb[0].mxu0
        %6602 = vmatprep.mubr.f32.mxu0 %v6415
        %6603 = vmatmul.mubr.f32.gmra.mrb[0].mxu0 %v6327
        %v6604 = vpop.f32.mrb[0].mxu0
        %v6605 = vadd.f32 0.0, %v6604
        %v6606 = vpop.f32.mrb[0].mxu0
        %6607 = vmatprep.mubr.f32.mxu0 %v6418
        %6608 = vmatmul.mubr.f32.gmra.mrb[0].mxu0 %v6328
        %v6609 = vpop.f32.mrb[0].mxu0
        %v6610 = vadd.f32 0.0, %v6609
        %v6611 = vpop.f32.mrb[0].mxu0
        %6612 = vmatprep.mubr.f32.mxu0 %v6421
        %6613 = vmatmul.mubr.f32.gmra.mrb[0].mxu0 %v6329
        %v6614 = vpop.f32.mrb[0].mxu0
        %v6615 = vadd.f32 0.0, %v6614
        %v6616 = vpop.f32.mrb[0].mxu0
        %6617 = vmatprep.mubr.f32.mxu0 %v6424
        %6618 = vmatmul.mubr.f32.gmra.mrb[0].mxu0 %v6330
        %v6619 = vpop.f32.mrb[0].mxu0
        %v6620 = vadd.f32 0.0, %v6619
        %v6621 = vpop.f32.mrb[0].mxu0
        %6622 = vmatprep.mubr.f32.mxu0 %v6427
        %6623 = vmatmul.mubr.f32.gmra.mrb[0].mxu0 %v6331
        %v6624 = vpop.f32.mrb[0].mxu0
        %v6625 = vadd.f32 0.0, %v6624
        %v6626 = vpop.f32.mrb[0].mxu0
        %6627 = vmatprep.mubr.f32.mxu0 %v6430
        %6628 = vmatmul.mubr.f32.gmra.mrb[0].mxu0 %v6332
        %v6629 = vpop.f32.mrb[0].mxu0
        %v6630 = vadd.f32 0.0, %v6629
        %v6631 = vpop.f32.mrb[0].mxu0
        %6632 = vmatprep.mubr.f32.mxu0 %v6433
        %6633 = vmatmul.mubr.f32.gmra.mrb[0].mxu0 %v6333
        %v6634 = vpop.f32.mrb[0].mxu0
        %v6635 = vadd.f32 0.0, %v6634
        %v6636 = vpop.f32.mrb[0].mxu0
        %6637 = vmatprep.mubr.f32.mxu0 %v6436
        %6638 = vmatmul.mubr.f32.gmra.mrb[0].mxu0 %v6334
        %v6639 = vpop.f32.mrb[0].mxu0
        %v6640 = vadd.f32 0.0, %v6639
        %v6641 = vpop.f32.mrb[0].mxu0
        %6642 = vmatprep.mubr.f32.mxu0 %v6439
        %6643 = vmatmul.mubr.f32.gmra.mrb[0].mxu0 %v6335
        %v6644 = vpop.f32.mrb[0].mxu0
        %v6645 = vadd.f32 0.0, %v6644
        %v6646 = vpop.f32.mrb[0].mxu0
        %6647 = vmatprep.mubr.f32.mxu0 %v6442
        %6648 = vmatmul.mubr.f32.gmra.mrb[0].mxu0 %v6336
        %v6649 = vpop.f32.mrb[0].mxu0
        %v6650 = vadd.f32 0.0, %v6649
        %v6651 = vpop.f32.mrb[0].mxu0
        %6652 = vmatprep.mubr.f32.mxu0 %v6445
        %6653 = vmatmul.mubr.f32.gmra.mrb[0].mxu0 %v6337
        %v6654 = vpop.f32.mrb[0].mxu0
        %v6655 = vadd.f32 0.0, %v6654
        %v6656 = vpop.f32.mrb[0].mxu0
        %6657 = vmatprep.mubr.f32.mxu0 %v6448
        %6658 = vmatmul.mubr.f32.gmra.mrb[0].mxu0 %v6338
        %v6659 = vpop.f32.mrb[0].mxu0
        %v6660 = vadd.f32 0.0, %v6659
        %v6661 = vpop.f32.mrb[0].mxu0
        %6662 = vmatprep.mubr.f32.mxu0 %v6451
        %6663 = vmatmul.mubr.f32.gmra.mrb[0].mxu0 %v6339
        %v6664 = vpop.f32.mrb[0].mxu0
        %v6665 = vadd.f32 0.0, %v6664
        %v6666 = vpop.f32.mrb[0].mxu0
        %6667 = vmatprep.mubr.f32.mxu0 %v6454
        %6668 = vmatmul.mubr.f32.gmra.mrb[0].mxu0 %v6340
        %v6669 = vpop.f32.mrb[0].mxu0
        %v6670 = vadd.f32 0.0, %v6669
        %v6671 = vpop.f32.mrb[0].mxu0
        %6672 = vmatprep.mubr.f32.mxu0 %v6457
        %6673 = vmatmul.mubr.f32.gmra.mrb[0].mxu0 %v6341
        %v6674 = vpop.f32.mrb[0].mxu0
        %v6675 = vadd.f32 0.0, %v6674
        %v6676 = vpop.f32.mrb[0].mxu0
        %6677 = vmatprep.mubr.f32.mxu0 %v6460
        %6678 = vmatmul.mubr.f32.gmra.mrb[0].mxu0 %v6342
        %v6679 = vpop.f32.mrb[0].mxu0
        %v6680 = vadd.f32 0.0, %v6679
        %v6681 = vpop.f32.mrb[0].mxu0
        %6682 = vmatprep.mubr.f32.mxu0 %v6463
        %6683 = vmatmul.mubr.f32.gmra.mrb[0].mxu0 %v6343
        %v6684 = vpop.f32.mrb[0].mxu0
        %v6685 = vadd.f32 0.0, %v6684
        %v6686 = vpop.f32.mrb[0].mxu0
        %6687 = vmatprep.mubr.f32.mxu0 %v6466
        %6688 = vmatmul.mubr.f32.gmra.mrb[0].mxu0 %v6344
        %v6689 = vpop.f32.mrb[0].mxu0
        %v6690 = vadd.f32 0.0, %v6689
        %v6691 = vpop.f32.mrb[0].mxu0
        %6692 = vdwg.mxu0
        %v6693 = vadd.f32 %v5930, %v6535
        %v6694 = vadd.f32 %v5935, %v6540
        %v6695 = vadd.f32 %v5940, %v6545
        %v6696 = vadd.f32 %v5945, %v6550
        %v6697 = vadd.f32 %v5950, %v6555
        %v6698 = vadd.f32 %v5955, %v6560
        %v6699 = vadd.f32 %v5960, %v6565
        %v6700 = vadd.f32 %v5965, %v6570
        %v6701 = vadd.f32 %v5970, %v6575
        %v6702 = vadd.f32 %v5975, %v6580
        %v6703 = vadd.f32 %v5980, %v6585
        %v6704 = vadd.f32 %v5985, %v6590
        %v6705 = vadd.f32 %v5990, %v6595
        %v6706 = vadd.f32 %v5995, %v6600
        %v6707 = vadd.f32 %v6000, %v6605
        %v6708 = vadd.f32 %v6005, %v6610
        %v6709 = vadd.f32 %v6010, %v6615
        %v6710 = vadd.f32 %v6015, %v6620
        %v6711 = vadd.f32 %v6020, %v6625
        %v6712 = vadd.f32 %v6025, %v6630
        %v6713 = vadd.f32 %v6030, %v6635
        %v6714 = vadd.f32 %v6035, %v6640
        %v6715 = vadd.f32 %v6040, %v6645
        %v6716 = vadd.f32 %v6045, %v6650
        %v6717 = vadd.f32 %v6050, %v6655
        %v6718 = vadd.f32 %v6055, %v6660
        %v6719 = vadd.f32 %v6060, %v6665
        %v6720 = vadd.f32 %v6065, %v6670
        %v6721 = vadd.f32 %v6070, %v6675
        %v6722 = vadd.f32 %v6075, %v6680
        %v6723 = vadd.f32 %v6080, %v6685
        %v6724 = vadd.f32 %v6085, %v6690
        %s6725 = sadd.s32 %s4774, 1
        %s6726 = scalar_lea.vmem %s4, %s6725
        %v6727 = vld [vmem:[%s6726] sm:$0x1]
        %v6729 = vlaneseq
        %v6730 = vshrl.u32 %v6729, 7
        %v6731 = vsub.s32 0, %v6730
        %v6732 = vrot.slane %v6727, %v6731
        %v6734 = vadd.f32 %v6693, %v6732
        %v6735 = vadd.f32 %v6694, %v6732
        %v6736 = vadd.f32 %v6695, %v6732
        %v6737 = vadd.f32 %v6696, %v6732
        %v6738 = vadd.f32 %v6697, %v6732
        %v6739 = vadd.f32 %v6698, %v6732
        %v6740 = vadd.f32 %v6699, %v6732
        %v6741 = vadd.f32 %v6700, %v6732
        %v6742 = vadd.f32 %v6701, %v6732
        %v6743 = vadd.f32 %v6702, %v6732
        %v6744 = vadd.f32 %v6703, %v6732
        %v6745 = vadd.f32 %v6704, %v6732
        %v6746 = vadd.f32 %v6705, %v6732
        %v6747 = vadd.f32 %v6706, %v6732
        %v6748 = vadd.f32 %v6707, %v6732
        %v6749 = vadd.f32 %v6708, %v6732
        %v6750 = vadd.f32 %v6709, %v6732
        %v6751 = vadd.f32 %v6710, %v6732
        %v6752 = vadd.f32 %v6711, %v6732
        %v6753 = vadd.f32 %v6712, %v6732
        %v6754 = vadd.f32 %v6713, %v6732
        %v6755 = vadd.f32 %v6714, %v6732
        %v6756 = vadd.f32 %v6715, %v6732
        %v6757 = vadd.f32 %v6716, %v6732
        %v6758 = vadd.f32 %v6717, %v6732
        %v6759 = vadd.f32 %v6718, %v6732
        %v6760 = vadd.f32 %v6719, %v6732
        %v6761 = vadd.f32 %v6720, %v6732
        %v6762 = vadd.f32 %v6721, %v6732
        %v6763 = vadd.f32 %v6722, %v6732
        %v6764 = vadd.f32 %v6723, %v6732
        %v6765 = vadd.f32 %v6724, %v6732
        %v6766 = vmax.f32 %v6734, 0.0
        %v6767 = vmax.f32 %v6735, 0.0
        %v6768 = vmax.f32 %v6736, 0.0
        %v6769 = vmax.f32 %v6737, 0.0
        %v6770 = vmax.f32 %v6738, 0.0
        %v6771 = vmax.f32 %v6739, 0.0
        %v6772 = vmax.f32 %v6740, 0.0
        %v6773 = vmax.f32 %v6741, 0.0
        %v6774 = vmax.f32 %v6742, 0.0
        %v6775 = vmax.f32 %v6743, 0.0
        %v6776 = vmax.f32 %v6744, 0.0
        %v6777 = vmax.f32 %v6745, 0.0
        %v6778 = vmax.f32 %v6746, 0.0
        %v6779 = vmax.f32 %v6747, 0.0
        %v6780 = vmax.f32 %v6748, 0.0
        %v6781 = vmax.f32 %v6749, 0.0
        %v6782 = vmax.f32 %v6750, 0.0
        %v6783 = vmax.f32 %v6751, 0.0
        %v6784 = vmax.f32 %v6752, 0.0
        %v6785 = vmax.f32 %v6753, 0.0
        %v6786 = vmax.f32 %v6754, 0.0
        %v6787 = vmax.f32 %v6755, 0.0
        %v6788 = vmax.f32 %v6756, 0.0
        %v6789 = vmax.f32 %v6757, 0.0
        %v6790 = vmax.f32 %v6758, 0.0
        %v6791 = vmax.f32 %v6759, 0.0
        %v6792 = vmax.f32 %v6760, 0.0
        %v6793 = vmax.f32 %v6761, 0.0
        %v6794 = vmax.f32 %v6762, 0.0
        %v6795 = vmax.f32 %v6763, 0.0
        %v6796 = vmax.f32 %v6764, 0.0
        %v6797 = vmax.f32 %v6765, 0.0
        %6798 = vst.msk [vmem:[%s2890 + $0x8] sm:$0xff] %vm352, %v6766
        %6799 = vst.msk [vmem:[%s2890 + $0x10] sm:$0xff] %vm352, %v6767
        %6800 = vst.msk [vmem:[%s2890 + $0x28] sm:$0xff] %vm352, %v6768
        %6801 = vst.msk [vmem:[%s2890 + $0x30] sm:$0xff] %vm352, %v6769
        %6802 = vst.msk [vmem:[%s2890 + $0x48] sm:$0xff] %vm352, %v6770
        %6803 = vst.msk [vmem:[%s2890 + $0x50] sm:$0xff] %vm352, %v6771
        %6804 = vst.msk [vmem:[%s2890 + $0x68] sm:$0xff] %vm352, %v6772
        %6805 = vst.msk [vmem:[%s2890 + $0x70] sm:$0xff] %vm352, %v6773
        %6806 = vst.msk [vmem:[%s2890 + $0x88] sm:$0xff] %vm352, %v6774
        %6807 = vst.msk [vmem:[%s2890 + $0x90] sm:$0xff] %vm352, %v6775
        %6808 = vst.msk [vmem:[%s2890 + $0xa8] sm:$0xff] %vm352, %v6776
        %6809 = vst.msk [vmem:[%s2890 + $0xb0] sm:$0xff] %vm352, %v6777
        %6810 = vst.msk [vmem:[%s2890 + $0xc8] sm:$0xff] %vm352, %v6778
        %6811 = vst.msk [vmem:[%s2890 + $0xd0] sm:$0xff] %vm352, %v6779
        %6812 = vst.msk [vmem:[%s2890 + $0xe8] sm:$0xff] %vm352, %v6780
        %6813 = vst.msk [vmem:[%s2890 + $0xf0] sm:$0xff] %vm352, %v6781
        %6814 = vst.msk [vmem:[%s2890 + $0x108] sm:$0xff] %vm352, %v6782
        %6815 = vst.msk [vmem:[%s2890 + $0x110] sm:$0xff] %vm352, %v6783
        %6816 = vst.msk [vmem:[%s2890 + $0x128] sm:$0xff] %vm352, %v6784
        %6817 = vst.msk [vmem:[%s2890 + $0x130] sm:$0xff] %vm352, %v6785
        %6818 = vst.msk [vmem:[%s2890 + $0x148] sm:$0xff] %vm352, %v6786
        %6819 = vst.msk [vmem:[%s2890 + $0x150] sm:$0xff] %vm352, %v6787
        %6820 = vst.msk [vmem:[%s2890 + $0x168] sm:$0xff] %vm352, %v6788
        %6821 = vst.msk [vmem:[%s2890 + $0x170] sm:$0xff] %vm352, %v6789
        %6822 = vst.msk [vmem:[%s2890 + $0x188] sm:$0xff] %vm352, %v6790
        %6823 = vst.msk [vmem:[%s2890 + $0x190] sm:$0xff] %vm352, %v6791
        %6824 = vst.msk [vmem:[%s2890 + $0x1a8] sm:$0xff] %vm352, %v6792
        %6825 = vst.msk [vmem:[%s2890 + $0x1b0] sm:$0xff] %vm352, %v6793
        %6826 = vst.msk [vmem:[%s2890 + $0x1c8] sm:$0xff] %vm352, %v6794
        %6827 = vst.msk [vmem:[%s2890 + $0x1d0] sm:$0xff] %vm352, %v6795
        %6828 = vst.msk [vmem:[%s2890 + $0x1e8] sm:$0xff] %vm352, %v6796
        %6829 = vst.msk [vmem:[%s2890 + $0x1f0] sm:$0xff] %vm352, %v6797
      $region53: #{tpu_custom_call.1} parent=47 // loop_footer
        %s2928 = sadd.s32 1, %s2924
      $region54: #{tpu_custom_call.1} parent=47 // loop_footer_branch
        %2923 = sbr.rel target = $region50
      $region55: #{tpu_custom_call.1} parent=47 // loop_exit
        _
      %v6830 = vld [vmem:[#allocation3 + $0x7] sm:$0xff]
      %v6831 = vld [vmem:[#allocation3 + $0xf] sm:$0xff]
      %v6832 = vld [vmem:[#allocation3 + $0x27] sm:$0xff]
      %v6833 = vld [vmem:[#allocation3 + $0x2f] sm:$0xff]
      %v6834 = vld [vmem:[#allocation3 + $0x47] sm:$0xff]
      %v6835 = vld [vmem:[#allocation3 + $0x4f] sm:$0xff]
      %v6836 = vld [vmem:[#allocation3 + $0x67] sm:$0xff]
      %v6837 = vld [vmem:[#allocation3 + $0x6f] sm:$0xff]
      %v6838 = vld [vmem:[#allocation3 + $0x87] sm:$0xff]
      %v6839 = vld [vmem:[#allocation3 + $0x8f] sm:$0xff]
      %v6840 = vld [vmem:[#allocation3 + $0xa7] sm:$0xff]
      %v6841 = vld [vmem:[#allocation3 + $0xaf] sm:$0xff]
      %v6842 = vld [vmem:[#allocation3 + $0xc7] sm:$0xff]
      %v6843 = vld [vmem:[#allocation3 + $0xcf] sm:$0xff]
      %v6844 = vld [vmem:[#allocation3 + $0xe7] sm:$0xff]
      %v6845 = vld [vmem:[#allocation3 + $0xef] sm:$0xff]
      %v6846 = vld [vmem:[#allocation3 + $0x107] sm:$0xff]
      %v6847 = vld [vmem:[#allocation3 + $0x10f] sm:$0xff]
      %v6848 = vld [vmem:[#allocation3 + $0x127] sm:$0xff]
      %v6849 = vld [vmem:[#allocation3 + $0x12f] sm:$0xff]
      %v6850 = vld [vmem:[#allocation3 + $0x147] sm:$0xff]
      %v6851 = vld [vmem:[#allocation3 + $0x14f] sm:$0xff]
      %v6852 = vld [vmem:[#allocation3 + $0x167] sm:$0xff]
      %v6853 = vld [vmem:[#allocation3 + $0x16f] sm:$0xff]
      %v6854 = vld [vmem:[#allocation3 + $0x187] sm:$0xff]
      %v6855 = vld [vmem:[#allocation3 + $0x18f] sm:$0xff]
      %v6856 = vld [vmem:[#allocation3 + $0x1a7] sm:$0xff]
      %v6857 = vld [vmem:[#allocation3 + $0x1af] sm:$0xff]
      %v6858 = vld [vmem:[#allocation3 + $0x1c7] sm:$0xff]
      %v6859 = vld [vmem:[#allocation3 + $0x1cf] sm:$0xff]
      %v6860 = vld [vmem:[#allocation3 + $0x1e7] sm:$0xff]
      %v6861 = vld [vmem:[#allocation3 + $0x1ef] sm:$0xff]
      %v6862 = vld [vmem:[#allocation3 + $0x8] sm:$0xff]
      %v6863 = vld [vmem:[#allocation3 + $0x10] sm:$0xff]
      %v6864 = vld [vmem:[#allocation3 + $0x28] sm:$0xff]
      %v6865 = vld [vmem:[#allocation3 + $0x30] sm:$0xff]
      %v6866 = vld [vmem:[#allocation3 + $0x48] sm:$0xff]
      %v6867 = vld [vmem:[#allocation3 + $0x50] sm:$0xff]
      %v6868 = vld [vmem:[#allocation3 + $0x68] sm:$0xff]
      %v6869 = vld [vmem:[#allocation3 + $0x70] sm:$0xff]
      %v6870 = vld [vmem:[#allocation3 + $0x88] sm:$0xff]
      %v6871 = vld [vmem:[#allocation3 + $0x90] sm:$0xff]
      %v6872 = vld [vmem:[#allocation3 + $0xa8] sm:$0xff]
      %v6873 = vld [vmem:[#allocation3 + $0xb0] sm:$0xff]
      %v6874 = vld [vmem:[#allocation3 + $0xc8] sm:$0xff]
      %v6875 = vld [vmem:[#allocation3 + $0xd0] sm:$0xff]
      %v6876 = vld [vmem:[#allocation3 + $0xe8] sm:$0xff]
      %v6877 = vld [vmem:[#allocation3 + $0xf0] sm:$0xff]
      %v6878 = vld [vmem:[#allocation3 + $0x108] sm:$0xff]
      %v6879 = vld [vmem:[#allocation3 + $0x110] sm:$0xff]
      %v6880 = vld [vmem:[#allocation3 + $0x128] sm:$0xff]
      %v6881 = vld [vmem:[#allocation3 + $0x130] sm:$0xff]
      %v6882 = vld [vmem:[#allocation3 + $0x148] sm:$0xff]
      %v6883 = vld [vmem:[#allocation3 + $0x150] sm:$0xff]
      %v6884 = vld [vmem:[#allocation3 + $0x168] sm:$0xff]
      %v6885 = vld [vmem:[#allocation3 + $0x170] sm:$0xff]
      %v6886 = vld [vmem:[#allocation3 + $0x188] sm:$0xff]
      %v6887 = vld [vmem:[#allocation3 + $0x190] sm:$0xff]
      %v6888 = vld [vmem:[#allocation3 + $0x1a8] sm:$0xff]
      %v6889 = vld [vmem:[#allocation3 + $0x1b0] sm:$0xff]
      %v6890 = vld [vmem:[#allocation3 + $0x1c8] sm:$0xff]
      %v6891 = vld [vmem:[#allocation3 + $0x1d0] sm:$0xff]
      %v6892 = vld [vmem:[#allocation3 + $0x1e8] sm:$0xff]
      %v6893 = vld [vmem:[#allocation3 + $0x1f0] sm:$0xff]
      %v6894 = vld [vmem:[#allocation3 + $0x9] sm:$0xff]
      %v6895 = vld [vmem:[#allocation3 + $0x11] sm:$0xff]
      %v6896 = vld [vmem:[#allocation3 + $0x29] sm:$0xff]
      %v6897 = vld [vmem:[#allocation3 + $0x31] sm:$0xff]
      %v6898 = vld [vmem:[#allocation3 + $0x49] sm:$0xff]
      %v6899 = vld [vmem:[#allocation3 + $0x51] sm:$0xff]
      %v6900 = vld [vmem:[#allocation3 + $0x69] sm:$0xff]
      %v6901 = vld [vmem:[#allocation3 + $0x71] sm:$0xff]
      %v6902 = vld [vmem:[#allocation3 + $0x89] sm:$0xff]
      %v6903 = vld [vmem:[#allocation3 + $0x91] sm:$0xff]
      %v6904 = vld [vmem:[#allocation3 + $0xa9] sm:$0xff]
      %v6905 = vld [vmem:[#allocation3 + $0xb1] sm:$0xff]
      %v6906 = vld [vmem:[#allocation3 + $0xc9] sm:$0xff]
      %v6907 = vld [vmem:[#allocation3 + $0xd1] sm:$0xff]
      %v6908 = vld [vmem:[#allocation3 + $0xe9] sm:$0xff]
      %v6909 = vld [vmem:[#allocation3 + $0xf1] sm:$0xff]
      %v6910 = vld [vmem:[#allocation3 + $0x109] sm:$0xff]
      %v6911 = vld [vmem:[#allocation3 + $0x111] sm:$0xff]
      %v6912 = vld [vmem:[#allocation3 + $0x129] sm:$0xff]
      %v6913 = vld [vmem:[#allocation3 + $0x131] sm:$0xff]
      %v6914 = vld [vmem:[#allocation3 + $0x149] sm:$0xff]
      %v6915 = vld [vmem:[#allocation3 + $0x151] sm:$0xff]
      %v6916 = vld [vmem:[#allocation3 + $0x169] sm:$0xff]
      %v6917 = vld [vmem:[#allocation3 + $0x171] sm:$0xff]
      %v6918 = vld [vmem:[#allocation3 + $0x189] sm:$0xff]
      %v6919 = vld [vmem:[#allocation3 + $0x191] sm:$0xff]
      %v6920 = vld [vmem:[#allocation3 + $0x1a9] sm:$0xff]
      %v6921 = vld [vmem:[#allocation3 + $0x1b1] sm:$0xff]
      %v6922 = vld [vmem:[#allocation3 + $0x1c9] sm:$0xff]
      %v6923 = vld [vmem:[#allocation3 + $0x1d1] sm:$0xff]
      %v6924 = vld [vmem:[#allocation3 + $0x1e9] sm:$0xff]
      %v6925 = vld [vmem:[#allocation3 + $0x1f1] sm:$0xff]
      %6958 = vrot.lane.b32.xlu0 %v6862, 64
      %v6959 = vpop.permute.xlu0 %6958
      %6960 = vrot.lane.b32.xlu0 %v6863, 64
      %v6961 = vpop.permute.xlu0 %6960
      %6962 = vrot.lane.b32.xlu0 %v6864, 64
      %v6963 = vpop.permute.xlu0 %6962
      %6964 = vrot.lane.b32.xlu0 %v6865, 64
      %v6965 = vpop.permute.xlu0 %6964
      %6966 = vrot.lane.b32.xlu0 %v6866, 64
      %v6967 = vpop.permute.xlu0 %6966
      %6968 = vrot.lane.b32.xlu0 %v6867, 64
      %v6969 = vpop.permute.xlu0 %6968
      %6970 = vrot.lane.b32.xlu0 %v6868, 64
      %v6971 = vpop.permute.xlu0 %6970
      %6972 = vrot.lane.b32.xlu0 %v6869, 64
      %v6973 = vpop.permute.xlu0 %6972
      %6974 = vrot.lane.b32.xlu0 %v6870, 64
      %v6975 = vpop.permute.xlu0 %6974
      %6976 = vrot.lane.b32.xlu0 %v6871, 64
      %v6977 = vpop.permute.xlu0 %6976
      %6978 = vrot.lane.b32.xlu0 %v6872, 64
      %v6979 = vpop.permute.xlu0 %6978
      %6980 = vrot.lane.b32.xlu0 %v6873, 64
      %v6981 = vpop.permute.xlu0 %6980
      %6982 = vrot.lane.b32.xlu0 %v6874, 64
      %v6983 = vpop.permute.xlu0 %6982
      %6984 = vrot.lane.b32.xlu0 %v6875, 64
      %v6985 = vpop.permute.xlu0 %6984
      %6986 = vrot.lane.b32.xlu0 %v6876, 64
      %v6987 = vpop.permute.xlu0 %6986
      %6988 = vrot.lane.b32.xlu0 %v6877, 64
      %v6989 = vpop.permute.xlu0 %6988
      %6990 = vrot.lane.b32.xlu0 %v6878, 64
      %v6991 = vpop.permute.xlu0 %6990
      %6992 = vrot.lane.b32.xlu0 %v6879, 64
      %v6993 = vpop.permute.xlu0 %6992
      %6994 = vrot.lane.b32.xlu0 %v6880, 64
      %v6995 = vpop.permute.xlu0 %6994
      %6996 = vrot.lane.b32.xlu0 %v6881, 64
      %v6997 = vpop.permute.xlu0 %6996
      %6998 = vrot.lane.b32.xlu0 %v6882, 64
      %v6999 = vpop.permute.xlu0 %6998
      %7000 = vrot.lane.b32.xlu0 %v6883, 64
      %v7001 = vpop.permute.xlu0 %7000
      %7002 = vrot.lane.b32.xlu0 %v6884, 64
      %v7003 = vpop.permute.xlu0 %7002
      %7004 = vrot.lane.b32.xlu0 %v6885, 64
      %v7005 = vpop.permute.xlu0 %7004
      %7006 = vrot.lane.b32.xlu0 %v6886, 64
      %v7007 = vpop.permute.xlu0 %7006
      %7008 = vrot.lane.b32.xlu0 %v6887, 64
      %v7009 = vpop.permute.xlu0 %7008
      %7010 = vrot.lane.b32.xlu0 %v6888, 64
      %v7011 = vpop.permute.xlu0 %7010
      %7012 = vrot.lane.b32.xlu0 %v6889, 64
      %v7013 = vpop.permute.xlu0 %7012
      %7014 = vrot.lane.b32.xlu0 %v6890, 64
      %v7015 = vpop.permute.xlu0 %7014
      %7016 = vrot.lane.b32.xlu0 %v6891, 64
      %v7017 = vpop.permute.xlu0 %7016
      %7018 = vrot.lane.b32.xlu0 %v6892, 64
      %v7019 = vpop.permute.xlu0 %7018
      %7020 = vrot.lane.b32.xlu0 %v6893, 64
      %v7021 = vpop.permute.xlu0 %7020
      %v7054 = vsel %vm352, %v6830, %v6959
      %v7055 = vsel %vm352, %v6831, %v6961
      %v7056 = vsel %vm352, %v6832, %v6963
      %v7057 = vsel %vm352, %v6833, %v6965
      %v7058 = vsel %vm352, %v6834, %v6967
      %v7059 = vsel %vm352, %v6835, %v6969
      %v7060 = vsel %vm352, %v6836, %v6971
      %v7061 = vsel %vm352, %v6837, %v6973
      %v7062 = vsel %vm352, %v6838, %v6975
      %v7063 = vsel %vm352, %v6839, %v6977
      %v7064 = vsel %vm352, %v6840, %v6979
      %v7065 = vsel %vm352, %v6841, %v6981
      %v7066 = vsel %vm352, %v6842, %v6983
      %v7067 = vsel %vm352, %v6843, %v6985
      %v7068 = vsel %vm352, %v6844, %v6987
      %v7069 = vsel %vm352, %v6845, %v6989
      %v7070 = vsel %vm352, %v6846, %v6991
      %v7071 = vsel %vm352, %v6847, %v6993
      %v7072 = vsel %vm352, %v6848, %v6995
      %v7073 = vsel %vm352, %v6849, %v6997
      %v7074 = vsel %vm352, %v6850, %v6999
      %v7075 = vsel %vm352, %v6851, %v7001
      %v7076 = vsel %vm352, %v6852, %v7003
      %v7077 = vsel %vm352, %v6853, %v7005
      %v7078 = vsel %vm352, %v6854, %v7007
      %v7079 = vsel %vm352, %v6855, %v7009
      %v7080 = vsel %vm352, %v6856, %v7011
      %v7081 = vsel %vm352, %v6857, %v7013
      %v7082 = vsel %vm352, %v6858, %v7015
      %v7083 = vsel %vm352, %v6859, %v7017
      %v7084 = vsel %vm352, %v6860, %v7019
      %v7085 = vsel %vm352, %v6861, %v7021
      %v7086 = vld [vmem:[%s5] sm:$0xff]
      %v7087 = vld [vmem:[%s5 + $0x8] sm:$0xff]
      %v7088 = vld [vmem:[%s5 + $0x10] sm:$0xff]
      %v7089 = vld [vmem:[%s5 + $0x18] sm:$0xff]
      %v7090 = vld [vmem:[%s5 + $0x20] sm:$0xff]
      %v7091 = vld [vmem:[%s5 + $0x28] sm:$0xff]
      %v7092 = vld [vmem:[%s5 + $0x30] sm:$0xff]
      %v7093 = vld [vmem:[%s5 + $0x38] sm:$0xff]
      %v7094 = vld [vmem:[%s5 + $0x40] sm:$0xff]
      %v7095 = vld [vmem:[%s5 + $0x48] sm:$0xff]
      %v7096 = vld [vmem:[%s5 + $0x50] sm:$0xff]
      %v7097 = vld [vmem:[%s5 + $0x58] sm:$0xff]
      %v7098 = vld [vmem:[%s5 + $0x60] sm:$0xff]
      %v7099 = vld [vmem:[%s5 + $0x68] sm:$0xff]
      %v7100 = vld [vmem:[%s5 + $0x70] sm:$0xff]
      %v7101 = vld [vmem:[%s5 + $0x78] sm:$0xff]
      %v7102 = vld [vmem:[%s5 + $0x80] sm:$0xff]
      %v7103 = vld [vmem:[%s5 + $0x88] sm:$0xff]
      %v7104 = vld [vmem:[%s5 + $0x90] sm:$0xff]
      %v7105 = vld [vmem:[%s5 + $0x98] sm:$0xff]
      %v7106 = vld [vmem:[%s5 + $0xa0] sm:$0xff]
      %v7107 = vld [vmem:[%s5 + $0xa8] sm:$0xff]
      %v7108 = vld [vmem:[%s5 + $0xb0] sm:$0xff]
      %v7109 = vld [vmem:[%s5 + $0xb8] sm:$0xff]
      %v7110 = vld [vmem:[%s2890 + $0x7] sm:$0xff]
      %v7111 = vld [vmem:[%s2890 + $0xf] sm:$0xff]
      %v7112 = vld [vmem:[%s2890 + $0x27] sm:$0xff]
      %v7113 = vld [vmem:[%s2890 + $0x2f] sm:$0xff]
      %v7114 = vld [vmem:[%s2890 + $0x47] sm:$0xff]
      %v7115 = vld [vmem:[%s2890 + $0x4f] sm:$0xff]
      %v7116 = vld [vmem:[%s2890 + $0x67] sm:$0xff]
      %v7117 = vld [vmem:[%s2890 + $0x6f] sm:$0xff]
      %v7118 = vld [vmem:[%s2890 + $0x87] sm:$0xff]
      %v7119 = vld [vmem:[%s2890 + $0x8f] sm:$0xff]
      %v7120 = vld [vmem:[%s2890 + $0xa7] sm:$0xff]
      %v7121 = vld [vmem:[%s2890 + $0xaf] sm:$0xff]
      %v7122 = vld [vmem:[%s2890 + $0xc7] sm:$0xff]
      %v7123 = vld [vmem:[%s2890 + $0xcf] sm:$0xff]
      %v7124 = vld [vmem:[%s2890 + $0xe7] sm:$0xff]
      %v7125 = vld [vmem:[%s2890 + $0xef] sm:$0xff]
      %v7126 = vld [vmem:[%s2890 + $0x107] sm:$0xff]
      %v7127 = vld [vmem:[%s2890 + $0x10f] sm:$0xff]
      %v7128 = vld [vmem:[%s2890 + $0x127] sm:$0xff]
      %v7129 = vld [vmem:[%s2890 + $0x12f] sm:$0xff]
      %v7130 = vld [vmem:[%s2890 + $0x147] sm:$0xff]
      %v7131 = vld [vmem:[%s2890 + $0x14f] sm:$0xff]
      %v7132 = vld [vmem:[%s2890 + $0x167] sm:$0xff]
      %v7133 = vld [vmem:[%s2890 + $0x16f] sm:$0xff]
      %v7134 = vld [vmem:[%s2890 + $0x187] sm:$0xff]
      %v7135 = vld [vmem:[%s2890 + $0x18f] sm:$0xff]
      %v7136 = vld [vmem:[%s2890 + $0x1a7] sm:$0xff]
      %v7137 = vld [vmem:[%s2890 + $0x1af] sm:$0xff]
      %v7138 = vld [vmem:[%s2890 + $0x1c7] sm:$0xff]
      %v7139 = vld [vmem:[%s2890 + $0x1cf] sm:$0xff]
      %v7140 = vld [vmem:[%s2890 + $0x1e7] sm:$0xff]
      %v7141 = vld [vmem:[%s2890 + $0x1ef] sm:$0xff]
      %v7142 = vld [vmem:[%s2890 + $0x8] sm:$0xff]
      %v7143 = vld [vmem:[%s2890 + $0x10] sm:$0xff]
      %v7144 = vld [vmem:[%s2890 + $0x28] sm:$0xff]
      %v7145 = vld [vmem:[%s2890 + $0x30] sm:$0xff]
      %v7146 = vld [vmem:[%s2890 + $0x48] sm:$0xff]
      %v7147 = vld [vmem:[%s2890 + $0x50] sm:$0xff]
      %v7148 = vld [vmem:[%s2890 + $0x68] sm:$0xff]
      %v7149 = vld [vmem:[%s2890 + $0x70] sm:$0xff]
      %v7150 = vld [vmem:[%s2890 + $0x88] sm:$0xff]
      %v7151 = vld [vmem:[%s2890 + $0x90] sm:$0xff]
      %v7152 = vld [vmem:[%s2890 + $0xa8] sm:$0xff]
      %v7153 = vld [vmem:[%s2890 + $0xb0] sm:$0xff]
      %v7154 = vld [vmem:[%s2890 + $0xc8] sm:$0xff]
      %v7155 = vld [vmem:[%s2890 + $0xd0] sm:$0xff]
      %v7156 = vld [vmem:[%s2890 + $0xe8] sm:$0xff]
      %v7157 = vld [vmem:[%s2890 + $0xf0] sm:$0xff]
      %v7158 = vld [vmem:[%s2890 + $0x108] sm:$0xff]
      %v7159 = vld [vmem:[%s2890 + $0x110] sm:$0xff]
      %v7160 = vld [vmem:[%s2890 + $0x128] sm:$0xff]
      %v7161 = vld [vmem:[%s2890 + $0x130] sm:$0xff]
      %v7162 = vld [vmem:[%s2890 + $0x148] sm:$0xff]
      %v7163 = vld [vmem:[%s2890 + $0x150] sm:$0xff]
      %v7164 = vld [vmem:[%s2890 + $0x168] sm:$0xff]
      %v7165 = vld [vmem:[%s2890 + $0x170] sm:$0xff]
      %v7166 = vld [vmem:[%s2890 + $0x188] sm:$0xff]
      %v7167 = vld [vmem:[%s2890 + $0x190] sm:$0xff]
      %v7168 = vld [vmem:[%s2890 + $0x1a8] sm:$0xff]
      %v7169 = vld [vmem:[%s2890 + $0x1b0] sm:$0xff]
      %v7170 = vld [vmem:[%s2890 + $0x1c8] sm:$0xff]
      %v7171 = vld [vmem:[%s2890 + $0x1d0] sm:$0xff]
      %v7172 = vld [vmem:[%s2890 + $0x1e8] sm:$0xff]
      %v7173 = vld [vmem:[%s2890 + $0x1f0] sm:$0xff]
      %v7174 = vld [vmem:[%s2890 + $0x9] sm:$0xff]
      %v7175 = vld [vmem:[%s2890 + $0x11] sm:$0xff]
      %v7176 = vld [vmem:[%s2890 + $0x29] sm:$0xff]
      %v7177 = vld [vmem:[%s2890 + $0x31] sm:$0xff]
      %v7178 = vld [vmem:[%s2890 + $0x49] sm:$0xff]
      %v7179 = vld [vmem:[%s2890 + $0x51] sm:$0xff]
      %v7180 = vld [vmem:[%s2890 + $0x69] sm:$0xff]
      %v7181 = vld [vmem:[%s2890 + $0x71] sm:$0xff]
      %v7182 = vld [vmem:[%s2890 + $0x89] sm:$0xff]
      %v7183 = vld [vmem:[%s2890 + $0x91] sm:$0xff]
      %v7184 = vld [vmem:[%s2890 + $0xa9] sm:$0xff]
      %v7185 = vld [vmem:[%s2890 + $0xb1] sm:$0xff]
      %v7186 = vld [vmem:[%s2890 + $0xc9] sm:$0xff]
      %v7187 = vld [vmem:[%s2890 + $0xd1] sm:$0xff]
      %v7188 = vld [vmem:[%s2890 + $0xe9] sm:$0xff]
      %v7189 = vld [vmem:[%s2890 + $0xf1] sm:$0xff]
      %v7190 = vld [vmem:[%s2890 + $0x109] sm:$0xff]
      %v7191 = vld [vmem:[%s2890 + $0x111] sm:$0xff]
      %v7192 = vld [vmem:[%s2890 + $0x129] sm:$0xff]
      %v7193 = vld [vmem:[%s2890 + $0x131] sm:$0xff]
      %v7194 = vld [vmem:[%s2890 + $0x149] sm:$0xff]
      %v7195 = vld [vmem:[%s2890 + $0x151] sm:$0xff]
      %v7196 = vld [vmem:[%s2890 + $0x169] sm:$0xff]
      %v7197 = vld [vmem:[%s2890 + $0x171] sm:$0xff]
      %v7198 = vld [vmem:[%s2890 + $0x189] sm:$0xff]
      %v7199 = vld [vmem:[%s2890 + $0x191] sm:$0xff]
      %v7200 = vld [vmem:[%s2890 + $0x1a9] sm:$0xff]
      %v7201 = vld [vmem:[%s2890 + $0x1b1] sm:$0xff]
      %v7202 = vld [vmem:[%s2890 + $0x1c9] sm:$0xff]
      %v7203 = vld [vmem:[%s2890 + $0x1d1] sm:$0xff]
      %v7204 = vld [vmem:[%s2890 + $0x1e9] sm:$0xff]
      %v7205 = vld [vmem:[%s2890 + $0x1f1] sm:$0xff]
      %7238 = vrot.lane.b32.xlu0 %v7142, 64
      %v7239 = vpop.permute.xlu0 %7238
      %7240 = vrot.lane.b32.xlu0 %v7143, 64
      %v7241 = vpop.permute.xlu0 %7240
      %7242 = vrot.lane.b32.xlu0 %v7144, 64
      %v7243 = vpop.permute.xlu0 %7242
      %7244 = vrot.lane.b32.xlu0 %v7145, 64
      %v7245 = vpop.permute.xlu0 %7244
      %7246 = vrot.lane.b32.xlu0 %v7146, 64
      %v7247 = vpop.permute.xlu0 %7246
      %7248 = vrot.lane.b32.xlu0 %v7147, 64
      %v7249 = vpop.permute.xlu0 %7248
      %7250 = vrot.lane.b32.xlu0 %v7148, 64
      %v7251 = vpop.permute.xlu0 %7250
      %7252 = vrot.lane.b32.xlu0 %v7149, 64
      %v7253 = vpop.permute.xlu0 %7252
      %7254 = vrot.lane.b32.xlu0 %v7150, 64
      %v7255 = vpop.permute.xlu0 %7254
      %7256 = vrot.lane.b32.xlu0 %v7151, 64
      %v7257 = vpop.permute.xlu0 %7256
      %7258 = vrot.lane.b32.xlu0 %v7152, 64
      %v7259 = vpop.permute.xlu0 %7258
      %7260 = vrot.lane.b32.xlu0 %v7153, 64
      %v7261 = vpop.permute.xlu0 %7260
      %7262 = vrot.lane.b32.xlu0 %v7154, 64
      %v7263 = vpop.permute.xlu0 %7262
      %7264 = vrot.lane.b32.xlu0 %v7155, 64
      %v7265 = vpop.permute.xlu0 %7264
      %7266 = vrot.lane.b32.xlu0 %v7156, 64
      %v7267 = vpop.permute.xlu0 %7266
      %7268 = vrot.lane.b32.xlu0 %v7157, 64
      %v7269 = vpop.permute.xlu0 %7268
      %7270 = vrot.lane.b32.xlu0 %v7158, 64
      %v7271 = vpop.permute.xlu0 %7270
      %7272 = vrot.lane.b32.xlu0 %v7159, 64
      %v7273 = vpop.permute.xlu0 %7272
      %7274 = vrot.lane.b32.xlu0 %v7160, 64
      %v7275 = vpop.permute.xlu0 %7274
      %7276 = vrot.lane.b32.xlu0 %v7161, 64
      %v7277 = vpop.permute.xlu0 %7276
      %7278 = vrot.lane.b32.xlu0 %v7162, 64
      %v7279 = vpop.permute.xlu0 %7278
      %7280 = vrot.lane.b32.xlu0 %v7163, 64
      %v7281 = vpop.permute.xlu0 %7280
      %7282 = vrot.lane.b32.xlu0 %v7164, 64
      %v7283 = vpop.permute.xlu0 %7282
      %7284 = vrot.lane.b32.xlu0 %v7165, 64
      %v7285 = vpop.permute.xlu0 %7284
      %7286 = vrot.lane.b32.xlu0 %v7166, 64
      %v7287 = vpop.permute.xlu0 %7286
      %7288 = vrot.lane.b32.xlu0 %v7167, 64
      %v7289 = vpop.permute.xlu0 %7288
      %7290 = vrot.lane.b32.xlu0 %v7168, 64
      %v7291 = vpop.permute.xlu0 %7290
      %7292 = vrot.lane.b32.xlu0 %v7169, 64
      %v7293 = vpop.permute.xlu0 %7292
      %7294 = vrot.lane.b32.xlu0 %v7170, 64
      %v7295 = vpop.permute.xlu0 %7294
      %7296 = vrot.lane.b32.xlu0 %v7171, 64
      %v7297 = vpop.permute.xlu0 %7296
      %7298 = vrot.lane.b32.xlu0 %v7172, 64
      %v7299 = vpop.permute.xlu0 %7298
      %7300 = vrot.lane.b32.xlu0 %v7173, 64
      %v7301 = vpop.permute.xlu0 %7300
      %v7334 = vsel %vm352, %v7110, %v7239
      %v7335 = vsel %vm352, %v7111, %v7241
      %v7336 = vsel %vm352, %v7112, %v7243
      %v7337 = vsel %vm352, %v7113, %v7245
      %v7338 = vsel %vm352, %v7114, %v7247
      %v7339 = vsel %vm352, %v7115, %v7249
      %v7340 = vsel %vm352, %v7116, %v7251
      %v7341 = vsel %vm352, %v7117, %v7253
      %v7342 = vsel %vm352, %v7118, %v7255
      %v7343 = vsel %vm352, %v7119, %v7257
      %v7344 = vsel %vm352, %v7120, %v7259
      %v7345 = vsel %vm352, %v7121, %v7261
      %v7346 = vsel %vm352, %v7122, %v7263
      %v7347 = vsel %vm352, %v7123, %v7265
      %v7348 = vsel %vm352, %v7124, %v7267
      %v7349 = vsel %vm352, %v7125, %v7269
      %v7350 = vsel %vm352, %v7126, %v7271
      %v7351 = vsel %vm352, %v7127, %v7273
      %v7352 = vsel %vm352, %v7128, %v7275
      %v7353 = vsel %vm352, %v7129, %v7277
      %v7354 = vsel %vm352, %v7130, %v7279
      %v7355 = vsel %vm352, %v7131, %v7281
      %v7356 = vsel %vm352, %v7132, %v7283
      %v7357 = vsel %vm352, %v7133, %v7285
      %v7358 = vsel %vm352, %v7134, %v7287
      %v7359 = vsel %vm352, %v7135, %v7289
      %v7360 = vsel %vm352, %v7136, %v7291
      %v7361 = vsel %vm352, %v7137, %v7293
      %v7362 = vsel %vm352, %v7138, %v7295
      %v7363 = vsel %vm352, %v7139, %v7297
      %v7364 = vsel %vm352, %v7140, %v7299
      %v7365 = vsel %vm352, %v7141, %v7301
      %s7366 = scalar_lea.vmem %s5, 192
      %v7367 = vld [vmem:[%s7366] sm:$0xff]
      %v7368 = vld [vmem:[%s7366 + $0x8] sm:$0xff]
      %v7369 = vld [vmem:[%s7366 + $0x10] sm:$0xff]
      %v7370 = vld [vmem:[%s7366 + $0x18] sm:$0xff]
      %v7371 = vld [vmem:[%s7366 + $0x20] sm:$0xff]
      %v7372 = vld [vmem:[%s7366 + $0x28] sm:$0xff]
      %v7373 = vld [vmem:[%s7366 + $0x30] sm:$0xff]
      %v7374 = vld [vmem:[%s7366 + $0x38] sm:$0xff]
      %v7375 = vld [vmem:[%s7366 + $0x40] sm:$0xff]
      %v7376 = vld [vmem:[%s7366 + $0x48] sm:$0xff]
      %v7377 = vld [vmem:[%s7366 + $0x50] sm:$0xff]
      %v7378 = vld [vmem:[%s7366 + $0x58] sm:$0xff]
      %v7379 = vld [vmem:[%s7366 + $0x60] sm:$0xff]
      %v7380 = vld [vmem:[%s7366 + $0x68] sm:$0xff]
      %v7381 = vld [vmem:[%s7366 + $0x70] sm:$0xff]
      %v7382 = vld [vmem:[%s7366 + $0x78] sm:$0xff]
      %v7383 = vld [vmem:[%s7366 + $0x80] sm:$0xff]
      %v7384 = vld [vmem:[%s7366 + $0x88] sm:$0xff]
      %v7385 = vld [vmem:[%s7366 + $0x90] sm:$0xff]
      %v7386 = vld [vmem:[%s7366 + $0x98] sm:$0xff]
      %v7387 = vld [vmem:[%s7366 + $0xa0] sm:$0xff]
      %v7388 = vld [vmem:[%s7366 + $0xa8] sm:$0xff]
      %v7389 = vld [vmem:[%s7366 + $0xb0] sm:$0xff]
      %v7390 = vld [vmem:[%s7366 + $0xb8] sm:$0xff]
      %v7392 = vsel %vm352, %v7174, 0
      %v7395 = vsel %vm352, %v7175, 0
      %v7398 = vsel %vm352, %v7176, 0
      %v7401 = vsel %vm352, %v7177, 0
      %v7404 = vsel %vm352, %v7178, 0
      %v7407 = vsel %vm352, %v7179, 0
      %v7410 = vsel %vm352, %v7180, 0
      %v7413 = vsel %vm352, %v7181, 0
      %v7416 = vsel %vm352, %v7182, 0
      %v7419 = vsel %vm352, %v7183, 0
      %v7422 = vsel %vm352, %v7184, 0
      %v7425 = vsel %vm352, %v7185, 0
      %v7428 = vsel %vm352, %v7186, 0
      %v7431 = vsel %vm352, %v7187, 0
      %v7434 = vsel %vm352, %v7188, 0
      %v7437 = vsel %vm352, %v7189, 0
      %v7440 = vsel %vm352, %v7190, 0
      %v7443 = vsel %vm352, %v7191, 0
      %v7446 = vsel %vm352, %v7192, 0
      %v7449 = vsel %vm352, %v7193, 0
      %v7452 = vsel %vm352, %v7194, 0
      %v7455 = vsel %vm352, %v7195, 0
      %v7458 = vsel %vm352, %v7196, 0
      %v7461 = vsel %vm352, %v7197, 0
      %v7464 = vsel %vm352, %v7198, 0
      %v7467 = vsel %vm352, %v7199, 0
      %v7470 = vsel %vm352, %v7200, 0
      %v7473 = vsel %vm352, %v7201, 0
      %v7476 = vsel %vm352, %v7202, 0
      %v7479 = vsel %vm352, %v7203, 0
      %v7482 = vsel %vm352, %v7204, 0
      %v7485 = vsel %vm352, %v7205, 0
      %7487 = vmatprep.subr.mxu0 0.0
      %7488 = vmatpush1.msra.mxu0 %v7367
      %7489 = vmatprep.subr.mxu0 0.0
      %7490 = vmatpush1.msra.mxu0 %v7368
      %7491 = vmatprep.subr.mxu0 0.0
      %7492 = vmatpush1.msra.mxu0 %v7369
      %7493 = vmatprep.subr.mxu0 0.0
      %7494 = vmatpush1.msra.mxu0 %v7370
      %7495 = vmatprep.subr.mxu0 0.0
      %7496 = vmatpush1.msra.mxu0 %v7371
      %7497 = vmatprep.subr.mxu0 0.0
      %7498 = vmatpush1.msra.mxu0 %v7372
      %7499 = vmatprep.subr.mxu0 0.0
      %7500 = vmatpush1.msra.mxu0 %v7373
      %7501 = vmatprep.subr.mxu0 0.0
      %7502 = vmatpush1.msra.mxu0 %v7374
      %7503 = vmatprep.subr.mxu0 0.0
      %7504 = vmatpush1.msra.mxu0 %v7375
      %7505 = vmatprep.subr.mxu0 0.0
      %7506 = vmatpush1.msra.mxu0 %v7376
      %7507 = vmatprep.subr.mxu0 0.0
      %7508 = vmatpush1.msra.mxu0 %v7377
      %7509 = vmatprep.subr.mxu0 0.0
      %7510 = vmatpush1.msra.mxu0 %v7378
      %7511 = vmatprep.subr.mxu0 0.0
      %7512 = vmatpush1.msra.mxu0 %v7379
      %7513 = vmatprep.subr.mxu0 0.0
      %7514 = vmatpush1.msra.mxu0 %v7380
      %7515 = vmatprep.subr.mxu0 0.0
      %7516 = vmatpush1.msra.mxu0 %v7381
      %7517 = vmatprep.subr.mxu0 0.0
      %7518 = vmatpush1.msra.mxu0 %v7382
      %7519 = vmatprep.subr.mxu0 0.0
      %7520 = vmatpush1.msra.mxu0 %v7383
      %7521 = vmatprep.subr.mxu0 0.0
      %7522 = vmatpush1.msra.mxu0 %v7384
      %7523 = vmatprep.subr.mxu0 0.0
      %7524 = vmatpush1.msra.mxu0 %v7385
      %7525 = vmatprep.subr.mxu0 0.0
      %7526 = vmatpush1.msra.mxu0 %v7386
      %7527 = vmatprep.subr.mxu0 0.0
      %7528 = vmatpush1.msra.mxu0 %v7387
      %7529 = vmatprep.subr.mxu0 0.0
      %7530 = vmatpush1.msra.mxu0 %v7388
      %7531 = vmatprep.subr.mxu0 0.0
      %7532 = vmatpush1.msra.mxu0 %v7389
      %7533 = vmatprep.subr.mxu0 0.0
      %7534 = vmatpush1.msra.mxu0 %v7390
      %7535 = vmatprep.subr.mxu0 0.0
      %7536 = vmatpush1.msra.mxu0 0.0
      %7537 = vmatprep.subr.mxu0 0.0
      %7538 = vmatpush1.msra.mxu0 0.0
      %7539 = vmatprep.subr.mxu0 0.0
      %7540 = vmatpush1.msra.mxu0 0.0
      %7541 = vmatprep.subr.mxu0 0.0
      %7542 = vmatpush1.msra.mxu0 0.0
      %7543 = vmatprep.subr.mxu0 0.0
      %7544 = vmatpush1.msra.mxu0 0.0
      %7545 = vmatprep.subr.mxu0 0.0
      %7546 = vmatpush1.msra.mxu0 0.0
      %7547 = vmatprep.subr.mxu0 0.0
      %7548 = vmatpush1.msra.mxu0 0.0
      %7549 = vmatprep.subr.mxu0 0.0
      %7550 = vmatpush1.msra.mxu0 0.0
      %7551 = vmatprep.mubr.f32.mxu0 %v7392
      %7552 = vmatmul.mubr.f32.gmra.mrb[0].mxu0 %v7334
      %v7553 = vpop.f32.mrb[0].mxu0
      %v7554 = vadd.f32 0.0, %v7553
      %v7555 = vpop.f32.mrb[0].mxu0
      %7556 = vmatprep.mubr.f32.mxu0 %v7395
      %7557 = vmatmul.mubr.f32.gmra.mrb[0].mxu0 %v7335
      %v7558 = vpop.f32.mrb[0].mxu0
      %v7559 = vadd.f32 0.0, %v7558
      %v7560 = vpop.f32.mrb[0].mxu0
      %7561 = vmatprep.mubr.f32.mxu0 %v7398
      %7562 = vmatmul.mubr.f32.gmra.mrb[0].mxu0 %v7336
      %v7563 = vpop.f32.mrb[0].mxu0
      %v7564 = vadd.f32 0.0, %v7563
      %v7565 = vpop.f32.mrb[0].mxu0
      %7566 = vmatprep.mubr.f32.mxu0 %v7401
      %7567 = vmatmul.mubr.f32.gmra.mrb[0].mxu0 %v7337
      %v7568 = vpop.f32.mrb[0].mxu0
      %v7569 = vadd.f32 0.0, %v7568
      %v7570 = vpop.f32.mrb[0].mxu0
      %7571 = vmatprep.mubr.f32.mxu0 %v7404
      %7572 = vmatmul.mubr.f32.gmra.mrb[0].mxu0 %v7338
      %v7573 = vpop.f32.mrb[0].mxu0
      %v7574 = vadd.f32 0.0, %v7573
      %v7575 = vpop.f32.mrb[0].mxu0
      %7576 = vmatprep.mubr.f32.mxu0 %v7407
      %7577 = vmatmul.mubr.f32.gmra.mrb[0].mxu0 %v7339
      %v7578 = vpop.f32.mrb[0].mxu0
      %v7579 = vadd.f32 0.0, %v7578
      %v7580 = vpop.f32.mrb[0].mxu0
      %7581 = vmatprep.mubr.f32.mxu0 %v7410
      %7582 = vmatmul.mubr.f32.gmra.mrb[0].mxu0 %v7340
      %v7583 = vpop.f32.mrb[0].mxu0
      %v7584 = vadd.f32 0.0, %v7583
      %v7585 = vpop.f32.mrb[0].mxu0
      %7586 = vmatprep.mubr.f32.mxu0 %v7413
      %7587 = vmatmul.mubr.f32.gmra.mrb[0].mxu0 %v7341
      %v7588 = vpop.f32.mrb[0].mxu0
      %v7589 = vadd.f32 0.0, %v7588
      %v7590 = vpop.f32.mrb[0].mxu0
      %7591 = vmatprep.mubr.f32.mxu0 %v7416
      %7592 = vmatmul.mubr.f32.gmra.mrb[0].mxu0 %v7342
      %v7593 = vpop.f32.mrb[0].mxu0
      %v7594 = vadd.f32 0.0, %v7593
      %v7595 = vpop.f32.mrb[0].mxu0
      %7596 = vmatprep.mubr.f32.mxu0 %v7419
      %7597 = vmatmul.mubr.f32.gmra.mrb[0].mxu0 %v7343
      %v7598 = vpop.f32.mrb[0].mxu0
      %v7599 = vadd.f32 0.0, %v7598
      %v7600 = vpop.f32.mrb[0].mxu0
      %7601 = vmatprep.mubr.f32.mxu0 %v7422
      %7602 = vmatmul.mubr.f32.gmra.mrb[0].mxu0 %v7344
      %v7603 = vpop.f32.mrb[0].mxu0
      %v7604 = vadd.f32 0.0, %v7603
      %v7605 = vpop.f32.mrb[0].mxu0
      %7606 = vmatprep.mubr.f32.mxu0 %v7425
      %7607 = vmatmul.mubr.f32.gmra.mrb[0].mxu0 %v7345
      %v7608 = vpop.f32.mrb[0].mxu0
      %v7609 = vadd.f32 0.0, %v7608
      %v7610 = vpop.f32.mrb[0].mxu0
      %7611 = vmatprep.mubr.f32.mxu0 %v7428
      %7612 = vmatmul.mubr.f32.gmra.mrb[0].mxu0 %v7346
      %v7613 = vpop.f32.mrb[0].mxu0
      %v7614 = vadd.f32 0.0, %v7613
      %v7615 = vpop.f32.mrb[0].mxu0
      %7616 = vmatprep.mubr.f32.mxu0 %v7431
      %7617 = vmatmul.mubr.f32.gmra.mrb[0].mxu0 %v7347
      %v7618 = vpop.f32.mrb[0].mxu0
      %v7619 = vadd.f32 0.0, %v7618
      %v7620 = vpop.f32.mrb[0].mxu0
      %7621 = vmatprep.mubr.f32.mxu0 %v7434
      %7622 = vmatmul.mubr.f32.gmra.mrb[0].mxu0 %v7348
      %v7623 = vpop.f32.mrb[0].mxu0
      %v7624 = vadd.f32 0.0, %v7623
      %v7625 = vpop.f32.mrb[0].mxu0
      %7626 = vmatprep.mubr.f32.mxu0 %v7437
      %7627 = vmatmul.mubr.f32.gmra.mrb[0].mxu0 %v7349
      %v7628 = vpop.f32.mrb[0].mxu0
      %v7629 = vadd.f32 0.0, %v7628
      %v7630 = vpop.f32.mrb[0].mxu0
      %7631 = vmatprep.mubr.f32.mxu0 %v7440
      %7632 = vmatmul.mubr.f32.gmra.mrb[0].mxu0 %v7350
      %v7633 = vpop.f32.mrb[0].mxu0
      %v7634 = vadd.f32 0.0, %v7633
      %v7635 = vpop.f32.mrb[0].mxu0
      %7636 = vmatprep.mubr.f32.mxu0 %v7443
      %7637 = vmatmul.mubr.f32.gmra.mrb[0].mxu0 %v7351
      %v7638 = vpop.f32.mrb[0].mxu0
      %v7639 = vadd.f32 0.0, %v7638
      %v7640 = vpop.f32.mrb[0].mxu0
      %7641 = vmatprep.mubr.f32.mxu0 %v7446
      %7642 = vmatmul.mubr.f32.gmra.mrb[0].mxu0 %v7352
      %v7643 = vpop.f32.mrb[0].mxu0
      %v7644 = vadd.f32 0.0, %v7643
      %v7645 = vpop.f32.mrb[0].mxu0
      %7646 = vmatprep.mubr.f32.mxu0 %v7449
      %7647 = vmatmul.mubr.f32.gmra.mrb[0].mxu0 %v7353
      %v7648 = vpop.f32.mrb[0].mxu0
      %v7649 = vadd.f32 0.0, %v7648
      %v7650 = vpop.f32.mrb[0].mxu0
      %7651 = vmatprep.mubr.f32.mxu0 %v7452
      %7652 = vmatmul.mubr.f32.gmra.mrb[0].mxu0 %v7354
      %v7653 = vpop.f32.mrb[0].mxu0
      %v7654 = vadd.f32 0.0, %v7653
      %v7655 = vpop.f32.mrb[0].mxu0
      %7656 = vmatprep.mubr.f32.mxu0 %v7455
      %7657 = vmatmul.mubr.f32.gmra.mrb[0].mxu0 %v7355
      %v7658 = vpop.f32.mrb[0].mxu0
      %v7659 = vadd.f32 0.0, %v7658
      %v7660 = vpop.f32.mrb[0].mxu0
      %7661 = vmatprep.mubr.f32.mxu0 %v7458
      %7662 = vmatmul.mubr.f32.gmra.mrb[0].mxu0 %v7356
      %v7663 = vpop.f32.mrb[0].mxu0
      %v7664 = vadd.f32 0.0, %v7663
      %v7665 = vpop.f32.mrb[0].mxu0
      %7666 = vmatprep.mubr.f32.mxu0 %v7461
      %7667 = vmatmul.mubr.f32.gmra.mrb[0].mxu0 %v7357
      %v7668 = vpop.f32.mrb[0].mxu0
      %v7669 = vadd.f32 0.0, %v7668
      %v7670 = vpop.f32.mrb[0].mxu0
      %7671 = vmatprep.mubr.f32.mxu0 %v7464
      %7672 = vmatmul.mubr.f32.gmra.mrb[0].mxu0 %v7358
      %v7673 = vpop.f32.mrb[0].mxu0
      %v7674 = vadd.f32 0.0, %v7673
      %v7675 = vpop.f32.mrb[0].mxu0
      %7676 = vmatprep.mubr.f32.mxu0 %v7467
      %7677 = vmatmul.mubr.f32.gmra.mrb[0].mxu0 %v7359
      %v7678 = vpop.f32.mrb[0].mxu0
      %v7679 = vadd.f32 0.0, %v7678
      %v7680 = vpop.f32.mrb[0].mxu0
      %7681 = vmatprep.mubr.f32.mxu0 %v7470
      %7682 = vmatmul.mubr.f32.gmra.mrb[0].mxu0 %v7360
      %v7683 = vpop.f32.mrb[0].mxu0
      %v7684 = vadd.f32 0.0, %v7683
      %v7685 = vpop.f32.mrb[0].mxu0
      %7686 = vmatprep.mubr.f32.mxu0 %v7473
      %7687 = vmatmul.mubr.f32.gmra.mrb[0].mxu0 %v7361
      %v7688 = vpop.f32.mrb[0].mxu0
      %v7689 = vadd.f32 0.0, %v7688
      %v7690 = vpop.f32.mrb[0].mxu0
      %7691 = vmatprep.mubr.f32.mxu0 %v7476
      %7692 = vmatmul.mubr.f32.gmra.mrb[0].mxu0 %v7362
      %v7693 = vpop.f32.mrb[0].mxu0
      %v7694 = vadd.f32 0.0, %v7693
      %v7695 = vpop.f32.mrb[0].mxu0
      %7696 = vmatprep.mubr.f32.mxu0 %v7479
      %7697 = vmatmul.mubr.f32.gmra.mrb[0].mxu0 %v7363
      %v7698 = vpop.f32.mrb[0].mxu0
      %v7699 = vadd.f32 0.0, %v7698
      %v7700 = vpop.f32.mrb[0].mxu0
      %7701 = vmatprep.mubr.f32.mxu0 %v7482
      %7702 = vmatmul.mubr.f32.gmra.mrb[0].mxu0 %v7364
      %v7703 = vpop.f32.mrb[0].mxu0
      %v7704 = vadd.f32 0.0, %v7703
      %v7705 = vpop.f32.mrb[0].mxu0
      %7706 = vmatprep.mubr.f32.mxu0 %v7485
      %7707 = vmatmul.mubr.f32.gmra.mrb[0].mxu0 %v7365
      %v7708 = vpop.f32.mrb[0].mxu0
      %v7709 = vadd.f32 0.0, %v7708
      %v7710 = vpop.f32.mrb[0].mxu0
      %7711 = vdwg.mxu0
      %v7713 = vsel %vm352, %v6894, 0
      %v7716 = vsel %vm352, %v6895, 0
      %v7719 = vsel %vm352, %v6896, 0
      %v7722 = vsel %vm352, %v6897, 0
      %v7725 = vsel %vm352, %v6898, 0
      %v7728 = vsel %vm352, %v6899, 0
      %v7731 = vsel %vm352, %v6900, 0
      %v7734 = vsel %vm352, %v6901, 0
      %v7737 = vsel %vm352, %v6902, 0
      %v7740 = vsel %vm352, %v6903, 0
      %v7743 = vsel %vm352, %v6904, 0
      %v7746 = vsel %vm352, %v6905, 0
      %v7749 = vsel %vm352, %v6906, 0
      %v7752 = vsel %vm352, %v6907, 0
      %v7755 = vsel %vm352, %v6908, 0
      %v7758 = vsel %vm352, %v6909, 0
      %v7761 = vsel %vm352, %v6910, 0
      %v7764 = vsel %vm352, %v6911, 0
      %v7767 = vsel %vm352, %v6912, 0
      %v7770 = vsel %vm352, %v6913, 0
      %v7773 = vsel %vm352, %v6914, 0
      %v7776 = vsel %vm352, %v6915, 0
      %v7779 = vsel %vm352, %v6916, 0
      %v7782 = vsel %vm352, %v6917, 0
      %v7785 = vsel %vm352, %v6918, 0
      %v7788 = vsel %vm352, %v6919, 0
      %v7791 = vsel %vm352, %v6920, 0
      %v7794 = vsel %vm352, %v6921, 0
      %v7797 = vsel %vm352, %v6922, 0
      %v7800 = vsel %vm352, %v6923, 0
      %v7803 = vsel %vm352, %v6924, 0
      %v7806 = vsel %vm352, %v6925, 0
      %7808 = vmatprep.subr.mxu0 0.0
      %7809 = vmatpush1.msra.mxu0 %v7086
      %7810 = vmatprep.subr.mxu0 0.0
      %7811 = vmatpush1.msra.mxu0 %v7087
      %7812 = vmatprep.subr.mxu0 0.0
      %7813 = vmatpush1.msra.mxu0 %v7088
      %7814 = vmatprep.subr.mxu0 0.0
      %7815 = vmatpush1.msra.mxu0 %v7089
      %7816 = vmatprep.subr.mxu0 0.0
      %7817 = vmatpush1.msra.mxu0 %v7090
      %7818 = vmatprep.subr.mxu0 0.0
      %7819 = vmatpush1.msra.mxu0 %v7091
      %7820 = vmatprep.subr.mxu0 0.0
      %7821 = vmatpush1.msra.mxu0 %v7092
      %7822 = vmatprep.subr.mxu0 0.0
      %7823 = vmatpush1.msra.mxu0 %v7093
      %7824 = vmatprep.subr.mxu0 0.0
      %7825 = vmatpush1.msra.mxu0 %v7094
      %7826 = vmatprep.subr.mxu0 0.0
      %7827 = vmatpush1.msra.mxu0 %v7095
      %7828 = vmatprep.subr.mxu0 0.0
      %7829 = vmatpush1.msra.mxu0 %v7096
      %7830 = vmatprep.subr.mxu0 0.0
      %7831 = vmatpush1.msra.mxu0 %v7097
      %7832 = vmatprep.subr.mxu0 0.0
      %7833 = vmatpush1.msra.mxu0 %v7098
      %7834 = vmatprep.subr.mxu0 0.0
      %7835 = vmatpush1.msra.mxu0 %v7099
      %7836 = vmatprep.subr.mxu0 0.0
      %7837 = vmatpush1.msra.mxu0 %v7100
      %7838 = vmatprep.subr.mxu0 0.0
      %7839 = vmatpush1.msra.mxu0 %v7101
      %7840 = vmatprep.subr.mxu0 0.0
      %7841 = vmatpush1.msra.mxu0 %v7102
      %7842 = vmatprep.subr.mxu0 0.0
      %7843 = vmatpush1.msra.mxu0 %v7103
      %7844 = vmatprep.subr.mxu0 0.0
      %7845 = vmatpush1.msra.mxu0 %v7104
      %7846 = vmatprep.subr.mxu0 0.0
      %7847 = vmatpush1.msra.mxu0 %v7105
      %7848 = vmatprep.subr.mxu0 0.0
      %7849 = vmatpush1.msra.mxu0 %v7106
      %7850 = vmatprep.subr.mxu0 0.0
      %7851 = vmatpush1.msra.mxu0 %v7107
      %7852 = vmatprep.subr.mxu0 0.0
      %7853 = vmatpush1.msra.mxu0 %v7108
      %7854 = vmatprep.subr.mxu0 0.0
      %7855 = vmatpush1.msra.mxu0 %v7109
      %7856 = vmatprep.subr.mxu0 0.0
      %7857 = vmatpush1.msra.mxu0 0.0
      %7858 = vmatprep.subr.mxu0 0.0
      %7859 = vmatpush1.msra.mxu0 0.0
      %7860 = vmatprep.subr.mxu0 0.0
      %7861 = vmatpush1.msra.mxu0 0.0
      %7862 = vmatprep.subr.mxu0 0.0
      %7863 = vmatpush1.msra.mxu0 0.0
      %7864 = vmatprep.subr.mxu0 0.0
      %7865 = vmatpush1.msra.mxu0 0.0
      %7866 = vmatprep.subr.mxu0 0.0
      %7867 = vmatpush1.msra.mxu0 0.0
      %7868 = vmatprep.subr.mxu0 0.0
      %7869 = vmatpush1.msra.mxu0 0.0
      %7870 = vmatprep.subr.mxu0 0.0
      %7871 = vmatpush1.msra.mxu0 0.0
      %7872 = vmatprep.mubr.f32.mxu0 %v7713
      %7873 = vmatmul.mubr.f32.gmra.mrb[0].mxu0 %v7054
      %v7874 = vpop.f32.mrb[0].mxu0
      %v7875 = vadd.f32 %v7554, %v7874
      %v7876 = vpop.f32.mrb[0].mxu0
      %7877 = vmatprep.mubr.f32.mxu0 %v7716
      %7878 = vmatmul.mubr.f32.gmra.mrb[0].mxu0 %v7055
      %v7879 = vpop.f32.mrb[0].mxu0
      %v7880 = vadd.f32 %v7559, %v7879
      %v7881 = vpop.f32.mrb[0].mxu0
      %7882 = vmatprep.mubr.f32.mxu0 %v7719
      %7883 = vmatmul.mubr.f32.gmra.mrb[0].mxu0 %v7056
      %v7884 = vpop.f32.mrb[0].mxu0
      %v7885 = vadd.f32 %v7564, %v7884
      %v7886 = vpop.f32.mrb[0].mxu0
      %7887 = vmatprep.mubr.f32.mxu0 %v7722
      %7888 = vmatmul.mubr.f32.gmra.mrb[0].mxu0 %v7057
      %v7889 = vpop.f32.mrb[0].mxu0
      %v7890 = vadd.f32 %v7569, %v7889
      %v7891 = vpop.f32.mrb[0].mxu0
      %7892 = vmatprep.mubr.f32.mxu0 %v7725
      %7893 = vmatmul.mubr.f32.gmra.mrb[0].mxu0 %v7058
      %v7894 = vpop.f32.mrb[0].mxu0
      %v7895 = vadd.f32 %v7574, %v7894
      %v7896 = vpop.f32.mrb[0].mxu0
      %7897 = vmatprep.mubr.f32.mxu0 %v7728
      %7898 = vmatmul.mubr.f32.gmra.mrb[0].mxu0 %v7059
      %v7899 = vpop.f32.mrb[0].mxu0
      %v7900 = vadd.f32 %v7579, %v7899
      %v7901 = vpop.f32.mrb[0].mxu0
      %7902 = vmatprep.mubr.f32.mxu0 %v7731
      %7903 = vmatmul.mubr.f32.gmra.mrb[0].mxu0 %v7060
      %v7904 = vpop.f32.mrb[0].mxu0
      %v7905 = vadd.f32 %v7584, %v7904
      %v7906 = vpop.f32.mrb[0].mxu0
      %7907 = vmatprep.mubr.f32.mxu0 %v7734
      %7908 = vmatmul.mubr.f32.gmra.mrb[0].mxu0 %v7061
      %v7909 = vpop.f32.mrb[0].mxu0
      %v7910 = vadd.f32 %v7589, %v7909
      %v7911 = vpop.f32.mrb[0].mxu0
      %7912 = vmatprep.mubr.f32.mxu0 %v7737
      %7913 = vmatmul.mubr.f32.gmra.mrb[0].mxu0 %v7062
      %v7914 = vpop.f32.mrb[0].mxu0
      %v7915 = vadd.f32 %v7594, %v7914
      %v7916 = vpop.f32.mrb[0].mxu0
      %7917 = vmatprep.mubr.f32.mxu0 %v7740
      %7918 = vmatmul.mubr.f32.gmra.mrb[0].mxu0 %v7063
      %v7919 = vpop.f32.mrb[0].mxu0
      %v7920 = vadd.f32 %v7599, %v7919
      %v7921 = vpop.f32.mrb[0].mxu0
      %7922 = vmatprep.mubr.f32.mxu0 %v7743
      %7923 = vmatmul.mubr.f32.gmra.mrb[0].mxu0 %v7064
      %v7924 = vpop.f32.mrb[0].mxu0
      %v7925 = vadd.f32 %v7604, %v7924
      %v7926 = vpop.f32.mrb[0].mxu0
      %7927 = vmatprep.mubr.f32.mxu0 %v7746
      %7928 = vmatmul.mubr.f32.gmra.mrb[0].mxu0 %v7065
      %v7929 = vpop.f32.mrb[0].mxu0
      %v7930 = vadd.f32 %v7609, %v7929
      %v7931 = vpop.f32.mrb[0].mxu0
      %7932 = vmatprep.mubr.f32.mxu0 %v7749
      %7933 = vmatmul.mubr.f32.gmra.mrb[0].mxu0 %v7066
      %v7934 = vpop.f32.mrb[0].mxu0
      %v7935 = vadd.f32 %v7614, %v7934
      %v7936 = vpop.f32.mrb[0].mxu0
      %7937 = vmatprep.mubr.f32.mxu0 %v7752
      %7938 = vmatmul.mubr.f32.gmra.mrb[0].mxu0 %v7067
      %v7939 = vpop.f32.mrb[0].mxu0
      %v7940 = vadd.f32 %v7619, %v7939
      %v7941 = vpop.f32.mrb[0].mxu0
      %7942 = vmatprep.mubr.f32.mxu0 %v7755
      %7943 = vmatmul.mubr.f32.gmra.mrb[0].mxu0 %v7068
      %v7944 = vpop.f32.mrb[0].mxu0
      %v7945 = vadd.f32 %v7624, %v7944
      %v7946 = vpop.f32.mrb[0].mxu0
      %7947 = vmatprep.mubr.f32.mxu0 %v7758
      %7948 = vmatmul.mubr.f32.gmra.mrb[0].mxu0 %v7069
      %v7949 = vpop.f32.mrb[0].mxu0
      %v7950 = vadd.f32 %v7629, %v7949
      %v7951 = vpop.f32.mrb[0].mxu0
      %7952 = vmatprep.mubr.f32.mxu0 %v7761
      %7953 = vmatmul.mubr.f32.gmra.mrb[0].mxu0 %v7070
      %v7954 = vpop.f32.mrb[0].mxu0
      %v7955 = vadd.f32 %v7634, %v7954
      %v7956 = vpop.f32.mrb[0].mxu0
      %7957 = vmatprep.mubr.f32.mxu0 %v7764
      %7958 = vmatmul.mubr.f32.gmra.mrb[0].mxu0 %v7071
      %v7959 = vpop.f32.mrb[0].mxu0
      %v7960 = vadd.f32 %v7639, %v7959
      %v7961 = vpop.f32.mrb[0].mxu0
      %7962 = vmatprep.mubr.f32.mxu0 %v7767
      %7963 = vmatmul.mubr.f32.gmra.mrb[0].mxu0 %v7072
      %v7964 = vpop.f32.mrb[0].mxu0
      %v7965 = vadd.f32 %v7644, %v7964
      %v7966 = vpop.f32.mrb[0].mxu0
      %7967 = vmatprep.mubr.f32.mxu0 %v7770
      %7968 = vmatmul.mubr.f32.gmra.mrb[0].mxu0 %v7073
      %v7969 = vpop.f32.mrb[0].mxu0
      %v7970 = vadd.f32 %v7649, %v7969
      %v7971 = vpop.f32.mrb[0].mxu0
      %7972 = vmatprep.mubr.f32.mxu0 %v7773
      %7973 = vmatmul.mubr.f32.gmra.mrb[0].mxu0 %v7074
      %v7974 = vpop.f32.mrb[0].mxu0
      %v7975 = vadd.f32 %v7654, %v7974
      %v7976 = vpop.f32.mrb[0].mxu0
      %7977 = vmatprep.mubr.f32.mxu0 %v7776
      %7978 = vmatmul.mubr.f32.gmra.mrb[0].mxu0 %v7075
      %v7979 = vpop.f32.mrb[0].mxu0
      %v7980 = vadd.f32 %v7659, %v7979
      %v7981 = vpop.f32.mrb[0].mxu0
      %7982 = vmatprep.mubr.f32.mxu0 %v7779
      %7983 = vmatmul.mubr.f32.gmra.mrb[0].mxu0 %v7076
      %v7984 = vpop.f32.mrb[0].mxu0
      %v7985 = vadd.f32 %v7664, %v7984
      %v7986 = vpop.f32.mrb[0].mxu0
      %7987 = vmatprep.mubr.f32.mxu0 %v7782
      %7988 = vmatmul.mubr.f32.gmra.mrb[0].mxu0 %v7077
      %v7989 = vpop.f32.mrb[0].mxu0
      %v7990 = vadd.f32 %v7669, %v7989
      %v7991 = vpop.f32.mrb[0].mxu0
      %7992 = vmatprep.mubr.f32.mxu0 %v7785
      %7993 = vmatmul.mubr.f32.gmra.mrb[0].mxu0 %v7078
      %v7994 = vpop.f32.mrb[0].mxu0
      %v7995 = vadd.f32 %v7674, %v7994
      %v7996 = vpop.f32.mrb[0].mxu0
      %7997 = vmatprep.mubr.f32.mxu0 %v7788
      %7998 = vmatmul.mubr.f32.gmra.mrb[0].mxu0 %v7079
      %v7999 = vpop.f32.mrb[0].mxu0
      %v8000 = vadd.f32 %v7679, %v7999
      %v8001 = vpop.f32.mrb[0].mxu0
      %8002 = vmatprep.mubr.f32.mxu0 %v7791
      %8003 = vmatmul.mubr.f32.gmra.mrb[0].mxu0 %v7080
      %v8004 = vpop.f32.mrb[0].mxu0
      %v8005 = vadd.f32 %v7684, %v8004
      %v8006 = vpop.f32.mrb[0].mxu0
      %8007 = vmatprep.mubr.f32.mxu0 %v7794
      %8008 = vmatmul.mubr.f32.gmra.mrb[0].mxu0 %v7081
      %v8009 = vpop.f32.mrb[0].mxu0
      %v8010 = vadd.f32 %v7689, %v8009
      %v8011 = vpop.f32.mrb[0].mxu0
      %8012 = vmatprep.mubr.f32.mxu0 %v7797
      %8013 = vmatmul.mubr.f32.gmra.mrb[0].mxu0 %v7082
      %v8014 = vpop.f32.mrb[0].mxu0
      %v8015 = vadd.f32 %v7694, %v8014
      %v8016 = vpop.f32.mrb[0].mxu0
      %8017 = vmatprep.mubr.f32.mxu0 %v7800
      %8018 = vmatmul.mubr.f32.gmra.mrb[0].mxu0 %v7083
      %v8019 = vpop.f32.mrb[0].mxu0
      %v8020 = vadd.f32 %v7699, %v8019
      %v8021 = vpop.f32.mrb[0].mxu0
      %8022 = vmatprep.mubr.f32.mxu0 %v7803
      %8023 = vmatmul.mubr.f32.gmra.mrb[0].mxu0 %v7084
      %v8024 = vpop.f32.mrb[0].mxu0
      %v8025 = vadd.f32 %v7704, %v8024
      %v8026 = vpop.f32.mrb[0].mxu0
      %8027 = vmatprep.mubr.f32.mxu0 %v7806
      %8028 = vmatmul.mubr.f32.gmra.mrb[0].mxu0 %v7085
      %v8029 = vpop.f32.mrb[0].mxu0
      %v8030 = vadd.f32 %v7709, %v8029
      %v8031 = vpop.f32.mrb[0].mxu0
      %8032 = vdwg.mxu0
      %s8033 = scalar_lea.vmem [#allocation3], 64
      %v8034 = vld [vmem:[%s8033 + $0x7] sm:$0xff]
      %v8035 = vld [vmem:[%s8033 + $0xf] sm:$0xff]
      %v8036 = vld [vmem:[%s8033 + $0x27] sm:$0xff]
      %v8037 = vld [vmem:[%s8033 + $0x2f] sm:$0xff]
      %v8038 = vld [vmem:[%s8033 + $0x47] sm:$0xff]
      %v8039 = vld [vmem:[%s8033 + $0x4f] sm:$0xff]
      %v8040 = vld [vmem:[%s8033 + $0x67] sm:$0xff]
      %v8041 = vld [vmem:[%s8033 + $0x6f] sm:$0xff]
      %v8042 = vld [vmem:[%s8033 + $0x87] sm:$0xff]
      %v8043 = vld [vmem:[%s8033 + $0x8f] sm:$0xff]
      %v8044 = vld [vmem:[%s8033 + $0xa7] sm:$0xff]
      %v8045 = vld [vmem:[%s8033 + $0xaf] sm:$0xff]
      %v8046 = vld [vmem:[%s8033 + $0xc7] sm:$0xff]
      %v8047 = vld [vmem:[%s8033 + $0xcf] sm:$0xff]
      %v8048 = vld [vmem:[%s8033 + $0xe7] sm:$0xff]
      %v8049 = vld [vmem:[%s8033 + $0xef] sm:$0xff]
      %v8050 = vld [vmem:[%s8033 + $0x107] sm:$0xff]
      %v8051 = vld [vmem:[%s8033 + $0x10f] sm:$0xff]
      %v8052 = vld [vmem:[%s8033 + $0x127] sm:$0xff]
      %v8053 = vld [vmem:[%s8033 + $0x12f] sm:$0xff]
      %v8054 = vld [vmem:[%s8033 + $0x147] sm:$0xff]
      %v8055 = vld [vmem:[%s8033 + $0x14f] sm:$0xff]
      %v8056 = vld [vmem:[%s8033 + $0x167] sm:$0xff]
      %v8057 = vld [vmem:[%s8033 + $0x16f] sm:$0xff]
      %v8058 = vld [vmem:[%s8033 + $0x187] sm:$0xff]
      %v8059 = vld [vmem:[%s8033 + $0x18f] sm:$0xff]
      %v8060 = vld [vmem:[%s8033 + $0x1a7] sm:$0xff]
      %v8061 = vld [vmem:[%s8033 + $0x1af] sm:$0xff]
      %v8062 = vld [vmem:[%s8033 + $0x1c7] sm:$0xff]
      %v8063 = vld [vmem:[%s8033 + $0x1cf] sm:$0xff]
      %v8064 = vld [vmem:[%s8033 + $0x1e7] sm:$0xff]
      %v8065 = vld [vmem:[%s8033 + $0x1ef] sm:$0xff]
      %v8066 = vld [vmem:[%s8033 + $0x8] sm:$0xff]
      %v8067 = vld [vmem:[%s8033 + $0x10] sm:$0xff]
      %v8068 = vld [vmem:[%s8033 + $0x28] sm:$0xff]
      %v8069 = vld [vmem:[%s8033 + $0x30] sm:$0xff]
      %v8070 = vld [vmem:[%s8033 + $0x48] sm:$0xff]
      %v8071 = vld [vmem:[%s8033 + $0x50] sm:$0xff]
      %v8072 = vld [vmem:[%s8033 + $0x68] sm:$0xff]
      %v8073 = vld [vmem:[%s8033 + $0x70] sm:$0xff]
      %v8074 = vld [vmem:[%s8033 + $0x88] sm:$0xff]
      %v8075 = vld [vmem:[%s8033 + $0x90] sm:$0xff]
      %v8076 = vld [vmem:[%s8033 + $0xa8] sm:$0xff]
      %v8077 = vld [vmem:[%s8033 + $0xb0] sm:$0xff]
      %v8078 = vld [vmem:[%s8033 + $0xc8] sm:$0xff]
      %v8079 = vld [vmem:[%s8033 + $0xd0] sm:$0xff]
      %v8080 = vld [vmem:[%s8033 + $0xe8] sm:$0xff]
      %v8081 = vld [vmem:[%s8033 + $0xf0] sm:$0xff]
      %v8082 = vld [vmem:[%s8033 + $0x108] sm:$0xff]
      %v8083 = vld [vmem:[%s8033 + $0x110] sm:$0xff]
      %v8084 = vld [vmem:[%s8033 + $0x128] sm:$0xff]
      %v8085 = vld [vmem:[%s8033 + $0x130] sm:$0xff]
      %v8086 = vld [vmem:[%s8033 + $0x148] sm:$0xff]
      %v8087 = vld [vmem:[%s8033 + $0x150] sm:$0xff]
      %v8088 = vld [vmem:[%s8033 + $0x168] sm:$0xff]
      %v8089 = vld [vmem:[%s8033 + $0x170] sm:$0xff]
      %v8090 = vld [vmem:[%s8033 + $0x188] sm:$0xff]
      %v8091 = vld [vmem:[%s8033 + $0x190] sm:$0xff]
      %v8092 = vld [vmem:[%s8033 + $0x1a8] sm:$0xff]
      %v8093 = vld [vmem:[%s8033 + $0x1b0] sm:$0xff]
      %v8094 = vld [vmem:[%s8033 + $0x1c8] sm:$0xff]
      %v8095 = vld [vmem:[%s8033 + $0x1d0] sm:$0xff]
      %v8096 = vld [vmem:[%s8033 + $0x1e8] sm:$0xff]
      %v8097 = vld [vmem:[%s8033 + $0x1f0] sm:$0xff]
      %v8098 = vld [vmem:[%s8033 + $0x9] sm:$0xff]
      %v8099 = vld [vmem:[%s8033 + $0x11] sm:$0xff]
      %v8100 = vld [vmem:[%s8033 + $0x29] sm:$0xff]
      %v8101 = vld [vmem:[%s8033 + $0x31] sm:$0xff]
      %v8102 = vld [vmem:[%s8033 + $0x49] sm:$0xff]
      %v8103 = vld [vmem:[%s8033 + $0x51] sm:$0xff]
      %v8104 = vld [vmem:[%s8033 + $0x69] sm:$0xff]
      %v8105 = vld [vmem:[%s8033 + $0x71] sm:$0xff]
      %v8106 = vld [vmem:[%s8033 + $0x89] sm:$0xff]
      %v8107 = vld [vmem:[%s8033 + $0x91] sm:$0xff]
      %v8108 = vld [vmem:[%s8033 + $0xa9] sm:$0xff]
      %v8109 = vld [vmem:[%s8033 + $0xb1] sm:$0xff]
      %v8110 = vld [vmem:[%s8033 + $0xc9] sm:$0xff]
      %v8111 = vld [vmem:[%s8033 + $0xd1] sm:$0xff]
      %v8112 = vld [vmem:[%s8033 + $0xe9] sm:$0xff]
      %v8113 = vld [vmem:[%s8033 + $0xf1] sm:$0xff]
      %v8114 = vld [vmem:[%s8033 + $0x109] sm:$0xff]
      %v8115 = vld [vmem:[%s8033 + $0x111] sm:$0xff]
      %v8116 = vld [vmem:[%s8033 + $0x129] sm:$0xff]
      %v8117 = vld [vmem:[%s8033 + $0x131] sm:$0xff]
      %v8118 = vld [vmem:[%s8033 + $0x149] sm:$0xff]
      %v8119 = vld [vmem:[%s8033 + $0x151] sm:$0xff]
      %v8120 = vld [vmem:[%s8033 + $0x169] sm:$0xff]
      %v8121 = vld [vmem:[%s8033 + $0x171] sm:$0xff]
      %v8122 = vld [vmem:[%s8033 + $0x189] sm:$0xff]
      %v8123 = vld [vmem:[%s8033 + $0x191] sm:$0xff]
      %v8124 = vld [vmem:[%s8033 + $0x1a9] sm:$0xff]
      %v8125 = vld [vmem:[%s8033 + $0x1b1] sm:$0xff]
      %v8126 = vld [vmem:[%s8033 + $0x1c9] sm:$0xff]
      %v8127 = vld [vmem:[%s8033 + $0x1d1] sm:$0xff]
      %v8128 = vld [vmem:[%s8033 + $0x1e9] sm:$0xff]
      %v8129 = vld [vmem:[%s8033 + $0x1f1] sm:$0xff]
      %8162 = vrot.lane.b32.xlu0 %v8066, 64
      %v8163 = vpop.permute.xlu0 %8162
      %8164 = vrot.lane.b32.xlu0 %v8067, 64
      %v8165 = vpop.permute.xlu0 %8164
      %8166 = vrot.lane.b32.xlu0 %v8068, 64
      %v8167 = vpop.permute.xlu0 %8166
      %8168 = vrot.lane.b32.xlu0 %v8069, 64
      %v8169 = vpop.permute.xlu0 %8168
      %8170 = vrot.lane.b32.xlu0 %v8070, 64
      %v8171 = vpop.permute.xlu0 %8170
      %8172 = vrot.lane.b32.xlu0 %v8071, 64
      %v8173 = vpop.permute.xlu0 %8172
      %8174 = vrot.lane.b32.xlu0 %v8072, 64
      %v8175 = vpop.permute.xlu0 %8174
      %8176 = vrot.lane.b32.xlu0 %v8073, 64
      %v8177 = vpop.permute.xlu0 %8176
      %8178 = vrot.lane.b32.xlu0 %v8074, 64
      %v8179 = vpop.permute.xlu0 %8178
      %8180 = vrot.lane.b32.xlu0 %v8075, 64
      %v8181 = vpop.permute.xlu0 %8180
      %8182 = vrot.lane.b32.xlu0 %v8076, 64
      %v8183 = vpop.permute.xlu0 %8182
      %8184 = vrot.lane.b32.xlu0 %v8077, 64
      %v8185 = vpop.permute.xlu0 %8184
      %8186 = vrot.lane.b32.xlu0 %v8078, 64
      %v8187 = vpop.permute.xlu0 %8186
      %8188 = vrot.lane.b32.xlu0 %v8079, 64
      %v8189 = vpop.permute.xlu0 %8188
      %8190 = vrot.lane.b32.xlu0 %v8080, 64
      %v8191 = vpop.permute.xlu0 %8190
      %8192 = vrot.lane.b32.xlu0 %v8081, 64
      %v8193 = vpop.permute.xlu0 %8192
      %8194 = vrot.lane.b32.xlu0 %v8082, 64
      %v8195 = vpop.permute.xlu0 %8194
      %8196 = vrot.lane.b32.xlu0 %v8083, 64
      %v8197 = vpop.permute.xlu0 %8196
      %8198 = vrot.lane.b32.xlu0 %v8084, 64
      %v8199 = vpop.permute.xlu0 %8198
      %8200 = vrot.lane.b32.xlu0 %v8085, 64
      %v8201 = vpop.permute.xlu0 %8200
      %8202 = vrot.lane.b32.xlu0 %v8086, 64
      %v8203 = vpop.permute.xlu0 %8202
      %8204 = vrot.lane.b32.xlu0 %v8087, 64
      %v8205 = vpop.permute.xlu0 %8204
      %8206 = vrot.lane.b32.xlu0 %v8088, 64
      %v8207 = vpop.permute.xlu0 %8206
      %8208 = vrot.lane.b32.xlu0 %v8089, 64
      %v8209 = vpop.permute.xlu0 %8208
      %8210 = vrot.lane.b32.xlu0 %v8090, 64
      %v8211 = vpop.permute.xlu0 %8210
      %8212 = vrot.lane.b32.xlu0 %v8091, 64
      %v8213 = vpop.permute.xlu0 %8212
      %8214 = vrot.lane.b32.xlu0 %v8092, 64
      %v8215 = vpop.permute.xlu0 %8214
      %8216 = vrot.lane.b32.xlu0 %v8093, 64
      %v8217 = vpop.permute.xlu0 %8216
      %8218 = vrot.lane.b32.xlu0 %v8094, 64
      %v8219 = vpop.permute.xlu0 %8218
      %8220 = vrot.lane.b32.xlu0 %v8095, 64
      %v8221 = vpop.permute.xlu0 %8220
      %8222 = vrot.lane.b32.xlu0 %v8096, 64
      %v8223 = vpop.permute.xlu0 %8222
      %8224 = vrot.lane.b32.xlu0 %v8097, 64
      %v8225 = vpop.permute.xlu0 %8224
      %v8258 = vsel %vm352, %v8034, %v8163
      %v8259 = vsel %vm352, %v8035, %v8165
      %v8260 = vsel %vm352, %v8036, %v8167
      %v8261 = vsel %vm352, %v8037, %v8169
      %v8262 = vsel %vm352, %v8038, %v8171
      %v8263 = vsel %vm352, %v8039, %v8173
      %v8264 = vsel %vm352, %v8040, %v8175
      %v8265 = vsel %vm352, %v8041, %v8177
      %v8266 = vsel %vm352, %v8042, %v8179
      %v8267 = vsel %vm352, %v8043, %v8181
      %v8268 = vsel %vm352, %v8044, %v8183
      %v8269 = vsel %vm352, %v8045, %v8185
      %v8270 = vsel %vm352, %v8046, %v8187
      %v8271 = vsel %vm352, %v8047, %v8189
      %v8272 = vsel %vm352, %v8048, %v8191
      %v8273 = vsel %vm352, %v8049, %v8193
      %v8274 = vsel %vm352, %v8050, %v8195
      %v8275 = vsel %vm352, %v8051, %v8197
      %v8276 = vsel %vm352, %v8052, %v8199
      %v8277 = vsel %vm352, %v8053, %v8201
      %v8278 = vsel %vm352, %v8054, %v8203
      %v8279 = vsel %vm352, %v8055, %v8205
      %v8280 = vsel %vm352, %v8056, %v8207
      %v8281 = vsel %vm352, %v8057, %v8209
      %v8282 = vsel %vm352, %v8058, %v8211
      %v8283 = vsel %vm352, %v8059, %v8213
      %v8284 = vsel %vm352, %v8060, %v8215
      %v8285 = vsel %vm352, %v8061, %v8217
      %v8286 = vsel %vm352, %v8062, %v8219
      %v8287 = vsel %vm352, %v8063, %v8221
      %v8288 = vsel %vm352, %v8064, %v8223
      %v8289 = vsel %vm352, %v8065, %v8225
      %s8290 = scalar_lea.vmem %s5, 384
      %v8291 = vld [vmem:[%s8290] sm:$0xff]
      %v8292 = vld [vmem:[%s8290 + $0x8] sm:$0xff]
      %v8293 = vld [vmem:[%s8290 + $0x10] sm:$0xff]
      %v8294 = vld [vmem:[%s8290 + $0x18] sm:$0xff]
      %v8295 = vld [vmem:[%s8290 + $0x20] sm:$0xff]
      %v8296 = vld [vmem:[%s8290 + $0x28] sm:$0xff]
      %v8297 = vld [vmem:[%s8290 + $0x30] sm:$0xff]
      %v8298 = vld [vmem:[%s8290 + $0x38] sm:$0xff]
      %v8299 = vld [vmem:[%s8290 + $0x40] sm:$0xff]
      %v8300 = vld [vmem:[%s8290 + $0x48] sm:$0xff]
      %v8301 = vld [vmem:[%s8290 + $0x50] sm:$0xff]
      %v8302 = vld [vmem:[%s8290 + $0x58] sm:$0xff]
      %v8303 = vld [vmem:[%s8290 + $0x60] sm:$0xff]
      %v8304 = vld [vmem:[%s8290 + $0x68] sm:$0xff]
      %v8305 = vld [vmem:[%s8290 + $0x70] sm:$0xff]
      %v8306 = vld [vmem:[%s8290 + $0x78] sm:$0xff]
      %v8307 = vld [vmem:[%s8290 + $0x80] sm:$0xff]
      %v8308 = vld [vmem:[%s8290 + $0x88] sm:$0xff]
      %v8309 = vld [vmem:[%s8290 + $0x90] sm:$0xff]
      %v8310 = vld [vmem:[%s8290 + $0x98] sm:$0xff]
      %v8311 = vld [vmem:[%s8290 + $0xa0] sm:$0xff]
      %v8312 = vld [vmem:[%s8290 + $0xa8] sm:$0xff]
      %v8313 = vld [vmem:[%s8290 + $0xb0] sm:$0xff]
      %v8314 = vld [vmem:[%s8290 + $0xb8] sm:$0xff]
      %v8316 = vsel %vm352, %v8098, 0
      %v8319 = vsel %vm352, %v8099, 0
      %v8322 = vsel %vm352, %v8100, 0
      %v8325 = vsel %vm352, %v8101, 0
      %v8328 = vsel %vm352, %v8102, 0
      %v8331 = vsel %vm352, %v8103, 0
      %v8334 = vsel %vm352, %v8104, 0
      %v8337 = vsel %vm352, %v8105, 0
      %v8340 = vsel %vm352, %v8106, 0
      %v8343 = vsel %vm352, %v8107, 0
      %v8346 = vsel %vm352, %v8108, 0
      %v8349 = vsel %vm352, %v8109, 0
      %v8352 = vsel %vm352, %v8110, 0
      %v8355 = vsel %vm352, %v8111, 0
      %v8358 = vsel %vm352, %v8112, 0
      %v8361 = vsel %vm352, %v8113, 0
      %v8364 = vsel %vm352, %v8114, 0
      %v8367 = vsel %vm352, %v8115, 0
      %v8370 = vsel %vm352, %v8116, 0
      %v8373 = vsel %vm352, %v8117, 0
      %v8376 = vsel %vm352, %v8118, 0
      %v8379 = vsel %vm352, %v8119, 0
      %v8382 = vsel %vm352, %v8120, 0
      %v8385 = vsel %vm352, %v8121, 0
      %v8388 = vsel %vm352, %v8122, 0
      %v8391 = vsel %vm352, %v8123, 0
      %v8394 = vsel %vm352, %v8124, 0
      %v8397 = vsel %vm352, %v8125, 0
      %v8400 = vsel %vm352, %v8126, 0
      %v8403 = vsel %vm352, %v8127, 0
      %v8406 = vsel %vm352, %v8128, 0
      %v8409 = vsel %vm352, %v8129, 0
      %8411 = vmatprep.subr.mxu0 0.0
      %8412 = vmatpush1.msra.mxu0 %v8291
      %8413 = vmatprep.subr.mxu0 0.0
      %8414 = vmatpush1.msra.mxu0 %v8292
      %8415 = vmatprep.subr.mxu0 0.0
      %8416 = vmatpush1.msra.mxu0 %v8293
      %8417 = vmatprep.subr.mxu0 0.0
      %8418 = vmatpush1.msra.mxu0 %v8294
      %8419 = vmatprep.subr.mxu0 0.0
      %8420 = vmatpush1.msra.mxu0 %v8295
      %8421 = vmatprep.subr.mxu0 0.0
      %8422 = vmatpush1.msra.mxu0 %v8296
      %8423 = vmatprep.subr.mxu0 0.0
      %8424 = vmatpush1.msra.mxu0 %v8297
      %8425 = vmatprep.subr.mxu0 0.0
      %8426 = vmatpush1.msra.mxu0 %v8298
      %8427 = vmatprep.subr.mxu0 0.0
      %8428 = vmatpush1.msra.mxu0 %v8299
      %8429 = vmatprep.subr.mxu0 0.0
      %8430 = vmatpush1.msra.mxu0 %v8300
      %8431 = vmatprep.subr.mxu0 0.0
      %8432 = vmatpush1.msra.mxu0 %v8301
      %8433 = vmatprep.subr.mxu0 0.0
      %8434 = vmatpush1.msra.mxu0 %v8302
      %8435 = vmatprep.subr.mxu0 0.0
      %8436 = vmatpush1.msra.mxu0 %v8303
      %8437 = vmatprep.subr.mxu0 0.0
      %8438 = vmatpush1.msra.mxu0 %v8304
      %8439 = vmatprep.subr.mxu0 0.0
      %8440 = vmatpush1.msra.mxu0 %v8305
      %8441 = vmatprep.subr.mxu0 0.0
      %8442 = vmatpush1.msra.mxu0 %v8306
      %8443 = vmatprep.subr.mxu0 0.0
      %8444 = vmatpush1.msra.mxu0 %v8307
      %8445 = vmatprep.subr.mxu0 0.0
      %8446 = vmatpush1.msra.mxu0 %v8308
      %8447 = vmatprep.subr.mxu0 0.0
      %8448 = vmatpush1.msra.mxu0 %v8309
      %8449 = vmatprep.subr.mxu0 0.0
      %8450 = vmatpush1.msra.mxu0 %v8310
      %8451 = vmatprep.subr.mxu0 0.0
      %8452 = vmatpush1.msra.mxu0 %v8311
      %8453 = vmatprep.subr.mxu0 0.0
      %8454 = vmatpush1.msra.mxu0 %v8312
      %8455 = vmatprep.subr.mxu0 0.0
      %8456 = vmatpush1.msra.mxu0 %v8313
      %8457 = vmatprep.subr.mxu0 0.0
      %8458 = vmatpush1.msra.mxu0 %v8314
      %8459 = vmatprep.subr.mxu0 0.0
      %8460 = vmatpush1.msra.mxu0 0.0
      %8461 = vmatprep.subr.mxu0 0.0
      %8462 = vmatpush1.msra.mxu0 0.0
      %8463 = vmatprep.subr.mxu0 0.0
      %8464 = vmatpush1.msra.mxu0 0.0
      %8465 = vmatprep.subr.mxu0 0.0
      %8466 = vmatpush1.msra.mxu0 0.0
      %8467 = vmatprep.subr.mxu0 0.0
      %8468 = vmatpush1.msra.mxu0 0.0
      %8469 = vmatprep.subr.mxu0 0.0
      %8470 = vmatpush1.msra.mxu0 0.0
      %8471 = vmatprep.subr.mxu0 0.0
      %8472 = vmatpush1.msra.mxu0 0.0
      %8473 = vmatprep.subr.mxu0 0.0
      %8474 = vmatpush1.msra.mxu0 0.0
      %8475 = vmatprep.mubr.f32.mxu0 %v8316
      %8476 = vmatmul.mubr.f32.gmra.mrb[0].mxu0 %v8258
      %v8477 = vpop.f32.mrb[0].mxu0
      %v8478 = vadd.f32 0.0, %v8477
      %v8479 = vpop.f32.mrb[0].mxu0
      %8480 = vmatprep.mubr.f32.mxu0 %v8319
      %8481 = vmatmul.mubr.f32.gmra.mrb[0].mxu0 %v8259
      %v8482 = vpop.f32.mrb[0].mxu0
      %v8483 = vadd.f32 0.0, %v8482
      %v8484 = vpop.f32.mrb[0].mxu0
      %8485 = vmatprep.mubr.f32.mxu0 %v8322
      %8486 = vmatmul.mubr.f32.gmra.mrb[0].mxu0 %v8260
      %v8487 = vpop.f32.mrb[0].mxu0
      %v8488 = vadd.f32 0.0, %v8487
      %v8489 = vpop.f32.mrb[0].mxu0
      %8490 = vmatprep.mubr.f32.mxu0 %v8325
      %8491 = vmatmul.mubr.f32.gmra.mrb[0].mxu0 %v8261
      %v8492 = vpop.f32.mrb[0].mxu0
      %v8493 = vadd.f32 0.0, %v8492
      %v8494 = vpop.f32.mrb[0].mxu0
      %8495 = vmatprep.mubr.f32.mxu0 %v8328
      %8496 = vmatmul.mubr.f32.gmra.mrb[0].mxu0 %v8262
      %v8497 = vpop.f32.mrb[0].mxu0
      %v8498 = vadd.f32 0.0, %v8497
      %v8499 = vpop.f32.mrb[0].mxu0
      %8500 = vmatprep.mubr.f32.mxu0 %v8331
      %8501 = vmatmul.mubr.f32.gmra.mrb[0].mxu0 %v8263
      %v8502 = vpop.f32.mrb[0].mxu0
      %v8503 = vadd.f32 0.0, %v8502
      %v8504 = vpop.f32.mrb[0].mxu0
      %8505 = vmatprep.mubr.f32.mxu0 %v8334
      %8506 = vmatmul.mubr.f32.gmra.mrb[0].mxu0 %v8264
      %v8507 = vpop.f32.mrb[0].mxu0
      %v8508 = vadd.f32 0.0, %v8507
      %v8509 = vpop.f32.mrb[0].mxu0
      %8510 = vmatprep.mubr.f32.mxu0 %v8337
      %8511 = vmatmul.mubr.f32.gmra.mrb[0].mxu0 %v8265
      %v8512 = vpop.f32.mrb[0].mxu0
      %v8513 = vadd.f32 0.0, %v8512
      %v8514 = vpop.f32.mrb[0].mxu0
      %8515 = vmatprep.mubr.f32.mxu0 %v8340
      %8516 = vmatmul.mubr.f32.gmra.mrb[0].mxu0 %v8266
      %v8517 = vpop.f32.mrb[0].mxu0
      %v8518 = vadd.f32 0.0, %v8517
      %v8519 = vpop.f32.mrb[0].mxu0
      %8520 = vmatprep.mubr.f32.mxu0 %v8343
      %8521 = vmatmul.mubr.f32.gmra.mrb[0].mxu0 %v8267
      %v8522 = vpop.f32.mrb[0].mxu0
      %v8523 = vadd.f32 0.0, %v8522
      %v8524 = vpop.f32.mrb[0].mxu0
      %8525 = vmatprep.mubr.f32.mxu0 %v8346
      %8526 = vmatmul.mubr.f32.gmra.mrb[0].mxu0 %v8268
      %v8527 = vpop.f32.mrb[0].mxu0
      %v8528 = vadd.f32 0.0, %v8527
      %v8529 = vpop.f32.mrb[0].mxu0
      %8530 = vmatprep.mubr.f32.mxu0 %v8349
      %8531 = vmatmul.mubr.f32.gmra.mrb[0].mxu0 %v8269
      %v8532 = vpop.f32.mrb[0].mxu0
      %v8533 = vadd.f32 0.0, %v8532
      %v8534 = vpop.f32.mrb[0].mxu0
      %8535 = vmatprep.mubr.f32.mxu0 %v8352
      %8536 = vmatmul.mubr.f32.gmra.mrb[0].mxu0 %v8270
      %v8537 = vpop.f32.mrb[0].mxu0
      %v8538 = vadd.f32 0.0, %v8537
      %v8539 = vpop.f32.mrb[0].mxu0
      %8540 = vmatprep.mubr.f32.mxu0 %v8355
      %8541 = vmatmul.mubr.f32.gmra.mrb[0].mxu0 %v8271
      %v8542 = vpop.f32.mrb[0].mxu0
      %v8543 = vadd.f32 0.0, %v8542
      %v8544 = vpop.f32.mrb[0].mxu0
      %8545 = vmatprep.mubr.f32.mxu0 %v8358
      %8546 = vmatmul.mubr.f32.gmra.mrb[0].mxu0 %v8272
      %v8547 = vpop.f32.mrb[0].mxu0
      %v8548 = vadd.f32 0.0, %v8547
      %v8549 = vpop.f32.mrb[0].mxu0
      %8550 = vmatprep.mubr.f32.mxu0 %v8361
      %8551 = vmatmul.mubr.f32.gmra.mrb[0].mxu0 %v8273
      %v8552 = vpop.f32.mrb[0].mxu0
      %v8553 = vadd.f32 0.0, %v8552
      %v8554 = vpop.f32.mrb[0].mxu0
      %8555 = vmatprep.mubr.f32.mxu0 %v8364
      %8556 = vmatmul.mubr.f32.gmra.mrb[0].mxu0 %v8274
      %v8557 = vpop.f32.mrb[0].mxu0
      %v8558 = vadd.f32 0.0, %v8557
      %v8559 = vpop.f32.mrb[0].mxu0
      %8560 = vmatprep.mubr.f32.mxu0 %v8367
      %8561 = vmatmul.mubr.f32.gmra.mrb[0].mxu0 %v8275
      %v8562 = vpop.f32.mrb[0].mxu0
      %v8563 = vadd.f32 0.0, %v8562
      %v8564 = vpop.f32.mrb[0].mxu0
      %8565 = vmatprep.mubr.f32.mxu0 %v8370
      %8566 = vmatmul.mubr.f32.gmra.mrb[0].mxu0 %v8276
      %v8567 = vpop.f32.mrb[0].mxu0
      %v8568 = vadd.f32 0.0, %v8567
      %v8569 = vpop.f32.mrb[0].mxu0
      %8570 = vmatprep.mubr.f32.mxu0 %v8373
      %8571 = vmatmul.mubr.f32.gmra.mrb[0].mxu0 %v8277
      %v8572 = vpop.f32.mrb[0].mxu0
      %v8573 = vadd.f32 0.0, %v8572
      %v8574 = vpop.f32.mrb[0].mxu0
      %8575 = vmatprep.mubr.f32.mxu0 %v8376
      %8576 = vmatmul.mubr.f32.gmra.mrb[0].mxu0 %v8278
      %v8577 = vpop.f32.mrb[0].mxu0
      %v8578 = vadd.f32 0.0, %v8577
      %v8579 = vpop.f32.mrb[0].mxu0
      %8580 = vmatprep.mubr.f32.mxu0 %v8379
      %8581 = vmatmul.mubr.f32.gmra.mrb[0].mxu0 %v8279
      %v8582 = vpop.f32.mrb[0].mxu0
      %v8583 = vadd.f32 0.0, %v8582
      %v8584 = vpop.f32.mrb[0].mxu0
      %8585 = vmatprep.mubr.f32.mxu0 %v8382
      %8586 = vmatmul.mubr.f32.gmra.mrb[0].mxu0 %v8280
      %v8587 = vpop.f32.mrb[0].mxu0
      %v8588 = vadd.f32 0.0, %v8587
      %v8589 = vpop.f32.mrb[0].mxu0
      %8590 = vmatprep.mubr.f32.mxu0 %v8385
      %8591 = vmatmul.mubr.f32.gmra.mrb[0].mxu0 %v8281
      %v8592 = vpop.f32.mrb[0].mxu0
      %v8593 = vadd.f32 0.0, %v8592
      %v8594 = vpop.f32.mrb[0].mxu0
      %8595 = vmatprep.mubr.f32.mxu0 %v8388
      %8596 = vmatmul.mubr.f32.gmra.mrb[0].mxu0 %v8282
      %v8597 = vpop.f32.mrb[0].mxu0
      %v8598 = vadd.f32 0.0, %v8597
      %v8599 = vpop.f32.mrb[0].mxu0
      %8600 = vmatprep.mubr.f32.mxu0 %v8391
      %8601 = vmatmul.mubr.f32.gmra.mrb[0].mxu0 %v8283
      %v8602 = vpop.f32.mrb[0].mxu0
      %v8603 = vadd.f32 0.0, %v8602
      %v8604 = vpop.f32.mrb[0].mxu0
      %8605 = vmatprep.mubr.f32.mxu0 %v8394
      %8606 = vmatmul.mubr.f32.gmra.mrb[0].mxu0 %v8284
      %v8607 = vpop.f32.mrb[0].mxu0
      %v8608 = vadd.f32 0.0, %v8607
      %v8609 = vpop.f32.mrb[0].mxu0
      %8610 = vmatprep.mubr.f32.mxu0 %v8397
      %8611 = vmatmul.mubr.f32.gmra.mrb[0].mxu0 %v8285
      %v8612 = vpop.f32.mrb[0].mxu0
      %v8613 = vadd.f32 0.0, %v8612
      %v8614 = vpop.f32.mrb[0].mxu0
      %8615 = vmatprep.mubr.f32.mxu0 %v8400
      %8616 = vmatmul.mubr.f32.gmra.mrb[0].mxu0 %v8286
      %v8617 = vpop.f32.mrb[0].mxu0
      %v8618 = vadd.f32 0.0, %v8617
      %v8619 = vpop.f32.mrb[0].mxu0
      %8620 = vmatprep.mubr.f32.mxu0 %v8403
      %8621 = vmatmul.mubr.f32.gmra.mrb[0].mxu0 %v8287
      %v8622 = vpop.f32.mrb[0].mxu0
      %v8623 = vadd.f32 0.0, %v8622
      %v8624 = vpop.f32.mrb[0].mxu0
      %8625 = vmatprep.mubr.f32.mxu0 %v8406
      %8626 = vmatmul.mubr.f32.gmra.mrb[0].mxu0 %v8288
      %v8627 = vpop.f32.mrb[0].mxu0
      %v8628 = vadd.f32 0.0, %v8627
      %v8629 = vpop.f32.mrb[0].mxu0
      %8630 = vmatprep.mubr.f32.mxu0 %v8409
      %8631 = vmatmul.mubr.f32.gmra.mrb[0].mxu0 %v8289
      %v8632 = vpop.f32.mrb[0].mxu0
      %v8633 = vadd.f32 0.0, %v8632
      %v8634 = vpop.f32.mrb[0].mxu0
      %8635 = vdwg.mxu0
      %v8636 = vadd.f32 %v7875, %v8478
      %v8637 = vadd.f32 %v7880, %v8483
      %v8638 = vadd.f32 %v7885, %v8488
      %v8639 = vadd.f32 %v7890, %v8493
      %v8640 = vadd.f32 %v7895, %v8498
      %v8641 = vadd.f32 %v7900, %v8503
      %v8642 = vadd.f32 %v7905, %v8508
      %v8643 = vadd.f32 %v7910, %v8513
      %v8644 = vadd.f32 %v7915, %v8518
      %v8645 = vadd.f32 %v7920, %v8523
      %v8646 = vadd.f32 %v7925, %v8528
      %v8647 = vadd.f32 %v7930, %v8533
      %v8648 = vadd.f32 %v7935, %v8538
      %v8649 = vadd.f32 %v7940, %v8543
      %v8650 = vadd.f32 %v7945, %v8548
      %v8651 = vadd.f32 %v7950, %v8553
      %v8652 = vadd.f32 %v7955, %v8558
      %v8653 = vadd.f32 %v7960, %v8563
      %v8654 = vadd.f32 %v7965, %v8568
      %v8655 = vadd.f32 %v7970, %v8573
      %v8656 = vadd.f32 %v7975, %v8578
      %v8657 = vadd.f32 %v7980, %v8583
      %v8658 = vadd.f32 %v7985, %v8588
      %v8659 = vadd.f32 %v7990, %v8593
      %v8660 = vadd.f32 %v7995, %v8598
      %v8661 = vadd.f32 %v8000, %v8603
      %v8662 = vadd.f32 %v8005, %v8608
      %v8663 = vadd.f32 %v8010, %v8613
      %v8664 = vadd.f32 %v8015, %v8618
      %v8665 = vadd.f32 %v8020, %v8623
      %v8666 = vadd.f32 %v8025, %v8628
      %v8667 = vadd.f32 %v8030, %v8633
      %v8668 = vld [vmem:[%s6] sm:$0x1]
      %v8670 = vlaneseq
      %v8671 = vshrl.u32 %v8670, 7
      %v8672 = vsub.s32 0, %v8671
      %v8673 = vrot.slane %v8668, %v8672
      %v8675 = vadd.f32 %v8636, %v8673
      %v8676 = vadd.f32 %v8637, %v8673
      %v8677 = vadd.f32 %v8638, %v8673
      %v8678 = vadd.f32 %v8639, %v8673
      %v8679 = vadd.f32 %v8640, %v8673
      %v8680 = vadd.f32 %v8641, %v8673
      %v8681 = vadd.f32 %v8642, %v8673
      %v8682 = vadd.f32 %v8643, %v8673
      %v8683 = vadd.f32 %v8644, %v8673
      %v8684 = vadd.f32 %v8645, %v8673
      %v8685 = vadd.f32 %v8646, %v8673
      %v8686 = vadd.f32 %v8647, %v8673
      %v8687 = vadd.f32 %v8648, %v8673
      %v8688 = vadd.f32 %v8649, %v8673
      %v8689 = vadd.f32 %v8650, %v8673
      %v8690 = vadd.f32 %v8651, %v8673
      %v8691 = vadd.f32 %v8652, %v8673
      %v8692 = vadd.f32 %v8653, %v8673
      %v8693 = vadd.f32 %v8654, %v8673
      %v8694 = vadd.f32 %v8655, %v8673
      %v8695 = vadd.f32 %v8656, %v8673
      %v8696 = vadd.f32 %v8657, %v8673
      %v8697 = vadd.f32 %v8658, %v8673
      %v8698 = vadd.f32 %v8659, %v8673
      %v8699 = vadd.f32 %v8660, %v8673
      %v8700 = vadd.f32 %v8661, %v8673
      %v8701 = vadd.f32 %v8662, %v8673
      %v8702 = vadd.f32 %v8663, %v8673
      %v8703 = vadd.f32 %v8664, %v8673
      %v8704 = vadd.f32 %v8665, %v8673
      %v8705 = vadd.f32 %v8666, %v8673
      %v8706 = vadd.f32 %v8667, %v8673
      %v8707 = vld [vmem:[%s273] sm:$0xff]
      %v8708 = vld [vmem:[%s273 + $0x8] sm:$0xff]
      %v8709 = vld [vmem:[%s273 + $0x10] sm:$0xff]
      %v8710 = vld [vmem:[%s273 + $0x18] sm:$0xff]
      %v8711 = vld [vmem:[%s273 + $0x20] sm:$0xff]
      %v8712 = vld [vmem:[%s273 + $0x28] sm:$0xff]
      %v8713 = vld [vmem:[%s273 + $0x30] sm:$0xff]
      %v8714 = vld [vmem:[%s273 + $0x38] sm:$0xff]
      %v8715 = vld [vmem:[%s273 + $0x40] sm:$0xff]
      %v8716 = vld [vmem:[%s273 + $0x48] sm:$0xff]
      %v8717 = vld [vmem:[%s273 + $0x50] sm:$0xff]
      %v8718 = vld [vmem:[%s273 + $0x58] sm:$0xff]
      %v8719 = vld [vmem:[%s273 + $0x60] sm:$0xff]
      %v8720 = vld [vmem:[%s273 + $0x68] sm:$0xff]
      %v8721 = vld [vmem:[%s273 + $0x70] sm:$0xff]
      %v8722 = vld [vmem:[%s273 + $0x78] sm:$0xff]
      %v8723 = vld [vmem:[%s273 + $0x80] sm:$0xff]
      %v8724 = vld [vmem:[%s273 + $0x88] sm:$0xff]
      %v8725 = vld [vmem:[%s273 + $0x90] sm:$0xff]
      %v8726 = vld [vmem:[%s273 + $0x98] sm:$0xff]
      %v8727 = vld [vmem:[%s273 + $0xa0] sm:$0xff]
      %v8728 = vld [vmem:[%s273 + $0xa8] sm:$0xff]
      %v8729 = vld [vmem:[%s273 + $0xb0] sm:$0xff]
      %v8730 = vld [vmem:[%s273 + $0xb8] sm:$0xff]
      %v8731 = vld [vmem:[%s273 + $0xc0] sm:$0xff]
      %v8732 = vld [vmem:[%s273 + $0xc8] sm:$0xff]
      %v8733 = vld [vmem:[%s273 + $0xd0] sm:$0xff]
      %v8734 = vld [vmem:[%s273 + $0xd8] sm:$0xff]
      %v8735 = vld [vmem:[%s273 + $0xe0] sm:$0xff]
      %v8736 = vld [vmem:[%s273 + $0xe8] sm:$0xff]
      %v8737 = vld [vmem:[%s273 + $0xf0] sm:$0xff]
      %v8738 = vld [vmem:[%s273 + $0xf8] sm:$0xff]
      %v8739 = vadd.f32 %v8675, %v8707
      %v8740 = vadd.f32 %v8676, %v8708
      %v8741 = vadd.f32 %v8677, %v8709
      %v8742 = vadd.f32 %v8678, %v8710
      %v8743 = vadd.f32 %v8679, %v8711
      %v8744 = vadd.f32 %v8680, %v8712
      %v8745 = vadd.f32 %v8681, %v8713
      %v8746 = vadd.f32 %v8682, %v8714
      %v8747 = vadd.f32 %v8683, %v8715
      %v8748 = vadd.f32 %v8684, %v8716
      %v8749 = vadd.f32 %v8685, %v8717
      %v8750 = vadd.f32 %v8686, %v8718
      %v8751 = vadd.f32 %v8687, %v8719
      %v8752 = vadd.f32 %v8688, %v8720
      %v8753 = vadd.f32 %v8689, %v8721
      %v8754 = vadd.f32 %v8690, %v8722
      %v8755 = vadd.f32 %v8691, %v8723
      %v8756 = vadd.f32 %v8692, %v8724
      %v8757 = vadd.f32 %v8693, %v8725
      %v8758 = vadd.f32 %v8694, %v8726
      %v8759 = vadd.f32 %v8695, %v8727
      %v8760 = vadd.f32 %v8696, %v8728
      %v8761 = vadd.f32 %v8697, %v8729
      %v8762 = vadd.f32 %v8698, %v8730
      %v8763 = vadd.f32 %v8699, %v8731
      %v8764 = vadd.f32 %v8700, %v8732
      %v8765 = vadd.f32 %v8701, %v8733
      %v8766 = vadd.f32 %v8702, %v8734
      %v8767 = vadd.f32 %v8703, %v8735
      %v8768 = vadd.f32 %v8704, %v8736
      %v8769 = vadd.f32 %v8705, %v8737
      %v8770 = vadd.f32 %v8706, %v8738
      %8771 = vst.msk [vmem:[%s278] sm:$0xff] %vm279, %v8739
      %8772 = vst.msk [vmem:[%s278 + $0x8] sm:$0xff] %vm279, %v8740
      %8773 = vst.msk [vmem:[%s278 + $0x10] sm:$0xff] %vm279, %v8741
      %8774 = vst.msk [vmem:[%s278 + $0x18] sm:$0xff] %vm279, %v8742
      %8775 = vst.msk [vmem:[%s278 + $0x20] sm:$0xff] %vm279, %v8743
      %8776 = vst.msk [vmem:[%s278 + $0x28] sm:$0xff] %vm279, %v8744
      %8777 = vst.msk [vmem:[%s278 + $0x30] sm:$0xff] %vm279, %v8745
      %8778 = vst.msk [vmem:[%s278 + $0x38] sm:$0xff] %vm279, %v8746
      %8779 = vst.msk [vmem:[%s278 + $0x40] sm:$0xff] %vm279, %v8747
      %8780 = vst.msk [vmem:[%s278 + $0x48] sm:$0xff] %vm279, %v8748
      %8781 = vst.msk [vmem:[%s278 + $0x50] sm:$0xff] %vm279, %v8749
      %8782 = vst.msk [vmem:[%s278 + $0x58] sm:$0xff] %vm279, %v8750
      %8783 = vst.msk [vmem:[%s278 + $0x60] sm:$0xff] %vm279, %v8751
      %8784 = vst.msk [vmem:[%s278 + $0x68] sm:$0xff] %vm279, %v8752
      %8785 = vst.msk [vmem:[%s278 + $0x70] sm:$0xff] %vm279, %v8753
      %8786 = vst.msk [vmem:[%s278 + $0x78] sm:$0xff] %vm279, %v8754
      %8787 = vst.msk [vmem:[%s278 + $0x80] sm:$0xff] %vm279, %v8755
      %8788 = vst.msk [vmem:[%s278 + $0x88] sm:$0xff] %vm279, %v8756
      %8789 = vst.msk [vmem:[%s278 + $0x90] sm:$0xff] %vm279, %v8757
      %8790 = vst.msk [vmem:[%s278 + $0x98] sm:$0xff] %vm279, %v8758
      %8791 = vst.msk [vmem:[%s278 + $0xa0] sm:$0xff] %vm279, %v8759
      %8792 = vst.msk [vmem:[%s278 + $0xa8] sm:$0xff] %vm279, %v8760
      %8793 = vst.msk [vmem:[%s278 + $0xb0] sm:$0xff] %vm279, %v8761
      %8794 = vst.msk [vmem:[%s278 + $0xb8] sm:$0xff] %vm279, %v8762
      %8795 = vst.msk [vmem:[%s278 + $0xc0] sm:$0xff] %vm279, %v8763
      %8796 = vst.msk [vmem:[%s278 + $0xc8] sm:$0xff] %vm279, %v8764
      %8797 = vst.msk [vmem:[%s278 + $0xd0] sm:$0xff] %vm279, %v8765
      %8798 = vst.msk [vmem:[%s278 + $0xd8] sm:$0xff] %vm279, %v8766
      %8799 = vst.msk [vmem:[%s278 + $0xe0] sm:$0xff] %vm279, %v8767
      %8800 = vst.msk [vmem:[%s278 + $0xe8] sm:$0xff] %vm279, %v8768
      %8801 = vst.msk [vmem:[%s278 + $0xf0] sm:$0xff] %vm279, %v8769
      %8802 = vst.msk [vmem:[%s278 + $0xf8] sm:$0xff] %vm279, %v8770
      %p8803 = scmp.lt.s32.totalorder %s18, 1
      %s8804 = scalar_select %p8803, %s18, 1
      %s8805 = smul.addr %s8804, 32
      %s8806 = smul.addr %s8805, 8
      %s8807 = scalar_lea.vmem %s7, %s8806
      // Predicated region
      $region56: #{tpu_custom_call.1} parent=47 // pred_check
        %p8808 = pneg %p188
      $region57: #{tpu_custom_call.1} parent=47 // pred_check_branch
        %8810 = sbr.rel (%p8808) target = $region59
      $region58: #{tpu_custom_call.1} parent=47 // pred_region
        _
      $region59: #{tpu_custom_call.1} parent=47 // pred_fallthru
        _
    $region48: #{tpu_custom_call.1} parent=5 // pred_fallthru
      _
    %p8811 = scmp.le.s32.totalorder 2, %s13
    // Predicated region
    $region60: #{tpu_custom_call.1} parent=5 // pred_check
      %p8812 = pneg %p8811
    $region61: #{tpu_custom_call.1} parent=5 // pred_check_branch
      %8814 = sbr.rel (%p8812) target = $region63
    $region62: #{tpu_custom_call.1} parent=5 // pred_region
      %s8815 = ssub.s32 %s13, 2
      // Predicated region
      $region64: #{tpu_custom_call.1} parent=62 // pred_check
        %p8816 = pneg %p194
      $region65: #{tpu_custom_call.1} parent=62 // pred_check_branch
        %8818 = sbr.rel (%p8816) target = $region67
      $region66: #{tpu_custom_call.1} parent=62 // pred_region
        %p8819 = scmp.lt.s32.totalorder %s19, 1
        %s8820 = scalar_select %p8819, %s19, 1
        %s8821 = smul.addr %s8820, 32
        %s8822 = smul.addr %s8821, 8
        %s8823 = scalar_lea.vmem %s7, %s8822
      $region67: #{tpu_custom_call.1} parent=62 // pred_fallthru
        _
    $region63: #{tpu_custom_call.1} parent=5 // pred_fallthru
      _
  $region6: #{tpu_custom_call.1} parent=0 // loop_footer
    %s17 = sadd.s32 1, %s13
  $region7: #{tpu_custom_call.1} parent=0 // loop_footer_branch
    %12 = sbr.rel target = $region3
  $region8: #{tpu_custom_call.1} parent=0 // loop_exit
    _

</llo_original>
